<compile_context>
chip_gen: v6e
topology: v6e:2x2x1
jax: 0.10.0
libtpu: 0.0.40
codegen_flags: <defaults>
</compile_context>

<pallas_src>
import functools
import math

import jax
import jax.numpy as jnp
import numpy as np
from jax.experimental import pallas as pl
from jax.experimental.pallas import tpu as pltpu

_LN_EPS = 1e-5
_BN_EPS = 1e-5


# ----------------------------- in-kernel helpers -----------------------------

def _erf(x):
    # f32 rational approximation of erf (what XLA's exact GELU uses in f32).
    x = jnp.clip(x, -4.0, 4.0)
    x2 = x * x
    p = jnp.float32(-2.72614225801306e-10)
    p = p * x2 + jnp.float32(2.77068142495902e-08)
    p = p * x2 + jnp.float32(-2.10102402082508e-06)
    p = p * x2 + jnp.float32(-5.69250639462346e-05)
    p = p * x2 + jnp.float32(-7.34990630326855e-04)
    p = p * x2 + jnp.float32(-2.95459980854025e-03)
    p = p * x2 + jnp.float32(-1.60960333262415e-02)
    p = p * x
    q = jnp.float32(-1.45660718464996e-05)
    q = q * x2 + jnp.float32(-2.13374055278905e-04)
    q = q * x2 + jnp.float32(-1.68282697438203e-03)
    q = q * x2 + jnp.float32(-7.37332916720468e-03)
    q = q * x2 + jnp.float32(-1.42647390514189e-02)
    return p * pl.reciprocal(q, approx=True)                # EUP, off the VALU


def _gelu_exact(x):
    # nn.GELU() default (erf form)
    return 0.5 * x * (1.0 + _erf(x * jnp.float32(1.0 / math.sqrt(2.0))))


def _layernorm(x, g, b):
    mu = jnp.mean(x, axis=-1, keepdims=True)
    var = jnp.mean(jnp.square(x - mu), axis=-1, keepdims=True)  # biased, as torch
    return (x - mu) * jax.lax.rsqrt(var + _LN_EPS) * g + b


# ------------------------------- fused kernel --------------------------------

def _fused_decoder_kernel(*refs, depth, heads, head_dim, vit_hw, n_conv):
    it = iter(refs)
    x_ref = next(it)
    pos_ref = next(it)
    ln1_g_ref = next(it); ln1_b_ref = next(it)
    wqkv_ref = next(it); wout_ref = next(it)
    ln2_g_ref = next(it); ln2_b_ref = next(it)
    w1_ref = next(it); b1_ref = next(it)
    w2_ref = next(it); b2_ref = next(it)
    norm_g_ref = next(it); norm_b_ref = next(it)
    conv_refs = [tuple(next(it) for _ in range(5)) for _ in range(n_conv)]
    head_w_ref = next(it); head_b_ref = next(it)
    o_ref = next(it)

    Bb, N, C = x_ref.shape
    inner = heads * head_dim
    att_scale = 1.0 / math.sqrt(head_dim)

    # ---- PositionalEmbedding + Transformer (batch folded into M) ----
    x = x_ref[...].astype(jnp.float32) + pos_ref[...]        # (Bb, N, C)
    xf = x.reshape(Bb * N, C)

    for d in range(depth):
        # Attention (pre-LN; to_qkv / to_out are bias-free)
        h = _layernorm(xf, ln1_g_ref[d], ln1_b_ref[d])
        qkv = jnp.dot(h, wqkv_ref[d], preferred_element_type=jnp.float32)
        qkv3 = qkv.reshape(Bb, N, 3 * inner)
        w_out = wout_ref[d]                                   # (inner, C)
        attn_proj = jnp.zeros((Bb * N, C), jnp.float32)
        for hh in range(heads):
            lo = hh * head_dim
            q = qkv3[:, :, lo:lo + head_dim]
            k = qkv3[:, :, inner + lo:inner + lo + head_dim]
            v = qkv3[:, :, 2 * inner + lo:2 * inner + lo + head_dim]
            dots = jnp.einsum('bnd,bmd->bnm', q, k,
                              preferred_element_type=jnp.float32) * att_scale
            dots = dots - jnp.max(dots, axis=-1, keepdims=True)
            e = jnp.exp(dots)
            p = e * pl.reciprocal(jnp.sum(e, axis=-1, keepdims=True), approx=True)
            oh = jnp.einsum('bnm,bmd->bnd', p, v,
                            preferred_element_type=jnp.float32)
            attn_proj = attn_proj + jnp.dot(oh.reshape(Bb * N, head_dim),
                                            w_out[lo:lo + head_dim, :],
                                            preferred_element_type=jnp.float32)
        xf = xf + attn_proj

        # FeedForward (pre-LN; Linear -> GELU -> Linear, with biases)
        h = _layernorm(xf, ln2_g_ref[d], ln2_b_ref[d])
        h = jnp.dot(h, w1_ref[d], preferred_element_type=jnp.float32) + b1_ref[d]
        h = _gelu_exact(h)
        h = jnp.dot(h, w2_ref[d], preferred_element_type=jnp.float32) + b2_ref[d]
        xf = xf + h

    xf = _layernorm(xf, norm_g_ref[...], norm_b_ref[...])

    # ---- stem: (nearest 2x upsample + 3x3 conv + BN + GELU) x n_conv ----
    img = xf                                  # (Bb*Hc*Wc, Cc) channels-last, flat
    Hc, Cc = vit_hw, C
    for s in range(n_conv):
        p_ref, w_ref, b_ref, scale_ref, shift_ref = conv_refs[s]
        Cin, Cout = Cc, w_ref.shape[1]
        Hu = 2 * Hc
        Wu = Hu
        # fused upsample + zero-pad: each row of p selects one source pixel
        pad_flat = jnp.dot(p_ref[...], img, preferred_element_type=jnp.float32)
        padded = pad_flat.reshape(Bb, Hu + 2, Wu + 2, Cin)
        taps = []
        for dy in range(3):
            for dx in range(3):
                taps.append(padded[:, dy:dy + Hu, dx:dx + Wu, :]
                            .reshape(Bb * Hu * Wu, Cin))
        patches = jnp.concatenate(taps, axis=-1)              # (Bb*Hu*Wu, 9*Cin)
        y = jnp.dot(patches, w_ref[...], preferred_element_type=jnp.float32)
        y = y + b_ref[...]                                    # Conv2d bias
        y = y * scale_ref[...] + shift_ref[...]               # BatchNorm2d (inference)
        img = _gelu_exact(y)                                  # (Bb*Hu*Wu, Cout)
        Hc, Cc = Hu, Cout

    # ---- head: 1x1 conv + tanh ----
    y = jnp.dot(img, head_w_ref[...], preferred_element_type=jnp.float32)
    y = jnp.tanh(y + head_b_ref[...])
    o_ref[...] = y.reshape(Bb, Hc * Hc, -1).astype(o_ref.dtype)


# ------------------------------ host-side glue --------------------------------

def posemb_sincos_2d(h, w, dim, temperature=10000.0):
    assert dim % 4 == 0
    y, x = jnp.meshgrid(jnp.arange(h), jnp.arange(w), indexing="ij")
    omega = jnp.arange(dim // 4, dtype=jnp.float32) / (dim // 4 - 1)
    omega = 1.0 / (temperature ** omega)
    y = y.reshape(-1)[:, None].astype(jnp.float32) * omega[None, :]
    x = x.reshape(-1)[:, None].astype(jnp.float32) * omega[None, :]
    return jnp.concatenate((jnp.sin(x), jnp.cos(x), jnp.sin(y), jnp.cos(y)),
                           axis=1).astype(jnp.float32)        # (h*w, dim)


def _upsample_pad_matrix(Bb, Hin, Win):
    """0/1 matrix P with P @ flat(src) == flat(zero_pad(nearest_up2x(src))).

    src is channels-last flattened over (b, h, w); the result is flattened over
    (b, y, x) of the (2H+2, 2W+2) padded, 2x-upsampled image.  Each nonzero row
    has exactly one 1, so the matmul just selects source pixels.
    """
    Hu, Wu = 2 * Hin, 2 * Win
    rows_per_b = (Hu + 2) * (Wu + 2)
    cols_per_b = Hin * Win
    m = np.zeros((Bb * rows_per_b, Bb * cols_per_b), dtype=np.float32)
    for b in range(Bb):
        for yy in range(1, Hu + 1):
            for xx in range(1, Wu + 1):
                r = b * rows_per_b + yy * (Wu + 2) + xx
                s = b * cols_per_b + ((yy - 1) // 2) * Win + (xx - 1) // 2
                m[r, s] = 1.0
    return jnp.asarray(m)


# ------------------------------ params / forward ------------------------------

def init_decoder_params(key, cfg):
    codebook_dim = cfg["codebook_dim"]
    input_size = cfg["input_size"]
    input_channels = cfg["input_channels"]
    upsize_channels = cfg["upsize_channels"]
    vit_in_size = cfg["vit_in_size"]
    depth = cfg["vit_depth"]
    heads = cfg["vit_heads"]
    head_dim = cfg["vit_head_dim"]
    mlp_dim = cfg["vit_mlp_dim"]
    assert input_size >= vit_in_size and depth >= 1

    stem_dims, HW, C = [], input_size, input_channels
    while HW > vit_in_size:
        out_channels = 2 * C if C != input_channels else upsize_channels
        stem_dims.append((out_channels, C))
        HW, C = HW // 2, out_channels
    assert HW == vit_in_size and C == codebook_dim

    keys = iter(jax.random.split(key, 128))

    def nrm(shape, scl):
        return (scl * jax.random.normal(next(keys), shape)).astype(jnp.float32)

    D = codebook_dim
    inner = heads * head_dim
    layers = []
    for _ in range(depth):
        layers.append(dict(
            ln1_g=(1.0 + 0.1 * jax.random.normal(next(keys), (1, D))).astype(jnp.float32),
            ln1_b=nrm((1, D), 0.1),
            w_qkv=nrm((D, 3 * inner), D ** -0.5),
            w_out=nrm((inner, D), inner ** -0.5),
            ln2_g=(1.0 + 0.1 * jax.random.normal(next(keys), (1, D))).astype(jnp.float32),
            ln2_b=nrm((1, D), 0.1),
            w1=nrm((D, mlp_dim), D ** -0.5),
            b1=nrm((1, mlp_dim), 0.1),
            w2=nrm((mlp_dim, D), mlp_dim ** -0.5),
            b2=nrm((1, D), 0.1),
        ))
    transformer = dict(
        layers=layers,
        norm_g=(1.0 + 0.1 * jax.random.normal(next(keys), (1, D))).astype(jnp.float32),
        norm_b=nrm((1, D), 0.1),
    )

    rev = stem_dims[::-1]
    conv_specs = list(rev[:-1])               # (cin, cout) for the 3x3 convs
    last_in, last_out = rev[-1]
    conv_specs.append((last_in, last_in))     # last 3x3 conv keeps channels

    # BatchNorm2d is evaluated in inference mode (running stats folded to affine).
    # TODO(synk): training-mode batch statistics are not modeled here.
    stem = []
    for (cin, cout) in conv_specs:
        # Conv weight stored in im2col layout (9*cin, cout):
        #   row (dy*3+dx)*cin + ci  <->  torch weight[cout, ci, dy, dx]
        # TODO(synk): loading real torch weights requires that transpose/reshape.
        w = nrm((9 * cin, cout), (9 * cin) ** -0.5)
        b = nrm((1, cout), 0.1)
        gamma = (1.0 + 0.1 * jax.random.normal(next(keys), (1, cout))).astype(jnp.float32)
        beta = nrm((1, cout), 0.1)
        rmean = nrm((1, cout), 0.1)
        rvar = (0.5 + jax.random.uniform(next(keys), (1, cout))).astype(jnp.float32)
        bscale = gamma * jax.lax.rsqrt(rvar + _BN_EPS)
        bshift = beta - rmean * bscale
        stem.append(dict(w=w, b=b,
                         scale=bscale.astype(jnp.float32),
                         shift=bshift.astype(jnp.float32)))

    head = dict(w=nrm((last_in, last_out), last_in ** -0.5),
                b=nrm((1, last_out), 0.1))
    return dict(transformer=transformer, stem=stem, head=head)


def stride_conv_vit_decoder_forward(x, params, cfg):
    """x: (B, vit_in_size**2, codebook_dim) -> (B, input_channels, H, W)."""
    B, N, C = x.shape
    hw = cfg["vit_in_size"]
    assert N == hw * hw
    depth = cfg["vit_depth"]
    heads = cfg["vit_heads"]
    head_dim = cfg["vit_head_dim"]

    # Two "parallel" grid steps when possible (v7x megacore); the per-step
    # batch Bb is folded into the M dimension of every matmul in the kernel.
    G = 2 if (B >= 2 and B % 2 == 0) else 1
    Bb = B // G

    posemb = posemb_sincos_2d(hw, hw, C)                      # (N, C)

    layers = params["transformer"]["layers"]

    def stk(name):
        return jnp.stack([l[name] for l in layers], axis=0)

    t_args = [stk("ln1_g"), stk("ln1_b"), stk("w_qkv"), stk("w_out"),
              stk("ln2_g"), stk("ln2_b"), stk("w1"), stk("b1"),
              stk("w2"), stk("b2")]

    conv_args = []
    Hc, Cc = hw, C
    for st in params["stem"]:
        cin, cout = Cc, st["w"].shape[1]
        assert st["w"].shape[0] == 9 * cin
        conv_args += [_upsample_pad_matrix(Bb, Hc, Hc),
                      st["w"], st["b"], st["scale"], st["shift"]]
        Hc, Cc = 2 * Hc, cout
    n_conv = len(params["stem"])

    head_w, head_b = params["head"]["w"], params["head"]["b"]
    c_out = head_w.shape[1]
    HW_out = Hc * Hc

    inputs = ([x.astype(jnp.float32), posemb] + t_args
              + [params["transformer"]["norm_g"], params["transformer"]["norm_b"]]
              + conv_args + [head_w, head_b])

    in_specs = [pl.BlockSpec((Bb, N, C), lambda g: (g, 0, 0))]
    for a in inputs[1:]:
        in_specs.append(pl.BlockSpec(a.shape, lambda g, _nd=a.ndim: (0,) * _nd))

    kernel = functools.partial(_fused_decoder_kernel, depth=depth, heads=heads,
                               head_dim=head_dim, vit_hw=hw, n_conv=n_conv)

    out = pl.pallas_call(
        kernel,
        grid=(G,),
        in_specs=in_specs,
        out_specs=pl.BlockSpec((Bb, HW_out, c_out), lambda g: (g, 0, 0)),
        out_shape=jax.ShapeDtypeStruct((B, HW_out, c_out), jnp.float32),
        compiler_params=pltpu.CompilerParams(dimension_semantics=("parallel",)),
    )(*inputs)

    # '(h w) c' -> 'c h w'  (tiny XLA permute; kernel keeps lane-dense matmuls)
    return jnp.transpose(out, (0, 2, 1)).reshape(B, c_out, Hc, Hc)


# ----------------------------------- main -------------------------------------

if __name__ == "__main__":
    cfg = dict(
        codebook_dim=16,
        input_size=16,
        input_channels=3,
        upsize_channels=8,
        vit_in_size=4,
        vit_depth=1,
        vit_heads=2,
        vit_head_dim=8,
        vit_mlp_dim=32,
    )
    key = jax.random.PRNGKey(0)
    k_params, k_x = jax.random.split(key)
    params = init_decoder_params(k_params, cfg)

    B = 2
    N = cfg["vit_in_size"] ** 2
    x = jax.random.normal(k_x, (B, N, cfg["codebook_dim"]), dtype=jnp.float32)

    out = stride_conv_vit_decoder_forward(x, params, cfg)
    out = jax.block_until_ready(out)
    assert out.shape == (B, cfg["input_channels"], cfg["input_size"], cfg["input_size"])
    assert bool(jnp.all(jnp.isfinite(out)))
    print("KERNEL_OK")
</pallas_src>

<mosaic_0001>
module attributes {stable_mosaic.version = 11 : i64} {
  func.func @_fused_decoder_kernel(%arg0: i32, %arg1: memref<1x16x16xf32, #tpu.memory_space<vmem>>, %arg2: memref<16x16xf32, #tpu.memory_space<vmem>>, %arg3: memref<1x1x16xf32, #tpu.memory_space<vmem>>, %arg4: memref<1x1x16xf32, #tpu.memory_space<vmem>>, %arg5: memref<1x16x48xf32, #tpu.memory_space<vmem>>, %arg6: memref<1x16x16xf32, #tpu.memory_space<vmem>>, %arg7: memref<1x1x16xf32, #tpu.memory_space<vmem>>, %arg8: memref<1x1x16xf32, #tpu.memory_space<vmem>>, %arg9: memref<1x16x32xf32, #tpu.memory_space<vmem>>, %arg10: memref<1x1x32xf32, #tpu.memory_space<vmem>>, %arg11: memref<1x32x16xf32, #tpu.memory_space<vmem>>, %arg12: memref<1x1x16xf32, #tpu.memory_space<vmem>>, %arg13: memref<1x16xf32, #tpu.memory_space<vmem>>, %arg14: memref<1x16xf32, #tpu.memory_space<vmem>>, %arg15: memref<100x16xf32, #tpu.memory_space<vmem>>, %arg16: memref<144x8xf32, #tpu.memory_space<vmem>>, %arg17: memref<1x8xf32, #tpu.memory_space<vmem>>, %arg18: memref<1x8xf32, #tpu.memory_space<vmem>>, %arg19: memref<1x8xf32, #tpu.memory_space<vmem>>, %arg20: memref<324x64xf32, #tpu.memory_space<vmem>>, %arg21: memref<72x8xf32, #tpu.memory_space<vmem>>, %arg22: memref<1x8xf32, #tpu.memory_space<vmem>>, %arg23: memref<1x8xf32, #tpu.memory_space<vmem>>, %arg24: memref<1x8xf32, #tpu.memory_space<vmem>>, %arg25: memref<8x3xf32, #tpu.memory_space<vmem>>, %arg26: memref<1x3xf32, #tpu.memory_space<vmem>>, %arg27: memref<1x256x3xf32, #tpu.memory_space<vmem>>) attributes {dimension_semantics = [#tpu.dimension_semantics<parallel>], iteration_bounds = array<i64: 2>, scalar_prefetch = 0 : i64, scratch_operands = 0 : i64, tpu.core_type = #tpu.core_type<tc>, window_params = [{transform_indices = @transform_0, window_bounds = array<i64: 1, 16, 16>}, {pipeline_mode = #tpu.pipeline_mode<synchronous>, transform_indices = @transform_1, window_bounds = array<i64: 16, 16>}, {pipeline_mode = #tpu.pipeline_mode<synchronous>, transform_indices = @transform_2, window_bounds = array<i64: 1, 1, 16>}, {pipeline_mode = #tpu.pipeline_mode<synchronous>, transform_indices = @transform_3, window_bounds = array<i64: 1, 1, 16>}, {pipeline_mode = #tpu.pipeline_mode<synchronous>, transform_indices = @transform_4, window_bounds = array<i64: 1, 16, 48>}, {pipeline_mode = #tpu.pipeline_mode<synchronous>, transform_indices = @transform_5, window_bounds = array<i64: 1, 16, 16>}, {pipeline_mode = #tpu.pipeline_mode<synchronous>, transform_indices = @transform_6, window_bounds = array<i64: 1, 1, 16>}, {pipeline_mode = #tpu.pipeline_mode<synchronous>, transform_indices = @transform_7, window_bounds = array<i64: 1, 1, 16>}, {pipeline_mode = #tpu.pipeline_mode<synchronous>, transform_indices = @transform_8, window_bounds = array<i64: 1, 16, 32>}, {pipeline_mode = #tpu.pipeline_mode<synchronous>, transform_indices = @transform_9, window_bounds = array<i64: 1, 1, 32>}, {pipeline_mode = #tpu.pipeline_mode<synchronous>, transform_indices = @transform_10, window_bounds = array<i64: 1, 32, 16>}, {pipeline_mode = #tpu.pipeline_mode<synchronous>, transform_indices = @transform_11, window_bounds = array<i64: 1, 1, 16>}, {pipeline_mode = #tpu.pipeline_mode<synchronous>, transform_indices = @transform_12, window_bounds = array<i64: 1, 16>}, {pipeline_mode = #tpu.pipeline_mode<synchronous>, transform_indices = @transform_13, window_bounds = array<i64: 1, 16>}, {pipeline_mode = #tpu.pipeline_mode<synchronous>, transform_indices = @transform_14, window_bounds = array<i64: 100, 16>}, {pipeline_mode = #tpu.pipeline_mode<synchronous>, transform_indices = @transform_15, window_bounds = array<i64: 144, 8>}, {pipeline_mode = #tpu.pipeline_mode<synchronous>, transform_indices = @transform_16, window_bounds = array<i64: 1, 8>}, {pipeline_mode = #tpu.pipeline_mode<synchronous>, transform_indices = @transform_17, window_bounds = array<i64: 1, 8>}, {pipeline_mode = #tpu.pipeline_mode<synchronous>, transform_indices = @transform_18, window_bounds = array<i64: 1, 8>}, {pipeline_mode = #tpu.pipeline_mode<synchronous>, transform_indices = @transform_19, window_bounds = array<i64: 324, 64>}, {pipeline_mode = #tpu.pipeline_mode<synchronous>, transform_indices = @transform_20, window_bounds = array<i64: 72, 8>}, {pipeline_mode = #tpu.pipeline_mode<synchronous>, transform_indices = @transform_21, window_bounds = array<i64: 1, 8>}, {pipeline_mode = #tpu.pipeline_mode<synchronous>, transform_indices = @transform_22, window_bounds = array<i64: 1, 8>}, {pipeline_mode = #tpu.pipeline_mode<synchronous>, transform_indices = @transform_23, window_bounds = array<i64: 1, 8>}, {pipeline_mode = #tpu.pipeline_mode<synchronous>, transform_indices = @transform_24, window_bounds = array<i64: 8, 3>}, {pipeline_mode = #tpu.pipeline_mode<synchronous>, transform_indices = @transform_25, window_bounds = array<i64: 1, 3>}, {transform_indices = @transform_26, window_bounds = array<i64: 1, 256, 3>}]} {
    %c0 = arith.constant 0 : index
    %c0_0 = arith.constant 0 : index
    %c0_1 = arith.constant 0 : index
    %0 = vector.load %arg1[%c0, %c0_0, %c0_1] : memref<1x16x16xf32, #tpu.memory_space<vmem>>, vector<1x16x16xf32>
    %c0_2 = arith.constant 0 : index
    %c0_3 = arith.constant 0 : index
    %1 = vector.load %arg2[%c0_2, %c0_3] : memref<16x16xf32, #tpu.memory_space<vmem>>, vector<16x16xf32>
    %2 = vector.shape_cast %1 : vector<16x16xf32> to vector<1x16x16xf32>
    %3 = arith.addf %0, %2 : vector<1x16x16xf32>
    %4 = vector.shape_cast %3 : vector<1x16x16xf32> to vector<16x16xf32>
    %c0_4 = arith.constant 0 : index
    %c0_5 = arith.constant 0 : index
    %c0_6 = arith.constant 0 : index
    %5 = vector.load %arg3[%c0_4, %c0_5, %c0_6] : memref<1x1x16xf32, #tpu.memory_space<vmem>>, vector<1x1x16xf32>
    %6 = vector.shape_cast %5 : vector<1x1x16xf32> to vector<1x16xf32>
    %c0_7 = arith.constant 0 : index
    %c0_8 = arith.constant 0 : index
    %c0_9 = arith.constant 0 : index
    %7 = vector.load %arg4[%c0_7, %c0_8, %c0_9] : memref<1x1x16xf32, #tpu.memory_space<vmem>>, vector<1x1x16xf32>
    %8 = vector.shape_cast %7 : vector<1x1x16xf32> to vector<1x16xf32>
    %cst = arith.constant dense<0.000000e+00> : vector<16xf32>
    %9 = vector.multi_reduction <add>, %4, %cst [1] : vector<16x16xf32> to vector<16xf32>
    %10 = vector.shape_cast %9 : vector<16xf32> to vector<16x1xf32>
    %cst_10 = arith.constant 1.600000e+01 : f32
    %11 = vector.broadcast %cst_10 : f32 to vector<16x1xf32>
    %12 = arith.divf %10, %11 : vector<16x1xf32>
    %13 = vector.broadcast %12 : vector<16x1xf32> to vector<16x16xf32>
    %14 = arith.subf %4, %13 : vector<16x16xf32>
    %15 = arith.mulf %14, %14 : vector<16x16xf32>
    %cst_11 = arith.constant dense<0.000000e+00> : vector<16xf32>
    %16 = vector.multi_reduction <add>, %15, %cst_11 [1] : vector<16x16xf32> to vector<16xf32>
    %17 = vector.shape_cast %16 : vector<16xf32> to vector<16x1xf32>
    %cst_12 = arith.constant 1.600000e+01 : f32
    %18 = vector.broadcast %cst_12 : f32 to vector<16x1xf32>
    %19 = arith.divf %17, %18 : vector<16x1xf32>
    %20 = vector.broadcast %12 : vector<16x1xf32> to vector<16x16xf32>
    %21 = arith.subf %4, %20 : vector<16x16xf32>
    %cst_13 = arith.constant 9.99999974E-6 : f32
    %22 = vector.broadcast %cst_13 : f32 to vector<16x1xf32>
    %23 = arith.addf %19, %22 : vector<16x1xf32>
    %24 = math.rsqrt %23 : vector<16x1xf32>
    %25 = vector.broadcast %24 : vector<16x1xf32> to vector<16x16xf32>
    %26 = arith.mulf %21, %25 : vector<16x16xf32>
    %27 = vector.broadcast %6 : vector<1x16xf32> to vector<16x16xf32>
    %28 = arith.mulf %26, %27 : vector<16x16xf32>
    %29 = vector.broadcast %8 : vector<1x16xf32> to vector<16x16xf32>
    %30 = arith.addf %28, %29 : vector<16x16xf32>
    %c0_14 = arith.constant 0 : index
    %c0_15 = arith.constant 0 : index
    %c0_16 = arith.constant 0 : index
    %31 = vector.load %arg5[%c0_14, %c0_15, %c0_16] : memref<1x16x48xf32, #tpu.memory_space<vmem>>, vector<1x16x48xf32>
    %32 = vector.shape_cast %31 : vector<1x16x48xf32> to vector<16x48xf32>
    %cst_17 = arith.constant dense<0.000000e+00> : vector<16x48xf32>
    %33 = tpu.matmul %30, %32, %cst_17 {dimension_numbers = #tpu.dot_dimension_numbers<[1], [0], [0], [1], [0, 0, 1, 1], [], []>} : vector<16x16xf32>, vector<16x48xf32>, vector<16x48xf32> -> vector<16x48xf32>
    %34 = vector.shape_cast %33 : vector<16x48xf32> to vector<1x16x48xf32>
    %c0_18 = arith.constant 0 : index
    %c0_19 = arith.constant 0 : index
    %c0_20 = arith.constant 0 : index
    %35 = vector.load %arg6[%c0_18, %c0_19, %c0_20] : memref<1x16x16xf32, #tpu.memory_space<vmem>>, vector<1x16x16xf32>
    %36 = vector.shape_cast %35 : vector<1x16x16xf32> to vector<16x16xf32>
    %cst_21 = arith.constant 0.000000e+00 : f32
    %37 = vector.broadcast %cst_21 : f32 to vector<16x16xf32>
    %38 = vector.extract_strided_slice %34 {offsets = [0, 0, 0], sizes = [1, 16, 8], strides = [1, 1, 1]} : vector<1x16x48xf32> to vector<1x16x8xf32>
    %39 = vector.extract_strided_slice %34 {offsets = [0, 0, 16], sizes = [1, 16, 8], strides = [1, 1, 1]} : vector<1x16x48xf32> to vector<1x16x8xf32>
    %40 = vector.extract_strided_slice %34 {offsets = [0, 0, 32], sizes = [1, 16, 8], strides = [1, 1, 1]} : vector<1x16x48xf32> to vector<1x16x8xf32>
    "tpu.trace_start"() <{level = 10 : i32, message = "bnd,bmd->bnm"}> : () -> ()
    %cst_22 = arith.constant dense<0.000000e+00> : vector<1x16x16xf32>
    %41 = tpu.matmul %38, %39, %cst_22 {dimension_numbers = #tpu.dot_dimension_numbers<[2], [2], [1], [1], [0, 0, 0, 1, 1, 1], [0], [0]>} : vector<1x16x8xf32>, vector<1x16x8xf32>, vector<1x16x16xf32> -> vector<1x16x16xf32>
    "tpu.trace_stop"() : () -> ()
    %cst_23 = arith.constant 0.353553385 : f32
    %42 = vector.broadcast %cst_23 : f32 to vector<1x16x16xf32>
    %43 = arith.mulf %41, %42 : vector<1x16x16xf32>
    %cst_24 = arith.constant dense<0xFF800000> : vector<1x16xf32>
    %44 = vector.multi_reduction <maximumf>, %43, %cst_24 [2] : vector<1x16x16xf32> to vector<1x16xf32>
    %45 = vector.shape_cast %44 : vector<1x16xf32> to vector<1x16x1xf32>
    %46 = vector.broadcast %45 : vector<1x16x1xf32> to vector<1x16x16xf32>
    %47 = arith.subf %43, %46 : vector<1x16x16xf32>
    %48 = math.exp %47 : vector<1x16x16xf32>
    %cst_25 = arith.constant dense<0.000000e+00> : vector<1x16xf32>
    %49 = vector.multi_reduction <add>, %48, %cst_25 [2] : vector<1x16x16xf32> to vector<1x16xf32>
    %50 = vector.shape_cast %49 : vector<1x16xf32> to vector<1x16x1xf32>
    %51 = tpu.reciprocal %50 {approx = true} : vector<1x16x1xf32> -> vector<1x16x1xf32>
    %52 = vector.broadcast %51 : vector<1x16x1xf32> to vector<1x16x16xf32>
    %53 = arith.mulf %48, %52 : vector<1x16x16xf32>
    "tpu.trace_start"() <{level = 10 : i32, message = "bnm,bmd->bnd"}> : () -> ()
    %cst_26 = arith.constant dense<0.000000e+00> : vector<1x16x8xf32>
    %54 = tpu.matmul %53, %40, %cst_26 {dimension_numbers = #tpu.dot_dimension_numbers<[2], [1], [1], [2], [0, 0, 0, 1, 1, 2], [0], [0]>} : vector<1x16x16xf32>, vector<1x16x8xf32>, vector<1x16x8xf32> -> vector<1x16x8xf32>
    "tpu.trace_stop"() : () -> ()
    %55 = vector.shape_cast %54 : vector<1x16x8xf32> to vector<16x8xf32>
    %56 = vector.extract_strided_slice %36 {offsets = [0, 0], sizes = [8, 16], strides = [1, 1]} : vector<16x16xf32> to vector<8x16xf32>
    %cst_27 = arith.constant dense<0.000000e+00> : vector<16x16xf32>
    %57 = tpu.matmul %55, %56, %cst_27 {dimension_numbers = #tpu.dot_dimension_numbers<[1], [0], [0], [1], [0, 0, 1, 1], [], []>} : vector<16x8xf32>, vector<8x16xf32>, vector<16x16xf32> -> vector<16x16xf32>
    %58 = arith.addf %37, %57 : vector<16x16xf32>
    %59 = vector.extract_strided_slice %34 {offsets = [0, 0, 8], sizes = [1, 16, 8], strides = [1, 1, 1]} : vector<1x16x48xf32> to vector<1x16x8xf32>
    %60 = vector.extract_strided_slice %34 {offsets = [0, 0, 24], sizes = [1, 16, 8], strides = [1, 1, 1]} : vector<1x16x48xf32> to vector<1x16x8xf32>
    %61 = vector.extract_strided_slice %34 {offsets = [0, 0, 40], sizes = [1, 16, 8], strides = [1, 1, 1]} : vector<1x16x48xf32> to vector<1x16x8xf32>
    "tpu.trace_start"() <{level = 10 : i32, message = "bnd,bmd->bnm"}> : () -> ()
    %cst_28 = arith.constant dense<0.000000e+00> : vector<1x16x16xf32>
    %62 = tpu.matmul %59, %60, %cst_28 {dimension_numbers = #tpu.dot_dimension_numbers<[2], [2], [1], [1], [0, 0, 0, 1, 1, 1], [0], [0]>} : vector<1x16x8xf32>, vector<1x16x8xf32>, vector<1x16x16xf32> -> vector<1x16x16xf32>
    "tpu.trace_stop"() : () -> ()
    %cst_29 = arith.constant 0.353553385 : f32
    %63 = vector.broadcast %cst_29 : f32 to vector<1x16x16xf32>
    %64 = arith.mulf %62, %63 : vector<1x16x16xf32>
    %cst_30 = arith.constant dense<0xFF800000> : vector<1x16xf32>
    %65 = vector.multi_reduction <maximumf>, %64, %cst_30 [2] : vector<1x16x16xf32> to vector<1x16xf32>
    %66 = vector.shape_cast %65 : vector<1x16xf32> to vector<1x16x1xf32>
    %67 = vector.broadcast %66 : vector<1x16x1xf32> to vector<1x16x16xf32>
    %68 = arith.subf %64, %67 : vector<1x16x16xf32>
    %69 = math.exp %68 : vector<1x16x16xf32>
    %cst_31 = arith.constant dense<0.000000e+00> : vector<1x16xf32>
    %70 = vector.multi_reduction <add>, %69, %cst_31 [2] : vector<1x16x16xf32> to vector<1x16xf32>
    %71 = vector.shape_cast %70 : vector<1x16xf32> to vector<1x16x1xf32>
    %72 = tpu.reciprocal %71 {approx = true} : vector<1x16x1xf32> -> vector<1x16x1xf32>
    %73 = vector.broadcast %72 : vector<1x16x1xf32> to vector<1x16x16xf32>
    %74 = arith.mulf %69, %73 : vector<1x16x16xf32>
    "tpu.trace_start"() <{level = 10 : i32, message = "bnm,bmd->bnd"}> : () -> ()
    %cst_32 = arith.constant dense<0.000000e+00> : vector<1x16x8xf32>
    %75 = tpu.matmul %74, %61, %cst_32 {dimension_numbers = #tpu.dot_dimension_numbers<[2], [1], [1], [2], [0, 0, 0, 1, 1, 2], [0], [0]>} : vector<1x16x16xf32>, vector<1x16x8xf32>, vector<1x16x8xf32> -> vector<1x16x8xf32>
    "tpu.trace_stop"() : () -> ()
    %76 = vector.shape_cast %75 : vector<1x16x8xf32> to vector<16x8xf32>
    %77 = vector.extract_strided_slice %36 {offsets = [8, 0], sizes = [8, 16], strides = [1, 1]} : vector<16x16xf32> to vector<8x16xf32>
    %cst_33 = arith.constant dense<0.000000e+00> : vector<16x16xf32>
    %78 = tpu.matmul %76, %77, %cst_33 {dimension_numbers = #tpu.dot_dimension_numbers<[1], [0], [0], [1], [0, 0, 1, 1], [], []>} : vector<16x8xf32>, vector<8x16xf32>, vector<16x16xf32> -> vector<16x16xf32>
    %79 = arith.addf %58, %78 : vector<16x16xf32>
    %80 = arith.addf %4, %79 : vector<16x16xf32>
    %c0_34 = arith.constant 0 : index
    %c0_35 = arith.constant 0 : index
    %c0_36 = arith.constant 0 : index
    %81 = vector.load %arg7[%c0_34, %c0_35, %c0_36] : memref<1x1x16xf32, #tpu.memory_space<vmem>>, vector<1x1x16xf32>
    %82 = vector.shape_cast %81 : vector<1x1x16xf32> to vector<1x16xf32>
    %c0_37 = arith.constant 0 : index
    %c0_38 = arith.constant 0 : index
    %c0_39 = arith.constant 0 : index
    %83 = vector.load %arg8[%c0_37, %c0_38, %c0_39] : memref<1x1x16xf32, #tpu.memory_space<vmem>>, vector<1x1x16xf32>
    %84 = vector.shape_cast %83 : vector<1x1x16xf32> to vector<1x16xf32>
    %cst_40 = arith.constant dense<0.000000e+00> : vector<16xf32>
    %85 = vector.multi_reduction <add>, %80, %cst_40 [1] : vector<16x16xf32> to vector<16xf32>
    %86 = vector.shape_cast %85 : vector<16xf32> to vector<16x1xf32>
    %cst_41 = arith.constant 1.600000e+01 : f32
    %87 = vector.broadcast %cst_41 : f32 to vector<16x1xf32>
    %88 = arith.divf %86, %87 : vector<16x1xf32>
    %89 = vector.broadcast %88 : vector<16x1xf32> to vector<16x16xf32>
    %90 = arith.subf %80, %89 : vector<16x16xf32>
    %91 = arith.mulf %90, %90 : vector<16x16xf32>
    %cst_42 = arith.constant dense<0.000000e+00> : vector<16xf32>
    %92 = vector.multi_reduction <add>, %91, %cst_42 [1] : vector<16x16xf32> to vector<16xf32>
    %93 = vector.shape_cast %92 : vector<16xf32> to vector<16x1xf32>
    %cst_43 = arith.constant 1.600000e+01 : f32
    %94 = vector.broadcast %cst_43 : f32 to vector<16x1xf32>
    %95 = arith.divf %93, %94 : vector<16x1xf32>
    %96 = vector.broadcast %88 : vector<16x1xf32> to vector<16x16xf32>
    %97 = arith.subf %80, %96 : vector<16x16xf32>
    %cst_44 = arith.constant 9.99999974E-6 : f32
    %98 = vector.broadcast %cst_44 : f32 to vector<16x1xf32>
    %99 = arith.addf %95, %98 : vector<16x1xf32>
    %100 = math.rsqrt %99 : vector<16x1xf32>
    %101 = vector.broadcast %100 : vector<16x1xf32> to vector<16x16xf32>
    %102 = arith.mulf %97, %101 : vector<16x16xf32>
    %103 = vector.broadcast %82 : vector<1x16xf32> to vector<16x16xf32>
    %104 = arith.mulf %102, %103 : vector<16x16xf32>
    %105 = vector.broadcast %84 : vector<1x16xf32> to vector<16x16xf32>
    %106 = arith.addf %104, %105 : vector<16x16xf32>
    %c0_45 = arith.constant 0 : index
    %c0_46 = arith.constant 0 : index
    %c0_47 = arith.constant 0 : index
    %107 = vector.load %arg9[%c0_45, %c0_46, %c0_47] : memref<1x16x32xf32, #tpu.memory_space<vmem>>, vector<1x16x32xf32>
    %108 = vector.shape_cast %107 : vector<1x16x32xf32> to vector<16x32xf32>
    %cst_48 = arith.constant dense<0.000000e+00> : vector<16x32xf32>
    %109 = tpu.matmul %106, %108, %cst_48 {dimension_numbers = #tpu.dot_dimension_numbers<[1], [0], [0], [1], [0, 0, 1, 1], [], []>} : vector<16x16xf32>, vector<16x32xf32>, vector<16x32xf32> -> vector<16x32xf32>
    %c0_49 = arith.constant 0 : index
    %c0_50 = arith.constant 0 : index
    %c0_51 = arith.constant 0 : index
    %110 = vector.load %arg10[%c0_49, %c0_50, %c0_51] : memref<1x1x32xf32, #tpu.memory_space<vmem>>, vector<1x1x32xf32>
    %111 = vector.shape_cast %110 : vector<1x1x32xf32> to vector<1x32xf32>
    %112 = vector.broadcast %111 : vector<1x32xf32> to vector<16x32xf32>
    %113 = arith.addf %109, %112 : vector<16x32xf32>
    %cst_52 = arith.constant 5.000000e-01 : f32
    %114 = vector.broadcast %cst_52 : f32 to vector<16x32xf32>
    %115 = arith.mulf %114, %113 : vector<16x32xf32>
    %cst_53 = arith.constant 0.707106769 : f32
    %116 = vector.broadcast %cst_53 : f32 to vector<16x32xf32>
    %117 = arith.mulf %113, %116 : vector<16x32xf32>
    %cst_54 = arith.constant -4.000000e+00 : f32
    %cst_55 = arith.constant 4.000000e+00 : f32
    %118 = vector.broadcast %cst_54 : f32 to vector<16x32xf32>
    %119 = arith.maximumf %118, %117 : vector<16x32xf32>
    %120 = vector.broadcast %cst_55 : f32 to vector<16x32xf32>
    %121 = arith.minimumf %120, %119 : vector<16x32xf32>
    %122 = arith.mulf %121, %121 : vector<16x32xf32>
    %cst_56 = arith.constant -2.72614237E-10 : f32
    %123 = vector.broadcast %cst_56 : f32 to vector<16x32xf32>
    %124 = arith.mulf %123, %122 : vector<16x32xf32>
    %cst_57 = arith.constant 2.77068146E-8 : f32
    %125 = vector.broadcast %cst_57 : f32 to vector<16x32xf32>
    %126 = arith.addf %124, %125 : vector<16x32xf32>
    %127 = arith.mulf %126, %122 : vector<16x32xf32>
    %cst_58 = arith.constant -2.10102394E-6 : f32
    %128 = vector.broadcast %cst_58 : f32 to vector<16x32xf32>
    %129 = arith.addf %127, %128 : vector<16x32xf32>
    %130 = arith.mulf %129, %122 : vector<16x32xf32>
    %cst_59 = arith.constant -5.69250624E-5 : f32
    %131 = vector.broadcast %cst_59 : f32 to vector<16x32xf32>
    %132 = arith.addf %130, %131 : vector<16x32xf32>
    %133 = arith.mulf %132, %122 : vector<16x32xf32>
    %cst_60 = arith.constant -7.34990637E-4 : f32
    %134 = vector.broadcast %cst_60 : f32 to vector<16x32xf32>
    %135 = arith.addf %133, %134 : vector<16x32xf32>
    %136 = arith.mulf %135, %122 : vector<16x32xf32>
    %cst_61 = arith.constant -2.954600e-03 : f32
    %137 = vector.broadcast %cst_61 : f32 to vector<16x32xf32>
    %138 = arith.addf %136, %137 : vector<16x32xf32>
    %139 = arith.mulf %138, %122 : vector<16x32xf32>
    %cst_62 = arith.constant -0.0160960332 : f32
    %140 = vector.broadcast %cst_62 : f32 to vector<16x32xf32>
    %141 = arith.addf %139, %140 : vector<16x32xf32>
    %142 = arith.mulf %141, %121 : vector<16x32xf32>
    %cst_63 = arith.constant -1.45660715E-5 : f32
    %143 = vector.broadcast %cst_63 : f32 to vector<16x32xf32>
    %144 = arith.mulf %143, %122 : vector<16x32xf32>
    %cst_64 = arith.constant -2.13374049E-4 : f32
    %145 = vector.broadcast %cst_64 : f32 to vector<16x32xf32>
    %146 = arith.addf %144, %145 : vector<16x32xf32>
    %147 = arith.mulf %146, %122 : vector<16x32xf32>
    %cst_65 = arith.constant -0.00168282702 : f32
    %148 = vector.broadcast %cst_65 : f32 to vector<16x32xf32>
    %149 = arith.addf %147, %148 : vector<16x32xf32>
    %150 = arith.mulf %149, %122 : vector<16x32xf32>
    %cst_66 = arith.constant -0.00737332925 : f32
    %151 = vector.broadcast %cst_66 : f32 to vector<16x32xf32>
    %152 = arith.addf %150, %151 : vector<16x32xf32>
    %153 = arith.mulf %152, %122 : vector<16x32xf32>
    %cst_67 = arith.constant -0.0142647391 : f32
    %154 = vector.broadcast %cst_67 : f32 to vector<16x32xf32>
    %155 = arith.addf %153, %154 : vector<16x32xf32>
    %156 = tpu.reciprocal %155 {approx = true} : vector<16x32xf32> -> vector<16x32xf32>
    %157 = arith.mulf %142, %156 : vector<16x32xf32>
    %cst_68 = arith.constant 1.000000e+00 : f32
    %158 = vector.broadcast %cst_68 : f32 to vector<16x32xf32>
    %159 = arith.addf %158, %157 : vector<16x32xf32>
    %160 = arith.mulf %115, %159 : vector<16x32xf32>
    %c0_69 = arith.constant 0 : index
    %c0_70 = arith.constant 0 : index
    %c0_71 = arith.constant 0 : index
    %161 = vector.load %arg11[%c0_69, %c0_70, %c0_71] : memref<1x32x16xf32, #tpu.memory_space<vmem>>, vector<1x32x16xf32>
    %162 = vector.shape_cast %161 : vector<1x32x16xf32> to vector<32x16xf32>
    %cst_72 = arith.constant dense<0.000000e+00> : vector<16x16xf32>
    %163 = tpu.matmul %160, %162, %cst_72 {dimension_numbers = #tpu.dot_dimension_numbers<[1], [0], [0], [1], [0, 0, 1, 1], [], []>} : vector<16x32xf32>, vector<32x16xf32>, vector<16x16xf32> -> vector<16x16xf32>
    %c0_73 = arith.constant 0 : index
    %c0_74 = arith.constant 0 : index
    %c0_75 = arith.constant 0 : index
    %164 = vector.load %arg12[%c0_73, %c0_74, %c0_75] : memref<1x1x16xf32, #tpu.memory_space<vmem>>, vector<1x1x16xf32>
    %165 = vector.shape_cast %164 : vector<1x1x16xf32> to vector<1x16xf32>
    %166 = vector.broadcast %165 : vector<1x16xf32> to vector<16x16xf32>
    %167 = arith.addf %163, %166 : vector<16x16xf32>
    %168 = arith.addf %80, %167 : vector<16x16xf32>
    %c0_76 = arith.constant 0 : index
    %c0_77 = arith.constant 0 : index
    %169 = vector.load %arg13[%c0_76, %c0_77] : memref<1x16xf32, #tpu.memory_space<vmem>>, vector<1x16xf32>
    %c0_78 = arith.constant 0 : index
    %c0_79 = arith.constant 0 : index
    %170 = vector.load %arg14[%c0_78, %c0_79] : memref<1x16xf32, #tpu.memory_space<vmem>>, vector<1x16xf32>
    %cst_80 = arith.constant dense<0.000000e+00> : vector<16xf32>
    %171 = vector.multi_reduction <add>, %168, %cst_80 [1] : vector<16x16xf32> to vector<16xf32>
    %172 = vector.shape_cast %171 : vector<16xf32> to vector<16x1xf32>
    %cst_81 = arith.constant 1.600000e+01 : f32
    %173 = vector.broadcast %cst_81 : f32 to vector<16x1xf32>
    %174 = arith.divf %172, %173 : vector<16x1xf32>
    %175 = vector.broadcast %174 : vector<16x1xf32> to vector<16x16xf32>
    %176 = arith.subf %168, %175 : vector<16x16xf32>
    %177 = arith.mulf %176, %176 : vector<16x16xf32>
    %cst_82 = arith.constant dense<0.000000e+00> : vector<16xf32>
    %178 = vector.multi_reduction <add>, %177, %cst_82 [1] : vector<16x16xf32> to vector<16xf32>
    %179 = vector.shape_cast %178 : vector<16xf32> to vector<16x1xf32>
    %cst_83 = arith.constant 1.600000e+01 : f32
    %180 = vector.broadcast %cst_83 : f32 to vector<16x1xf32>
    %181 = arith.divf %179, %180 : vector<16x1xf32>
    %182 = vector.broadcast %174 : vector<16x1xf32> to vector<16x16xf32>
    %183 = arith.subf %168, %182 : vector<16x16xf32>
    %cst_84 = arith.constant 9.99999974E-6 : f32
    %184 = vector.broadcast %cst_84 : f32 to vector<16x1xf32>
    %185 = arith.addf %181, %184 : vector<16x1xf32>
    %186 = math.rsqrt %185 : vector<16x1xf32>
    %187 = vector.broadcast %186 : vector<16x1xf32> to vector<16x16xf32>
    %188 = arith.mulf %183, %187 : vector<16x16xf32>
    %189 = vector.broadcast %169 : vector<1x16xf32> to vector<16x16xf32>
    %190 = arith.mulf %188, %189 : vector<16x16xf32>
    %191 = vector.broadcast %170 : vector<1x16xf32> to vector<16x16xf32>
    %192 = arith.addf %190, %191 : vector<16x16xf32>
    %c0_85 = arith.constant 0 : index
    %c0_86 = arith.constant 0 : index
    %193 = vector.load %arg15[%c0_85, %c0_86] : memref<100x16xf32, #tpu.memory_space<vmem>>, vector<100x16xf32>
    %cst_87 = arith.constant dense<0.000000e+00> : vector<100x16xf32>
    %194 = tpu.matmul %193, %192, %cst_87 {dimension_numbers = #tpu.dot_dimension_numbers<[1], [0], [0], [1], [0, 0, 1, 1], [], []>} : vector<100x16xf32>, vector<16x16xf32>, vector<100x16xf32> -> vector<100x16xf32>
    %195 = vector.shape_cast %194 : vector<100x16xf32> to vector<1x10x10x16xf32>
    %196 = vector.extract_strided_slice %195 {offsets = [0, 0, 0, 0], sizes = [1, 8, 8, 16], strides = [1, 1, 1, 1]} : vector<1x10x10x16xf32> to vector<1x8x8x16xf32>
    %197 = vector.shape_cast %196 : vector<1x8x8x16xf32> to vector<64x16xf32>
    %198 = vector.extract_strided_slice %195 {offsets = [0, 0, 1, 0], sizes = [1, 8, 8, 16], strides = [1, 1, 1, 1]} : vector<1x10x10x16xf32> to vector<1x8x8x16xf32>
    %199 = vector.shape_cast %198 : vector<1x8x8x16xf32> to vector<64x16xf32>
    %200 = vector.extract_strided_slice %195 {offsets = [0, 0, 2, 0], sizes = [1, 8, 8, 16], strides = [1, 1, 1, 1]} : vector<1x10x10x16xf32> to vector<1x8x8x16xf32>
    %201 = vector.shape_cast %200 : vector<1x8x8x16xf32> to vector<64x16xf32>
    %202 = vector.extract_strided_slice %195 {offsets = [0, 1, 0, 0], sizes = [1, 8, 8, 16], strides = [1, 1, 1, 1]} : vector<1x10x10x16xf32> to vector<1x8x8x16xf32>
    %203 = vector.shape_cast %202 : vector<1x8x8x16xf32> to vector<64x16xf32>
    %204 = vector.extract_strided_slice %195 {offsets = [0, 1, 1, 0], sizes = [1, 8, 8, 16], strides = [1, 1, 1, 1]} : vector<1x10x10x16xf32> to vector<1x8x8x16xf32>
    %205 = vector.shape_cast %204 : vector<1x8x8x16xf32> to vector<64x16xf32>
    %206 = vector.extract_strided_slice %195 {offsets = [0, 1, 2, 0], sizes = [1, 8, 8, 16], strides = [1, 1, 1, 1]} : vector<1x10x10x16xf32> to vector<1x8x8x16xf32>
    %207 = vector.shape_cast %206 : vector<1x8x8x16xf32> to vector<64x16xf32>
    %208 = vector.extract_strided_slice %195 {offsets = [0, 2, 0, 0], sizes = [1, 8, 8, 16], strides = [1, 1, 1, 1]} : vector<1x10x10x16xf32> to vector<1x8x8x16xf32>
    %209 = vector.shape_cast %208 : vector<1x8x8x16xf32> to vector<64x16xf32>
    %210 = vector.extract_strided_slice %195 {offsets = [0, 2, 1, 0], sizes = [1, 8, 8, 16], strides = [1, 1, 1, 1]} : vector<1x10x10x16xf32> to vector<1x8x8x16xf32>
    %211 = vector.shape_cast %210 : vector<1x8x8x16xf32> to vector<64x16xf32>
    %212 = vector.extract_strided_slice %195 {offsets = [0, 2, 2, 0], sizes = [1, 8, 8, 16], strides = [1, 1, 1, 1]} : vector<1x10x10x16xf32> to vector<1x8x8x16xf32>
    %213 = vector.shape_cast %212 : vector<1x8x8x16xf32> to vector<64x16xf32>
    %214 = tpu.concatenate %197, %199, %201, %203, %205, %207, %209, %211, %213 in 1 : vector<64x16xf32>, vector<64x16xf32>, vector<64x16xf32>, vector<64x16xf32>, vector<64x16xf32>, vector<64x16xf32>, vector<64x16xf32>, vector<64x16xf32>, vector<64x16xf32> -> vector<64x144xf32>
    %c0_88 = arith.constant 0 : index
    %c0_89 = arith.constant 0 : index
    %215 = vector.load %arg16[%c0_88, %c0_89] : memref<144x8xf32, #tpu.memory_space<vmem>>, vector<144x8xf32>
    %cst_90 = arith.constant dense<0.000000e+00> : vector<64x8xf32>
    %216 = tpu.matmul %214, %215, %cst_90 {dimension_numbers = #tpu.dot_dimension_numbers<[1], [0], [0], [1], [0, 0, 1, 1], [], []>} : vector<64x144xf32>, vector<144x8xf32>, vector<64x8xf32> -> vector<64x8xf32>
    %c0_91 = arith.constant 0 : index
    %c0_92 = arith.constant 0 : index
    %217 = vector.load %arg17[%c0_91, %c0_92] : memref<1x8xf32, #tpu.memory_space<vmem>>, vector<1x8xf32>
    %218 = vector.broadcast %217 : vector<1x8xf32> to vector<64x8xf32>
    %219 = arith.addf %216, %218 : vector<64x8xf32>
    %c0_93 = arith.constant 0 : index
    %c0_94 = arith.constant 0 : index
    %220 = vector.load %arg18[%c0_93, %c0_94] : memref<1x8xf32, #tpu.memory_space<vmem>>, vector<1x8xf32>
    %221 = vector.broadcast %220 : vector<1x8xf32> to vector<64x8xf32>
    %222 = arith.mulf %219, %221 : vector<64x8xf32>
    %c0_95 = arith.constant 0 : index
    %c0_96 = arith.constant 0 : index
    %223 = vector.load %arg19[%c0_95, %c0_96] : memref<1x8xf32, #tpu.memory_space<vmem>>, vector<1x8xf32>
    %224 = vector.broadcast %223 : vector<1x8xf32> to vector<64x8xf32>
    %225 = arith.addf %222, %224 : vector<64x8xf32>
    %cst_97 = arith.constant 5.000000e-01 : f32
    %226 = vector.broadcast %cst_97 : f32 to vector<64x8xf32>
    %227 = arith.mulf %226, %225 : vector<64x8xf32>
    %cst_98 = arith.constant 0.707106769 : f32
    %228 = vector.broadcast %cst_98 : f32 to vector<64x8xf32>
    %229 = arith.mulf %225, %228 : vector<64x8xf32>
    %cst_99 = arith.constant -4.000000e+00 : f32
    %cst_100 = arith.constant 4.000000e+00 : f32
    %230 = vector.broadcast %cst_99 : f32 to vector<64x8xf32>
    %231 = arith.maximumf %230, %229 : vector<64x8xf32>
    %232 = vector.broadcast %cst_100 : f32 to vector<64x8xf32>
    %233 = arith.minimumf %232, %231 : vector<64x8xf32>
    %234 = arith.mulf %233, %233 : vector<64x8xf32>
    %cst_101 = arith.constant -2.72614237E-10 : f32
    %235 = vector.broadcast %cst_101 : f32 to vector<64x8xf32>
    %236 = arith.mulf %235, %234 : vector<64x8xf32>
    %cst_102 = arith.constant 2.77068146E-8 : f32
    %237 = vector.broadcast %cst_102 : f32 to vector<64x8xf32>
    %238 = arith.addf %236, %237 : vector<64x8xf32>
    %239 = arith.mulf %238, %234 : vector<64x8xf32>
    %cst_103 = arith.constant -2.10102394E-6 : f32
    %240 = vector.broadcast %cst_103 : f32 to vector<64x8xf32>
    %241 = arith.addf %239, %240 : vector<64x8xf32>
    %242 = arith.mulf %241, %234 : vector<64x8xf32>
    %cst_104 = arith.constant -5.69250624E-5 : f32
    %243 = vector.broadcast %cst_104 : f32 to vector<64x8xf32>
    %244 = arith.addf %242, %243 : vector<64x8xf32>
    %245 = arith.mulf %244, %234 : vector<64x8xf32>
    %cst_105 = arith.constant -7.34990637E-4 : f32
    %246 = vector.broadcast %cst_105 : f32 to vector<64x8xf32>
    %247 = arith.addf %245, %246 : vector<64x8xf32>
    %248 = arith.mulf %247, %234 : vector<64x8xf32>
    %cst_106 = arith.constant -2.954600e-03 : f32
    %249 = vector.broadcast %cst_106 : f32 to vector<64x8xf32>
    %250 = arith.addf %248, %249 : vector<64x8xf32>
    %251 = arith.mulf %250, %234 : vector<64x8xf32>
    %cst_107 = arith.constant -0.0160960332 : f32
    %252 = vector.broadcast %cst_107 : f32 to vector<64x8xf32>
    %253 = arith.addf %251, %252 : vector<64x8xf32>
    %254 = arith.mulf %253, %233 : vector<64x8xf32>
    %cst_108 = arith.constant -1.45660715E-5 : f32
    %255 = vector.broadcast %cst_108 : f32 to vector<64x8xf32>
    %256 = arith.mulf %255, %234 : vector<64x8xf32>
    %cst_109 = arith.constant -2.13374049E-4 : f32
    %257 = vector.broadcast %cst_109 : f32 to vector<64x8xf32>
    %258 = arith.addf %256, %257 : vector<64x8xf32>
    %259 = arith.mulf %258, %234 : vector<64x8xf32>
    %cst_110 = arith.constant -0.00168282702 : f32
    %260 = vector.broadcast %cst_110 : f32 to vector<64x8xf32>
    %261 = arith.addf %259, %260 : vector<64x8xf32>
    %262 = arith.mulf %261, %234 : vector<64x8xf32>
    %cst_111 = arith.constant -0.00737332925 : f32
    %263 = vector.broadcast %cst_111 : f32 to vector<64x8xf32>
    %264 = arith.addf %262, %263 : vector<64x8xf32>
    %265 = arith.mulf %264, %234 : vector<64x8xf32>
    %cst_112 = arith.constant -0.0142647391 : f32
    %266 = vector.broadcast %cst_112 : f32 to vector<64x8xf32>
    %267 = arith.addf %265, %266 : vector<64x8xf32>
    %268 = tpu.reciprocal %267 {approx = true} : vector<64x8xf32> -> vector<64x8xf32>
    %269 = arith.mulf %254, %268 : vector<64x8xf32>
    %cst_113 = arith.constant 1.000000e+00 : f32
    %270 = vector.broadcast %cst_113 : f32 to vector<64x8xf32>
    %271 = arith.addf %270, %269 : vector<64x8xf32>
    %272 = arith.mulf %227, %271 : vector<64x8xf32>
    %c0_114 = arith.constant 0 : index
    %c0_115 = arith.constant 0 : index
    %273 = vector.load %arg20[%c0_114, %c0_115] : memref<324x64xf32, #tpu.memory_space<vmem>>, vector<324x64xf32>
    %cst_116 = arith.constant dense<0.000000e+00> : vector<324x8xf32>
    %274 = tpu.matmul %273, %272, %cst_116 {dimension_numbers = #tpu.dot_dimension_numbers<[1], [0], [0], [1], [0, 0, 1, 1], [], []>} : vector<324x64xf32>, vector<64x8xf32>, vector<324x8xf32> -> vector<324x8xf32>
    %275 = vector.shape_cast %274 : vector<324x8xf32> to vector<1x18x18x8xf32>
    %276 = vector.extract_strided_slice %275 {offsets = [0, 0, 0, 0], sizes = [1, 16, 16, 8], strides = [1, 1, 1, 1]} : vector<1x18x18x8xf32> to vector<1x16x16x8xf32>
    %277 = vector.shape_cast %276 : vector<1x16x16x8xf32> to vector<256x8xf32>
    %278 = vector.extract_strided_slice %275 {offsets = [0, 0, 1, 0], sizes = [1, 16, 16, 8], strides = [1, 1, 1, 1]} : vector<1x18x18x8xf32> to vector<1x16x16x8xf32>
    %279 = vector.shape_cast %278 : vector<1x16x16x8xf32> to vector<256x8xf32>
    %280 = vector.extract_strided_slice %275 {offsets = [0, 0, 2, 0], sizes = [1, 16, 16, 8], strides = [1, 1, 1, 1]} : vector<1x18x18x8xf32> to vector<1x16x16x8xf32>
    %281 = vector.shape_cast %280 : vector<1x16x16x8xf32> to vector<256x8xf32>
    %282 = vector.extract_strided_slice %275 {offsets = [0, 1, 0, 0], sizes = [1, 16, 16, 8], strides = [1, 1, 1, 1]} : vector<1x18x18x8xf32> to vector<1x16x16x8xf32>
    %283 = vector.shape_cast %282 : vector<1x16x16x8xf32> to vector<256x8xf32>
    %284 = vector.extract_strided_slice %275 {offsets = [0, 1, 1, 0], sizes = [1, 16, 16, 8], strides = [1, 1, 1, 1]} : vector<1x18x18x8xf32> to vector<1x16x16x8xf32>
    %285 = vector.shape_cast %284 : vector<1x16x16x8xf32> to vector<256x8xf32>
    %286 = vector.extract_strided_slice %275 {offsets = [0, 1, 2, 0], sizes = [1, 16, 16, 8], strides = [1, 1, 1, 1]} : vector<1x18x18x8xf32> to vector<1x16x16x8xf32>
    %287 = vector.shape_cast %286 : vector<1x16x16x8xf32> to vector<256x8xf32>
    %288 = vector.extract_strided_slice %275 {offsets = [0, 2, 0, 0], sizes = [1, 16, 16, 8], strides = [1, 1, 1, 1]} : vector<1x18x18x8xf32> to vector<1x16x16x8xf32>
    %289 = vector.shape_cast %288 : vector<1x16x16x8xf32> to vector<256x8xf32>
    %290 = vector.extract_strided_slice %275 {offsets = [0, 2, 1, 0], sizes = [1, 16, 16, 8], strides = [1, 1, 1, 1]} : vector<1x18x18x8xf32> to vector<1x16x16x8xf32>
    %291 = vector.shape_cast %290 : vector<1x16x16x8xf32> to vector<256x8xf32>
    %292 = vector.extract_strided_slice %275 {offsets = [0, 2, 2, 0], sizes = [1, 16, 16, 8], strides = [1, 1, 1, 1]} : vector<1x18x18x8xf32> to vector<1x16x16x8xf32>
    %293 = vector.shape_cast %292 : vector<1x16x16x8xf32> to vector<256x8xf32>
    %294 = tpu.concatenate %277, %279, %281, %283, %285, %287, %289, %291, %293 in 1 : vector<256x8xf32>, vector<256x8xf32>, vector<256x8xf32>, vector<256x8xf32>, vector<256x8xf32>, vector<256x8xf32>, vector<256x8xf32>, vector<256x8xf32>, vector<256x8xf32> -> vector<256x72xf32>
    %c0_117 = arith.constant 0 : index
    %c0_118 = arith.constant 0 : index
    %295 = vector.load %arg21[%c0_117, %c0_118] : memref<72x8xf32, #tpu.memory_space<vmem>>, vector<72x8xf32>
    %cst_119 = arith.constant dense<0.000000e+00> : vector<256x8xf32>
    %296 = tpu.matmul %294, %295, %cst_119 {dimension_numbers = #tpu.dot_dimension_numbers<[1], [0], [0], [1], [0, 0, 1, 1], [], []>} : vector<256x72xf32>, vector<72x8xf32>, vector<256x8xf32> -> vector<256x8xf32>
    %c0_120 = arith.constant 0 : index
    %c0_121 = arith.constant 0 : index
    %297 = vector.load %arg22[%c0_120, %c0_121] : memref<1x8xf32, #tpu.memory_space<vmem>>, vector<1x8xf32>
    %298 = vector.broadcast %297 : vector<1x8xf32> to vector<256x8xf32>
    %299 = arith.addf %296, %298 : vector<256x8xf32>
    %c0_122 = arith.constant 0 : index
    %c0_123 = arith.constant 0 : index
    %300 = vector.load %arg23[%c0_122, %c0_123] : memref<1x8xf32, #tpu.memory_space<vmem>>, vector<1x8xf32>
    %301 = vector.broadcast %300 : vector<1x8xf32> to vector<256x8xf32>
    %302 = arith.mulf %299, %301 : vector<256x8xf32>
    %c0_124 = arith.constant 0 : index
    %c0_125 = arith.constant 0 : index
    %303 = vector.load %arg24[%c0_124, %c0_125] : memref<1x8xf32, #tpu.memory_space<vmem>>, vector<1x8xf32>
    %304 = vector.broadcast %303 : vector<1x8xf32> to vector<256x8xf32>
    %305 = arith.addf %302, %304 : vector<256x8xf32>
    %cst_126 = arith.constant 5.000000e-01 : f32
    %306 = vector.broadcast %cst_126 : f32 to vector<256x8xf32>
    %307 = arith.mulf %306, %305 : vector<256x8xf32>
    %cst_127 = arith.constant 0.707106769 : f32
    %308 = vector.broadcast %cst_127 : f32 to vector<256x8xf32>
    %309 = arith.mulf %305, %308 : vector<256x8xf32>
    %cst_128 = arith.constant -4.000000e+00 : f32
    %cst_129 = arith.constant 4.000000e+00 : f32
    %310 = vector.broadcast %cst_128 : f32 to vector<256x8xf32>
    %311 = arith.maximumf %310, %309 : vector<256x8xf32>
    %312 = vector.broadcast %cst_129 : f32 to vector<256x8xf32>
    %313 = arith.minimumf %312, %311 : vector<256x8xf32>
    %314 = arith.mulf %313, %313 : vector<256x8xf32>
    %cst_130 = arith.constant -2.72614237E-10 : f32
    %315 = vector.broadcast %cst_130 : f32 to vector<256x8xf32>
    %316 = arith.mulf %315, %314 : vector<256x8xf32>
    %cst_131 = arith.constant 2.77068146E-8 : f32
    %317 = vector.broadcast %cst_131 : f32 to vector<256x8xf32>
    %318 = arith.addf %316, %317 : vector<256x8xf32>
    %319 = arith.mulf %318, %314 : vector<256x8xf32>
    %cst_132 = arith.constant -2.10102394E-6 : f32
    %320 = vector.broadcast %cst_132 : f32 to vector<256x8xf32>
    %321 = arith.addf %319, %320 : vector<256x8xf32>
    %322 = arith.mulf %321, %314 : vector<256x8xf32>
    %cst_133 = arith.constant -5.69250624E-5 : f32
    %323 = vector.broadcast %cst_133 : f32 to vector<256x8xf32>
    %324 = arith.addf %322, %323 : vector<256x8xf32>
    %325 = arith.mulf %324, %314 : vector<256x8xf32>
    %cst_134 = arith.constant -7.34990637E-4 : f32
    %326 = vector.broadcast %cst_134 : f32 to vector<256x8xf32>
    %327 = arith.addf %325, %326 : vector<256x8xf32>
    %328 = arith.mulf %327, %314 : vector<256x8xf32>
    %cst_135 = arith.constant -2.954600e-03 : f32
    %329 = vector.broadcast %cst_135 : f32 to vector<256x8xf32>
    %330 = arith.addf %328, %329 : vector<256x8xf32>
    %331 = arith.mulf %330, %314 : vector<256x8xf32>
    %cst_136 = arith.constant -0.0160960332 : f32
    %332 = vector.broadcast %cst_136 : f32 to vector<256x8xf32>
    %333 = arith.addf %331, %332 : vector<256x8xf32>
    %334 = arith.mulf %333, %313 : vector<256x8xf32>
    %cst_137 = arith.constant -1.45660715E-5 : f32
    %335 = vector.broadcast %cst_137 : f32 to vector<256x8xf32>
    %336 = arith.mulf %335, %314 : vector<256x8xf32>
    %cst_138 = arith.constant -2.13374049E-4 : f32
    %337 = vector.broadcast %cst_138 : f32 to vector<256x8xf32>
    %338 = arith.addf %336, %337 : vector<256x8xf32>
    %339 = arith.mulf %338, %314 : vector<256x8xf32>
    %cst_139 = arith.constant -0.00168282702 : f32
    %340 = vector.broadcast %cst_139 : f32 to vector<256x8xf32>
    %341 = arith.addf %339, %340 : vector<256x8xf32>
    %342 = arith.mulf %341, %314 : vector<256x8xf32>
    %cst_140 = arith.constant -0.00737332925 : f32
    %343 = vector.broadcast %cst_140 : f32 to vector<256x8xf32>
    %344 = arith.addf %342, %343 : vector<256x8xf32>
    %345 = arith.mulf %344, %314 : vector<256x8xf32>
    %cst_141 = arith.constant -0.0142647391 : f32
    %346 = vector.broadcast %cst_141 : f32 to vector<256x8xf32>
    %347 = arith.addf %345, %346 : vector<256x8xf32>
    %348 = tpu.reciprocal %347 {approx = true} : vector<256x8xf32> -> vector<256x8xf32>
    %349 = arith.mulf %334, %348 : vector<256x8xf32>
    %cst_142 = arith.constant 1.000000e+00 : f32
    %350 = vector.broadcast %cst_142 : f32 to vector<256x8xf32>
    %351 = arith.addf %350, %349 : vector<256x8xf32>
    %352 = arith.mulf %307, %351 : vector<256x8xf32>
    %c0_143 = arith.constant 0 : index
    %c0_144 = arith.constant 0 : index
    %353 = vector.load %arg25[%c0_143, %c0_144] : memref<8x3xf32, #tpu.memory_space<vmem>>, vector<8x3xf32>
    %cst_145 = arith.constant dense<0.000000e+00> : vector<256x3xf32>
    %354 = tpu.matmul %352, %353, %cst_145 {dimension_numbers = #tpu.dot_dimension_numbers<[1], [0], [0], [1], [0, 0, 1, 1], [], []>} : vector<256x8xf32>, vector<8x3xf32>, vector<256x3xf32> -> vector<256x3xf32>
    %c0_146 = arith.constant 0 : index
    %c0_147 = arith.constant 0 : index
    %355 = vector.load %arg26[%c0_146, %c0_147] : memref<1x3xf32, #tpu.memory_space<vmem>>, vector<1x3xf32>
    %356 = vector.broadcast %355 : vector<1x3xf32> to vector<256x3xf32>
    %357 = arith.addf %354, %356 : vector<256x3xf32>
    %358 = math.tanh %357 : vector<256x3xf32>
    %359 = vector.shape_cast %358 : vector<256x3xf32> to vector<1x256x3xf32>
    %c0_148 = arith.constant 0 : index
    %c0_149 = arith.constant 0 : index
    %c0_150 = arith.constant 0 : index
    %360 = vector.load %arg27[%c0_148, %c0_149, %c0_150] : memref<1x256x3xf32, #tpu.memory_space<vmem>>, vector<1x256x3xf32>
    tpu.vector_store %arg27[%c0_148, %c0_149, %c0_150], %359 {strides = array<i32>} : memref<1x256x3xf32, #tpu.memory_space<vmem>>, vector<1x256x3xf32>,
    return
  }
  func.func @transform_0(%arg0: i32) -> (i32, i32, i32) {
    %c0_i32 = arith.constant 0 : i32
    %c0_i32_0 = arith.constant 0 : i32
    %c0_i32_1 = arith.constant 0 : i32
    return %arg0, %c0_i32, %c0_i32_0 : i32, i32, i32
  }
  func.func @transform_1(%arg0: i32) -> (i32, i32) {
    %c0_i32 = arith.constant 0 : i32
    %c0_i32_0 = arith.constant 0 : i32
    %c0_i32_1 = arith.constant 0 : i32
    return %c0_i32, %c0_i32_0 : i32, i32
  }
  func.func @transform_2(%arg0: i32) -> (i32, i32, i32) {
    %c0_i32 = arith.constant 0 : i32
    %c0_i32_0 = arith.constant 0 : i32
    %c0_i32_1 = arith.constant 0 : i32
    %c0_i32_2 = arith.constant 0 : i32
    return %c0_i32, %c0_i32_0, %c0_i32_1 : i32, i32, i32
  }
  func.func @transform_3(%arg0: i32) -> (i32, i32, i32) {
    %c0_i32 = arith.constant 0 : i32
    %c0_i32_0 = arith.constant 0 : i32
    %c0_i32_1 = arith.constant 0 : i32
    %c0_i32_2 = arith.constant 0 : i32
    return %c0_i32, %c0_i32_0, %c0_i32_1 : i32, i32, i32
  }
  func.func @transform_4(%arg0: i32) -> (i32, i32, i32) {
    %c0_i32 = arith.constant 0 : i32
    %c0_i32_0 = arith.constant 0 : i32
    %c0_i32_1 = arith.constant 0 : i32
    %c0_i32_2 = arith.constant 0 : i32
    return %c0_i32, %c0_i32_0, %c0_i32_1 : i32, i32, i32
  }
  func.func @transform_5(%arg0: i32) -> (i32, i32, i32) {
    %c0_i32 = arith.constant 0 : i32
    %c0_i32_0 = arith.constant 0 : i32
    %c0_i32_1 = arith.constant 0 : i32
    %c0_i32_2 = arith.constant 0 : i32
    return %c0_i32, %c0_i32_0, %c0_i32_1 : i32, i32, i32
  }
  func.func @transform_6(%arg0: i32) -> (i32, i32, i32) {
    %c0_i32 = arith.constant 0 : i32
    %c0_i32_0 = arith.constant 0 : i32
    %c0_i32_1 = arith.constant 0 : i32
    %c0_i32_2 = arith.constant 0 : i32
    return %c0_i32, %c0_i32_0, %c0_i32_1 : i32, i32, i32
  }
  func.func @transform_7(%arg0: i32) -> (i32, i32, i32) {
    %c0_i32 = arith.constant 0 : i32
    %c0_i32_0 = arith.constant 0 : i32
    %c0_i32_1 = arith.constant 0 : i32
    %c0_i32_2 = arith.constant 0 : i32
    return %c0_i32, %c0_i32_0, %c0_i32_1 : i32, i32, i32
  }
  func.func @transform_8(%arg0: i32) -> (i32, i32, i32) {
    %c0_i32 = arith.constant 0 : i32
    %c0_i32_0 = arith.constant 0 : i32
    %c0_i32_1 = arith.constant 0 : i32
    %c0_i32_2 = arith.constant 0 : i32
    return %c0_i32, %c0_i32_0, %c0_i32_1 : i32, i32, i32
  }
  func.func @transform_9(%arg0: i32) -> (i32, i32, i32) {
    %c0_i32 = arith.constant 0 : i32
    %c0_i32_0 = arith.constant 0 : i32
    %c0_i32_1 = arith.constant 0 : i32
    %c0_i32_2 = arith.constant 0 : i32
    return %c0_i32, %c0_i32_0, %c0_i32_1 : i32, i32, i32
  }
  func.func @transform_10(%arg0: i32) -> (i32, i32, i32) {
    %c0_i32 = arith.constant 0 : i32
    %c0_i32_0 = arith.constant 0 : i32
    %c0_i32_1 = arith.constant 0 : i32
    %c0_i32_2 = arith.constant 0 : i32
    return %c0_i32, %c0_i32_0, %c0_i32_1 : i32, i32, i32
  }
  func.func @transform_11(%arg0: i32) -> (i32, i32, i32) {
    %c0_i32 = arith.constant 0 : i32
    %c0_i32_0 = arith.constant 0 : i32
    %c0_i32_1 = arith.constant 0 : i32
    %c0_i32_2 = arith.constant 0 : i32
    return %c0_i32, %c0_i32_0, %c0_i32_1 : i32, i32, i32
  }
  func.func @transform_12(%arg0: i32) -> (i32, i32) {
    %c0_i32 = arith.constant 0 : i32
    %c0_i32_0 = arith.constant 0 : i32
    %c0_i32_1 = arith.constant 0 : i32
    return %c0_i32, %c0_i32_0 : i32, i32
  }
  func.func @transform_13(%arg0: i32) -> (i32, i32) {
    %c0_i32 = arith.constant 0 : i32
    %c0_i32_0 = arith.constant 0 : i32
    %c0_i32_1 = arith.constant 0 : i32
    return %c0_i32, %c0_i32_0 : i32, i32
  }
  func.func @transform_14(%arg0: i32) -> (i32, i32) {
    %c0_i32 = arith.constant 0 : i32
    %c0_i32_0 = arith.constant 0 : i32
    %c0_i32_1 = arith.constant 0 : i32
    return %c0_i32, %c0_i32_0 : i32, i32
  }
  func.func @transform_15(%arg0: i32) -> (i32, i32) {
    %c0_i32 = arith.constant 0 : i32
    %c0_i32_0 = arith.constant 0 : i32
    %c0_i32_1 = arith.constant 0 : i32
    return %c0_i32, %c0_i32_0 : i32, i32
  }
  func.func @transform_16(%arg0: i32) -> (i32, i32) {
    %c0_i32 = arith.constant 0 : i32
    %c0_i32_0 = arith.constant 0 : i32
    %c0_i32_1 = arith.constant 0 : i32
    return %c0_i32, %c0_i32_0 : i32, i32
  }
  func.func @transform_17(%arg0: i32) -> (i32, i32) {
    %c0_i32 = arith.constant 0 : i32
    %c0_i32_0 = arith.constant 0 : i32
    %c0_i32_1 = arith.constant 0 : i32
    return %c0_i32, %c0_i32_0 : i32, i32
  }
  func.func @transform_18(%arg0: i32) -> (i32, i32) {
    %c0_i32 = arith.constant 0 : i32
    %c0_i32_0 = arith.constant 0 : i32
    %c0_i32_1 = arith.constant 0 : i32
    return %c0_i32, %c0_i32_0 : i32, i32
  }
  func.func @transform_19(%arg0: i32) -> (i32, i32) {
    %c0_i32 = arith.constant 0 : i32
    %c0_i32_0 = arith.constant 0 : i32
    %c0_i32_1 = arith.constant 0 : i32
    return %c0_i32, %c0_i32_0 : i32, i32
  }
  func.func @transform_20(%arg0: i32) -> (i32, i32) {
    %c0_i32 = arith.constant 0 : i32
    %c0_i32_0 = arith.constant 0 : i32
    %c0_i32_1 = arith.constant 0 : i32
    return %c0_i32, %c0_i32_0 : i32, i32
  }
  func.func @transform_21(%arg0: i32) -> (i32, i32) {
    %c0_i32 = arith.constant 0 : i32
    %c0_i32_0 = arith.constant 0 : i32
    %c0_i32_1 = arith.constant 0 : i32
    return %c0_i32, %c0_i32_0 : i32, i32
  }
  func.func @transform_22(%arg0: i32) -> (i32, i32) {
    %c0_i32 = arith.constant 0 : i32
    %c0_i32_0 = arith.constant 0 : i32
    %c0_i32_1 = arith.constant 0 : i32
    return %c0_i32, %c0_i32_0 : i32, i32
  }
  func.func @transform_23(%arg0: i32) -> (i32, i32) {
    %c0_i32 = arith.constant 0 : i32
    %c0_i32_0 = arith.constant 0 : i32
    %c0_i32_1 = arith.constant 0 : i32
    return %c0_i32, %c0_i32_0 : i32, i32
  }
  func.func @transform_24(%arg0: i32) -> (i32, i32) {
    %c0_i32 = arith.constant 0 : i32
    %c0_i32_0 = arith.constant 0 : i32
    %c0_i32_1 = arith.constant 0 : i32
    return %c0_i32, %c0_i32_0 : i32, i32
  }
  func.func @transform_25(%arg0: i32) -> (i32, i32) {
    %c0_i32 = arith.constant 0 : i32
    %c0_i32_0 = arith.constant 0 : i32
    %c0_i32_1 = arith.constant 0 : i32
    return %c0_i32, %c0_i32_0 : i32, i32
  }
  func.func @transform_26(%arg0: i32) -> (i32, i32, i32) {
    %c0_i32 = arith.constant 0 : i32
    %c0_i32_0 = arith.constant 0 : i32
    %c0_i32_1 = arith.constant 0 : i32
    return %arg0, %c0_i32, %c0_i32_0 : i32, i32, i32
  }
}

</mosaic_0001>

<llo_original>
// kernel: tpu_custom_call.1
$region0: #{tpu_custom_call.1}
  #allocation0 [shape = 'u32[]', space=smem, size = 0x4, offset = 0x4, fixed_abs, tag = 'smem constant byte address 0x4 - core index']
  #allocation1 [shape = 'u32[144,128]{1,0:T(1,128)}', space=vmem, size = 0x12000, scoped, tag = 'internal scratch']
  %s0 = inlined_call_operand.vmem [shape: f32[2,16,16], index: 0, kind: input, shape index: {}]
  %s1 = inlined_call_operand.vmem [shape: f32[16,16], index: 1, kind: input, shape index: {}]
  %s2 = inlined_call_operand.vmem [shape: f32[1,1,16], index: 2, kind: input, shape index: {}]
  %s3 = inlined_call_operand.vmem [shape: f32[1,1,16], index: 3, kind: input, shape index: {}]
  %s4 = inlined_call_operand.vmem [shape: f32[1,16,48], index: 4, kind: input, shape index: {}]
  %s5 = inlined_call_operand.vmem [shape: f32[1,16,16], index: 5, kind: input, shape index: {}]
  %s6 = inlined_call_operand.vmem [shape: f32[1,1,16], index: 6, kind: input, shape index: {}]
  %s7 = inlined_call_operand.vmem [shape: f32[1,1,16], index: 7, kind: input, shape index: {}]
  %s8 = inlined_call_operand.vmem [shape: f32[1,16,32], index: 8, kind: input, shape index: {}]
  %s9 = inlined_call_operand.vmem [shape: f32[1,1,32], index: 9, kind: input, shape index: {}]
  %s10 = inlined_call_operand.vmem [shape: f32[1,32,16], index: 10, kind: input, shape index: {}]
  %s11 = inlined_call_operand.vmem [shape: f32[1,1,16], index: 11, kind: input, shape index: {}]
  %s12 = inlined_call_operand.vmem [shape: f32[1,16], index: 12, kind: input, shape index: {}]
  %s13 = inlined_call_operand.vmem [shape: f32[1,16], index: 13, kind: input, shape index: {}]
  %s14 = inlined_call_operand.vmem [shape: f32[100,16], index: 14, kind: input, shape index: {}]
  %s15 = inlined_call_operand.vmem [shape: f32[144,8], index: 15, kind: input, shape index: {}]
  %s16 = inlined_call_operand.vmem [shape: f32[1,8], index: 16, kind: input, shape index: {}]
  %s17 = inlined_call_operand.vmem [shape: f32[1,8], index: 17, kind: input, shape index: {}]
  %s18 = inlined_call_operand.vmem [shape: f32[1,8], index: 18, kind: input, shape index: {}]
  %s19 = inlined_call_operand.vmem [shape: f32[324,64], index: 19, kind: input, shape index: {}]
  %s20 = inlined_call_operand.vmem [shape: f32[72,8], index: 20, kind: input, shape index: {}]
  %s21 = inlined_call_operand.vmem [shape: f32[1,8], index: 21, kind: input, shape index: {}]
  %s22 = inlined_call_operand.vmem [shape: f32[1,8], index: 22, kind: input, shape index: {}]
  %s23 = inlined_call_operand.vmem [shape: f32[1,8], index: 23, kind: input, shape index: {}]
  %s24 = inlined_call_operand.vmem [shape: f32[8,3], index: 24, kind: input, shape index: {}]
  %s25 = inlined_call_operand.vmem [shape: f32[1,3], index: 25, kind: input, shape index: {}]
  %s26 = inlined_call_operand.vmem [shape: f32[2,256,3], index: 26, kind: output, shape index: {}]
  %s27 = sld [smem:[#allocation0]]
  $region137: #{tpu_custom_call.1} parent=0
    _
  %s29 = ssub.s32 1, %s27
  %s30 = scalar_select 0, %s29, %s27
  loop: start=0, step=1, limit=4
  $region2: #{tpu_custom_call.1} parent=0 // loop_pre_header
    _
  $region3: #{tpu_custom_call.1} parent=0 // loop_header
    %s32 = sphi 0, %s36
    %p33 = scmp.ge.s32.totalorder %s32, 4
    %s42 = sphi 0, %s44
    %s45 = sphi 0, %s42
    %s46 = sphi 0, %s45
    %s62 = sphi 0, %s46
    %s66 = sphi 0, %s66
    %s68 = sphi 0, %s66
    %s69 = sphi 0, %s68
    %s83 = sphi 0, %s69
    %s87 = sphi 0, %s87
    %s89 = sphi 0, %s87
    %s90 = sphi 0, %s89
    %s104 = sphi 0, %s90
    %s108 = sphi 0, %s108
    %s110 = sphi 0, %s108
    %s111 = sphi 0, %s110
    %s125 = sphi 0, %s111
    %s129 = sphi 0, %s129
    %s131 = sphi 0, %s129
    %s132 = sphi 0, %s131
    %s146 = sphi 0, %s132
    %s150 = sphi 0, %s150
    %s152 = sphi 0, %s150
    %s153 = sphi 0, %s152
    %s167 = sphi 0, %s153
    %s171 = sphi 0, %s171
    %s173 = sphi 0, %s171
    %s174 = sphi 0, %s173
    %s188 = sphi 0, %s174
    %s192 = sphi 0, %s192
    %s194 = sphi 0, %s192
    %s195 = sphi 0, %s194
    %s209 = sphi 0, %s195
    %s213 = sphi 0, %s213
    %s215 = sphi 0, %s213
    %s216 = sphi 0, %s215
    %s230 = sphi 0, %s216
    %s234 = sphi 0, %s234
    %s236 = sphi 0, %s234
    %s237 = sphi 0, %s236
    %s251 = sphi 0, %s237
    %s255 = sphi 0, %s255
    %s257 = sphi 0, %s255
    %s258 = sphi 0, %s257
    %s272 = sphi 0, %s258
    %s276 = sphi 0, %s276
    %s278 = sphi 0, %s276
    %s279 = sphi 0, %s278
    %s293 = sphi 0, %s279
    %s297 = sphi 0, %s297
    %s299 = sphi 0, %s297
    %s300 = sphi 0, %s299
    %s314 = sphi 0, %s300
    %s318 = sphi 0, %s318
    %s320 = sphi 0, %s318
    %s321 = sphi 0, %s320
    %s335 = sphi 0, %s321
    %s339 = sphi 0, %s339
    %s341 = sphi 0, %s339
    %s342 = sphi 0, %s341
    %s356 = sphi 0, %s342
    %s360 = sphi 0, %s360
    %s362 = sphi 0, %s360
    %s363 = sphi 0, %s362
    %s377 = sphi 0, %s363
    %s381 = sphi 0, %s381
    %s383 = sphi 0, %s381
    %s384 = sphi 0, %s383
    %s398 = sphi 0, %s384
    %s402 = sphi 0, %s402
    %s404 = sphi 0, %s402
    %s405 = sphi 0, %s404
    %s419 = sphi 0, %s405
    %s423 = sphi 0, %s423
    %s425 = sphi 0, %s423
    %s426 = sphi 0, %s425
    %s440 = sphi 0, %s426
    %s444 = sphi 0, %s444
    %s446 = sphi 0, %s444
    %s447 = sphi 0, %s446
    %s461 = sphi 0, %s447
    %s465 = sphi 0, %s465
    %s467 = sphi 0, %s465
    %s468 = sphi 0, %s467
    %s482 = sphi 0, %s468
    %s486 = sphi 0, %s486
    %s488 = sphi 0, %s486
    %s489 = sphi 0, %s488
    %s503 = sphi 0, %s489
    %s507 = sphi 0, %s507
    %s509 = sphi 0, %s507
    %s510 = sphi 0, %s509
    %s524 = sphi 0, %s510
    %s528 = sphi 0, %s528
    %s530 = sphi 0, %s528
    %s531 = sphi 0, %s530
    %s545 = sphi 0, %s531
    %s549 = sphi 0, %s549
    %s551 = sphi 0, %s549
    %s552 = sphi 0, %s551
    %s566 = sphi 0, %s552
    %s570 = sphi 0, %s570
    %s572 = sphi 0, %s570
    %s573 = sphi 0, %s572
    %s587 = sphi 0, %s573
    %s593 = sphi 0, %s595
    %s596 = sphi 0, %s593
    %s597 = sphi 0, %s596
    %s613 = sphi 0, %s597
  $region4: #{tpu_custom_call.1} parent=0 // loop_header_branch
    %35 = sbr.rel (%p33) target = $region8
  $region5: #{tpu_custom_call.1} parent=0 // loop_body
    %s37 = ssub.s32 %s32, 1
    %s38 = ssub.s32 %s32, 2
    %s39 = sadd.s32 %s32, 1
    %s40 = ssub.s32 %s32, %s39
    %p41 = scmp.eq.s32.totalorder %s40, 0
    %s43 = sadd.s32 %s42, 1
    %s44 = scalar_select %p41, %s42, %s43
    %p47 = pneg %p41
    %p48 = scmp.eq.s32.totalorder %s32, 1
    %p49 = por %p47, %p48
    %p50 = scmp.ne.s32.totalorder %s42, %s45
    %p51 = scmp.eq.s32.totalorder %s32, 0
    %p52 = por %p50, %p51
    %p53 = scmp.ne.s32.totalorder %s42, %s45
    %p54 = scmp.eq.s32.totalorder %s37, 1
    %p55 = por %p53, %p54
    %p56 = scmp.ne.s32.totalorder %s45, %s46
    %p57 = scmp.eq.s32.totalorder %s37, 0
    %p58 = por %p56, %p57
    %p59 = scmp.ne.s32.totalorder %s45, %s46
    %p60 = scmp.eq.s32.totalorder %s38, 1
    %p61 = por %p59, %p60
    %p63 = scmp.ne.s32.totalorder %s46, %s62
    %p64 = scmp.eq.s32.totalorder %s38, 0
    %p65 = por %p63, %p64
    %s67 = sadd.s32 %s66, 1
    %p70 = scmp.eq.s32.totalorder %s32, 1
    %p71 = scmp.ne.s32.totalorder %s66, %s68
    %p72 = scmp.eq.s32.totalorder %s32, 0
    %p73 = por %p71, %p72
    %p74 = scmp.ne.s32.totalorder %s66, %s68
    %p75 = scmp.eq.s32.totalorder %s37, 1
    %p76 = por %p74, %p75
    %p77 = scmp.ne.s32.totalorder %s68, %s69
    %p78 = scmp.eq.s32.totalorder %s37, 0
    %p79 = por %p77, %p78
    %p80 = scmp.ne.s32.totalorder %s68, %s69
    %p81 = scmp.eq.s32.totalorder %s38, 1
    %p82 = por %p80, %p81
    %p84 = scmp.ne.s32.totalorder %s69, %s83
    %p85 = scmp.eq.s32.totalorder %s38, 0
    %p86 = por %p84, %p85
    %s88 = sadd.s32 %s87, 1
    %p91 = scmp.eq.s32.totalorder %s32, 1
    %p92 = scmp.ne.s32.totalorder %s87, %s89
    %p93 = scmp.eq.s32.totalorder %s32, 0
    %p94 = por %p92, %p93
    %p95 = scmp.ne.s32.totalorder %s87, %s89
    %p96 = scmp.eq.s32.totalorder %s37, 1
    %p97 = por %p95, %p96
    %p98 = scmp.ne.s32.totalorder %s89, %s90
    %p99 = scmp.eq.s32.totalorder %s37, 0
    %p100 = por %p98, %p99
    %p101 = scmp.ne.s32.totalorder %s89, %s90
    %p102 = scmp.eq.s32.totalorder %s38, 1
    %p103 = por %p101, %p102
    %p105 = scmp.ne.s32.totalorder %s90, %s104
    %p106 = scmp.eq.s32.totalorder %s38, 0
    %p107 = por %p105, %p106
    %s109 = sadd.s32 %s108, 1
    %p112 = scmp.eq.s32.totalorder %s32, 1
    %p113 = scmp.ne.s32.totalorder %s108, %s110
    %p114 = scmp.eq.s32.totalorder %s32, 0
    %p115 = por %p113, %p114
    %p116 = scmp.ne.s32.totalorder %s108, %s110
    %p117 = scmp.eq.s32.totalorder %s37, 1
    %p118 = por %p116, %p117
    %p119 = scmp.ne.s32.totalorder %s110, %s111
    %p120 = scmp.eq.s32.totalorder %s37, 0
    %p121 = por %p119, %p120
    %p122 = scmp.ne.s32.totalorder %s110, %s111
    %p123 = scmp.eq.s32.totalorder %s38, 1
    %p124 = por %p122, %p123
    %p126 = scmp.ne.s32.totalorder %s111, %s125
    %p127 = scmp.eq.s32.totalorder %s38, 0
    %p128 = por %p126, %p127
    %s130 = sadd.s32 %s129, 1
    %p133 = scmp.eq.s32.totalorder %s32, 1
    %p134 = scmp.ne.s32.totalorder %s129, %s131
    %p135 = scmp.eq.s32.totalorder %s32, 0
    %p136 = por %p134, %p135
    %p137 = scmp.ne.s32.totalorder %s129, %s131
    %p138 = scmp.eq.s32.totalorder %s37, 1
    %p139 = por %p137, %p138
    %p140 = scmp.ne.s32.totalorder %s131, %s132
    %p141 = scmp.eq.s32.totalorder %s37, 0
    %p142 = por %p140, %p141
    %p143 = scmp.ne.s32.totalorder %s131, %s132
    %p144 = scmp.eq.s32.totalorder %s38, 1
    %p145 = por %p143, %p144
    %p147 = scmp.ne.s32.totalorder %s132, %s146
    %p148 = scmp.eq.s32.totalorder %s38, 0
    %p149 = por %p147, %p148
    %s151 = sadd.s32 %s150, 1
    %p154 = scmp.eq.s32.totalorder %s32, 1
    %p155 = scmp.ne.s32.totalorder %s150, %s152
    %p156 = scmp.eq.s32.totalorder %s32, 0
    %p157 = por %p155, %p156
    %p158 = scmp.ne.s32.totalorder %s150, %s152
    %p159 = scmp.eq.s32.totalorder %s37, 1
    %p160 = por %p158, %p159
    %p161 = scmp.ne.s32.totalorder %s152, %s153
    %p162 = scmp.eq.s32.totalorder %s37, 0
    %p163 = por %p161, %p162
    %p164 = scmp.ne.s32.totalorder %s152, %s153
    %p165 = scmp.eq.s32.totalorder %s38, 1
    %p166 = por %p164, %p165
    %p168 = scmp.ne.s32.totalorder %s153, %s167
    %p169 = scmp.eq.s32.totalorder %s38, 0
    %p170 = por %p168, %p169
    %s172 = sadd.s32 %s171, 1
    %p175 = scmp.eq.s32.totalorder %s32, 1
    %p176 = scmp.ne.s32.totalorder %s171, %s173
    %p177 = scmp.eq.s32.totalorder %s32, 0
    %p178 = por %p176, %p177
    %p179 = scmp.ne.s32.totalorder %s171, %s173
    %p180 = scmp.eq.s32.totalorder %s37, 1
    %p181 = por %p179, %p180
    %p182 = scmp.ne.s32.totalorder %s173, %s174
    %p183 = scmp.eq.s32.totalorder %s37, 0
    %p184 = por %p182, %p183
    %p185 = scmp.ne.s32.totalorder %s173, %s174
    %p186 = scmp.eq.s32.totalorder %s38, 1
    %p187 = por %p185, %p186
    %p189 = scmp.ne.s32.totalorder %s174, %s188
    %p190 = scmp.eq.s32.totalorder %s38, 0
    %p191 = por %p189, %p190
    %s193 = sadd.s32 %s192, 1
    %p196 = scmp.eq.s32.totalorder %s32, 1
    %p197 = scmp.ne.s32.totalorder %s192, %s194
    %p198 = scmp.eq.s32.totalorder %s32, 0
    %p199 = por %p197, %p198
    %p200 = scmp.ne.s32.totalorder %s192, %s194
    %p201 = scmp.eq.s32.totalorder %s37, 1
    %p202 = por %p200, %p201
    %p203 = scmp.ne.s32.totalorder %s194, %s195
    %p204 = scmp.eq.s32.totalorder %s37, 0
    %p205 = por %p203, %p204
    %p206 = scmp.ne.s32.totalorder %s194, %s195
    %p207 = scmp.eq.s32.totalorder %s38, 1
    %p208 = por %p206, %p207
    %p210 = scmp.ne.s32.totalorder %s195, %s209
    %p211 = scmp.eq.s32.totalorder %s38, 0
    %p212 = por %p210, %p211
    %s214 = sadd.s32 %s213, 1
    %p217 = scmp.eq.s32.totalorder %s32, 1
    %p218 = scmp.ne.s32.totalorder %s213, %s215
    %p219 = scmp.eq.s32.totalorder %s32, 0
    %p220 = por %p218, %p219
    %p221 = scmp.ne.s32.totalorder %s213, %s215
    %p222 = scmp.eq.s32.totalorder %s37, 1
    %p223 = por %p221, %p222
    %p224 = scmp.ne.s32.totalorder %s215, %s216
    %p225 = scmp.eq.s32.totalorder %s37, 0
    %p226 = por %p224, %p225
    %p227 = scmp.ne.s32.totalorder %s215, %s216
    %p228 = scmp.eq.s32.totalorder %s38, 1
    %p229 = por %p227, %p228
    %p231 = scmp.ne.s32.totalorder %s216, %s230
    %p232 = scmp.eq.s32.totalorder %s38, 0
    %p233 = por %p231, %p232
    %s235 = sadd.s32 %s234, 1
    %p238 = scmp.eq.s32.totalorder %s32, 1
    %p239 = scmp.ne.s32.totalorder %s234, %s236
    %p240 = scmp.eq.s32.totalorder %s32, 0
    %p241 = por %p239, %p240
    %p242 = scmp.ne.s32.totalorder %s234, %s236
    %p243 = scmp.eq.s32.totalorder %s37, 1
    %p244 = por %p242, %p243
    %p245 = scmp.ne.s32.totalorder %s236, %s237
    %p246 = scmp.eq.s32.totalorder %s37, 0
    %p247 = por %p245, %p246
    %p248 = scmp.ne.s32.totalorder %s236, %s237
    %p249 = scmp.eq.s32.totalorder %s38, 1
    %p250 = por %p248, %p249
    %p252 = scmp.ne.s32.totalorder %s237, %s251
    %p253 = scmp.eq.s32.totalorder %s38, 0
    %p254 = por %p252, %p253
    %s256 = sadd.s32 %s255, 1
    %p259 = scmp.eq.s32.totalorder %s32, 1
    %p260 = scmp.ne.s32.totalorder %s255, %s257
    %p261 = scmp.eq.s32.totalorder %s32, 0
    %p262 = por %p260, %p261
    %p263 = scmp.ne.s32.totalorder %s255, %s257
    %p264 = scmp.eq.s32.totalorder %s37, 1
    %p265 = por %p263, %p264
    %p266 = scmp.ne.s32.totalorder %s257, %s258
    %p267 = scmp.eq.s32.totalorder %s37, 0
    %p268 = por %p266, %p267
    %p269 = scmp.ne.s32.totalorder %s257, %s258
    %p270 = scmp.eq.s32.totalorder %s38, 1
    %p271 = por %p269, %p270
    %p273 = scmp.ne.s32.totalorder %s258, %s272
    %p274 = scmp.eq.s32.totalorder %s38, 0
    %p275 = por %p273, %p274
    %s277 = sadd.s32 %s276, 1
    %p280 = scmp.eq.s32.totalorder %s32, 1
    %p281 = scmp.ne.s32.totalorder %s276, %s278
    %p282 = scmp.eq.s32.totalorder %s32, 0
    %p283 = por %p281, %p282
    %p284 = scmp.ne.s32.totalorder %s276, %s278
    %p285 = scmp.eq.s32.totalorder %s37, 1
    %p286 = por %p284, %p285
    %p287 = scmp.ne.s32.totalorder %s278, %s279
    %p288 = scmp.eq.s32.totalorder %s37, 0
    %p289 = por %p287, %p288
    %p290 = scmp.ne.s32.totalorder %s278, %s279
    %p291 = scmp.eq.s32.totalorder %s38, 1
    %p292 = por %p290, %p291
    %p294 = scmp.ne.s32.totalorder %s279, %s293
    %p295 = scmp.eq.s32.totalorder %s38, 0
    %p296 = por %p294, %p295
    %s298 = sadd.s32 %s297, 1
    %p301 = scmp.eq.s32.totalorder %s32, 1
    %p302 = scmp.ne.s32.totalorder %s297, %s299
    %p303 = scmp.eq.s32.totalorder %s32, 0
    %p304 = por %p302, %p303
    %p305 = scmp.ne.s32.totalorder %s297, %s299
    %p306 = scmp.eq.s32.totalorder %s37, 1
    %p307 = por %p305, %p306
    %p308 = scmp.ne.s32.totalorder %s299, %s300
    %p309 = scmp.eq.s32.totalorder %s37, 0
    %p310 = por %p308, %p309
    %p311 = scmp.ne.s32.totalorder %s299, %s300
    %p312 = scmp.eq.s32.totalorder %s38, 1
    %p313 = por %p311, %p312
    %p315 = scmp.ne.s32.totalorder %s300, %s314
    %p316 = scmp.eq.s32.totalorder %s38, 0
    %p317 = por %p315, %p316
    %s319 = sadd.s32 %s318, 1
    %p322 = scmp.eq.s32.totalorder %s32, 1
    %p323 = scmp.ne.s32.totalorder %s318, %s320
    %p324 = scmp.eq.s32.totalorder %s32, 0
    %p325 = por %p323, %p324
    %p326 = scmp.ne.s32.totalorder %s318, %s320
    %p327 = scmp.eq.s32.totalorder %s37, 1
    %p328 = por %p326, %p327
    %p329 = scmp.ne.s32.totalorder %s320, %s321
    %p330 = scmp.eq.s32.totalorder %s37, 0
    %p331 = por %p329, %p330
    %p332 = scmp.ne.s32.totalorder %s320, %s321
    %p333 = scmp.eq.s32.totalorder %s38, 1
    %p334 = por %p332, %p333
    %p336 = scmp.ne.s32.totalorder %s321, %s335
    %p337 = scmp.eq.s32.totalorder %s38, 0
    %p338 = por %p336, %p337
    %s340 = sadd.s32 %s339, 1
    %p343 = scmp.eq.s32.totalorder %s32, 1
    %p344 = scmp.ne.s32.totalorder %s339, %s341
    %p345 = scmp.eq.s32.totalorder %s32, 0
    %p346 = por %p344, %p345
    %p347 = scmp.ne.s32.totalorder %s339, %s341
    %p348 = scmp.eq.s32.totalorder %s37, 1
    %p349 = por %p347, %p348
    %p350 = scmp.ne.s32.totalorder %s341, %s342
    %p351 = scmp.eq.s32.totalorder %s37, 0
    %p352 = por %p350, %p351
    %p353 = scmp.ne.s32.totalorder %s341, %s342
    %p354 = scmp.eq.s32.totalorder %s38, 1
    %p355 = por %p353, %p354
    %p357 = scmp.ne.s32.totalorder %s342, %s356
    %p358 = scmp.eq.s32.totalorder %s38, 0
    %p359 = por %p357, %p358
    %s361 = sadd.s32 %s360, 1
    %p364 = scmp.eq.s32.totalorder %s32, 1
    %p365 = scmp.ne.s32.totalorder %s360, %s362
    %p366 = scmp.eq.s32.totalorder %s32, 0
    %p367 = por %p365, %p366
    %p368 = scmp.ne.s32.totalorder %s360, %s362
    %p369 = scmp.eq.s32.totalorder %s37, 1
    %p370 = por %p368, %p369
    %p371 = scmp.ne.s32.totalorder %s362, %s363
    %p372 = scmp.eq.s32.totalorder %s37, 0
    %p373 = por %p371, %p372
    %p374 = scmp.ne.s32.totalorder %s362, %s363
    %p375 = scmp.eq.s32.totalorder %s38, 1
    %p376 = por %p374, %p375
    %p378 = scmp.ne.s32.totalorder %s363, %s377
    %p379 = scmp.eq.s32.totalorder %s38, 0
    %p380 = por %p378, %p379
    %s382 = sadd.s32 %s381, 1
    %p385 = scmp.eq.s32.totalorder %s32, 1
    %p386 = scmp.ne.s32.totalorder %s381, %s383
    %p387 = scmp.eq.s32.totalorder %s32, 0
    %p388 = por %p386, %p387
    %p389 = scmp.ne.s32.totalorder %s381, %s383
    %p390 = scmp.eq.s32.totalorder %s37, 1
    %p391 = por %p389, %p390
    %p392 = scmp.ne.s32.totalorder %s383, %s384
    %p393 = scmp.eq.s32.totalorder %s37, 0
    %p394 = por %p392, %p393
    %p395 = scmp.ne.s32.totalorder %s383, %s384
    %p396 = scmp.eq.s32.totalorder %s38, 1
    %p397 = por %p395, %p396
    %p399 = scmp.ne.s32.totalorder %s384, %s398
    %p400 = scmp.eq.s32.totalorder %s38, 0
    %p401 = por %p399, %p400
    %s403 = sadd.s32 %s402, 1
    %p406 = scmp.eq.s32.totalorder %s32, 1
    %p407 = scmp.ne.s32.totalorder %s402, %s404
    %p408 = scmp.eq.s32.totalorder %s32, 0
    %p409 = por %p407, %p408
    %p410 = scmp.ne.s32.totalorder %s402, %s404
    %p411 = scmp.eq.s32.totalorder %s37, 1
    %p412 = por %p410, %p411
    %p413 = scmp.ne.s32.totalorder %s404, %s405
    %p414 = scmp.eq.s32.totalorder %s37, 0
    %p415 = por %p413, %p414
    %p416 = scmp.ne.s32.totalorder %s404, %s405
    %p417 = scmp.eq.s32.totalorder %s38, 1
    %p418 = por %p416, %p417
    %p420 = scmp.ne.s32.totalorder %s405, %s419
    %p421 = scmp.eq.s32.totalorder %s38, 0
    %p422 = por %p420, %p421
    %s424 = sadd.s32 %s423, 1
    %p427 = scmp.eq.s32.totalorder %s32, 1
    %p428 = scmp.ne.s32.totalorder %s423, %s425
    %p429 = scmp.eq.s32.totalorder %s32, 0
    %p430 = por %p428, %p429
    %p431 = scmp.ne.s32.totalorder %s423, %s425
    %p432 = scmp.eq.s32.totalorder %s37, 1
    %p433 = por %p431, %p432
    %p434 = scmp.ne.s32.totalorder %s425, %s426
    %p435 = scmp.eq.s32.totalorder %s37, 0
    %p436 = por %p434, %p435
    %p437 = scmp.ne.s32.totalorder %s425, %s426
    %p438 = scmp.eq.s32.totalorder %s38, 1
    %p439 = por %p437, %p438
    %p441 = scmp.ne.s32.totalorder %s426, %s440
    %p442 = scmp.eq.s32.totalorder %s38, 0
    %p443 = por %p441, %p442
    %s445 = sadd.s32 %s444, 1
    %p448 = scmp.eq.s32.totalorder %s32, 1
    %p449 = scmp.ne.s32.totalorder %s444, %s446
    %p450 = scmp.eq.s32.totalorder %s32, 0
    %p451 = por %p449, %p450
    %p452 = scmp.ne.s32.totalorder %s444, %s446
    %p453 = scmp.eq.s32.totalorder %s37, 1
    %p454 = por %p452, %p453
    %p455 = scmp.ne.s32.totalorder %s446, %s447
    %p456 = scmp.eq.s32.totalorder %s37, 0
    %p457 = por %p455, %p456
    %p458 = scmp.ne.s32.totalorder %s446, %s447
    %p459 = scmp.eq.s32.totalorder %s38, 1
    %p460 = por %p458, %p459
    %p462 = scmp.ne.s32.totalorder %s447, %s461
    %p463 = scmp.eq.s32.totalorder %s38, 0
    %p464 = por %p462, %p463
    %s466 = sadd.s32 %s465, 1
    %p469 = scmp.eq.s32.totalorder %s32, 1
    %p470 = scmp.ne.s32.totalorder %s465, %s467
    %p471 = scmp.eq.s32.totalorder %s32, 0
    %p472 = por %p470, %p471
    %p473 = scmp.ne.s32.totalorder %s465, %s467
    %p474 = scmp.eq.s32.totalorder %s37, 1
    %p475 = por %p473, %p474
    %p476 = scmp.ne.s32.totalorder %s467, %s468
    %p477 = scmp.eq.s32.totalorder %s37, 0
    %p478 = por %p476, %p477
    %p479 = scmp.ne.s32.totalorder %s467, %s468
    %p480 = scmp.eq.s32.totalorder %s38, 1
    %p481 = por %p479, %p480
    %p483 = scmp.ne.s32.totalorder %s468, %s482
    %p484 = scmp.eq.s32.totalorder %s38, 0
    %p485 = por %p483, %p484
    %s487 = sadd.s32 %s486, 1
    %p490 = scmp.eq.s32.totalorder %s32, 1
    %p491 = scmp.ne.s32.totalorder %s486, %s488
    %p492 = scmp.eq.s32.totalorder %s32, 0
    %p493 = por %p491, %p492
    %p494 = scmp.ne.s32.totalorder %s486, %s488
    %p495 = scmp.eq.s32.totalorder %s37, 1
    %p496 = por %p494, %p495
    %p497 = scmp.ne.s32.totalorder %s488, %s489
    %p498 = scmp.eq.s32.totalorder %s37, 0
    %p499 = por %p497, %p498
    %p500 = scmp.ne.s32.totalorder %s488, %s489
    %p501 = scmp.eq.s32.totalorder %s38, 1
    %p502 = por %p500, %p501
    %p504 = scmp.ne.s32.totalorder %s489, %s503
    %p505 = scmp.eq.s32.totalorder %s38, 0
    %p506 = por %p504, %p505
    %s508 = sadd.s32 %s507, 1
    %p511 = scmp.eq.s32.totalorder %s32, 1
    %p512 = scmp.ne.s32.totalorder %s507, %s509
    %p513 = scmp.eq.s32.totalorder %s32, 0
    %p514 = por %p512, %p513
    %p515 = scmp.ne.s32.totalorder %s507, %s509
    %p516 = scmp.eq.s32.totalorder %s37, 1
    %p517 = por %p515, %p516
    %p518 = scmp.ne.s32.totalorder %s509, %s510
    %p519 = scmp.eq.s32.totalorder %s37, 0
    %p520 = por %p518, %p519
    %p521 = scmp.ne.s32.totalorder %s509, %s510
    %p522 = scmp.eq.s32.totalorder %s38, 1
    %p523 = por %p521, %p522
    %p525 = scmp.ne.s32.totalorder %s510, %s524
    %p526 = scmp.eq.s32.totalorder %s38, 0
    %p527 = por %p525, %p526
    %s529 = sadd.s32 %s528, 1
    %p532 = scmp.eq.s32.totalorder %s32, 1
    %p533 = scmp.ne.s32.totalorder %s528, %s530
    %p534 = scmp.eq.s32.totalorder %s32, 0
    %p535 = por %p533, %p534
    %p536 = scmp.ne.s32.totalorder %s528, %s530
    %p537 = scmp.eq.s32.totalorder %s37, 1
    %p538 = por %p536, %p537
    %p539 = scmp.ne.s32.totalorder %s530, %s531
    %p540 = scmp.eq.s32.totalorder %s37, 0
    %p541 = por %p539, %p540
    %p542 = scmp.ne.s32.totalorder %s530, %s531
    %p543 = scmp.eq.s32.totalorder %s38, 1
    %p544 = por %p542, %p543
    %p546 = scmp.ne.s32.totalorder %s531, %s545
    %p547 = scmp.eq.s32.totalorder %s38, 0
    %p548 = por %p546, %p547
    %s550 = sadd.s32 %s549, 1
    %p553 = scmp.eq.s32.totalorder %s32, 1
    %p554 = scmp.ne.s32.totalorder %s549, %s551
    %p555 = scmp.eq.s32.totalorder %s32, 0
    %p556 = por %p554, %p555
    %p557 = scmp.ne.s32.totalorder %s549, %s551
    %p558 = scmp.eq.s32.totalorder %s37, 1
    %p559 = por %p557, %p558
    %p560 = scmp.ne.s32.totalorder %s551, %s552
    %p561 = scmp.eq.s32.totalorder %s37, 0
    %p562 = por %p560, %p561
    %p563 = scmp.ne.s32.totalorder %s551, %s552
    %p564 = scmp.eq.s32.totalorder %s38, 1
    %p565 = por %p563, %p564
    %p567 = scmp.ne.s32.totalorder %s552, %s566
    %p568 = scmp.eq.s32.totalorder %s38, 0
    %p569 = por %p567, %p568
    %s571 = sadd.s32 %s570, 1
    %p574 = scmp.eq.s32.totalorder %s32, 1
    %p575 = scmp.ne.s32.totalorder %s570, %s572
    %p576 = scmp.eq.s32.totalorder %s32, 0
    %p577 = por %p575, %p576
    %p578 = scmp.ne.s32.totalorder %s570, %s572
    %p579 = scmp.eq.s32.totalorder %s37, 1
    %p580 = por %p578, %p579
    %p581 = scmp.ne.s32.totalorder %s572, %s573
    %p582 = scmp.eq.s32.totalorder %s37, 0
    %p583 = por %p581, %p582
    %p584 = scmp.ne.s32.totalorder %s572, %s573
    %p585 = scmp.eq.s32.totalorder %s38, 1
    %p586 = por %p584, %p585
    %p588 = scmp.ne.s32.totalorder %s573, %s587
    %p589 = scmp.eq.s32.totalorder %s38, 0
    %p590 = por %p588, %p589
    %s591 = ssub.s32 %s32, %s39
    %p592 = scmp.eq.s32.totalorder %s591, 0
    %s594 = sadd.s32 %s593, 1
    %s595 = scalar_select %p592, %s593, %s594
    %p598 = pneg %p592
    %p599 = scmp.eq.s32.totalorder %s32, 1
    %p600 = por %p598, %p599
    %p601 = scmp.ne.s32.totalorder %s593, %s596
    %p602 = scmp.eq.s32.totalorder %s32, 0
    %p603 = por %p601, %p602
    %p604 = scmp.ne.s32.totalorder %s593, %s596
    %p605 = scmp.eq.s32.totalorder %s37, 1
    %p606 = por %p604, %p605
    %p607 = scmp.ne.s32.totalorder %s596, %s597
    %p608 = scmp.eq.s32.totalorder %s37, 0
    %p609 = por %p607, %p608
    %p610 = scmp.ne.s32.totalorder %s596, %s597
    %p611 = scmp.eq.s32.totalorder %s38, 1
    %p612 = por %p610, %p611
    %p614 = scmp.ne.s32.totalorder %s597, %s613
    %p615 = scmp.eq.s32.totalorder %s38, 0
    %p616 = por %p614, %p615
    %p617 = scmp.le.s32.totalorder 1, %s32
    %p618 = scmp.lt.s32.totalorder %s32, 3
    %p619 = pnand %p617, %p618
    %p620 = pneg %p619
    // Predicated region
    $region9: #{tpu_custom_call.1} parent=5 // pred_check
      _
    $region10: #{tpu_custom_call.1} parent=5 // pred_check_branch
      %622 = sbr.rel (%p619) target = $region12
    $region11: #{tpu_custom_call.1} parent=5 // pred_region
      %s623 = ssub.s32 %s32, 1
      // Predicated region
      $region13: #{tpu_custom_call.1} parent=11 // pred_check
        %p624 = pneg %p79
      $region14: #{tpu_custom_call.1} parent=11 // pred_check_branch
        %626 = sbr.rel (%p624) target = $region16
      $region15: #{tpu_custom_call.1} parent=11 // pred_region
        _
      $region16: #{tpu_custom_call.1} parent=11 // pred_fallthru
        _
      // Predicated region
      $region17: #{tpu_custom_call.1} parent=11 // pred_check
        %p627 = pneg %p100
      $region18: #{tpu_custom_call.1} parent=11 // pred_check_branch
        %629 = sbr.rel (%p627) target = $region20
      $region19: #{tpu_custom_call.1} parent=11 // pred_region
        _
      $region20: #{tpu_custom_call.1} parent=11 // pred_fallthru
        _
      // Predicated region
      $region21: #{tpu_custom_call.1} parent=11 // pred_check
        %p630 = pneg %p121
      $region22: #{tpu_custom_call.1} parent=11 // pred_check_branch
        %632 = sbr.rel (%p630) target = $region24
      $region23: #{tpu_custom_call.1} parent=11 // pred_region
        _
      $region24: #{tpu_custom_call.1} parent=11 // pred_fallthru
        _
      // Predicated region
      $region25: #{tpu_custom_call.1} parent=11 // pred_check
        %p633 = pneg %p142
      $region26: #{tpu_custom_call.1} parent=11 // pred_check_branch
        %635 = sbr.rel (%p633) target = $region28
      $region27: #{tpu_custom_call.1} parent=11 // pred_region
        _
      $region28: #{tpu_custom_call.1} parent=11 // pred_fallthru
        _
      // Predicated region
      $region29: #{tpu_custom_call.1} parent=11 // pred_check
        %p636 = pneg %p163
      $region30: #{tpu_custom_call.1} parent=11 // pred_check_branch
        %638 = sbr.rel (%p636) target = $region32
      $region31: #{tpu_custom_call.1} parent=11 // pred_region
        _
      $region32: #{tpu_custom_call.1} parent=11 // pred_fallthru
        _
      // Predicated region
      $region33: #{tpu_custom_call.1} parent=11 // pred_check
        %p639 = pneg %p184
      $region34: #{tpu_custom_call.1} parent=11 // pred_check_branch
        %641 = sbr.rel (%p639) target = $region36
      $region35: #{tpu_custom_call.1} parent=11 // pred_region
        _
      $region36: #{tpu_custom_call.1} parent=11 // pred_fallthru
        _
      // Predicated region
      $region37: #{tpu_custom_call.1} parent=11 // pred_check
        %p642 = pneg %p205
      $region38: #{tpu_custom_call.1} parent=11 // pred_check_branch
        %644 = sbr.rel (%p642) target = $region40
      $region39: #{tpu_custom_call.1} parent=11 // pred_region
        _
      $region40: #{tpu_custom_call.1} parent=11 // pred_fallthru
        _
      // Predicated region
      $region41: #{tpu_custom_call.1} parent=11 // pred_check
        %p645 = pneg %p226
      $region42: #{tpu_custom_call.1} parent=11 // pred_check_branch
        %647 = sbr.rel (%p645) target = $region44
      $region43: #{tpu_custom_call.1} parent=11 // pred_region
        _
      $region44: #{tpu_custom_call.1} parent=11 // pred_fallthru
        _
      // Predicated region
      $region45: #{tpu_custom_call.1} parent=11 // pred_check
        %p648 = pneg %p247
      $region46: #{tpu_custom_call.1} parent=11 // pred_check_branch
        %650 = sbr.rel (%p648) target = $region48
      $region47: #{tpu_custom_call.1} parent=11 // pred_region
        _
      $region48: #{tpu_custom_call.1} parent=11 // pred_fallthru
        _
      // Predicated region
      $region49: #{tpu_custom_call.1} parent=11 // pred_check
        %p651 = pneg %p268
      $region50: #{tpu_custom_call.1} parent=11 // pred_check_branch
        %653 = sbr.rel (%p651) target = $region52
      $region51: #{tpu_custom_call.1} parent=11 // pred_region
        _
      $region52: #{tpu_custom_call.1} parent=11 // pred_fallthru
        _
      // Predicated region
      $region53: #{tpu_custom_call.1} parent=11 // pred_check
        %p654 = pneg %p289
      $region54: #{tpu_custom_call.1} parent=11 // pred_check_branch
        %656 = sbr.rel (%p654) target = $region56
      $region55: #{tpu_custom_call.1} parent=11 // pred_region
        _
      $region56: #{tpu_custom_call.1} parent=11 // pred_fallthru
        _
      // Predicated region
      $region57: #{tpu_custom_call.1} parent=11 // pred_check
        %p657 = pneg %p310
      $region58: #{tpu_custom_call.1} parent=11 // pred_check_branch
        %659 = sbr.rel (%p657) target = $region60
      $region59: #{tpu_custom_call.1} parent=11 // pred_region
        _
      $region60: #{tpu_custom_call.1} parent=11 // pred_fallthru
        _
      // Predicated region
      $region61: #{tpu_custom_call.1} parent=11 // pred_check
        %p660 = pneg %p331
      $region62: #{tpu_custom_call.1} parent=11 // pred_check_branch
        %662 = sbr.rel (%p660) target = $region64
      $region63: #{tpu_custom_call.1} parent=11 // pred_region
        _
      $region64: #{tpu_custom_call.1} parent=11 // pred_fallthru
        _
      // Predicated region
      $region65: #{tpu_custom_call.1} parent=11 // pred_check
        %p663 = pneg %p352
      $region66: #{tpu_custom_call.1} parent=11 // pred_check_branch
        %665 = sbr.rel (%p663) target = $region68
      $region67: #{tpu_custom_call.1} parent=11 // pred_region
        _
      $region68: #{tpu_custom_call.1} parent=11 // pred_fallthru
        _
      // Predicated region
      $region69: #{tpu_custom_call.1} parent=11 // pred_check
        %p666 = pneg %p373
      $region70: #{tpu_custom_call.1} parent=11 // pred_check_branch
        %668 = sbr.rel (%p666) target = $region72
      $region71: #{tpu_custom_call.1} parent=11 // pred_region
        _
      $region72: #{tpu_custom_call.1} parent=11 // pred_fallthru
        _
      // Predicated region
      $region73: #{tpu_custom_call.1} parent=11 // pred_check
        %p669 = pneg %p394
      $region74: #{tpu_custom_call.1} parent=11 // pred_check_branch
        %671 = sbr.rel (%p669) target = $region76
      $region75: #{tpu_custom_call.1} parent=11 // pred_region
        _
      $region76: #{tpu_custom_call.1} parent=11 // pred_fallthru
        _
      // Predicated region
      $region77: #{tpu_custom_call.1} parent=11 // pred_check
        %p672 = pneg %p415
      $region78: #{tpu_custom_call.1} parent=11 // pred_check_branch
        %674 = sbr.rel (%p672) target = $region80
      $region79: #{tpu_custom_call.1} parent=11 // pred_region
        _
      $region80: #{tpu_custom_call.1} parent=11 // pred_fallthru
        _
      // Predicated region
      $region81: #{tpu_custom_call.1} parent=11 // pred_check
        %p675 = pneg %p436
      $region82: #{tpu_custom_call.1} parent=11 // pred_check_branch
        %677 = sbr.rel (%p675) target = $region84
      $region83: #{tpu_custom_call.1} parent=11 // pred_region
        _
      $region84: #{tpu_custom_call.1} parent=11 // pred_fallthru
        _
      // Predicated region
      $region85: #{tpu_custom_call.1} parent=11 // pred_check
        %p678 = pneg %p457
      $region86: #{tpu_custom_call.1} parent=11 // pred_check_branch
        %680 = sbr.rel (%p678) target = $region88
      $region87: #{tpu_custom_call.1} parent=11 // pred_region
        _
      $region88: #{tpu_custom_call.1} parent=11 // pred_fallthru
        _
      // Predicated region
      $region89: #{tpu_custom_call.1} parent=11 // pred_check
        %p681 = pneg %p478
      $region90: #{tpu_custom_call.1} parent=11 // pred_check_branch
        %683 = sbr.rel (%p681) target = $region92
      $region91: #{tpu_custom_call.1} parent=11 // pred_region
        _
      $region92: #{tpu_custom_call.1} parent=11 // pred_fallthru
        _
      // Predicated region
      $region93: #{tpu_custom_call.1} parent=11 // pred_check
        %p684 = pneg %p499
      $region94: #{tpu_custom_call.1} parent=11 // pred_check_branch
        %686 = sbr.rel (%p684) target = $region96
      $region95: #{tpu_custom_call.1} parent=11 // pred_region
        _
      $region96: #{tpu_custom_call.1} parent=11 // pred_fallthru
        _
      // Predicated region
      $region97: #{tpu_custom_call.1} parent=11 // pred_check
        %p687 = pneg %p520
      $region98: #{tpu_custom_call.1} parent=11 // pred_check_branch
        %689 = sbr.rel (%p687) target = $region100
      $region99: #{tpu_custom_call.1} parent=11 // pred_region
        _
      $region100: #{tpu_custom_call.1} parent=11 // pred_fallthru
        _
      // Predicated region
      $region101: #{tpu_custom_call.1} parent=11 // pred_check
        %p690 = pneg %p541
      $region102: #{tpu_custom_call.1} parent=11 // pred_check_branch
        %692 = sbr.rel (%p690) target = $region104
      $region103: #{tpu_custom_call.1} parent=11 // pred_region
        _
      $region104: #{tpu_custom_call.1} parent=11 // pred_fallthru
        _
      // Predicated region
      $region105: #{tpu_custom_call.1} parent=11 // pred_check
        %p693 = pneg %p562
      $region106: #{tpu_custom_call.1} parent=11 // pred_check_branch
        %695 = sbr.rel (%p693) target = $region108
      $region107: #{tpu_custom_call.1} parent=11 // pred_region
        _
      $region108: #{tpu_custom_call.1} parent=11 // pred_fallthru
        _
      // Predicated region
      $region109: #{tpu_custom_call.1} parent=11 // pred_check
        %p696 = pneg %p583
      $region110: #{tpu_custom_call.1} parent=11 // pred_check_branch
        %698 = sbr.rel (%p696) target = $region112
      $region111: #{tpu_custom_call.1} parent=11 // pred_region
        _
      $region112: #{tpu_custom_call.1} parent=11 // pred_fallthru
        _
    $region12: #{tpu_custom_call.1} parent=5 // pred_fallthru
      _
    %p699 = scmp.lt.s32.totalorder %s32, 2
    // Predicated region
    $region113: #{tpu_custom_call.1} parent=5 // pred_check
      %p700 = pneg %p699
    $region114: #{tpu_custom_call.1} parent=5 // pred_check_branch
      %702 = sbr.rel (%p700) target = $region116
    $region115: #{tpu_custom_call.1} parent=5 // pred_region
      // Predicated region
      $region117: #{tpu_custom_call.1} parent=115 // pred_check
        %p703 = pneg %p52
      $region118: #{tpu_custom_call.1} parent=115 // pred_check_branch
        %705 = sbr.rel (%p703) target = $region120
      $region119: #{tpu_custom_call.1} parent=115 // pred_region
        %p706 = scmp.lt.s32.totalorder %s32, 1
        %s707 = scalar_select %p706, %s32, 1
        %s708 = smul.addr %s707, 2
        %s709 = smul.addr %s708, 8
        %s710 = scalar_lea.vmem %s0, %s709
      $region120: #{tpu_custom_call.1} parent=115 // pred_fallthru
        _
    $region116: #{tpu_custom_call.1} parent=5 // pred_fallthru
      _
    %p711 = scmp.le.s32.totalorder 1, %s32
    %p712 = scmp.lt.s32.totalorder %s32, 3
    %p713 = pnand %p711, %p712
    %p714 = pneg %p713
    // Predicated region
    $region121: #{tpu_custom_call.1} parent=5 // pred_check
      _
    $region122: #{tpu_custom_call.1} parent=5 // pred_check_branch
      %716 = sbr.rel (%p713) target = $region124
    $region123: #{tpu_custom_call.1} parent=5 // pred_region
      %s717 = ssub.s32 %s32, 1
      %p718 = scmp.lt.s32.totalorder %s37, 1
      %s719 = scalar_select %p718, %s37, 1
      %s720 = smul.addr %s719, 2
      %s721 = smul.addr %s720, 8
      %s722 = scalar_lea.vmem %s0, %s721
      %p723 = pneg %p58
      %p724 = pneg %p55
      %p725 = pneg %p79
      %p726 = pneg %p76
      %p727 = pneg %p100
      %p728 = pneg %p97
      %p729 = pneg %p121
      %p730 = pneg %p118
      %p731 = pneg %p142
      %p732 = pneg %p139
      %p733 = pneg %p163
      %p734 = pneg %p160
      %p735 = pneg %p184
      %p736 = pneg %p181
      %p737 = pneg %p205
      %p738 = pneg %p202
      %p739 = pneg %p226
      %p740 = pneg %p223
      %p741 = pneg %p247
      %p742 = pneg %p244
      %p743 = pneg %p268
      %p744 = pneg %p265
      %p745 = pneg %p289
      %p746 = pneg %p286
      %p747 = pneg %p310
      %p748 = pneg %p307
      %p749 = pneg %p331
      %p750 = pneg %p328
      %p751 = pneg %p352
      %p752 = pneg %p349
      %p753 = pneg %p373
      %p754 = pneg %p370
      %p755 = pneg %p394
      %p756 = pneg %p391
      %p757 = pneg %p415
      %p758 = pneg %p412
      %p759 = pneg %p436
      %p760 = pneg %p433
      %p761 = pneg %p457
      %p762 = pneg %p454
      %p763 = pneg %p478
      %p764 = pneg %p475
      %p765 = pneg %p499
      %p766 = pneg %p496
      %p767 = pneg %p520
      %p768 = pneg %p517
      %p769 = pneg %p541
      %p770 = pneg %p538
      %p771 = pneg %p562
      %p772 = pneg %p559
      %p773 = pneg %p583
      %p774 = pneg %p580
      %p775 = pneg %p609
      %p776 = pneg %p606
      %p777 = scmp.lt.s32.totalorder %s37, 1
      %s778 = scalar_select %p777, %s37, 1
      %s779 = smul.addr %s778, 32
      %s780 = smul.addr %s779, 8
      %s781 = scalar_lea.vmem %s26, %s780
      %p782 = scmp.lt.s32.totalorder %s37, 1
      %s783 = scalar_select %p782, %s37, 1
      %s784 = smul.addr %s783, 2
      %s785 = smul.addr %s784, 8
      %s786 = scalar_lea.vmem %s0, %s785
      %p787 = scmp.lt.s32.totalorder %s37, 1
      %s788 = scalar_select %p787, %s37, 1
      %s789 = smul.addr %s788, 32
      %s790 = smul.addr %s789, 8
      %s791 = scalar_lea.vmem %s26, %s790
      %v792 = vld [vmem:[%s786] sm:$0xff]
      %v793 = vld [vmem:[%s786 + $0x8] sm:$0xff]
      %v794 = vld [vmem:[%s1] sm:$0xff]
      %v795 = vld [vmem:[%s1 + $0x8] sm:$0xff]
      %v796 = vadd.f32 %v792, %v794
      %v797 = vadd.f32 %v793, %v795
      %v798 = vld [vmem:[%s2] sm:$0x1]
      %v799 = vld [vmem:[%s3] sm:$0x1]
      %vm800 = vcmask 130048
      %v801 = vsel %vm800, %v796, 0.0
      %802 = vadd.xlane.f32.xlu0 %v801
      %v803 = vpop.xlane.xlu0 %802
      %v804 = vsel %vm800, %v797, 0.0
      %805 = vadd.xlane.f32.xlu0 %v804
      %v806 = vpop.xlane.xlu0 %805
      %v807 = vrcp.pop 16.0
      %v808 = vmul.f32 %v803, %v807
      %v809 = vmul.f32 %v806, %v807
      %v810 = vsub.f32 %v796, %v808
      %v811 = vsub.f32 %v797, %v809
      %v812 = vmul.f32 %v810, %v810
      %v813 = vmul.f32 %v811, %v811
      %v814 = vsel %vm800, %v812, 0.0
      %815 = vadd.xlane.f32.xlu0 %v814
      %v816 = vpop.xlane.xlu0 %815
      %v817 = vsel %vm800, %v813, 0.0
      %818 = vadd.xlane.f32.xlu0 %v817
      %v819 = vpop.xlane.xlu0 %818
      %v820 = vmul.f32 %v816, %v807
      %v821 = vmul.f32 %v819, %v807
      %v822 = vadd.f32 %v820, 1e-05
      %v823 = vadd.f32 %v821, 1e-05
      %v824 = vrsqrt.pop %v822
      %v825 = vrsqrt.pop %v823
      %v826 = vmul.f32 %v810, %v824
      %v827 = vmul.f32 %v811, %v825
      %v829 = vlaneseq
      %v830 = vshrl.u32 %v829, 7
      %v831 = vsub.s32 0, %v830
      %v832 = vrot.slane %v798, %v831
      %v834 = vmul.f32 %v826, %v832
      %v835 = vmul.f32 %v827, %v832
      %v837 = vlaneseq
      %v838 = vshrl.u32 %v837, 7
      %v839 = vsub.s32 0, %v838
      %v840 = vrot.slane %v799, %v839
      %v842 = vadd.f32 %v834, %v840
      %v843 = vadd.f32 %v835, %v840
      %v844 = vld [vmem:[%s4] sm:$0xff]
      %v845 = vld [vmem:[%s4 + $0x8] sm:$0xff]
      %v847 = vsel %vm800, %v842, 0
      %v850 = vsel %vm800, %v843, 0
      %852 = vmatprep.subr.mxu0 0.0
      %853 = vmatpush1.msra.mxu0 0.0
      %854 = vmatprep.subr.mxu0 0.0
      %855 = vmatpush1.msra.mxu0 0.0
      %856 = vmatprep.subr.mxu0 0.0
      %857 = vmatpush1.msra.mxu0 0.0
      %858 = vmatprep.subr.mxu0 0.0
      %859 = vmatpush1.msra.mxu0 0.0
      %860 = vmatprep.subr.mxu0 0.0
      %861 = vmatpush1.msra.mxu0 0.0
      %862 = vmatprep.subr.mxu0 0.0
      %863 = vmatpush1.msra.mxu0 0.0
      %864 = vmatprep.subr.mxu0 0.0
      %865 = vmatpush1.msra.mxu0 0.0
      %866 = vmatprep.subr.mxu0 0.0
      %867 = vmatpush1.msra.mxu0 0.0
      %868 = vmatprep.subr.mxu0 0.0
      %869 = vmatpush1.msra.mxu0 0.0
      %870 = vmatprep.subr.mxu0 0.0
      %871 = vmatpush1.msra.mxu0 0.0
      %872 = vmatprep.subr.mxu0 0.0
      %873 = vmatpush1.msra.mxu0 0.0
      %874 = vmatprep.subr.mxu0 0.0
      %875 = vmatpush1.msra.mxu0 0.0
      %876 = vmatprep.subr.mxu0 0.0
      %877 = vmatpush1.msra.mxu0 0.0
      %878 = vmatprep.subr.mxu0 0.0
      %879 = vmatpush1.msra.mxu0 0.0
      %880 = vmatprep.subr.mxu0 0.0
      %881 = vmatpush1.msra.mxu0 %v845
      %882 = vmatprep.subr.mxu0 0.0
      %883 = vmatpush1.msra.mxu0 %v844
      %884 = vmatprep.subr.mxu0 0.0
      %885 = vmatpush2.msra.mxu0 0.0
      %886 = vmatprep.subr.mxu0 0.0
      %887 = vmatpush2.msra.mxu0 0.0
      %888 = vmatprep.subr.mxu0 0.0
      %889 = vmatpush2.msra.mxu0 0.0
      %890 = vmatprep.subr.mxu0 0.0
      %891 = vmatpush2.msra.mxu0 0.0
      %892 = vmatprep.subr.mxu0 0.0
      %893 = vmatpush2.msra.mxu0 0.0
      %894 = vmatprep.subr.mxu0 0.0
      %895 = vmatpush2.msra.mxu0 0.0
      %896 = vmatprep.subr.mxu0 0.0
      %897 = vmatpush2.msra.mxu0 0.0
      %898 = vmatprep.subr.mxu0 0.0
      %899 = vmatpush2.msra.mxu0 0.0
      %900 = vmatprep.subr.mxu0 0.0
      %901 = vmatpush2.msra.mxu0 0.0
      %902 = vmatprep.subr.mxu0 0.0
      %903 = vmatpush2.msra.mxu0 0.0
      %904 = vmatprep.subr.mxu0 0.0
      %905 = vmatpush2.msra.mxu0 0.0
      %906 = vmatprep.subr.mxu0 0.0
      %907 = vmatpush2.msra.mxu0 0.0
      %908 = vmatprep.subr.mxu0 0.0
      %909 = vmatpush2.msra.mxu0 0.0
      %910 = vmatprep.subr.mxu0 0.0
      %911 = vmatpush2.msra.mxu0 0.0
      %912 = vmatprep.subr.mxu0 0.0
      %913 = vmatpush2.msra.mxu0 0.0
      %914 = vmatprep.subr.mxu0 0.0
      %915 = vmatpush2.msra.mxu0 0.0
      %916 = vmatprep.mubr.f32.mxu0 0.0
      %917 = vmatmul.mubr.f32.gmra.mxu0 %v847
      %v918 = vpop.f32.mrf.mxu0
      %v919 = vadd.f32 0.0, %v918
      %v920 = vpop.f32.mrf.mxu0
      %921 = vmatprep.mubr.f32.mxu0 0.0
      %922 = vmatmul.mubr.f32.gmra.mxu0 %v850
      %v923 = vpop.f32.mrf.mxu0
      %v924 = vadd.f32 0.0, %v923
      %v925 = vpop.f32.mrf.mxu0
      %926 = vdwg.mxu0
      %v927 = vld [vmem:[%s5] sm:$0xff]
      %v928 = vld [vmem:[%s5 + $0x8] sm:$0xff]
      %931 = vrot.lane.b32.xlu0 %v919, 112
      %v932 = vpop.permute.xlu0 %931
      %933 = vrot.lane.b32.xlu0 %v924, 112
      %v934 = vpop.permute.xlu0 %933
      %vm935 = vcmask 64512
      %v936 = vsel %vm935, %v919, 0
      %v938 = vsel %vm935, %v924, 0
      %v940 = vsel %vm935, %v932, 0
      %v942 = vsel %vm935, %v934, 0
      %944 = vmatprep.subr.mxu0 0.0
      %945 = vmatpush1.xpose.msra.mxu0 0.0
      %946 = vmatprep.subr.mxu0 0.0
      %947 = vmatpush1.xpose.msra.mxu0 0.0
      %948 = vmatprep.subr.mxu0 0.0
      %949 = vmatpush1.xpose.msra.mxu0 0.0
      %950 = vmatprep.subr.mxu0 0.0
      %951 = vmatpush1.xpose.msra.mxu0 0.0
      %952 = vmatprep.subr.mxu0 0.0
      %953 = vmatpush1.xpose.msra.mxu0 0.0
      %954 = vmatprep.subr.mxu0 0.0
      %955 = vmatpush1.xpose.msra.mxu0 0.0
      %956 = vmatprep.subr.mxu0 0.0
      %957 = vmatpush1.xpose.msra.mxu0 0.0
      %958 = vmatprep.subr.mxu0 0.0
      %959 = vmatpush1.xpose.msra.mxu0 0.0
      %960 = vmatprep.subr.mxu0 0.0
      %961 = vmatpush1.xpose.msra.mxu0 0.0
      %962 = vmatprep.subr.mxu0 0.0
      %963 = vmatpush1.xpose.msra.mxu0 0.0
      %964 = vmatprep.subr.mxu0 0.0
      %965 = vmatpush1.xpose.msra.mxu0 0.0
      %966 = vmatprep.subr.mxu0 0.0
      %967 = vmatpush1.xpose.msra.mxu0 0.0
      %968 = vmatprep.subr.mxu0 0.0
      %969 = vmatpush1.xpose.msra.mxu0 0.0
      %970 = vmatprep.subr.mxu0 0.0
      %971 = vmatpush1.xpose.msra.mxu0 0.0
      %972 = vmatprep.subr.mxu0 0.0
      %973 = vmatpush1.xpose.msra.mxu0 %v942
      %974 = vmatprep.subr.mxu0 0.0
      %975 = vmatpush1.xpose.msra.mxu0 %v940
      %976 = vmatprep.subr.mxu0 0.0
      %977 = vmatpush2.xpose.msra.mxu0 0.0
      %978 = vmatprep.subr.mxu0 0.0
      %979 = vmatpush2.xpose.msra.mxu0 0.0
      %980 = vmatprep.subr.mxu0 0.0
      %981 = vmatpush2.xpose.msra.mxu0 0.0
      %982 = vmatprep.subr.mxu0 0.0
      %983 = vmatpush2.xpose.msra.mxu0 0.0
      %984 = vmatprep.subr.mxu0 0.0
      %985 = vmatpush2.xpose.msra.mxu0 0.0
      %986 = vmatprep.subr.mxu0 0.0
      %987 = vmatpush2.xpose.msra.mxu0 0.0
      %988 = vmatprep.subr.mxu0 0.0
      %989 = vmatpush2.xpose.msra.mxu0 0.0
      %990 = vmatprep.subr.mxu0 0.0
      %991 = vmatpush2.xpose.msra.mxu0 0.0
      %992 = vmatprep.subr.mxu0 0.0
      %993 = vmatpush2.xpose.msra.mxu0 0.0
      %994 = vmatprep.subr.mxu0 0.0
      %995 = vmatpush2.xpose.msra.mxu0 0.0
      %996 = vmatprep.subr.mxu0 0.0
      %997 = vmatpush2.xpose.msra.mxu0 0.0
      %998 = vmatprep.subr.mxu0 0.0
      %999 = vmatpush2.xpose.msra.mxu0 0.0
      %1000 = vmatprep.subr.mxu0 0.0
      %1001 = vmatpush2.xpose.msra.mxu0 0.0
      %1002 = vmatprep.subr.mxu0 0.0
      %1003 = vmatpush2.xpose.msra.mxu0 0.0
      %1004 = vmatprep.subr.mxu0 0.0
      %1005 = vmatpush2.xpose.msra.mxu0 0.0
      %1006 = vmatprep.subr.mxu0 0.0
      %1007 = vmatpush2.xpose.msra.mxu0 0.0
      %1008 = vmatprep.mubr.f32.mxu0 0.0
      %1009 = vmatmul.mubr.f32.gmra.mxu0 %v936
      %v1010 = vpop.f32.mrf.mxu0
      %v1011 = vadd.f32 0.0, %v1010
      %v1012 = vpop.f32.mrf.mxu0
      %1013 = vmatprep.mubr.f32.mxu0 0.0
      %1014 = vmatmul.mubr.f32.gmra.mxu0 %v938
      %v1015 = vpop.f32.mrf.mxu0
      %v1016 = vadd.f32 0.0, %v1015
      %v1017 = vpop.f32.mrf.mxu0
      %1018 = vdwg.mxu0
      %v1019 = vmul.f32 %v1011, 0.35355338
      %v1020 = vmul.f32 %v1016, 0.35355338
      %v1021 = vsel %vm800, %v1019, -inf
      %1022 = vmax.xlane.f32.xlu0 %v1021
      %v1023 = vpop.xlane.xlu0 %1022
      %v1024 = vsel %vm800, %v1020, -inf
      %1025 = vmax.xlane.f32.xlu0 %v1024
      %v1026 = vpop.xlane.xlu0 %1025
      %v1027 = vsub.f32 %v1019, %v1023
      %v1028 = vsub.f32 %v1020, %v1026
      %v1029 = vmul.f32 %v1027, 1.442695
      %v1030 = vpow.pop %v1029
      %v1031 = vmul.f32 %v1028, 1.442695
      %v1032 = vpow.pop %v1031
      %v1033 = vsel %vm800, %v1030, 0.0
      %1034 = vadd.xlane.f32.xlu0 %v1033
      %v1035 = vpop.xlane.xlu0 %1034
      %v1036 = vsel %vm800, %v1032, 0.0
      %1037 = vadd.xlane.f32.xlu0 %v1036
      %v1038 = vpop.xlane.xlu0 %1037
      %v1039 = vrcp.pop %v1035
      %v1040 = vrcp.pop %v1038
      %v1041 = vmul.f32 %v1030, %v1039
      %v1042 = vmul.f32 %v1032, %v1040
      %1043 = vrot.lane.b32.xlu0 %v919, 96
      %v1044 = vpop.permute.xlu0 %1043
      %1045 = vrot.lane.b32.xlu0 %v924, 96
      %v1046 = vpop.permute.xlu0 %1045
      %v1050 = vsel %vm800, %v1041, 0
      %v1053 = vsel %vm800, %v1042, 0
      %1055 = vmatprep.subr.mxu0 0.0
      %1056 = vmatpush1.msra.mxu0 0.0
      %1057 = vmatprep.subr.mxu0 0.0
      %1058 = vmatpush1.msra.mxu0 0.0
      %1059 = vmatprep.subr.mxu0 0.0
      %1060 = vmatpush1.msra.mxu0 0.0
      %1061 = vmatprep.subr.mxu0 0.0
      %1062 = vmatpush1.msra.mxu0 0.0
      %1063 = vmatprep.subr.mxu0 0.0
      %1064 = vmatpush1.msra.mxu0 0.0
      %1065 = vmatprep.subr.mxu0 0.0
      %1066 = vmatpush1.msra.mxu0 0.0
      %1067 = vmatprep.subr.mxu0 0.0
      %1068 = vmatpush1.msra.mxu0 0.0
      %1069 = vmatprep.subr.mxu0 0.0
      %1070 = vmatpush1.msra.mxu0 0.0
      %1071 = vmatprep.subr.mxu0 0.0
      %1072 = vmatpush1.msra.mxu0 0.0
      %1073 = vmatprep.subr.mxu0 0.0
      %1074 = vmatpush1.msra.mxu0 0.0
      %1075 = vmatprep.subr.mxu0 0.0
      %1076 = vmatpush1.msra.mxu0 0.0
      %1077 = vmatprep.subr.mxu0 0.0
      %1078 = vmatpush1.msra.mxu0 0.0
      %1079 = vmatprep.subr.mxu0 0.0
      %1080 = vmatpush1.msra.mxu0 0.0
      %1081 = vmatprep.subr.mxu0 0.0
      %1082 = vmatpush1.msra.mxu0 0.0
      %1083 = vmatprep.subr.mxu0 0.0
      %1084 = vmatpush1.msra.mxu0 %v1046
      %1085 = vmatprep.subr.mxu0 0.0
      %1086 = vmatpush1.msra.mxu0 %v1044
      %1087 = vmatprep.subr.mxu0 0.0
      %1088 = vmatpush2.msra.mxu0 0.0
      %1089 = vmatprep.subr.mxu0 0.0
      %1090 = vmatpush2.msra.mxu0 0.0
      %1091 = vmatprep.subr.mxu0 0.0
      %1092 = vmatpush2.msra.mxu0 0.0
      %1093 = vmatprep.subr.mxu0 0.0
      %1094 = vmatpush2.msra.mxu0 0.0
      %1095 = vmatprep.subr.mxu0 0.0
      %1096 = vmatpush2.msra.mxu0 0.0
      %1097 = vmatprep.subr.mxu0 0.0
      %1098 = vmatpush2.msra.mxu0 0.0
      %1099 = vmatprep.subr.mxu0 0.0
      %1100 = vmatpush2.msra.mxu0 0.0
      %1101 = vmatprep.subr.mxu0 0.0
      %1102 = vmatpush2.msra.mxu0 0.0
      %1103 = vmatprep.subr.mxu0 0.0
      %1104 = vmatpush2.msra.mxu0 0.0
      %1105 = vmatprep.subr.mxu0 0.0
      %1106 = vmatpush2.msra.mxu0 0.0
      %1107 = vmatprep.subr.mxu0 0.0
      %1108 = vmatpush2.msra.mxu0 0.0
      %1109 = vmatprep.subr.mxu0 0.0
      %1110 = vmatpush2.msra.mxu0 0.0
      %1111 = vmatprep.subr.mxu0 0.0
      %1112 = vmatpush2.msra.mxu0 0.0
      %1113 = vmatprep.subr.mxu0 0.0
      %1114 = vmatpush2.msra.mxu0 0.0
      %1115 = vmatprep.subr.mxu0 0.0
      %1116 = vmatpush2.msra.mxu0 0.0
      %1117 = vmatprep.subr.mxu0 0.0
      %1118 = vmatpush2.msra.mxu0 0.0
      %1119 = vmatprep.mubr.f32.mxu0 0.0
      %1120 = vmatmul.mubr.f32.gmra.mxu0 %v1050
      %v1121 = vpop.f32.mrf.mxu0
      %v1122 = vadd.f32 0.0, %v1121
      %v1123 = vpop.f32.mrf.mxu0
      %1124 = vmatprep.mubr.f32.mxu0 0.0
      %1125 = vmatmul.mubr.f32.gmra.mxu0 %v1053
      %v1126 = vpop.f32.mrf.mxu0
      %v1127 = vadd.f32 0.0, %v1126
      %v1128 = vpop.f32.mrf.mxu0
      %1129 = vdwg.mxu0
      %1130 = vrot.lane.b32.xlu0 %v919, 120
      %v1131 = vpop.permute.xlu0 %1130
      %1132 = vrot.lane.b32.xlu0 %v924, 120
      %v1133 = vpop.permute.xlu0 %1132
      %1134 = vrot.lane.b32.xlu0 %v919, 104
      %v1135 = vpop.permute.xlu0 %1134
      %1136 = vrot.lane.b32.xlu0 %v924, 104
      %v1137 = vpop.permute.xlu0 %1136
      %v1138 = vsel %vm935, %v1131, 0
      %v1140 = vsel %vm935, %v1133, 0
      %v1142 = vsel %vm935, %v1135, 0
      %v1144 = vsel %vm935, %v1137, 0
      %1146 = vmatprep.subr.mxu0 0.0
      %1147 = vmatpush1.xpose.msra.mxu0 0.0
      %1148 = vmatprep.subr.mxu0 0.0
      %1149 = vmatpush1.xpose.msra.mxu0 0.0
      %1150 = vmatprep.subr.mxu0 0.0
      %1151 = vmatpush1.xpose.msra.mxu0 0.0
      %1152 = vmatprep.subr.mxu0 0.0
      %1153 = vmatpush1.xpose.msra.mxu0 0.0
      %1154 = vmatprep.subr.mxu0 0.0
      %1155 = vmatpush1.xpose.msra.mxu0 0.0
      %1156 = vmatprep.subr.mxu0 0.0
      %1157 = vmatpush1.xpose.msra.mxu0 0.0
      %1158 = vmatprep.subr.mxu0 0.0
      %1159 = vmatpush1.xpose.msra.mxu0 0.0
      %1160 = vmatprep.subr.mxu0 0.0
      %1161 = vmatpush1.xpose.msra.mxu0 0.0
      %1162 = vmatprep.subr.mxu0 0.0
      %1163 = vmatpush1.xpose.msra.mxu0 0.0
      %1164 = vmatprep.subr.mxu0 0.0
      %1165 = vmatpush1.xpose.msra.mxu0 0.0
      %1166 = vmatprep.subr.mxu0 0.0
      %1167 = vmatpush1.xpose.msra.mxu0 0.0
      %1168 = vmatprep.subr.mxu0 0.0
      %1169 = vmatpush1.xpose.msra.mxu0 0.0
      %1170 = vmatprep.subr.mxu0 0.0
      %1171 = vmatpush1.xpose.msra.mxu0 0.0
      %1172 = vmatprep.subr.mxu0 0.0
      %1173 = vmatpush1.xpose.msra.mxu0 0.0
      %1174 = vmatprep.subr.mxu0 0.0
      %1175 = vmatpush1.xpose.msra.mxu0 %v1144
      %1176 = vmatprep.subr.mxu0 0.0
      %1177 = vmatpush1.xpose.msra.mxu0 %v1142
      %1178 = vmatprep.subr.mxu0 0.0
      %1179 = vmatpush2.xpose.msra.mxu0 0.0
      %1180 = vmatprep.subr.mxu0 0.0
      %1181 = vmatpush2.xpose.msra.mxu0 0.0
      %1182 = vmatprep.subr.mxu0 0.0
      %1183 = vmatpush2.xpose.msra.mxu0 0.0
      %1184 = vmatprep.subr.mxu0 0.0
      %1185 = vmatpush2.xpose.msra.mxu0 0.0
      %1186 = vmatprep.subr.mxu0 0.0
      %1187 = vmatpush2.xpose.msra.mxu0 0.0
      %1188 = vmatprep.subr.mxu0 0.0
      %1189 = vmatpush2.xpose.msra.mxu0 0.0
      %1190 = vmatprep.subr.mxu0 0.0
      %1191 = vmatpush2.xpose.msra.mxu0 0.0
      %1192 = vmatprep.subr.mxu0 0.0
      %1193 = vmatpush2.xpose.msra.mxu0 0.0
      %1194 = vmatprep.subr.mxu0 0.0
      %1195 = vmatpush2.xpose.msra.mxu0 0.0
      %1196 = vmatprep.subr.mxu0 0.0
      %1197 = vmatpush2.xpose.msra.mxu0 0.0
      %1198 = vmatprep.subr.mxu0 0.0
      %1199 = vmatpush2.xpose.msra.mxu0 0.0
      %1200 = vmatprep.subr.mxu0 0.0
      %1201 = vmatpush2.xpose.msra.mxu0 0.0
      %1202 = vmatprep.subr.mxu0 0.0
      %1203 = vmatpush2.xpose.msra.mxu0 0.0
      %1204 = vmatprep.subr.mxu0 0.0
      %1205 = vmatpush2.xpose.msra.mxu0 0.0
      %1206 = vmatprep.subr.mxu0 0.0
      %1207 = vmatpush2.xpose.msra.mxu0 0.0
      %1208 = vmatprep.subr.mxu0 0.0
      %1209 = vmatpush2.xpose.msra.mxu0 0.0
      %1210 = vmatprep.mubr.f32.mxu0 0.0
      %1211 = vmatmul.mubr.f32.gmra.mxu0 %v1138
      %v1212 = vpop.f32.mrf.mxu0
      %v1213 = vadd.f32 0.0, %v1212
      %v1214 = vpop.f32.mrf.mxu0
      %1215 = vmatprep.mubr.f32.mxu0 0.0
      %1216 = vmatmul.mubr.f32.gmra.mxu0 %v1140
      %v1217 = vpop.f32.mrf.mxu0
      %v1218 = vadd.f32 0.0, %v1217
      %v1219 = vpop.f32.mrf.mxu0
      %1220 = vdwg.mxu0
      %v1221 = vmul.f32 %v1213, 0.35355338
      %v1222 = vmul.f32 %v1218, 0.35355338
      %v1223 = vsel %vm800, %v1221, -inf
      %1224 = vmax.xlane.f32.xlu0 %v1223
      %v1225 = vpop.xlane.xlu0 %1224
      %v1226 = vsel %vm800, %v1222, -inf
      %1227 = vmax.xlane.f32.xlu0 %v1226
      %v1228 = vpop.xlane.xlu0 %1227
      %v1229 = vsub.f32 %v1221, %v1225
      %v1230 = vsub.f32 %v1222, %v1228
      %v1231 = vmul.f32 %v1229, 1.442695
      %v1232 = vpow.pop %v1231
      %v1233 = vmul.f32 %v1230, 1.442695
      %v1234 = vpow.pop %v1233
      %v1235 = vsel %vm800, %v1232, 0.0
      %1236 = vadd.xlane.f32.xlu0 %v1235
      %v1237 = vpop.xlane.xlu0 %1236
      %v1238 = vsel %vm800, %v1234, 0.0
      %1239 = vadd.xlane.f32.xlu0 %v1238
      %v1240 = vpop.xlane.xlu0 %1239
      %v1241 = vrcp.pop %v1237
      %v1242 = vrcp.pop %v1240
      %v1243 = vmul.f32 %v1232, %v1241
      %v1244 = vmul.f32 %v1234, %v1242
      %1245 = vrot.lane.b32.xlu0 %v919, 88
      %v1246 = vpop.permute.xlu0 %1245
      %1247 = vrot.lane.b32.xlu0 %v924, 88
      %v1248 = vpop.permute.xlu0 %1247
      %v1252 = vsel %vm800, %v1243, 0
      %v1255 = vsel %vm800, %v1244, 0
      %1257 = vmatprep.subr.mxu0 0.0
      %1258 = vmatpush1.msra.mxu0 0.0
      %1259 = vmatprep.subr.mxu0 0.0
      %1260 = vmatpush1.msra.mxu0 0.0
      %1261 = vmatprep.subr.mxu0 0.0
      %1262 = vmatpush1.msra.mxu0 0.0
      %1263 = vmatprep.subr.mxu0 0.0
      %1264 = vmatpush1.msra.mxu0 0.0
      %1265 = vmatprep.subr.mxu0 0.0
      %1266 = vmatpush1.msra.mxu0 0.0
      %1267 = vmatprep.subr.mxu0 0.0
      %1268 = vmatpush1.msra.mxu0 0.0
      %1269 = vmatprep.subr.mxu0 0.0
      %1270 = vmatpush1.msra.mxu0 0.0
      %1271 = vmatprep.subr.mxu0 0.0
      %1272 = vmatpush1.msra.mxu0 0.0
      %1273 = vmatprep.subr.mxu0 0.0
      %1274 = vmatpush1.msra.mxu0 0.0
      %1275 = vmatprep.subr.mxu0 0.0
      %1276 = vmatpush1.msra.mxu0 0.0
      %1277 = vmatprep.subr.mxu0 0.0
      %1278 = vmatpush1.msra.mxu0 0.0
      %1279 = vmatprep.subr.mxu0 0.0
      %1280 = vmatpush1.msra.mxu0 0.0
      %1281 = vmatprep.subr.mxu0 0.0
      %1282 = vmatpush1.msra.mxu0 0.0
      %1283 = vmatprep.subr.mxu0 0.0
      %1284 = vmatpush1.msra.mxu0 0.0
      %1285 = vmatprep.subr.mxu0 0.0
      %1286 = vmatpush1.msra.mxu0 %v1248
      %1287 = vmatprep.subr.mxu0 0.0
      %1288 = vmatpush1.msra.mxu0 %v1246
      %1289 = vmatprep.subr.mxu0 0.0
      %1290 = vmatpush2.msra.mxu0 0.0
      %1291 = vmatprep.subr.mxu0 0.0
      %1292 = vmatpush2.msra.mxu0 0.0
      %1293 = vmatprep.subr.mxu0 0.0
      %1294 = vmatpush2.msra.mxu0 0.0
      %1295 = vmatprep.subr.mxu0 0.0
      %1296 = vmatpush2.msra.mxu0 0.0
      %1297 = vmatprep.subr.mxu0 0.0
      %1298 = vmatpush2.msra.mxu0 0.0
      %1299 = vmatprep.subr.mxu0 0.0
      %1300 = vmatpush2.msra.mxu0 0.0
      %1301 = vmatprep.subr.mxu0 0.0
      %1302 = vmatpush2.msra.mxu0 0.0
      %1303 = vmatprep.subr.mxu0 0.0
      %1304 = vmatpush2.msra.mxu0 0.0
      %1305 = vmatprep.subr.mxu0 0.0
      %1306 = vmatpush2.msra.mxu0 0.0
      %1307 = vmatprep.subr.mxu0 0.0
      %1308 = vmatpush2.msra.mxu0 0.0
      %1309 = vmatprep.subr.mxu0 0.0
      %1310 = vmatpush2.msra.mxu0 0.0
      %1311 = vmatprep.subr.mxu0 0.0
      %1312 = vmatpush2.msra.mxu0 0.0
      %1313 = vmatprep.subr.mxu0 0.0
      %1314 = vmatpush2.msra.mxu0 0.0
      %1315 = vmatprep.subr.mxu0 0.0
      %1316 = vmatpush2.msra.mxu0 0.0
      %1317 = vmatprep.subr.mxu0 0.0
      %1318 = vmatpush2.msra.mxu0 0.0
      %1319 = vmatprep.subr.mxu0 0.0
      %1320 = vmatpush2.msra.mxu0 0.0
      %1321 = vmatprep.mubr.f32.mxu0 0.0
      %1322 = vmatmul.mubr.f32.gmra.mxu0 %v1252
      %v1323 = vpop.f32.mrf.mxu0
      %v1324 = vadd.f32 0.0, %v1323
      %v1325 = vpop.f32.mrf.mxu0
      %1326 = vmatprep.mubr.f32.mxu0 0.0
      %1327 = vmatmul.mubr.f32.gmra.mxu0 %v1255
      %v1328 = vpop.f32.mrf.mxu0
      %v1329 = vadd.f32 0.0, %v1328
      %v1330 = vpop.f32.mrf.mxu0
      %1331 = vdwg.mxu0
      %v1333 = vsel %vm935, %v1324, 0
      %v1336 = vsel %vm935, %v1329, 0
      %1338 = vmatprep.subr.mxu0 0.0
      %1339 = vmatpush1.msra.mxu0 0.0
      %1340 = vmatprep.subr.mxu0 0.0
      %1341 = vmatpush1.msra.mxu0 0.0
      %1342 = vmatprep.subr.mxu0 0.0
      %1343 = vmatpush1.msra.mxu0 0.0
      %1344 = vmatprep.subr.mxu0 0.0
      %1345 = vmatpush1.msra.mxu0 0.0
      %1346 = vmatprep.subr.mxu0 0.0
      %1347 = vmatpush1.msra.mxu0 0.0
      %1348 = vmatprep.subr.mxu0 0.0
      %1349 = vmatpush1.msra.mxu0 0.0
      %1350 = vmatprep.subr.mxu0 0.0
      %1351 = vmatpush1.msra.mxu0 0.0
      %1352 = vmatprep.subr.mxu0 0.0
      %1353 = vmatpush1.msra.mxu0 0.0
      %1354 = vmatprep.subr.mxu0 0.0
      %1355 = vmatpush1.msra.mxu0 0.0
      %1356 = vmatprep.subr.mxu0 0.0
      %1357 = vmatpush1.msra.mxu0 0.0
      %1358 = vmatprep.subr.mxu0 0.0
      %1359 = vmatpush1.msra.mxu0 0.0
      %1360 = vmatprep.subr.mxu0 0.0
      %1361 = vmatpush1.msra.mxu0 0.0
      %1362 = vmatprep.subr.mxu0 0.0
      %1363 = vmatpush1.msra.mxu0 0.0
      %1364 = vmatprep.subr.mxu0 0.0
      %1365 = vmatpush1.msra.mxu0 0.0
      %1366 = vmatprep.subr.mxu0 0.0
      %1367 = vmatpush1.msra.mxu0 0.0
      %1368 = vmatprep.subr.mxu0 0.0
      %1369 = vmatpush1.msra.mxu0 %v928
      %1370 = vmatprep.subr.mxu0 0.0
      %1371 = vmatpush2.msra.mxu0 0.0
      %1372 = vmatprep.subr.mxu0 0.0
      %1373 = vmatpush2.msra.mxu0 0.0
      %1374 = vmatprep.subr.mxu0 0.0
      %1375 = vmatpush2.msra.mxu0 0.0
      %1376 = vmatprep.subr.mxu0 0.0
      %1377 = vmatpush2.msra.mxu0 0.0
      %1378 = vmatprep.subr.mxu0 0.0
      %1379 = vmatpush2.msra.mxu0 0.0
      %1380 = vmatprep.subr.mxu0 0.0
      %1381 = vmatpush2.msra.mxu0 0.0
      %1382 = vmatprep.subr.mxu0 0.0
      %1383 = vmatpush2.msra.mxu0 0.0
      %1384 = vmatprep.subr.mxu0 0.0
      %1385 = vmatpush2.msra.mxu0 0.0
      %1386 = vmatprep.subr.mxu0 0.0
      %1387 = vmatpush2.msra.mxu0 0.0
      %1388 = vmatprep.subr.mxu0 0.0
      %1389 = vmatpush2.msra.mxu0 0.0
      %1390 = vmatprep.subr.mxu0 0.0
      %1391 = vmatpush2.msra.mxu0 0.0
      %1392 = vmatprep.subr.mxu0 0.0
      %1393 = vmatpush2.msra.mxu0 0.0
      %1394 = vmatprep.subr.mxu0 0.0
      %1395 = vmatpush2.msra.mxu0 0.0
      %1396 = vmatprep.subr.mxu0 0.0
      %1397 = vmatpush2.msra.mxu0 0.0
      %1398 = vmatprep.subr.mxu0 0.0
      %1399 = vmatpush2.msra.mxu0 0.0
      %1400 = vmatprep.subr.mxu0 0.0
      %1401 = vmatpush2.msra.mxu0 0.0
      %1402 = vmatprep.mubr.f32.mxu0 0.0
      %1403 = vmatmul.mubr.f32.gmra.mxu0 %v1333
      %v1404 = vpop.f32.mrf.mxu0
      %v1405 = vadd.f32 0.0, %v1404
      %v1406 = vpop.f32.mrf.mxu0
      %1407 = vmatprep.mubr.f32.mxu0 0.0
      %1408 = vmatmul.mubr.f32.gmra.mxu0 %v1336
      %v1409 = vpop.f32.mrf.mxu0
      %v1410 = vadd.f32 0.0, %v1409
      %v1411 = vpop.f32.mrf.mxu0
      %1412 = vdwg.mxu0
      %v1414 = vsel %vm935, %v1122, 0
      %v1417 = vsel %vm935, %v1127, 0
      %1419 = vmatprep.subr.mxu0 0.0
      %1420 = vmatpush1.msra.mxu0 0.0
      %1421 = vmatprep.subr.mxu0 0.0
      %1422 = vmatpush1.msra.mxu0 0.0
      %1423 = vmatprep.subr.mxu0 0.0
      %1424 = vmatpush1.msra.mxu0 0.0
      %1425 = vmatprep.subr.mxu0 0.0
      %1426 = vmatpush1.msra.mxu0 0.0
      %1427 = vmatprep.subr.mxu0 0.0
      %1428 = vmatpush1.msra.mxu0 0.0
      %1429 = vmatprep.subr.mxu0 0.0
      %1430 = vmatpush1.msra.mxu0 0.0
      %1431 = vmatprep.subr.mxu0 0.0
      %1432 = vmatpush1.msra.mxu0 0.0
      %1433 = vmatprep.subr.mxu0 0.0
      %1434 = vmatpush1.msra.mxu0 0.0
      %1435 = vmatprep.subr.mxu0 0.0
      %1436 = vmatpush1.msra.mxu0 0.0
      %1437 = vmatprep.subr.mxu0 0.0
      %1438 = vmatpush1.msra.mxu0 0.0
      %1439 = vmatprep.subr.mxu0 0.0
      %1440 = vmatpush1.msra.mxu0 0.0
      %1441 = vmatprep.subr.mxu0 0.0
      %1442 = vmatpush1.msra.mxu0 0.0
      %1443 = vmatprep.subr.mxu0 0.0
      %1444 = vmatpush1.msra.mxu0 0.0
      %1445 = vmatprep.subr.mxu0 0.0
      %1446 = vmatpush1.msra.mxu0 0.0
      %1447 = vmatprep.subr.mxu0 0.0
      %1448 = vmatpush1.msra.mxu0 0.0
      %1449 = vmatprep.subr.mxu0 0.0
      %1450 = vmatpush1.msra.mxu0 %v927
      %1451 = vmatprep.subr.mxu0 0.0
      %1452 = vmatpush2.msra.mxu0 0.0
      %1453 = vmatprep.subr.mxu0 0.0
      %1454 = vmatpush2.msra.mxu0 0.0
      %1455 = vmatprep.subr.mxu0 0.0
      %1456 = vmatpush2.msra.mxu0 0.0
      %1457 = vmatprep.subr.mxu0 0.0
      %1458 = vmatpush2.msra.mxu0 0.0
      %1459 = vmatprep.subr.mxu0 0.0
      %1460 = vmatpush2.msra.mxu0 0.0
      %1461 = vmatprep.subr.mxu0 0.0
      %1462 = vmatpush2.msra.mxu0 0.0
      %1463 = vmatprep.subr.mxu0 0.0
      %1464 = vmatpush2.msra.mxu0 0.0
      %1465 = vmatprep.subr.mxu0 0.0
      %1466 = vmatpush2.msra.mxu0 0.0
      %1467 = vmatprep.subr.mxu0 0.0
      %1468 = vmatpush2.msra.mxu0 0.0
      %1469 = vmatprep.subr.mxu0 0.0
      %1470 = vmatpush2.msra.mxu0 0.0
      %1471 = vmatprep.subr.mxu0 0.0
      %1472 = vmatpush2.msra.mxu0 0.0
      %1473 = vmatprep.subr.mxu0 0.0
      %1474 = vmatpush2.msra.mxu0 0.0
      %1475 = vmatprep.subr.mxu0 0.0
      %1476 = vmatpush2.msra.mxu0 0.0
      %1477 = vmatprep.subr.mxu0 0.0
      %1478 = vmatpush2.msra.mxu0 0.0
      %1479 = vmatprep.subr.mxu0 0.0
      %1480 = vmatpush2.msra.mxu0 0.0
      %1481 = vmatprep.subr.mxu0 0.0
      %1482 = vmatpush2.msra.mxu0 0.0
      %1483 = vmatprep.mubr.f32.mxu0 0.0
      %1484 = vmatmul.mubr.f32.gmra.mxu0 %v1414
      %v1485 = vpop.f32.mrf.mxu0
      %v1486 = vadd.f32 %v1405, %v1485
      %v1487 = vpop.f32.mrf.mxu0
      %1488 = vmatprep.mubr.f32.mxu0 0.0
      %1489 = vmatmul.mubr.f32.gmra.mxu0 %v1417
      %v1490 = vpop.f32.mrf.mxu0
      %v1491 = vadd.f32 %v1410, %v1490
      %v1492 = vpop.f32.mrf.mxu0
      %1493 = vdwg.mxu0
      %v1494 = vadd.f32 %v796, %v1486
      %v1495 = vadd.f32 %v797, %v1491
      %v1496 = vld [vmem:[%s6] sm:$0x1]
      %v1497 = vld [vmem:[%s7] sm:$0x1]
      %v1498 = vsel %vm800, %v1494, 0.0
      %1499 = vadd.xlane.f32.xlu0 %v1498
      %v1500 = vpop.xlane.xlu0 %1499
      %v1501 = vsel %vm800, %v1495, 0.0
      %1502 = vadd.xlane.f32.xlu0 %v1501
      %v1503 = vpop.xlane.xlu0 %1502
      %v1504 = vmul.f32 %v1500, %v807
      %v1505 = vmul.f32 %v1503, %v807
      %v1506 = vsub.f32 %v1494, %v1504
      %v1507 = vsub.f32 %v1495, %v1505
      %v1508 = vmul.f32 %v1506, %v1506
      %v1509 = vmul.f32 %v1507, %v1507
      %v1510 = vsel %vm800, %v1508, 0.0
      %1511 = vadd.xlane.f32.xlu0 %v1510
      %v1512 = vpop.xlane.xlu0 %1511
      %v1513 = vsel %vm800, %v1509, 0.0
      %1514 = vadd.xlane.f32.xlu0 %v1513
      %v1515 = vpop.xlane.xlu0 %1514
      %v1516 = vmul.f32 %v1512, %v807
      %v1517 = vmul.f32 %v1515, %v807
      %v1518 = vadd.f32 %v1516, 1e-05
      %v1519 = vadd.f32 %v1517, 1e-05
      %v1520 = vrsqrt.pop %v1518
      %v1521 = vrsqrt.pop %v1519
      %v1522 = vmul.f32 %v1506, %v1520
      %v1523 = vmul.f32 %v1507, %v1521
      %v1525 = vlaneseq
      %v1526 = vshrl.u32 %v1525, 7
      %v1527 = vsub.s32 0, %v1526
      %v1528 = vrot.slane %v1496, %v1527
      %v1530 = vmul.f32 %v1522, %v1528
      %v1531 = vmul.f32 %v1523, %v1528
      %v1533 = vlaneseq
      %v1534 = vshrl.u32 %v1533, 7
      %v1535 = vsub.s32 0, %v1534
      %v1536 = vrot.slane %v1497, %v1535
      %v1538 = vadd.f32 %v1530, %v1536
      %v1539 = vadd.f32 %v1531, %v1536
      %v1540 = vld [vmem:[%s8] sm:$0xff]
      %v1541 = vld [vmem:[%s8 + $0x8] sm:$0xff]
      %v1542 = vld [vmem:[%s9] sm:$0x1]
      %v1544 = vlaneseq
      %v1545 = vshrl.u32 %v1544, 7
      %v1546 = vsub.s32 0, %v1545
      %v1547 = vrot.slane %v1542, %v1546
      %v1550 = vsel %vm800, %v1538, 0
      %v1553 = vsel %vm800, %v1539, 0
      %1555 = vmatprep.subr.mxu0 0.0
      %1556 = vmatpush1.msra.mxu0 0.0
      %1557 = vmatprep.subr.mxu0 0.0
      %1558 = vmatpush1.msra.mxu0 0.0
      %1559 = vmatprep.subr.mxu0 0.0
      %1560 = vmatpush1.msra.mxu0 0.0
      %1561 = vmatprep.subr.mxu0 0.0
      %1562 = vmatpush1.msra.mxu0 0.0
      %1563 = vmatprep.subr.mxu0 0.0
      %1564 = vmatpush1.msra.mxu0 0.0
      %1565 = vmatprep.subr.mxu0 0.0
      %1566 = vmatpush1.msra.mxu0 0.0
      %1567 = vmatprep.subr.mxu0 0.0
      %1568 = vmatpush1.msra.mxu0 0.0
      %1569 = vmatprep.subr.mxu0 0.0
      %1570 = vmatpush1.msra.mxu0 0.0
      %1571 = vmatprep.subr.mxu0 0.0
      %1572 = vmatpush1.msra.mxu0 0.0
      %1573 = vmatprep.subr.mxu0 0.0
      %1574 = vmatpush1.msra.mxu0 0.0
      %1575 = vmatprep.subr.mxu0 0.0
      %1576 = vmatpush1.msra.mxu0 0.0
      %1577 = vmatprep.subr.mxu0 0.0
      %1578 = vmatpush1.msra.mxu0 0.0
      %1579 = vmatprep.subr.mxu0 0.0
      %1580 = vmatpush1.msra.mxu0 0.0
      %1581 = vmatprep.subr.mxu0 0.0
      %1582 = vmatpush1.msra.mxu0 0.0
      %1583 = vmatprep.subr.mxu0 0.0
      %1584 = vmatpush1.msra.mxu0 %v1541
      %1585 = vmatprep.subr.mxu0 0.0
      %1586 = vmatpush1.msra.mxu0 %v1540
      %1587 = vmatprep.subr.mxu0 0.0
      %1588 = vmatpush2.msra.mxu0 0.0
      %1589 = vmatprep.subr.mxu0 0.0
      %1590 = vmatpush2.msra.mxu0 0.0
      %1591 = vmatprep.subr.mxu0 0.0
      %1592 = vmatpush2.msra.mxu0 0.0
      %1593 = vmatprep.subr.mxu0 0.0
      %1594 = vmatpush2.msra.mxu0 0.0
      %1595 = vmatprep.subr.mxu0 0.0
      %1596 = vmatpush2.msra.mxu0 0.0
      %1597 = vmatprep.subr.mxu0 0.0
      %1598 = vmatpush2.msra.mxu0 0.0
      %1599 = vmatprep.subr.mxu0 0.0
      %1600 = vmatpush2.msra.mxu0 0.0
      %1601 = vmatprep.subr.mxu0 0.0
      %1602 = vmatpush2.msra.mxu0 0.0
      %1603 = vmatprep.subr.mxu0 0.0
      %1604 = vmatpush2.msra.mxu0 0.0
      %1605 = vmatprep.subr.mxu0 0.0
      %1606 = vmatpush2.msra.mxu0 0.0
      %1607 = vmatprep.subr.mxu0 0.0
      %1608 = vmatpush2.msra.mxu0 0.0
      %1609 = vmatprep.subr.mxu0 0.0
      %1610 = vmatpush2.msra.mxu0 0.0
      %1611 = vmatprep.subr.mxu0 0.0
      %1612 = vmatpush2.msra.mxu0 0.0
      %1613 = vmatprep.subr.mxu0 0.0
      %1614 = vmatpush2.msra.mxu0 0.0
      %1615 = vmatprep.subr.mxu0 0.0
      %1616 = vmatpush2.msra.mxu0 0.0
      %1617 = vmatprep.subr.mxu0 0.0
      %1618 = vmatpush2.msra.mxu0 0.0
      %1619 = vmatprep.mubr.f32.mxu0 0.0
      %1620 = vmatmul.mubr.f32.gmra.mxu0 %v1550
      %v1621 = vpop.f32.mrf.mxu0
      %v1622 = vadd.f32 %v1547, %v1621
      %v1623 = vpop.f32.mrf.mxu0
      %1624 = vmatprep.mubr.f32.mxu0 0.0
      %1625 = vmatmul.mubr.f32.gmra.mxu0 %v1553
      %v1626 = vpop.f32.mrf.mxu0
      %v1627 = vadd.f32 %v1547, %v1626
      %v1628 = vpop.f32.mrf.mxu0
      %1629 = vdwg.mxu0
      %v1630 = vmul.f32 %v1622, 0.5
      %v1631 = vmul.f32 %v1627, 0.5
      %v1632 = vmul.f32 %v1622, 0.70710677
      %v1633 = vmul.f32 %v1627, 0.70710677
      %v1634 = vmax.f32 %v1632, -4.0
      %v1635 = vmax.f32 %v1633, -4.0
      %v1636 = vmin.f32 %v1634, 4.0
      %v1637 = vmin.f32 %v1635, 4.0
      %v1638 = vmul.f32 %v1636, %v1636
      %v1639 = vmul.f32 %v1637, %v1637
      %v1640 = vmul.f32 %v1638, -2.7261424e-10
      %v1641 = vmul.f32 %v1639, -2.7261424e-10
      %v1642 = vadd.f32 %v1640, 2.7706815e-08
      %v1643 = vadd.f32 %v1641, 2.7706815e-08
      %v1644 = vmul.f32 %v1642, %v1638
      %v1645 = vmul.f32 %v1643, %v1639
      %v1646 = vadd.f32 %v1644, -2.101024e-06
      %v1647 = vadd.f32 %v1645, -2.101024e-06
      %v1648 = vmul.f32 %v1646, %v1638
      %v1649 = vmul.f32 %v1647, %v1639
      %v1650 = vadd.f32 %v1648, -5.6925062e-05
      %v1651 = vadd.f32 %v1649, -5.6925062e-05
      %v1652 = vmul.f32 %v1650, %v1638
      %v1653 = vmul.f32 %v1651, %v1639
      %v1654 = vadd.f32 %v1652, -0.00073499064
      %v1655 = vadd.f32 %v1653, -0.00073499064
      %v1656 = vmul.f32 %v1654, %v1638
      %v1657 = vmul.f32 %v1655, %v1639
      %v1658 = vadd.f32 %v1656, -0.0029546
      %v1659 = vadd.f32 %v1657, -0.0029546
      %v1660 = vmul.f32 %v1658, %v1638
      %v1661 = vmul.f32 %v1659, %v1639
      %v1662 = vadd.f32 %v1660, -0.016096033
      %v1663 = vadd.f32 %v1661, -0.016096033
      %v1664 = vmul.f32 %v1662, %v1636
      %v1665 = vmul.f32 %v1663, %v1637
      %v1666 = vmul.f32 %v1638, -1.45660715e-05
      %v1667 = vmul.f32 %v1639, -1.45660715e-05
      %v1668 = vadd.f32 %v1666, -0.00021337405
      %v1669 = vadd.f32 %v1667, -0.00021337405
      %v1670 = vmul.f32 %v1668, %v1638
      %v1671 = vmul.f32 %v1669, %v1639
      %v1672 = vadd.f32 %v1670, -0.001682827
      %v1673 = vadd.f32 %v1671, -0.001682827
      %v1674 = vmul.f32 %v1672, %v1638
      %v1675 = vmul.f32 %v1673, %v1639
      %v1676 = vadd.f32 %v1674, -0.0073733293
      %v1677 = vadd.f32 %v1675, -0.0073733293
      %v1678 = vmul.f32 %v1676, %v1638
      %v1679 = vmul.f32 %v1677, %v1639
      %v1680 = vadd.f32 %v1678, -0.014264739
      %v1681 = vadd.f32 %v1679, -0.014264739
      %v1682 = vrcp.pop %v1680
      %v1683 = vrcp.pop %v1681
      %v1684 = vmul.f32 %v1664, %v1682
      %v1685 = vmul.f32 %v1665, %v1683
      %v1686 = vadd.f32 %v1684, 1.0
      %v1687 = vadd.f32 %v1685, 1.0
      %v1688 = vmul.f32 %v1630, %v1686
      %v1689 = vmul.f32 %v1631, %v1687
      %v1690 = vld [vmem:[%s10] sm:$0xff]
      %v1691 = vld [vmem:[%s10 + $0x8] sm:$0xff]
      %v1692 = vld [vmem:[%s10 + $0x10] sm:$0xff]
      %v1693 = vld [vmem:[%s10 + $0x18] sm:$0xff]
      %v1694 = vld [vmem:[%s11] sm:$0x1]
      %v1696 = vlaneseq
      %v1697 = vshrl.u32 %v1696, 7
      %v1698 = vsub.s32 0, %v1697
      %v1699 = vrot.slane %v1694, %v1698
      %vm1701 = vcmask 261120
      %v1703 = vsel %vm1701, %v1688, 0
      %v1706 = vsel %vm1701, %v1689, 0
      %1708 = vmatprep.subr.mxu0 0.0
      %1709 = vmatpush1.msra.mxu0 0.0
      %1710 = vmatprep.subr.mxu0 0.0
      %1711 = vmatpush1.msra.mxu0 0.0
      %1712 = vmatprep.subr.mxu0 0.0
      %1713 = vmatpush1.msra.mxu0 0.0
      %1714 = vmatprep.subr.mxu0 0.0
      %1715 = vmatpush1.msra.mxu0 0.0
      %1716 = vmatprep.subr.mxu0 0.0
      %1717 = vmatpush1.msra.mxu0 0.0
      %1718 = vmatprep.subr.mxu0 0.0
      %1719 = vmatpush1.msra.mxu0 0.0
      %1720 = vmatprep.subr.mxu0 0.0
      %1721 = vmatpush1.msra.mxu0 0.0
      %1722 = vmatprep.subr.mxu0 0.0
      %1723 = vmatpush1.msra.mxu0 0.0
      %1724 = vmatprep.subr.mxu0 0.0
      %1725 = vmatpush1.msra.mxu0 0.0
      %1726 = vmatprep.subr.mxu0 0.0
      %1727 = vmatpush1.msra.mxu0 0.0
      %1728 = vmatprep.subr.mxu0 0.0
      %1729 = vmatpush1.msra.mxu0 0.0
      %1730 = vmatprep.subr.mxu0 0.0
      %1731 = vmatpush1.msra.mxu0 0.0
      %1732 = vmatprep.subr.mxu0 0.0
      %1733 = vmatpush1.msra.mxu0 %v1693
      %1734 = vmatprep.subr.mxu0 0.0
      %1735 = vmatpush1.msra.mxu0 %v1692
      %1736 = vmatprep.subr.mxu0 0.0
      %1737 = vmatpush1.msra.mxu0 %v1691
      %1738 = vmatprep.subr.mxu0 0.0
      %1739 = vmatpush1.msra.mxu0 %v1690
      %1740 = vmatprep.subr.mxu0 0.0
      %1741 = vmatpush2.msra.mxu0 0.0
      %1742 = vmatprep.subr.mxu0 0.0
      %1743 = vmatpush2.msra.mxu0 0.0
      %1744 = vmatprep.subr.mxu0 0.0
      %1745 = vmatpush2.msra.mxu0 0.0
      %1746 = vmatprep.subr.mxu0 0.0
      %1747 = vmatpush2.msra.mxu0 0.0
      %1748 = vmatprep.subr.mxu0 0.0
      %1749 = vmatpush2.msra.mxu0 0.0
      %1750 = vmatprep.subr.mxu0 0.0
      %1751 = vmatpush2.msra.mxu0 0.0
      %1752 = vmatprep.subr.mxu0 0.0
      %1753 = vmatpush2.msra.mxu0 0.0
      %1754 = vmatprep.subr.mxu0 0.0
      %1755 = vmatpush2.msra.mxu0 0.0
      %1756 = vmatprep.subr.mxu0 0.0
      %1757 = vmatpush2.msra.mxu0 0.0
      %1758 = vmatprep.subr.mxu0 0.0
      %1759 = vmatpush2.msra.mxu0 0.0
      %1760 = vmatprep.subr.mxu0 0.0
      %1761 = vmatpush2.msra.mxu0 0.0
      %1762 = vmatprep.subr.mxu0 0.0
      %1763 = vmatpush2.msra.mxu0 0.0
      %1764 = vmatprep.subr.mxu0 0.0
      %1765 = vmatpush2.msra.mxu0 0.0
      %1766 = vmatprep.subr.mxu0 0.0
      %1767 = vmatpush2.msra.mxu0 0.0
      %1768 = vmatprep.subr.mxu0 0.0
      %1769 = vmatpush2.msra.mxu0 0.0
      %1770 = vmatprep.subr.mxu0 0.0
      %1771 = vmatpush2.msra.mxu0 0.0
      %1772 = vmatprep.mubr.f32.mxu0 0.0
      %1773 = vmatmul.mubr.f32.gmra.mxu0 %v1703
      %v1774 = vpop.f32.mrf.mxu0
      %v1775 = vadd.f32 %v1699, %v1774
      %v1776 = vpop.f32.mrf.mxu0
      %1777 = vmatprep.mubr.f32.mxu0 0.0
      %1778 = vmatmul.mubr.f32.gmra.mxu0 %v1706
      %v1779 = vpop.f32.mrf.mxu0
      %v1780 = vadd.f32 %v1699, %v1779
      %v1781 = vpop.f32.mrf.mxu0
      %1782 = vdwg.mxu0
      %v1783 = vadd.f32 %v1494, %v1775
      %v1784 = vadd.f32 %v1495, %v1780
      %v1785 = vld [vmem:[%s12] sm:$0x1]
      %v1786 = vld [vmem:[%s13] sm:$0x1]
      %v1787 = vsel %vm800, %v1783, 0.0
      %1788 = vadd.xlane.f32.xlu0 %v1787
      %v1789 = vpop.xlane.xlu0 %1788
      %v1790 = vsel %vm800, %v1784, 0.0
      %1791 = vadd.xlane.f32.xlu0 %v1790
      %v1792 = vpop.xlane.xlu0 %1791
      %v1793 = vmul.f32 %v1789, %v807
      %v1794 = vmul.f32 %v1792, %v807
      %v1795 = vsub.f32 %v1783, %v1793
      %v1796 = vsub.f32 %v1784, %v1794
      %v1797 = vmul.f32 %v1795, %v1795
      %v1798 = vmul.f32 %v1796, %v1796
      %v1799 = vsel %vm800, %v1797, 0.0
      %1800 = vadd.xlane.f32.xlu0 %v1799
      %v1801 = vpop.xlane.xlu0 %1800
      %v1802 = vsel %vm800, %v1798, 0.0
      %1803 = vadd.xlane.f32.xlu0 %v1802
      %v1804 = vpop.xlane.xlu0 %1803
      %v1805 = vmul.f32 %v1801, %v807
      %v1806 = vmul.f32 %v1804, %v807
      %v1807 = vadd.f32 %v1805, 1e-05
      %v1808 = vadd.f32 %v1806, 1e-05
      %v1809 = vrsqrt.pop %v1807
      %v1810 = vrsqrt.pop %v1808
      %v1811 = vmul.f32 %v1795, %v1809
      %v1812 = vmul.f32 %v1796, %v1810
      %v1814 = vlaneseq
      %v1815 = vshrl.u32 %v1814, 7
      %v1816 = vsub.s32 0, %v1815
      %v1817 = vrot.slane %v1785, %v1816
      %v1819 = vmul.f32 %v1811, %v1817
      %v1820 = vmul.f32 %v1812, %v1817
      %v1822 = vlaneseq
      %v1823 = vshrl.u32 %v1822, 7
      %v1824 = vsub.s32 0, %v1823
      %v1825 = vrot.slane %v1786, %v1824
      %v1827 = vadd.f32 %v1819, %v1825
      %v1828 = vadd.f32 %v1820, %v1825
      %v1829 = vld [vmem:[%s14] sm:$0xff]
      %v1830 = vld [vmem:[%s14 + $0x8] sm:$0xff]
      %v1831 = vld [vmem:[%s14 + $0x10] sm:$0xff]
      %v1832 = vld [vmem:[%s14 + $0x18] sm:$0xff]
      %v1833 = vld [vmem:[%s14 + $0x20] sm:$0xff]
      %v1834 = vld [vmem:[%s14 + $0x28] sm:$0xff]
      %v1835 = vld [vmem:[%s14 + $0x30] sm:$0xff]
      %v1836 = vld [vmem:[%s14 + $0x38] sm:$0xff]
      %v1837 = vld [vmem:[%s14 + $0x40] sm:$0xff]
      %v1838 = vld [vmem:[%s14 + $0x48] sm:$0xff]
      %v1839 = vld [vmem:[%s14 + $0x50] sm:$0xff]
      %v1840 = vld [vmem:[%s14 + $0x58] sm:$0xff]
      %v1841 = vld [vmem:[%s14 + $0x60] sm:$0xf]
      %v1843 = vsel %vm800, %v1829, 0
      %v1846 = vsel %vm800, %v1830, 0
      %v1849 = vsel %vm800, %v1831, 0
      %v1852 = vsel %vm800, %v1832, 0
      %v1855 = vsel %vm800, %v1833, 0
      %v1858 = vsel %vm800, %v1834, 0
      %v1861 = vsel %vm800, %v1835, 0
      %v1864 = vsel %vm800, %v1836, 0
      %v1867 = vsel %vm800, %v1837, 0
      %v1870 = vsel %vm800, %v1838, 0
      %v1873 = vsel %vm800, %v1839, 0
      %v1876 = vsel %vm800, %v1840, 0
      %v1879 = vsel %vm800, %v1841, 0
      %1881 = vmatprep.subr.mxu0 0.0
      %1882 = vmatpush1.msra.mxu0 0.0
      %1883 = vmatprep.subr.mxu0 0.0
      %1884 = vmatpush1.msra.mxu0 0.0
      %1885 = vmatprep.subr.mxu0 0.0
      %1886 = vmatpush1.msra.mxu0 0.0
      %1887 = vmatprep.subr.mxu0 0.0
      %1888 = vmatpush1.msra.mxu0 0.0
      %1889 = vmatprep.subr.mxu0 0.0
      %1890 = vmatpush1.msra.mxu0 0.0
      %1891 = vmatprep.subr.mxu0 0.0
      %1892 = vmatpush1.msra.mxu0 0.0
      %1893 = vmatprep.subr.mxu0 0.0
      %1894 = vmatpush1.msra.mxu0 0.0
      %1895 = vmatprep.subr.mxu0 0.0
      %1896 = vmatpush1.msra.mxu0 0.0
      %1897 = vmatprep.subr.mxu0 0.0
      %1898 = vmatpush1.msra.mxu0 0.0
      %1899 = vmatprep.subr.mxu0 0.0
      %1900 = vmatpush1.msra.mxu0 0.0
      %1901 = vmatprep.subr.mxu0 0.0
      %1902 = vmatpush1.msra.mxu0 0.0
      %1903 = vmatprep.subr.mxu0 0.0
      %1904 = vmatpush1.msra.mxu0 0.0
      %1905 = vmatprep.subr.mxu0 0.0
      %1906 = vmatpush1.msra.mxu0 0.0
      %1907 = vmatprep.subr.mxu0 0.0
      %1908 = vmatpush1.msra.mxu0 0.0
      %1909 = vmatprep.subr.mxu0 0.0
      %1910 = vmatpush1.msra.mxu0 %v1828
      %1911 = vmatprep.subr.mxu0 0.0
      %1912 = vmatpush1.msra.mxu0 %v1827
      %1913 = vmatprep.subr.mxu0 0.0
      %1914 = vmatpush2.msra.mxu0 0.0
      %1915 = vmatprep.subr.mxu0 0.0
      %1916 = vmatpush2.msra.mxu0 0.0
      %1917 = vmatprep.subr.mxu0 0.0
      %1918 = vmatpush2.msra.mxu0 0.0
      %1919 = vmatprep.subr.mxu0 0.0
      %1920 = vmatpush2.msra.mxu0 0.0
      %1921 = vmatprep.subr.mxu0 0.0
      %1922 = vmatpush2.msra.mxu0 0.0
      %1923 = vmatprep.subr.mxu0 0.0
      %1924 = vmatpush2.msra.mxu0 0.0
      %1925 = vmatprep.subr.mxu0 0.0
      %1926 = vmatpush2.msra.mxu0 0.0
      %1927 = vmatprep.subr.mxu0 0.0
      %1928 = vmatpush2.msra.mxu0 0.0
      %1929 = vmatprep.subr.mxu0 0.0
      %1930 = vmatpush2.msra.mxu0 0.0
      %1931 = vmatprep.subr.mxu0 0.0
      %1932 = vmatpush2.msra.mxu0 0.0
      %1933 = vmatprep.subr.mxu0 0.0
      %1934 = vmatpush2.msra.mxu0 0.0
      %1935 = vmatprep.subr.mxu0 0.0
      %1936 = vmatpush2.msra.mxu0 0.0
      %1937 = vmatprep.subr.mxu0 0.0
      %1938 = vmatpush2.msra.mxu0 0.0
      %1939 = vmatprep.subr.mxu0 0.0
      %1940 = vmatpush2.msra.mxu0 0.0
      %1941 = vmatprep.subr.mxu0 0.0
      %1942 = vmatpush2.msra.mxu0 0.0
      %1943 = vmatprep.subr.mxu0 0.0
      %1944 = vmatpush2.msra.mxu0 0.0
      %1945 = vmatprep.mubr.f32.mxu0 0.0
      %1946 = vmatmul.mubr.f32.gmra.mxu0 %v1843
      %v1947 = vpop.f32.mrf.mxu0
      %v1948 = vadd.f32 0.0, %v1947
      %v1949 = vpop.f32.mrf.mxu0
      %1950 = vmatprep.mubr.f32.mxu0 0.0
      %1951 = vmatmul.mubr.f32.gmra.mxu0 %v1846
      %v1952 = vpop.f32.mrf.mxu0
      %v1953 = vadd.f32 0.0, %v1952
      %v1954 = vpop.f32.mrf.mxu0
      %1955 = vmatprep.mubr.f32.mxu0 0.0
      %1956 = vmatmul.mubr.f32.gmra.mxu0 %v1849
      %v1957 = vpop.f32.mrf.mxu0
      %v1958 = vadd.f32 0.0, %v1957
      %v1959 = vpop.f32.mrf.mxu0
      %1960 = vmatprep.mubr.f32.mxu0 0.0
      %1961 = vmatmul.mubr.f32.gmra.mxu0 %v1852
      %v1962 = vpop.f32.mrf.mxu0
      %v1963 = vadd.f32 0.0, %v1962
      %v1964 = vpop.f32.mrf.mxu0
      %1965 = vmatprep.mubr.f32.mxu0 0.0
      %1966 = vmatmul.mubr.f32.gmra.mxu0 %v1855
      %v1967 = vpop.f32.mrf.mxu0
      %v1968 = vadd.f32 0.0, %v1967
      %v1969 = vpop.f32.mrf.mxu0
      %1970 = vmatprep.mubr.f32.mxu0 0.0
      %1971 = vmatmul.mubr.f32.gmra.mxu0 %v1858
      %v1972 = vpop.f32.mrf.mxu0
      %v1973 = vadd.f32 0.0, %v1972
      %v1974 = vpop.f32.mrf.mxu0
      %1975 = vmatprep.mubr.f32.mxu0 0.0
      %1976 = vmatmul.mubr.f32.gmra.mxu0 %v1861
      %v1977 = vpop.f32.mrf.mxu0
      %v1978 = vadd.f32 0.0, %v1977
      %v1979 = vpop.f32.mrf.mxu0
      %1980 = vmatprep.mubr.f32.mxu0 0.0
      %1981 = vmatmul.mubr.f32.gmra.mxu0 %v1864
      %v1982 = vpop.f32.mrf.mxu0
      %v1983 = vadd.f32 0.0, %v1982
      %v1984 = vpop.f32.mrf.mxu0
      %1985 = vmatprep.mubr.f32.mxu0 0.0
      %1986 = vmatmul.mubr.f32.gmra.mxu0 %v1867
      %v1987 = vpop.f32.mrf.mxu0
      %v1988 = vadd.f32 0.0, %v1987
      %v1989 = vpop.f32.mrf.mxu0
      %1990 = vmatprep.mubr.f32.mxu0 0.0
      %1991 = vmatmul.mubr.f32.gmra.mxu0 %v1870
      %v1992 = vpop.f32.mrf.mxu0
      %v1993 = vadd.f32 0.0, %v1992
      %v1994 = vpop.f32.mrf.mxu0
      %1995 = vmatprep.mubr.f32.mxu0 0.0
      %1996 = vmatmul.mubr.f32.gmra.mxu0 %v1873
      %v1997 = vpop.f32.mrf.mxu0
      %v1998 = vadd.f32 0.0, %v1997
      %v1999 = vpop.f32.mrf.mxu0
      %2000 = vmatprep.mubr.f32.mxu0 0.0
      %2001 = vmatmul.mubr.f32.gmra.mxu0 %v1876
      %v2002 = vpop.f32.mrf.mxu0
      %v2003 = vadd.f32 0.0, %v2002
      %v2004 = vpop.f32.mrf.mxu0
      %2005 = vmatprep.mubr.f32.mxu0 0.0
      %2006 = vmatmul.mubr.f32.gmra.mxu0 %v1879
      %v2007 = vpop.f32.mrf.mxu0
      %v2008 = vadd.f32 0.0, %v2007
      %v2009 = vpop.f32.mrf.mxu0
      %2010 = vdwg.mxu0
      %v2024 = vcombine.high %v1948, %v1948
      %v2026 = vunpack.c.l.s4 1983009808
      %v2027 = vunpack.c.0.s8 %v2026
      %v2028 = vlaneseq
      %v2029 = vshrl.u32 %v2028, 7
      %v2030 = vsub.s32 %v2027, %v2029
      %v2031 = vrot.slane %v1948, %v2030
      %v2033 = vunpack.c.l.s4 1983009808
      %v2034 = vunpack.c.0.s8 %v2033
      %v2035 = vlaneseq
      %v2036 = vshrl.u32 %v2035, 7
      %v2037 = vsub.s32 %v2034, %v2036
      %v2038 = vrot.slane %v2024, %v2037
      %v2039 = vcombine.high %v2031, %v2031
      %v2040 = vcombine.high %v2038, %v2038
      %v2041 = vcombine.high %v1953, %v1953
      %v2043 = vunpack.c.l.s4 1983009808
      %v2044 = vunpack.c.0.s8 %v2043
      %v2045 = vlaneseq
      %v2046 = vshrl.u32 %v2045, 7
      %v2047 = vsub.s32 %v2044, %v2046
      %v2048 = vrot.slane %v1953, %v2047
      %v2050 = vunpack.c.l.s4 1983009808
      %v2051 = vunpack.c.0.s8 %v2050
      %v2052 = vlaneseq
      %v2053 = vshrl.u32 %v2052, 7
      %v2054 = vsub.s32 %v2051, %v2053
      %v2055 = vrot.slane %v2041, %v2054
      %v2056 = vcombine.high %v2048, %v2048
      %v2057 = vcombine.high %v2055, %v2055
      %v2058 = vcombine.high %v1958, %v1958
      %v2060 = vunpack.c.l.s4 1983009808
      %v2061 = vunpack.c.0.s8 %v2060
      %v2062 = vlaneseq
      %v2063 = vshrl.u32 %v2062, 7
      %v2064 = vsub.s32 %v2061, %v2063
      %v2065 = vrot.slane %v1958, %v2064
      %v2067 = vunpack.c.l.s4 1983009808
      %v2068 = vunpack.c.0.s8 %v2067
      %v2069 = vlaneseq
      %v2070 = vshrl.u32 %v2069, 7
      %v2071 = vsub.s32 %v2068, %v2070
      %v2072 = vrot.slane %v2058, %v2071
      %v2073 = vcombine.high %v2065, %v2065
      %v2074 = vcombine.high %v2072, %v2072
      %v2075 = vcombine.high %v1963, %v1963
      %v2077 = vunpack.c.l.s4 1983009808
      %v2078 = vunpack.c.0.s8 %v2077
      %v2079 = vlaneseq
      %v2080 = vshrl.u32 %v2079, 7
      %v2081 = vsub.s32 %v2078, %v2080
      %v2082 = vrot.slane %v1963, %v2081
      %v2084 = vunpack.c.l.s4 1983009808
      %v2085 = vunpack.c.0.s8 %v2084
      %v2086 = vlaneseq
      %v2087 = vshrl.u32 %v2086, 7
      %v2088 = vsub.s32 %v2085, %v2087
      %v2089 = vrot.slane %v2075, %v2088
      %v2090 = vcombine.high %v2082, %v2082
      %v2091 = vcombine.high %v2089, %v2089
      %v2092 = vcombine.high %v1968, %v1968
      %v2094 = vunpack.c.l.s4 1983009808
      %v2095 = vunpack.c.0.s8 %v2094
      %v2096 = vlaneseq
      %v2097 = vshrl.u32 %v2096, 7
      %v2098 = vsub.s32 %v2095, %v2097
      %v2099 = vrot.slane %v1968, %v2098
      %v2101 = vunpack.c.l.s4 1983009808
      %v2102 = vunpack.c.0.s8 %v2101
      %v2103 = vlaneseq
      %v2104 = vshrl.u32 %v2103, 7
      %v2105 = vsub.s32 %v2102, %v2104
      %v2106 = vrot.slane %v2092, %v2105
      %v2107 = vcombine.high %v2099, %v2099
      %v2108 = vcombine.high %v2106, %v2106
      %v2109 = vcombine.high %v1973, %v1973
      %v2111 = vunpack.c.l.s4 1983009808
      %v2112 = vunpack.c.0.s8 %v2111
      %v2113 = vlaneseq
      %v2114 = vshrl.u32 %v2113, 7
      %v2115 = vsub.s32 %v2112, %v2114
      %v2116 = vrot.slane %v1973, %v2115
      %v2118 = vunpack.c.l.s4 1983009808
      %v2119 = vunpack.c.0.s8 %v2118
      %v2120 = vlaneseq
      %v2121 = vshrl.u32 %v2120, 7
      %v2122 = vsub.s32 %v2119, %v2121
      %v2123 = vrot.slane %v2109, %v2122
      %v2124 = vcombine.high %v2116, %v2116
      %v2125 = vcombine.high %v2123, %v2123
      %v2126 = vcombine.high %v1978, %v1978
      %v2128 = vunpack.c.l.s4 1983009808
      %v2129 = vunpack.c.0.s8 %v2128
      %v2130 = vlaneseq
      %v2131 = vshrl.u32 %v2130, 7
      %v2132 = vsub.s32 %v2129, %v2131
      %v2133 = vrot.slane %v1978, %v2132
      %v2135 = vunpack.c.l.s4 1983009808
      %v2136 = vunpack.c.0.s8 %v2135
      %v2137 = vlaneseq
      %v2138 = vshrl.u32 %v2137, 7
      %v2139 = vsub.s32 %v2136, %v2138
      %v2140 = vrot.slane %v2126, %v2139
      %v2141 = vcombine.high %v2133, %v2133
      %v2142 = vcombine.high %v2140, %v2140
      %v2143 = vcombine.high %v1983, %v1983
      %v2145 = vunpack.c.l.s4 1983009808
      %v2146 = vunpack.c.0.s8 %v2145
      %v2147 = vlaneseq
      %v2148 = vshrl.u32 %v2147, 7
      %v2149 = vsub.s32 %v2146, %v2148
      %v2150 = vrot.slane %v1983, %v2149
      %v2152 = vunpack.c.l.s4 1983009808
      %v2153 = vunpack.c.0.s8 %v2152
      %v2154 = vlaneseq
      %v2155 = vshrl.u32 %v2154, 7
      %v2156 = vsub.s32 %v2153, %v2155
      %v2157 = vrot.slane %v2143, %v2156
      %v2158 = vcombine.high %v2150, %v2150
      %v2159 = vcombine.high %v2157, %v2157
      %v2160 = vcombine.high %v1988, %v1988
      %v2162 = vunpack.c.l.s4 1983009808
      %v2163 = vunpack.c.0.s8 %v2162
      %v2164 = vlaneseq
      %v2165 = vshrl.u32 %v2164, 7
      %v2166 = vsub.s32 %v2163, %v2165
      %v2167 = vrot.slane %v1988, %v2166
      %v2169 = vunpack.c.l.s4 1983009808
      %v2170 = vunpack.c.0.s8 %v2169
      %v2171 = vlaneseq
      %v2172 = vshrl.u32 %v2171, 7
      %v2173 = vsub.s32 %v2170, %v2172
      %v2174 = vrot.slane %v2160, %v2173
      %v2175 = vcombine.high %v2167, %v2167
      %v2176 = vcombine.high %v2174, %v2174
      %v2177 = vcombine.high %v1993, %v1993
      %v2179 = vunpack.c.l.s4 1983009808
      %v2180 = vunpack.c.0.s8 %v2179
      %v2181 = vlaneseq
      %v2182 = vshrl.u32 %v2181, 7
      %v2183 = vsub.s32 %v2180, %v2182
      %v2184 = vrot.slane %v1993, %v2183
      %v2186 = vunpack.c.l.s4 1983009808
      %v2187 = vunpack.c.0.s8 %v2186
      %v2188 = vlaneseq
      %v2189 = vshrl.u32 %v2188, 7
      %v2190 = vsub.s32 %v2187, %v2189
      %v2191 = vrot.slane %v2177, %v2190
      %v2192 = vcombine.high %v2184, %v2184
      %v2193 = vcombine.high %v2191, %v2191
      %v2194 = vcombine.high %v1998, %v1998
      %v2196 = vunpack.c.l.s4 1983009808
      %v2197 = vunpack.c.0.s8 %v2196
      %v2198 = vlaneseq
      %v2199 = vshrl.u32 %v2198, 7
      %v2200 = vsub.s32 %v2197, %v2199
      %v2201 = vrot.slane %v1998, %v2200
      %v2203 = vunpack.c.l.s4 1983009808
      %v2204 = vunpack.c.0.s8 %v2203
      %v2205 = vlaneseq
      %v2206 = vshrl.u32 %v2205, 7
      %v2207 = vsub.s32 %v2204, %v2206
      %v2208 = vrot.slane %v2194, %v2207
      %v2209 = vcombine.high %v2201, %v2201
      %v2210 = vcombine.high %v2208, %v2208
      %v2211 = vcombine.high %v2003, %v2003
      %v2213 = vunpack.c.l.s4 1983009808
      %v2214 = vunpack.c.0.s8 %v2213
      %v2215 = vlaneseq
      %v2216 = vshrl.u32 %v2215, 7
      %v2217 = vsub.s32 %v2214, %v2216
      %v2218 = vrot.slane %v2003, %v2217
      %v2220 = vunpack.c.l.s4 1983009808
      %v2221 = vunpack.c.0.s8 %v2220
      %v2222 = vlaneseq
      %v2223 = vshrl.u32 %v2222, 7
      %v2224 = vsub.s32 %v2221, %v2223
      %v2225 = vrot.slane %v2211, %v2224
      %v2226 = vcombine.high %v2218, %v2218
      %v2227 = vcombine.high %v2225, %v2225
      %v2229 = vunpack.c.l.s4 1983009808
      %v2230 = vunpack.c.0.s8 %v2229
      %v2231 = vlaneseq
      %v2232 = vshrl.u32 %v2231, 7
      %v2233 = vsub.s32 %v2230, %v2232
      %v2234 = vrot.slane %v2008, %v2233
      %v2235 = vcombine.high %v2234, %v2234
      %vm2236 = vcmask 1040384
      %vm2237 = vcmask 1042434
      %vm2238 = vmor %vm2236, %vm2237
      %vm2239 = vcmask 1044484
      %vm2240 = vmor %vm2238, %vm2239
      %vm2241 = vcmask 1046534
      %vm2242 = vmor %vm2240, %vm2241
      %v2243 = vrot.slane %v2031, 7
      %v2244 = vrot.slane %v2243, 2
      %v2245 = vrot.slane %v2039, 7
      %v2246 = vsel %vm2242, %v2244, %v2245
      %v2247 = vrot.slane %v2245, 2
      %v2248 = vrot.slane %v2038, 7
      %v2249 = vsel %vm2242, %v2247, %v2248
      %v2250 = vrot.slane %v2248, 2
      %v2251 = vrot.slane %v2040, 7
      %v2252 = vsel %vm2242, %v2250, %v2251
      %v2253 = vrot.slane %v2251, 2
      %v2254 = vrot.slane %v2048, 7
      %v2255 = vsel %vm2242, %v2253, %v2254
      %v2256 = vrot.slane %v2056, 7
      %v2257 = vrot.slane %v2256, 2
      %v2258 = vrot.slane %v2055, 7
      %v2259 = vsel %vm2242, %v2257, %v2258
      %v2260 = vrot.slane %v2258, 2
      %v2261 = vrot.slane %v2057, 7
      %v2262 = vsel %vm2242, %v2260, %v2261
      %v2263 = vrot.slane %v2261, 2
      %v2264 = vrot.slane %v2065, 7
      %v2265 = vsel %vm2242, %v2263, %v2264
      %v2266 = vrot.slane %v2264, 2
      %v2267 = vrot.slane %v2073, 7
      %v2268 = vsel %vm2242, %v2266, %v2267
      %v2269 = vrot.slane %v2072, 7
      %v2270 = vrot.slane %v2269, 2
      %v2271 = vrot.slane %v2074, 7
      %v2272 = vsel %vm2242, %v2270, %v2271
      %v2273 = vrot.slane %v2271, 2
      %v2274 = vrot.slane %v2082, 7
      %v2275 = vsel %vm2242, %v2273, %v2274
      %v2276 = vrot.slane %v2274, 2
      %v2277 = vrot.slane %v2090, 7
      %v2278 = vsel %vm2242, %v2276, %v2277
      %v2279 = vrot.slane %v2277, 2
      %v2280 = vrot.slane %v2089, 7
      %v2281 = vsel %vm2242, %v2279, %v2280
      %v2282 = vrot.slane %v2091, 7
      %v2283 = vrot.slane %v2282, 2
      %v2284 = vrot.slane %v2099, 7
      %v2285 = vsel %vm2242, %v2283, %v2284
      %v2286 = vrot.slane %v2284, 2
      %v2287 = vrot.slane %v2107, 7
      %v2288 = vsel %vm2242, %v2286, %v2287
      %v2289 = vrot.slane %v2287, 2
      %v2290 = vrot.slane %v2106, 7
      %v2291 = vsel %vm2242, %v2289, %v2290
      %v2292 = vrot.slane %v2290, 2
      %v2293 = vrot.slane %v2108, 7
      %v2294 = vsel %vm2242, %v2292, %v2293
      %v2295 = vrot.slane %v2116, 7
      %v2296 = vrot.slane %v2295, 2
      %v2297 = vrot.slane %v2124, 7
      %v2298 = vsel %vm2242, %v2296, %v2297
      %v2299 = vrot.slane %v2297, 2
      %v2300 = vrot.slane %v2123, 7
      %v2301 = vsel %vm2242, %v2299, %v2300
      %v2302 = vrot.slane %v2300, 2
      %v2303 = vrot.slane %v2125, 7
      %v2304 = vsel %vm2242, %v2302, %v2303
      %v2305 = vrot.slane %v2303, 2
      %v2306 = vrot.slane %v2133, 7
      %v2307 = vsel %vm2242, %v2305, %v2306
      %v2308 = vrot.slane %v2141, 7
      %v2309 = vrot.slane %v2308, 2
      %v2310 = vrot.slane %v2140, 7
      %v2311 = vsel %vm2242, %v2309, %v2310
      %v2312 = vrot.slane %v2310, 2
      %v2313 = vrot.slane %v2142, 7
      %v2314 = vsel %vm2242, %v2312, %v2313
      %v2315 = vrot.slane %v2313, 2
      %v2316 = vrot.slane %v2150, 7
      %v2317 = vsel %vm2242, %v2315, %v2316
      %v2318 = vrot.slane %v2316, 2
      %v2319 = vrot.slane %v2158, 7
      %v2320 = vsel %vm2242, %v2318, %v2319
      %v2321 = vrot.slane %v2157, 7
      %v2322 = vrot.slane %v2321, 2
      %v2323 = vrot.slane %v2159, 7
      %v2324 = vsel %vm2242, %v2322, %v2323
      %v2325 = vrot.slane %v2323, 2
      %v2326 = vrot.slane %v2167, 7
      %v2327 = vsel %vm2242, %v2325, %v2326
      %v2328 = vrot.slane %v2326, 2
      %v2329 = vrot.slane %v2175, 7
      %v2330 = vsel %vm2242, %v2328, %v2329
      %v2331 = vrot.slane %v2329, 2
      %v2332 = vrot.slane %v2174, 7
      %v2333 = vsel %vm2242, %v2331, %v2332
      %v2334 = vrot.slane %v2176, 7
      %v2335 = vrot.slane %v2334, 2
      %v2336 = vrot.slane %v2184, 7
      %v2337 = vsel %vm2242, %v2335, %v2336
      %v2338 = vrot.slane %v2336, 2
      %v2339 = vrot.slane %v2192, 7
      %v2340 = vsel %vm2242, %v2338, %v2339
      %v2341 = vrot.slane %v2339, 2
      %v2342 = vrot.slane %v2191, 7
      %v2343 = vsel %vm2242, %v2341, %v2342
      %v2344 = vrot.slane %v2342, 2
      %v2345 = vrot.slane %v2193, 7
      %v2346 = vsel %vm2242, %v2344, %v2345
      %v2347 = vrot.slane %v2201, 7
      %v2348 = vrot.slane %v2347, 2
      %v2349 = vrot.slane %v2209, 7
      %v2350 = vsel %vm2242, %v2348, %v2349
      %v2351 = vrot.slane %v2349, 2
      %v2352 = vrot.slane %v2208, 7
      %v2353 = vsel %vm2242, %v2351, %v2352
      %v2354 = vrot.slane %v2352, 2
      %v2355 = vrot.slane %v2210, 7
      %v2356 = vsel %vm2242, %v2354, %v2355
      %v2357 = vrot.slane %v2355, 2
      %v2358 = vrot.slane %v2218, 7
      %v2359 = vsel %vm2242, %v2357, %v2358
      %v2360 = vrot.slane %v2226, 7
      %v2361 = vrot.slane %v2360, 2
      %v2362 = vrot.slane %v2225, 7
      %v2363 = vsel %vm2242, %v2361, %v2362
      %v2364 = vrot.slane %v2362, 2
      %v2365 = vrot.slane %v2227, 7
      %v2366 = vsel %vm2242, %v2364, %v2365
      %v2367 = vrot.slane %v2365, 2
      %v2368 = vrot.slane %v2234, 7
      %v2369 = vsel %vm2242, %v2367, %v2368
      %v2370 = vrot.slane %v2368, 2
      %v2371 = vrot.slane %v2235, 7
      %v2372 = vsel %vm2242, %v2370, %v2371
      %v2373 = vcombine.low %v2031, %v2039
      %v2374 = vcombine.low %v2038, %v2040
      %v2376 = vunpack.c.l.s4 1983009808
      %v2377 = vunpack.c.0.s8 %v2376
      %v2378 = vlaneseq
      %v2379 = vshrl.u32 %v2378, 7
      %v2380 = vsub.s32 %v2377, %v2379
      %v2381 = vrot.slane %v2373, %v2380
      %v2383 = vunpack.c.l.s4 1983009808
      %v2384 = vunpack.c.0.s8 %v2383
      %v2385 = vlaneseq
      %v2386 = vshrl.u32 %v2385, 7
      %v2387 = vsub.s32 %v2384, %v2386
      %v2388 = vrot.slane %v2374, %v2387
      %v2389 = vcombine.low %v2381, %v2388
      %v2390 = vcombine.low %v2056, %v2055
      %v2391 = vcombine.low %v2057, %v2065
      %v2393 = vunpack.c.l.s4 1983009808
      %v2394 = vunpack.c.0.s8 %v2393
      %v2395 = vlaneseq
      %v2396 = vshrl.u32 %v2395, 7
      %v2397 = vsub.s32 %v2394, %v2396
      %v2398 = vrot.slane %v2390, %v2397
      %v2400 = vunpack.c.l.s4 1983009808
      %v2401 = vunpack.c.0.s8 %v2400
      %v2402 = vlaneseq
      %v2403 = vshrl.u32 %v2402, 7
      %v2404 = vsub.s32 %v2401, %v2403
      %v2405 = vrot.slane %v2391, %v2404
      %v2406 = vcombine.low %v2398, %v2405
      %v2407 = vcombine.low %v2072, %v2074
      %v2408 = vcombine.low %v2082, %v2090
      %v2410 = vunpack.c.l.s4 1983009808
      %v2411 = vunpack.c.0.s8 %v2410
      %v2412 = vlaneseq
      %v2413 = vshrl.u32 %v2412, 7
      %v2414 = vsub.s32 %v2411, %v2413
      %v2415 = vrot.slane %v2407, %v2414
      %v2417 = vunpack.c.l.s4 1983009808
      %v2418 = vunpack.c.0.s8 %v2417
      %v2419 = vlaneseq
      %v2420 = vshrl.u32 %v2419, 7
      %v2421 = vsub.s32 %v2418, %v2420
      %v2422 = vrot.slane %v2408, %v2421
      %v2423 = vcombine.low %v2415, %v2422
      %v2424 = vcombine.low %v2091, %v2099
      %v2425 = vcombine.low %v2107, %v2106
      %v2427 = vunpack.c.l.s4 1983009808
      %v2428 = vunpack.c.0.s8 %v2427
      %v2429 = vlaneseq
      %v2430 = vshrl.u32 %v2429, 7
      %v2431 = vsub.s32 %v2428, %v2430
      %v2432 = vrot.slane %v2424, %v2431
      %v2434 = vunpack.c.l.s4 1983009808
      %v2435 = vunpack.c.0.s8 %v2434
      %v2436 = vlaneseq
      %v2437 = vshrl.u32 %v2436, 7
      %v2438 = vsub.s32 %v2435, %v2437
      %v2439 = vrot.slane %v2425, %v2438
      %v2440 = vcombine.low %v2432, %v2439
      %v2441 = vcombine.low %v2116, %v2124
      %v2442 = vcombine.low %v2123, %v2125
      %v2444 = vunpack.c.l.s4 1983009808
      %v2445 = vunpack.c.0.s8 %v2444
      %v2446 = vlaneseq
      %v2447 = vshrl.u32 %v2446, 7
      %v2448 = vsub.s32 %v2445, %v2447
      %v2449 = vrot.slane %v2441, %v2448
      %v2451 = vunpack.c.l.s4 1983009808
      %v2452 = vunpack.c.0.s8 %v2451
      %v2453 = vlaneseq
      %v2454 = vshrl.u32 %v2453, 7
      %v2455 = vsub.s32 %v2452, %v2454
      %v2456 = vrot.slane %v2442, %v2455
      %v2457 = vcombine.low %v2449, %v2456
      %v2458 = vcombine.low %v2141, %v2140
      %v2459 = vcombine.low %v2142, %v2150
      %v2461 = vunpack.c.l.s4 1983009808
      %v2462 = vunpack.c.0.s8 %v2461
      %v2463 = vlaneseq
      %v2464 = vshrl.u32 %v2463, 7
      %v2465 = vsub.s32 %v2462, %v2464
      %v2466 = vrot.slane %v2458, %v2465
      %v2468 = vunpack.c.l.s4 1983009808
      %v2469 = vunpack.c.0.s8 %v2468
      %v2470 = vlaneseq
      %v2471 = vshrl.u32 %v2470, 7
      %v2472 = vsub.s32 %v2469, %v2471
      %v2473 = vrot.slane %v2459, %v2472
      %v2474 = vcombine.low %v2466, %v2473
      %v2475 = vcombine.low %v2157, %v2159
      %v2476 = vcombine.low %v2167, %v2175
      %v2478 = vunpack.c.l.s4 1983009808
      %v2479 = vunpack.c.0.s8 %v2478
      %v2480 = vlaneseq
      %v2481 = vshrl.u32 %v2480, 7
      %v2482 = vsub.s32 %v2479, %v2481
      %v2483 = vrot.slane %v2475, %v2482
      %v2485 = vunpack.c.l.s4 1983009808
      %v2486 = vunpack.c.0.s8 %v2485
      %v2487 = vlaneseq
      %v2488 = vshrl.u32 %v2487, 7
      %v2489 = vsub.s32 %v2486, %v2488
      %v2490 = vrot.slane %v2476, %v2489
      %v2491 = vcombine.low %v2483, %v2490
      %v2492 = vcombine.low %v2176, %v2184
      %v2493 = vcombine.low %v2192, %v2191
      %v2495 = vunpack.c.l.s4 1983009808
      %v2496 = vunpack.c.0.s8 %v2495
      %v2497 = vlaneseq
      %v2498 = vshrl.u32 %v2497, 7
      %v2499 = vsub.s32 %v2496, %v2498
      %v2500 = vrot.slane %v2492, %v2499
      %v2502 = vunpack.c.l.s4 1983009808
      %v2503 = vunpack.c.0.s8 %v2502
      %v2504 = vlaneseq
      %v2505 = vshrl.u32 %v2504, 7
      %v2506 = vsub.s32 %v2503, %v2505
      %v2507 = vrot.slane %v2493, %v2506
      %v2508 = vcombine.low %v2500, %v2507
      %v2517 = vcombine.low %v2246, %v2249
      %v2518 = vcombine.low %v2252, %v2255
      %v2520 = vunpack.c.l.s4 1983009808
      %v2521 = vunpack.c.0.s8 %v2520
      %v2522 = vlaneseq
      %v2523 = vshrl.u32 %v2522, 7
      %v2524 = vsub.s32 %v2521, %v2523
      %v2525 = vrot.slane %v2517, %v2524
      %v2527 = vunpack.c.l.s4 1983009808
      %v2528 = vunpack.c.0.s8 %v2527
      %v2529 = vlaneseq
      %v2530 = vshrl.u32 %v2529, 7
      %v2531 = vsub.s32 %v2528, %v2530
      %v2532 = vrot.slane %v2518, %v2531
      %v2533 = vcombine.low %v2525, %v2532
      %v2534 = vcombine.low %v2259, %v2262
      %v2535 = vcombine.low %v2265, %v2268
      %v2537 = vunpack.c.l.s4 1983009808
      %v2538 = vunpack.c.0.s8 %v2537
      %v2539 = vlaneseq
      %v2540 = vshrl.u32 %v2539, 7
      %v2541 = vsub.s32 %v2538, %v2540
      %v2542 = vrot.slane %v2534, %v2541
      %v2544 = vunpack.c.l.s4 1983009808
      %v2545 = vunpack.c.0.s8 %v2544
      %v2546 = vlaneseq
      %v2547 = vshrl.u32 %v2546, 7
      %v2548 = vsub.s32 %v2545, %v2547
      %v2549 = vrot.slane %v2535, %v2548
      %v2550 = vcombine.low %v2542, %v2549
      %v2551 = vcombine.low %v2272, %v2275
      %v2552 = vcombine.low %v2278, %v2281
      %v2554 = vunpack.c.l.s4 1983009808
      %v2555 = vunpack.c.0.s8 %v2554
      %v2556 = vlaneseq
      %v2557 = vshrl.u32 %v2556, 7
      %v2558 = vsub.s32 %v2555, %v2557
      %v2559 = vrot.slane %v2551, %v2558
      %v2561 = vunpack.c.l.s4 1983009808
      %v2562 = vunpack.c.0.s8 %v2561
      %v2563 = vlaneseq
      %v2564 = vshrl.u32 %v2563, 7
      %v2565 = vsub.s32 %v2562, %v2564
      %v2566 = vrot.slane %v2552, %v2565
      %v2567 = vcombine.low %v2559, %v2566
      %v2568 = vcombine.low %v2285, %v2288
      %v2569 = vcombine.low %v2291, %v2294
      %v2571 = vunpack.c.l.s4 1983009808
      %v2572 = vunpack.c.0.s8 %v2571
      %v2573 = vlaneseq
      %v2574 = vshrl.u32 %v2573, 7
      %v2575 = vsub.s32 %v2572, %v2574
      %v2576 = vrot.slane %v2568, %v2575
      %v2578 = vunpack.c.l.s4 1983009808
      %v2579 = vunpack.c.0.s8 %v2578
      %v2580 = vlaneseq
      %v2581 = vshrl.u32 %v2580, 7
      %v2582 = vsub.s32 %v2579, %v2581
      %v2583 = vrot.slane %v2569, %v2582
      %v2584 = vcombine.low %v2576, %v2583
      %v2585 = vcombine.low %v2298, %v2301
      %v2586 = vcombine.low %v2304, %v2307
      %v2588 = vunpack.c.l.s4 1983009808
      %v2589 = vunpack.c.0.s8 %v2588
      %v2590 = vlaneseq
      %v2591 = vshrl.u32 %v2590, 7
      %v2592 = vsub.s32 %v2589, %v2591
      %v2593 = vrot.slane %v2585, %v2592
      %v2595 = vunpack.c.l.s4 1983009808
      %v2596 = vunpack.c.0.s8 %v2595
      %v2597 = vlaneseq
      %v2598 = vshrl.u32 %v2597, 7
      %v2599 = vsub.s32 %v2596, %v2598
      %v2600 = vrot.slane %v2586, %v2599
      %v2601 = vcombine.low %v2593, %v2600
      %v2602 = vcombine.low %v2311, %v2314
      %v2603 = vcombine.low %v2317, %v2320
      %v2605 = vunpack.c.l.s4 1983009808
      %v2606 = vunpack.c.0.s8 %v2605
      %v2607 = vlaneseq
      %v2608 = vshrl.u32 %v2607, 7
      %v2609 = vsub.s32 %v2606, %v2608
      %v2610 = vrot.slane %v2602, %v2609
      %v2612 = vunpack.c.l.s4 1983009808
      %v2613 = vunpack.c.0.s8 %v2612
      %v2614 = vlaneseq
      %v2615 = vshrl.u32 %v2614, 7
      %v2616 = vsub.s32 %v2613, %v2615
      %v2617 = vrot.slane %v2603, %v2616
      %v2618 = vcombine.low %v2610, %v2617
      %v2619 = vcombine.low %v2324, %v2327
      %v2620 = vcombine.low %v2330, %v2333
      %v2622 = vunpack.c.l.s4 1983009808
      %v2623 = vunpack.c.0.s8 %v2622
      %v2624 = vlaneseq
      %v2625 = vshrl.u32 %v2624, 7
      %v2626 = vsub.s32 %v2623, %v2625
      %v2627 = vrot.slane %v2619, %v2626
      %v2629 = vunpack.c.l.s4 1983009808
      %v2630 = vunpack.c.0.s8 %v2629
      %v2631 = vlaneseq
      %v2632 = vshrl.u32 %v2631, 7
      %v2633 = vsub.s32 %v2630, %v2632
      %v2634 = vrot.slane %v2620, %v2633
      %v2635 = vcombine.low %v2627, %v2634
      %v2636 = vcombine.low %v2337, %v2340
      %v2637 = vcombine.low %v2343, %v2346
      %v2639 = vunpack.c.l.s4 1983009808
      %v2640 = vunpack.c.0.s8 %v2639
      %v2641 = vlaneseq
      %v2642 = vshrl.u32 %v2641, 7
      %v2643 = vsub.s32 %v2640, %v2642
      %v2644 = vrot.slane %v2636, %v2643
      %v2646 = vunpack.c.l.s4 1983009808
      %v2647 = vunpack.c.0.s8 %v2646
      %v2648 = vlaneseq
      %v2649 = vshrl.u32 %v2648, 7
      %v2650 = vsub.s32 %v2647, %v2649
      %v2651 = vrot.slane %v2637, %v2650
      %v2652 = vcombine.low %v2644, %v2651
      %2653 = vrot.lane.b32.xlu0 %v2533, 16
      %v2654 = vpop.permute.xlu0 %2653
      %2655 = vrot.lane.b32.xlu0 %v2550, 16
      %v2656 = vpop.permute.xlu0 %2655
      %2657 = vrot.lane.b32.xlu0 %v2567, 16
      %v2658 = vpop.permute.xlu0 %2657
      %2659 = vrot.lane.b32.xlu0 %v2584, 16
      %v2660 = vpop.permute.xlu0 %2659
      %2661 = vrot.lane.b32.xlu0 %v2601, 16
      %v2662 = vpop.permute.xlu0 %2661
      %2663 = vrot.lane.b32.xlu0 %v2618, 16
      %v2664 = vpop.permute.xlu0 %2663
      %2665 = vrot.lane.b32.xlu0 %v2635, 16
      %v2666 = vpop.permute.xlu0 %2665
      %2667 = vrot.lane.b32.xlu0 %v2652, 16
      %v2668 = vpop.permute.xlu0 %2667
      %v2677 = vcombine.low %v2039, %v2038
      %v2678 = vcombine.low %v2040, %v2048
      %v2680 = vunpack.c.l.s4 1983009808
      %v2681 = vunpack.c.0.s8 %v2680
      %v2682 = vlaneseq
      %v2683 = vshrl.u32 %v2682, 7
      %v2684 = vsub.s32 %v2681, %v2683
      %v2685 = vrot.slane %v2677, %v2684
      %v2687 = vunpack.c.l.s4 1983009808
      %v2688 = vunpack.c.0.s8 %v2687
      %v2689 = vlaneseq
      %v2690 = vshrl.u32 %v2689, 7
      %v2691 = vsub.s32 %v2688, %v2690
      %v2692 = vrot.slane %v2678, %v2691
      %v2693 = vcombine.low %v2685, %v2692
      %v2694 = vcombine.low %v2055, %v2057
      %v2695 = vcombine.low %v2065, %v2073
      %v2697 = vunpack.c.l.s4 1983009808
      %v2698 = vunpack.c.0.s8 %v2697
      %v2699 = vlaneseq
      %v2700 = vshrl.u32 %v2699, 7
      %v2701 = vsub.s32 %v2698, %v2700
      %v2702 = vrot.slane %v2694, %v2701
      %v2704 = vunpack.c.l.s4 1983009808
      %v2705 = vunpack.c.0.s8 %v2704
      %v2706 = vlaneseq
      %v2707 = vshrl.u32 %v2706, 7
      %v2708 = vsub.s32 %v2705, %v2707
      %v2709 = vrot.slane %v2695, %v2708
      %v2710 = vcombine.low %v2702, %v2709
      %v2711 = vcombine.low %v2074, %v2082
      %v2712 = vcombine.low %v2090, %v2089
      %v2714 = vunpack.c.l.s4 1983009808
      %v2715 = vunpack.c.0.s8 %v2714
      %v2716 = vlaneseq
      %v2717 = vshrl.u32 %v2716, 7
      %v2718 = vsub.s32 %v2715, %v2717
      %v2719 = vrot.slane %v2711, %v2718
      %v2721 = vunpack.c.l.s4 1983009808
      %v2722 = vunpack.c.0.s8 %v2721
      %v2723 = vlaneseq
      %v2724 = vshrl.u32 %v2723, 7
      %v2725 = vsub.s32 %v2722, %v2724
      %v2726 = vrot.slane %v2712, %v2725
      %v2727 = vcombine.low %v2719, %v2726
      %v2728 = vcombine.low %v2099, %v2107
      %v2729 = vcombine.low %v2106, %v2108
      %v2731 = vunpack.c.l.s4 1983009808
      %v2732 = vunpack.c.0.s8 %v2731
      %v2733 = vlaneseq
      %v2734 = vshrl.u32 %v2733, 7
      %v2735 = vsub.s32 %v2732, %v2734
      %v2736 = vrot.slane %v2728, %v2735
      %v2738 = vunpack.c.l.s4 1983009808
      %v2739 = vunpack.c.0.s8 %v2738
      %v2740 = vlaneseq
      %v2741 = vshrl.u32 %v2740, 7
      %v2742 = vsub.s32 %v2739, %v2741
      %v2743 = vrot.slane %v2729, %v2742
      %v2744 = vcombine.low %v2736, %v2743
      %v2745 = vcombine.low %v2124, %v2123
      %v2746 = vcombine.low %v2125, %v2133
      %v2748 = vunpack.c.l.s4 1983009808
      %v2749 = vunpack.c.0.s8 %v2748
      %v2750 = vlaneseq
      %v2751 = vshrl.u32 %v2750, 7
      %v2752 = vsub.s32 %v2749, %v2751
      %v2753 = vrot.slane %v2745, %v2752
      %v2755 = vunpack.c.l.s4 1983009808
      %v2756 = vunpack.c.0.s8 %v2755
      %v2757 = vlaneseq
      %v2758 = vshrl.u32 %v2757, 7
      %v2759 = vsub.s32 %v2756, %v2758
      %v2760 = vrot.slane %v2746, %v2759
      %v2761 = vcombine.low %v2753, %v2760
      %v2762 = vcombine.low %v2140, %v2142
      %v2763 = vcombine.low %v2150, %v2158
      %v2765 = vunpack.c.l.s4 1983009808
      %v2766 = vunpack.c.0.s8 %v2765
      %v2767 = vlaneseq
      %v2768 = vshrl.u32 %v2767, 7
      %v2769 = vsub.s32 %v2766, %v2768
      %v2770 = vrot.slane %v2762, %v2769
      %v2772 = vunpack.c.l.s4 1983009808
      %v2773 = vunpack.c.0.s8 %v2772
      %v2774 = vlaneseq
      %v2775 = vshrl.u32 %v2774, 7
      %v2776 = vsub.s32 %v2773, %v2775
      %v2777 = vrot.slane %v2763, %v2776
      %v2778 = vcombine.low %v2770, %v2777
      %v2779 = vcombine.low %v2159, %v2167
      %v2780 = vcombine.low %v2175, %v2174
      %v2782 = vunpack.c.l.s4 1983009808
      %v2783 = vunpack.c.0.s8 %v2782
      %v2784 = vlaneseq
      %v2785 = vshrl.u32 %v2784, 7
      %v2786 = vsub.s32 %v2783, %v2785
      %v2787 = vrot.slane %v2779, %v2786
      %v2789 = vunpack.c.l.s4 1983009808
      %v2790 = vunpack.c.0.s8 %v2789
      %v2791 = vlaneseq
      %v2792 = vshrl.u32 %v2791, 7
      %v2793 = vsub.s32 %v2790, %v2792
      %v2794 = vrot.slane %v2780, %v2793
      %v2795 = vcombine.low %v2787, %v2794
      %v2796 = vcombine.low %v2184, %v2192
      %v2797 = vcombine.low %v2191, %v2193
      %v2799 = vunpack.c.l.s4 1983009808
      %v2800 = vunpack.c.0.s8 %v2799
      %v2801 = vlaneseq
      %v2802 = vshrl.u32 %v2801, 7
      %v2803 = vsub.s32 %v2800, %v2802
      %v2804 = vrot.slane %v2796, %v2803
      %v2806 = vunpack.c.l.s4 1983009808
      %v2807 = vunpack.c.0.s8 %v2806
      %v2808 = vlaneseq
      %v2809 = vshrl.u32 %v2808, 7
      %v2810 = vsub.s32 %v2807, %v2809
      %v2811 = vrot.slane %v2797, %v2810
      %v2812 = vcombine.low %v2804, %v2811
      %2813 = vrot.lane.b32.xlu0 %v2693, 32
      %v2814 = vpop.permute.xlu0 %2813
      %2815 = vrot.lane.b32.xlu0 %v2710, 32
      %v2816 = vpop.permute.xlu0 %2815
      %2817 = vrot.lane.b32.xlu0 %v2727, 32
      %v2818 = vpop.permute.xlu0 %2817
      %2819 = vrot.lane.b32.xlu0 %v2744, 32
      %v2820 = vpop.permute.xlu0 %2819
      %2821 = vrot.lane.b32.xlu0 %v2761, 32
      %v2822 = vpop.permute.xlu0 %2821
      %2823 = vrot.lane.b32.xlu0 %v2778, 32
      %v2824 = vpop.permute.xlu0 %2823
      %2825 = vrot.lane.b32.xlu0 %v2795, 32
      %v2826 = vpop.permute.xlu0 %2825
      %2827 = vrot.lane.b32.xlu0 %v2812, 32
      %v2828 = vpop.permute.xlu0 %2827
      %v2837 = vcombine.low %v2201, %v2209
      %v2838 = vcombine.low %v2208, %v2210
      %v2840 = vunpack.c.l.s4 1983009808
      %v2841 = vunpack.c.0.s8 %v2840
      %v2842 = vlaneseq
      %v2843 = vshrl.u32 %v2842, 7
      %v2844 = vsub.s32 %v2841, %v2843
      %v2845 = vrot.slane %v2837, %v2844
      %v2847 = vunpack.c.l.s4 1983009808
      %v2848 = vunpack.c.0.s8 %v2847
      %v2849 = vlaneseq
      %v2850 = vshrl.u32 %v2849, 7
      %v2851 = vsub.s32 %v2848, %v2850
      %v2852 = vrot.slane %v2838, %v2851
      %v2853 = vcombine.low %v2845, %v2852
      %2854 = vrot.lane.b32.xlu0 %v2406, 48
      %v2855 = vpop.permute.xlu0 %2854
      %2856 = vrot.lane.b32.xlu0 %v2423, 48
      %v2857 = vpop.permute.xlu0 %2856
      %2858 = vrot.lane.b32.xlu0 %v2440, 48
      %v2859 = vpop.permute.xlu0 %2858
      %2860 = vrot.lane.b32.xlu0 %v2457, 48
      %v2861 = vpop.permute.xlu0 %2860
      %2862 = vrot.lane.b32.xlu0 %v2474, 48
      %v2863 = vpop.permute.xlu0 %2862
      %2864 = vrot.lane.b32.xlu0 %v2491, 48
      %v2865 = vpop.permute.xlu0 %2864
      %2866 = vrot.lane.b32.xlu0 %v2508, 48
      %v2867 = vpop.permute.xlu0 %2866
      %2868 = vrot.lane.b32.xlu0 %v2853, 48
      %v2869 = vpop.permute.xlu0 %2868
      %v2878 = vcombine.low %v2350, %v2353
      %v2879 = vcombine.low %v2356, %v2359
      %v2881 = vunpack.c.l.s4 1983009808
      %v2882 = vunpack.c.0.s8 %v2881
      %v2883 = vlaneseq
      %v2884 = vshrl.u32 %v2883, 7
      %v2885 = vsub.s32 %v2882, %v2884
      %v2886 = vrot.slane %v2878, %v2885
      %v2888 = vunpack.c.l.s4 1983009808
      %v2889 = vunpack.c.0.s8 %v2888
      %v2890 = vlaneseq
      %v2891 = vshrl.u32 %v2890, 7
      %v2892 = vsub.s32 %v2889, %v2891
      %v2893 = vrot.slane %v2879, %v2892
      %v2894 = vcombine.low %v2886, %v2893
      %2895 = vrot.lane.b32.xlu0 %v2550, 64
      %v2896 = vpop.permute.xlu0 %2895
      %2897 = vrot.lane.b32.xlu0 %v2567, 64
      %v2898 = vpop.permute.xlu0 %2897
      %2899 = vrot.lane.b32.xlu0 %v2584, 64
      %v2900 = vpop.permute.xlu0 %2899
      %2901 = vrot.lane.b32.xlu0 %v2601, 64
      %v2902 = vpop.permute.xlu0 %2901
      %2903 = vrot.lane.b32.xlu0 %v2618, 64
      %v2904 = vpop.permute.xlu0 %2903
      %2905 = vrot.lane.b32.xlu0 %v2635, 64
      %v2906 = vpop.permute.xlu0 %2905
      %2907 = vrot.lane.b32.xlu0 %v2652, 64
      %v2908 = vpop.permute.xlu0 %2907
      %2909 = vrot.lane.b32.xlu0 %v2894, 64
      %v2910 = vpop.permute.xlu0 %2909
      %v2919 = vcombine.low %v2209, %v2208
      %v2920 = vcombine.low %v2210, %v2218
      %v2922 = vunpack.c.l.s4 1983009808
      %v2923 = vunpack.c.0.s8 %v2922
      %v2924 = vlaneseq
      %v2925 = vshrl.u32 %v2924, 7
      %v2926 = vsub.s32 %v2923, %v2925
      %v2927 = vrot.slane %v2919, %v2926
      %v2929 = vunpack.c.l.s4 1983009808
      %v2930 = vunpack.c.0.s8 %v2929
      %v2931 = vlaneseq
      %v2932 = vshrl.u32 %v2931, 7
      %v2933 = vsub.s32 %v2930, %v2932
      %v2934 = vrot.slane %v2920, %v2933
      %v2935 = vcombine.low %v2927, %v2934
      %2936 = vrot.lane.b32.xlu0 %v2710, 80
      %v2937 = vpop.permute.xlu0 %2936
      %2938 = vrot.lane.b32.xlu0 %v2727, 80
      %v2939 = vpop.permute.xlu0 %2938
      %2940 = vrot.lane.b32.xlu0 %v2744, 80
      %v2941 = vpop.permute.xlu0 %2940
      %2942 = vrot.lane.b32.xlu0 %v2761, 80
      %v2943 = vpop.permute.xlu0 %2942
      %2944 = vrot.lane.b32.xlu0 %v2778, 80
      %v2945 = vpop.permute.xlu0 %2944
      %2946 = vrot.lane.b32.xlu0 %v2795, 80
      %v2947 = vpop.permute.xlu0 %2946
      %2948 = vrot.lane.b32.xlu0 %v2812, 80
      %v2949 = vpop.permute.xlu0 %2948
      %2950 = vrot.lane.b32.xlu0 %v2935, 80
      %v2951 = vpop.permute.xlu0 %2950
      %v2960 = vcombine.low %v2226, %v2225
      %v2961 = vcombine.low %v2227, %v2234
      %v2963 = vunpack.c.l.s4 1983009808
      %v2964 = vunpack.c.0.s8 %v2963
      %v2965 = vlaneseq
      %v2966 = vshrl.u32 %v2965, 7
      %v2967 = vsub.s32 %v2964, %v2966
      %v2968 = vrot.slane %v2960, %v2967
      %v2970 = vunpack.c.l.s4 1983009808
      %v2971 = vunpack.c.0.s8 %v2970
      %v2972 = vlaneseq
      %v2973 = vshrl.u32 %v2972, 7
      %v2974 = vsub.s32 %v2971, %v2973
      %v2975 = vrot.slane %v2961, %v2974
      %v2976 = vcombine.low %v2968, %v2975
      %2977 = vrot.lane.b32.xlu0 %v2423, 96
      %v2978 = vpop.permute.xlu0 %2977
      %2979 = vrot.lane.b32.xlu0 %v2440, 96
      %v2980 = vpop.permute.xlu0 %2979
      %2981 = vrot.lane.b32.xlu0 %v2457, 96
      %v2982 = vpop.permute.xlu0 %2981
      %2983 = vrot.lane.b32.xlu0 %v2474, 96
      %v2984 = vpop.permute.xlu0 %2983
      %2985 = vrot.lane.b32.xlu0 %v2491, 96
      %v2986 = vpop.permute.xlu0 %2985
      %2987 = vrot.lane.b32.xlu0 %v2508, 96
      %v2988 = vpop.permute.xlu0 %2987
      %2989 = vrot.lane.b32.xlu0 %v2853, 96
      %v2990 = vpop.permute.xlu0 %2989
      %2991 = vrot.lane.b32.xlu0 %v2976, 96
      %v2992 = vpop.permute.xlu0 %2991
      %v3001 = vcombine.low %v2363, %v2366
      %v3002 = vcombine.low %v2369, %v2372
      %v3004 = vunpack.c.l.s4 1983009808
      %v3005 = vunpack.c.0.s8 %v3004
      %v3006 = vlaneseq
      %v3007 = vshrl.u32 %v3006, 7
      %v3008 = vsub.s32 %v3005, %v3007
      %v3009 = vrot.slane %v3001, %v3008
      %v3011 = vunpack.c.l.s4 1983009808
      %v3012 = vunpack.c.0.s8 %v3011
      %v3013 = vlaneseq
      %v3014 = vshrl.u32 %v3013, 7
      %v3015 = vsub.s32 %v3012, %v3014
      %v3016 = vrot.slane %v3002, %v3015
      %v3017 = vcombine.low %v3009, %v3016
      %3018 = vrot.lane.b32.xlu0 %v2567, 112
      %v3019 = vpop.permute.xlu0 %3018
      %3020 = vrot.lane.b32.xlu0 %v2584, 112
      %v3021 = vpop.permute.xlu0 %3020
      %3022 = vrot.lane.b32.xlu0 %v2601, 112
      %v3023 = vpop.permute.xlu0 %3022
      %3024 = vrot.lane.b32.xlu0 %v2618, 112
      %v3025 = vpop.permute.xlu0 %3024
      %3026 = vrot.lane.b32.xlu0 %v2635, 112
      %v3027 = vpop.permute.xlu0 %3026
      %3028 = vrot.lane.b32.xlu0 %v2652, 112
      %v3029 = vpop.permute.xlu0 %3028
      %3030 = vrot.lane.b32.xlu0 %v2894, 112
      %v3031 = vpop.permute.xlu0 %3030
      %3032 = vrot.lane.b32.xlu0 %v3017, 112
      %v3033 = vpop.permute.xlu0 %3032
      %v3042 = vcombine.low %v2225, %v2227
      %v3043 = vcombine.low %v2234, %v2235
      %v3045 = vunpack.c.l.s4 1983009808
      %v3046 = vunpack.c.0.s8 %v3045
      %v3047 = vlaneseq
      %v3048 = vshrl.u32 %v3047, 7
      %v3049 = vsub.s32 %v3046, %v3048
      %v3050 = vrot.slane %v3042, %v3049
      %v3052 = vunpack.c.l.s4 1983009808
      %v3053 = vunpack.c.0.s8 %v3052
      %v3054 = vlaneseq
      %v3055 = vshrl.u32 %v3054, 7
      %v3056 = vsub.s32 %v3053, %v3055
      %v3057 = vrot.slane %v3043, %v3056
      %v3058 = vcombine.low %v3050, %v3057
      %v3059 = vsel %vm800, %v2389, %v2654
      %v3060 = vsel %vm800, %v2406, %v2656
      %v3061 = vsel %vm800, %v2423, %v2658
      %v3062 = vsel %vm800, %v2440, %v2660
      %v3063 = vsel %vm800, %v2457, %v2662
      %v3064 = vsel %vm800, %v2474, %v2664
      %v3065 = vsel %vm800, %v2491, %v2666
      %v3066 = vsel %vm800, %v2508, %v2668
      %v3067 = vsel %vm1701, %v3059, %v2814
      %v3068 = vsel %vm1701, %v3060, %v2816
      %v3069 = vsel %vm1701, %v3061, %v2818
      %v3070 = vsel %vm1701, %v3062, %v2820
      %v3071 = vsel %vm1701, %v3063, %v2822
      %v3072 = vsel %vm1701, %v3064, %v2824
      %v3073 = vsel %vm1701, %v3065, %v2826
      %v3074 = vsel %vm1701, %v3066, %v2828
      %vm3075 = vcmask 392192
      %v3076 = vsel %vm3075, %v3067, %v2855
      %v3077 = vsel %vm3075, %v3068, %v2857
      %v3078 = vsel %vm3075, %v3069, %v2859
      %v3079 = vsel %vm3075, %v3070, %v2861
      %v3080 = vsel %vm3075, %v3071, %v2863
      %v3081 = vsel %vm3075, %v3072, %v2865
      %v3082 = vsel %vm3075, %v3073, %v2867
      %v3083 = vsel %vm3075, %v3074, %v2869
      %vm3084 = vcmask 523264
      %v3085 = vsel %vm3084, %v3076, %v2896
      %v3086 = vsel %vm3084, %v3077, %v2898
      %v3087 = vsel %vm3084, %v3078, %v2900
      %v3088 = vsel %vm3084, %v3079, %v2902
      %v3089 = vsel %vm3084, %v3080, %v2904
      %v3090 = vsel %vm3084, %v3081, %v2906
      %v3091 = vsel %vm3084, %v3082, %v2908
      %v3092 = vsel %vm3084, %v3083, %v2910
      %vm3093 = vcmask 654336
      %v3094 = vsel %vm3093, %v3085, %v2937
      %v3095 = vsel %vm3093, %v3086, %v2939
      %v3096 = vsel %vm3093, %v3087, %v2941
      %v3097 = vsel %vm3093, %v3088, %v2943
      %v3098 = vsel %vm3093, %v3089, %v2945
      %v3099 = vsel %vm3093, %v3090, %v2947
      %v3100 = vsel %vm3093, %v3091, %v2949
      %v3101 = vsel %vm3093, %v3092, %v2951
      %vm3102 = vcmask 785408
      %v3103 = vsel %vm3102, %v3094, %v2978
      %v3104 = vsel %vm3102, %v3095, %v2980
      %v3105 = vsel %vm3102, %v3096, %v2982
      %v3106 = vsel %vm3102, %v3097, %v2984
      %v3107 = vsel %vm3102, %v3098, %v2986
      %v3108 = vsel %vm3102, %v3099, %v2988
      %v3109 = vsel %vm3102, %v3100, %v2990
      %v3110 = vsel %vm3102, %v3101, %v2992
      %vm3111 = vcmask 916480
      %v3112 = vsel %vm3111, %v3103, %v3019
      %v3113 = vsel %vm3111, %v3104, %v3021
      %v3114 = vsel %vm3111, %v3105, %v3023
      %v3115 = vsel %vm3111, %v3106, %v3025
      %v3116 = vsel %vm3111, %v3107, %v3027
      %v3117 = vsel %vm3111, %v3108, %v3029
      %v3118 = vsel %vm3111, %v3109, %v3031
      %v3119 = vsel %vm3111, %v3110, %v3033
      %v3120 = vld [vmem:[%s15] sm:$0xff]
      %v3121 = vld [vmem:[%s15 + $0x8] sm:$0xff]
      %v3122 = vld [vmem:[%s15 + $0x10] sm:$0xff]
      %v3123 = vld [vmem:[%s15 + $0x18] sm:$0xff]
      %v3124 = vld [vmem:[%s15 + $0x20] sm:$0xff]
      %v3125 = vld [vmem:[%s15 + $0x28] sm:$0xff]
      %v3126 = vld [vmem:[%s15 + $0x30] sm:$0xff]
      %v3127 = vld [vmem:[%s15 + $0x38] sm:$0xff]
      %v3128 = vld [vmem:[%s15 + $0x40] sm:$0xff]
      %v3129 = vld [vmem:[%s15 + $0x48] sm:$0xff]
      %v3130 = vld [vmem:[%s15 + $0x50] sm:$0xff]
      %v3131 = vld [vmem:[%s15 + $0x58] sm:$0xff]
      %v3132 = vld [vmem:[%s15 + $0x60] sm:$0xff]
      %v3133 = vld [vmem:[%s15 + $0x68] sm:$0xff]
      %v3134 = vld [vmem:[%s15 + $0x70] sm:$0xff]
      %v3135 = vld [vmem:[%s15 + $0x78] sm:$0xff]
      %v3136 = vld [vmem:[%s15 + $0x80] sm:$0xff]
      %v3137 = vld [vmem:[%s15 + $0x88] sm:$0xff]
      %v3138 = vld [vmem:[%s16] sm:$0x1]
      %v3140 = vlaneseq
      %v3141 = vshrl.u32 %v3140, 7
      %v3142 = vsub.s32 0, %v3141
      %v3143 = vrot.slane %v3138, %v3142
      %v3145 = vsel %vm800, %v2727, 0
      %v3147 = vsel %vm800, %v2744, 0
      %v3149 = vsel %vm800, %v2761, 0
      %v3151 = vsel %vm800, %v2778, 0
      %v3153 = vsel %vm800, %v2795, 0
      %v3155 = vsel %vm800, %v2812, 0
      %v3157 = vsel %vm800, %v2935, 0
      %v3159 = vsel %vm800, %v3058, 0
      %3161 = vmatprep.subr.mxu0 0.0
      %3162 = vmatpush1.msra.mxu0 %v3135
      %3163 = vmatprep.subr.mxu0 0.0
      %3164 = vmatpush1.msra.mxu0 %v3134
      %3165 = vmatprep.subr.mxu0 0.0
      %3166 = vmatpush1.msra.mxu0 %v3133
      %3167 = vmatprep.subr.mxu0 0.0
      %3168 = vmatpush1.msra.mxu0 %v3132
      %3169 = vmatprep.subr.mxu0 0.0
      %3170 = vmatpush1.msra.mxu0 %v3131
      %3171 = vmatprep.subr.mxu0 0.0
      %3172 = vmatpush1.msra.mxu0 %v3130
      %3173 = vmatprep.subr.mxu0 0.0
      %3174 = vmatpush1.msra.mxu0 %v3129
      %3175 = vmatprep.subr.mxu0 0.0
      %3176 = vmatpush1.msra.mxu0 %v3128
      %3177 = vmatprep.subr.mxu0 0.0
      %3178 = vmatpush1.msra.mxu0 %v3127
      %3179 = vmatprep.subr.mxu0 0.0
      %3180 = vmatpush1.msra.mxu0 %v3126
      %3181 = vmatprep.subr.mxu0 0.0
      %3182 = vmatpush1.msra.mxu0 %v3125
      %3183 = vmatprep.subr.mxu0 0.0
      %3184 = vmatpush1.msra.mxu0 %v3124
      %3185 = vmatprep.subr.mxu0 0.0
      %3186 = vmatpush1.msra.mxu0 %v3123
      %3187 = vmatprep.subr.mxu0 0.0
      %3188 = vmatpush1.msra.mxu0 %v3122
      %3189 = vmatprep.subr.mxu0 0.0
      %3190 = vmatpush1.msra.mxu0 %v3121
      %3191 = vmatprep.subr.mxu0 0.0
      %3192 = vmatpush1.msra.mxu0 %v3120
      %3193 = vmatprep.subr.mxu0 0.0
      %3194 = vmatpush2.msra.mxu0 0.0
      %3195 = vmatprep.subr.mxu0 0.0
      %3196 = vmatpush2.msra.mxu0 0.0
      %3197 = vmatprep.subr.mxu0 0.0
      %3198 = vmatpush2.msra.mxu0 0.0
      %3199 = vmatprep.subr.mxu0 0.0
      %3200 = vmatpush2.msra.mxu0 0.0
      %3201 = vmatprep.subr.mxu0 0.0
      %3202 = vmatpush2.msra.mxu0 0.0
      %3203 = vmatprep.subr.mxu0 0.0
      %3204 = vmatpush2.msra.mxu0 0.0
      %3205 = vmatprep.subr.mxu0 0.0
      %3206 = vmatpush2.msra.mxu0 0.0
      %3207 = vmatprep.subr.mxu0 0.0
      %3208 = vmatpush2.msra.mxu0 0.0
      %3209 = vmatprep.subr.mxu0 0.0
      %3210 = vmatpush2.msra.mxu0 0.0
      %3211 = vmatprep.subr.mxu0 0.0
      %3212 = vmatpush2.msra.mxu0 0.0
      %3213 = vmatprep.subr.mxu0 0.0
      %3214 = vmatpush2.msra.mxu0 0.0
      %3215 = vmatprep.subr.mxu0 0.0
      %3216 = vmatpush2.msra.mxu0 0.0
      %3217 = vmatprep.subr.mxu0 0.0
      %3218 = vmatpush2.msra.mxu0 0.0
      %3219 = vmatprep.subr.mxu0 0.0
      %3220 = vmatpush2.msra.mxu0 0.0
      %3221 = vmatprep.subr.mxu0 0.0
      %3222 = vmatpush2.msra.mxu0 %v3137
      %3223 = vmatprep.subr.mxu0 0.0
      %3224 = vmatpush2.msra.mxu0 %v3136
      %3225 = vmatprep.mubr.f32.mxu0 %v3145
      %3226 = vmatmul.mubr.f32.gmra.mxu0 %v3112
      %v3227 = vpop.f32.mrf.mxu0
      %v3228 = vadd.f32 %v3143, %v3227
      %v3229 = vpop.f32.mrf.mxu0
      %3230 = vmatprep.mubr.f32.mxu0 %v3147
      %3231 = vmatmul.mubr.f32.gmra.mxu0 %v3113
      %v3232 = vpop.f32.mrf.mxu0
      %v3233 = vadd.f32 %v3143, %v3232
      %v3234 = vpop.f32.mrf.mxu0
      %3235 = vmatprep.mubr.f32.mxu0 %v3149
      %3236 = vmatmul.mubr.f32.gmra.mxu0 %v3114
      %v3237 = vpop.f32.mrf.mxu0
      %v3238 = vadd.f32 %v3143, %v3237
      %v3239 = vpop.f32.mrf.mxu0
      %3240 = vmatprep.mubr.f32.mxu0 %v3151
      %3241 = vmatmul.mubr.f32.gmra.mxu0 %v3115
      %v3242 = vpop.f32.mrf.mxu0
      %v3243 = vadd.f32 %v3143, %v3242
      %v3244 = vpop.f32.mrf.mxu0
      %3245 = vmatprep.mubr.f32.mxu0 %v3153
      %3246 = vmatmul.mubr.f32.gmra.mxu0 %v3116
      %v3247 = vpop.f32.mrf.mxu0
      %v3248 = vadd.f32 %v3143, %v3247
      %v3249 = vpop.f32.mrf.mxu0
      %3250 = vmatprep.mubr.f32.mxu0 %v3155
      %3251 = vmatmul.mubr.f32.gmra.mxu0 %v3117
      %v3252 = vpop.f32.mrf.mxu0
      %v3253 = vadd.f32 %v3143, %v3252
      %v3254 = vpop.f32.mrf.mxu0
      %3255 = vmatprep.mubr.f32.mxu0 %v3157
      %3256 = vmatmul.mubr.f32.gmra.mxu0 %v3118
      %v3257 = vpop.f32.mrf.mxu0
      %v3258 = vadd.f32 %v3143, %v3257
      %v3259 = vpop.f32.mrf.mxu0
      %3260 = vmatprep.mubr.f32.mxu0 %v3159
      %3261 = vmatmul.mubr.f32.gmra.mxu0 %v3119
      %v3262 = vpop.f32.mrf.mxu0
      %v3263 = vadd.f32 %v3143, %v3262
      %v3264 = vpop.f32.mrf.mxu0
      %3265 = vdwg.mxu0
      %v3266 = vld [vmem:[%s17] sm:$0x1]
      %v3268 = vlaneseq
      %v3269 = vshrl.u32 %v3268, 7
      %v3270 = vsub.s32 0, %v3269
      %v3271 = vrot.slane %v3266, %v3270
      %v3273 = vmul.f32 %v3228, %v3271
      %v3274 = vmul.f32 %v3233, %v3271
      %v3275 = vmul.f32 %v3238, %v3271
      %v3276 = vmul.f32 %v3243, %v3271
      %v3277 = vmul.f32 %v3248, %v3271
      %v3278 = vmul.f32 %v3253, %v3271
      %v3279 = vmul.f32 %v3258, %v3271
      %v3280 = vmul.f32 %v3263, %v3271
      %v3281 = vld [vmem:[%s18] sm:$0x1]
      %v3283 = vlaneseq
      %v3284 = vshrl.u32 %v3283, 7
      %v3285 = vsub.s32 0, %v3284
      %v3286 = vrot.slane %v3281, %v3285
      %v3288 = vadd.f32 %v3273, %v3286
      %v3289 = vadd.f32 %v3274, %v3286
      %v3290 = vadd.f32 %v3275, %v3286
      %v3291 = vadd.f32 %v3276, %v3286
      %v3292 = vadd.f32 %v3277, %v3286
      %v3293 = vadd.f32 %v3278, %v3286
      %v3294 = vadd.f32 %v3279, %v3286
      %v3295 = vadd.f32 %v3280, %v3286
      %v3296 = vmul.f32 %v3288, 0.5
      %v3297 = vmul.f32 %v3289, 0.5
      %v3298 = vmul.f32 %v3290, 0.5
      %v3299 = vmul.f32 %v3291, 0.5
      %v3300 = vmul.f32 %v3292, 0.5
      %v3301 = vmul.f32 %v3293, 0.5
      %v3302 = vmul.f32 %v3294, 0.5
      %v3303 = vmul.f32 %v3295, 0.5
      %v3304 = vmul.f32 %v3288, 0.70710677
      %v3305 = vmul.f32 %v3289, 0.70710677
      %v3306 = vmul.f32 %v3290, 0.70710677
      %v3307 = vmul.f32 %v3291, 0.70710677
      %v3308 = vmul.f32 %v3292, 0.70710677
      %v3309 = vmul.f32 %v3293, 0.70710677
      %v3310 = vmul.f32 %v3294, 0.70710677
      %v3311 = vmul.f32 %v3295, 0.70710677
      %v3312 = vmax.f32 %v3304, -4.0
      %v3313 = vmax.f32 %v3305, -4.0
      %v3314 = vmax.f32 %v3306, -4.0
      %v3315 = vmax.f32 %v3307, -4.0
      %v3316 = vmax.f32 %v3308, -4.0
      %v3317 = vmax.f32 %v3309, -4.0
      %v3318 = vmax.f32 %v3310, -4.0
      %v3319 = vmax.f32 %v3311, -4.0
      %v3320 = vmin.f32 %v3312, 4.0
      %v3321 = vmin.f32 %v3313, 4.0
      %v3322 = vmin.f32 %v3314, 4.0
      %v3323 = vmin.f32 %v3315, 4.0
      %v3324 = vmin.f32 %v3316, 4.0
      %v3325 = vmin.f32 %v3317, 4.0
      %v3326 = vmin.f32 %v3318, 4.0
      %v3327 = vmin.f32 %v3319, 4.0
      %v3328 = vmul.f32 %v3320, %v3320
      %v3329 = vmul.f32 %v3321, %v3321
      %v3330 = vmul.f32 %v3322, %v3322
      %v3331 = vmul.f32 %v3323, %v3323
      %v3332 = vmul.f32 %v3324, %v3324
      %v3333 = vmul.f32 %v3325, %v3325
      %v3334 = vmul.f32 %v3326, %v3326
      %v3335 = vmul.f32 %v3327, %v3327
      %v3336 = vmul.f32 %v3328, -2.7261424e-10
      %v3337 = vmul.f32 %v3329, -2.7261424e-10
      %v3338 = vmul.f32 %v3330, -2.7261424e-10
      %v3339 = vmul.f32 %v3331, -2.7261424e-10
      %v3340 = vmul.f32 %v3332, -2.7261424e-10
      %v3341 = vmul.f32 %v3333, -2.7261424e-10
      %v3342 = vmul.f32 %v3334, -2.7261424e-10
      %v3343 = vmul.f32 %v3335, -2.7261424e-10
      %v3344 = vadd.f32 %v3336, 2.7706815e-08
      %v3345 = vadd.f32 %v3337, 2.7706815e-08
      %v3346 = vadd.f32 %v3338, 2.7706815e-08
      %v3347 = vadd.f32 %v3339, 2.7706815e-08
      %v3348 = vadd.f32 %v3340, 2.7706815e-08
      %v3349 = vadd.f32 %v3341, 2.7706815e-08
      %v3350 = vadd.f32 %v3342, 2.7706815e-08
      %v3351 = vadd.f32 %v3343, 2.7706815e-08
      %v3352 = vmul.f32 %v3344, %v3328
      %v3353 = vmul.f32 %v3345, %v3329
      %v3354 = vmul.f32 %v3346, %v3330
      %v3355 = vmul.f32 %v3347, %v3331
      %v3356 = vmul.f32 %v3348, %v3332
      %v3357 = vmul.f32 %v3349, %v3333
      %v3358 = vmul.f32 %v3350, %v3334
      %v3359 = vmul.f32 %v3351, %v3335
      %v3360 = vadd.f32 %v3352, -2.101024e-06
      %v3361 = vadd.f32 %v3353, -2.101024e-06
      %v3362 = vadd.f32 %v3354, -2.101024e-06
      %v3363 = vadd.f32 %v3355, -2.101024e-06
      %v3364 = vadd.f32 %v3356, -2.101024e-06
      %v3365 = vadd.f32 %v3357, -2.101024e-06
      %v3366 = vadd.f32 %v3358, -2.101024e-06
      %v3367 = vadd.f32 %v3359, -2.101024e-06
      %v3368 = vmul.f32 %v3360, %v3328
      %v3369 = vmul.f32 %v3361, %v3329
      %v3370 = vmul.f32 %v3362, %v3330
      %v3371 = vmul.f32 %v3363, %v3331
      %v3372 = vmul.f32 %v3364, %v3332
      %v3373 = vmul.f32 %v3365, %v3333
      %v3374 = vmul.f32 %v3366, %v3334
      %v3375 = vmul.f32 %v3367, %v3335
      %v3376 = vadd.f32 %v3368, -5.6925062e-05
      %v3377 = vadd.f32 %v3369, -5.6925062e-05
      %v3378 = vadd.f32 %v3370, -5.6925062e-05
      %v3379 = vadd.f32 %v3371, -5.6925062e-05
      %v3380 = vadd.f32 %v3372, -5.6925062e-05
      %v3381 = vadd.f32 %v3373, -5.6925062e-05
      %v3382 = vadd.f32 %v3374, -5.6925062e-05
      %v3383 = vadd.f32 %v3375, -5.6925062e-05
      %v3384 = vmul.f32 %v3376, %v3328
      %v3385 = vmul.f32 %v3377, %v3329
      %v3386 = vmul.f32 %v3378, %v3330
      %v3387 = vmul.f32 %v3379, %v3331
      %v3388 = vmul.f32 %v3380, %v3332
      %v3389 = vmul.f32 %v3381, %v3333
      %v3390 = vmul.f32 %v3382, %v3334
      %v3391 = vmul.f32 %v3383, %v3335
      %v3392 = vadd.f32 %v3384, -0.00073499064
      %v3393 = vadd.f32 %v3385, -0.00073499064
      %v3394 = vadd.f32 %v3386, -0.00073499064
      %v3395 = vadd.f32 %v3387, -0.00073499064
      %v3396 = vadd.f32 %v3388, -0.00073499064
      %v3397 = vadd.f32 %v3389, -0.00073499064
      %v3398 = vadd.f32 %v3390, -0.00073499064
      %v3399 = vadd.f32 %v3391, -0.00073499064
      %v3400 = vmul.f32 %v3392, %v3328
      %v3401 = vmul.f32 %v3393, %v3329
      %v3402 = vmul.f32 %v3394, %v3330
      %v3403 = vmul.f32 %v3395, %v3331
      %v3404 = vmul.f32 %v3396, %v3332
      %v3405 = vmul.f32 %v3397, %v3333
      %v3406 = vmul.f32 %v3398, %v3334
      %v3407 = vmul.f32 %v3399, %v3335
      %v3408 = vadd.f32 %v3400, -0.0029546
      %v3409 = vadd.f32 %v3401, -0.0029546
      %v3410 = vadd.f32 %v3402, -0.0029546
      %v3411 = vadd.f32 %v3403, -0.0029546
      %v3412 = vadd.f32 %v3404, -0.0029546
      %v3413 = vadd.f32 %v3405, -0.0029546
      %v3414 = vadd.f32 %v3406, -0.0029546
      %v3415 = vadd.f32 %v3407, -0.0029546
      %v3416 = vmul.f32 %v3408, %v3328
      %v3417 = vmul.f32 %v3409, %v3329
      %v3418 = vmul.f32 %v3410, %v3330
      %v3419 = vmul.f32 %v3411, %v3331
      %v3420 = vmul.f32 %v3412, %v3332
      %v3421 = vmul.f32 %v3413, %v3333
      %v3422 = vmul.f32 %v3414, %v3334
      %v3423 = vmul.f32 %v3415, %v3335
      %v3424 = vadd.f32 %v3416, -0.016096033
      %v3425 = vadd.f32 %v3417, -0.016096033
      %v3426 = vadd.f32 %v3418, -0.016096033
      %v3427 = vadd.f32 %v3419, -0.016096033
      %v3428 = vadd.f32 %v3420, -0.016096033
      %v3429 = vadd.f32 %v3421, -0.016096033
      %v3430 = vadd.f32 %v3422, -0.016096033
      %v3431 = vadd.f32 %v3423, -0.016096033
      %v3432 = vmul.f32 %v3424, %v3320
      %v3433 = vmul.f32 %v3425, %v3321
      %v3434 = vmul.f32 %v3426, %v3322
      %v3435 = vmul.f32 %v3427, %v3323
      %v3436 = vmul.f32 %v3428, %v3324
      %v3437 = vmul.f32 %v3429, %v3325
      %v3438 = vmul.f32 %v3430, %v3326
      %v3439 = vmul.f32 %v3431, %v3327
      %v3440 = vmul.f32 %v3328, -1.45660715e-05
      %v3441 = vmul.f32 %v3329, -1.45660715e-05
      %v3442 = vmul.f32 %v3330, -1.45660715e-05
      %v3443 = vmul.f32 %v3331, -1.45660715e-05
      %v3444 = vmul.f32 %v3332, -1.45660715e-05
      %v3445 = vmul.f32 %v3333, -1.45660715e-05
      %v3446 = vmul.f32 %v3334, -1.45660715e-05
      %v3447 = vmul.f32 %v3335, -1.45660715e-05
      %v3448 = vadd.f32 %v3440, -0.00021337405
      %v3449 = vadd.f32 %v3441, -0.00021337405
      %v3450 = vadd.f32 %v3442, -0.00021337405
      %v3451 = vadd.f32 %v3443, -0.00021337405
      %v3452 = vadd.f32 %v3444, -0.00021337405
      %v3453 = vadd.f32 %v3445, -0.00021337405
      %v3454 = vadd.f32 %v3446, -0.00021337405
      %v3455 = vadd.f32 %v3447, -0.00021337405
      %v3456 = vmul.f32 %v3448, %v3328
      %v3457 = vmul.f32 %v3449, %v3329
      %v3458 = vmul.f32 %v3450, %v3330
      %v3459 = vmul.f32 %v3451, %v3331
      %v3460 = vmul.f32 %v3452, %v3332
      %v3461 = vmul.f32 %v3453, %v3333
      %v3462 = vmul.f32 %v3454, %v3334
      %v3463 = vmul.f32 %v3455, %v3335
      %v3464 = vadd.f32 %v3456, -0.001682827
      %v3465 = vadd.f32 %v3457, -0.001682827
      %v3466 = vadd.f32 %v3458, -0.001682827
      %v3467 = vadd.f32 %v3459, -0.001682827
      %v3468 = vadd.f32 %v3460, -0.001682827
      %v3469 = vadd.f32 %v3461, -0.001682827
      %v3470 = vadd.f32 %v3462, -0.001682827
      %v3471 = vadd.f32 %v3463, -0.001682827
      %v3472 = vmul.f32 %v3464, %v3328
      %v3473 = vmul.f32 %v3465, %v3329
      %v3474 = vmul.f32 %v3466, %v3330
      %v3475 = vmul.f32 %v3467, %v3331
      %v3476 = vmul.f32 %v3468, %v3332
      %v3477 = vmul.f32 %v3469, %v3333
      %v3478 = vmul.f32 %v3470, %v3334
      %v3479 = vmul.f32 %v3471, %v3335
      %v3480 = vadd.f32 %v3472, -0.0073733293
      %v3481 = vadd.f32 %v3473, -0.0073733293
      %v3482 = vadd.f32 %v3474, -0.0073733293
      %v3483 = vadd.f32 %v3475, -0.0073733293
      %v3484 = vadd.f32 %v3476, -0.0073733293
      %v3485 = vadd.f32 %v3477, -0.0073733293
      %v3486 = vadd.f32 %v3478, -0.0073733293
      %v3487 = vadd.f32 %v3479, -0.0073733293
      %v3488 = vmul.f32 %v3480, %v3328
      %v3489 = vmul.f32 %v3481, %v3329
      %v3490 = vmul.f32 %v3482, %v3330
      %v3491 = vmul.f32 %v3483, %v3331
      %v3492 = vmul.f32 %v3484, %v3332
      %v3493 = vmul.f32 %v3485, %v3333
      %v3494 = vmul.f32 %v3486, %v3334
      %v3495 = vmul.f32 %v3487, %v3335
      %v3496 = vadd.f32 %v3488, -0.014264739
      %v3497 = vadd.f32 %v3489, -0.014264739
      %v3498 = vadd.f32 %v3490, -0.014264739
      %v3499 = vadd.f32 %v3491, -0.014264739
      %v3500 = vadd.f32 %v3492, -0.014264739
      %v3501 = vadd.f32 %v3493, -0.014264739
      %v3502 = vadd.f32 %v3494, -0.014264739
      %v3503 = vadd.f32 %v3495, -0.014264739
      %v3504 = vrcp.pop %v3496
      %v3505 = vrcp.pop %v3497
      %v3506 = vrcp.pop %v3498
      %v3507 = vrcp.pop %v3499
      %v3508 = vrcp.pop %v3500
      %v3509 = vrcp.pop %v3501
      %v3510 = vrcp.pop %v3502
      %v3511 = vrcp.pop %v3503
      %v3512 = vmul.f32 %v3432, %v3504
      %v3513 = vmul.f32 %v3433, %v3505
      %v3514 = vmul.f32 %v3434, %v3506
      %v3515 = vmul.f32 %v3435, %v3507
      %v3516 = vmul.f32 %v3436, %v3508
      %v3517 = vmul.f32 %v3437, %v3509
      %v3518 = vmul.f32 %v3438, %v3510
      %v3519 = vmul.f32 %v3439, %v3511
      %v3520 = vadd.f32 %v3512, 1.0
      %v3521 = vadd.f32 %v3513, 1.0
      %v3522 = vadd.f32 %v3514, 1.0
      %v3523 = vadd.f32 %v3515, 1.0
      %v3524 = vadd.f32 %v3516, 1.0
      %v3525 = vadd.f32 %v3517, 1.0
      %v3526 = vadd.f32 %v3518, 1.0
      %v3527 = vadd.f32 %v3519, 1.0
      %v3528 = vmul.f32 %v3296, %v3520
      %v3529 = vmul.f32 %v3297, %v3521
      %v3530 = vmul.f32 %v3298, %v3522
      %v3531 = vmul.f32 %v3299, %v3523
      %v3532 = vmul.f32 %v3300, %v3524
      %v3533 = vmul.f32 %v3301, %v3525
      %v3534 = vmul.f32 %v3302, %v3526
      %v3535 = vmul.f32 %v3303, %v3527
      %v3536 = vld [vmem:[%s19] sm:$0xff]
      %v3537 = vld [vmem:[%s19 + $0x8] sm:$0xff]
      %v3538 = vld [vmem:[%s19 + $0x10] sm:$0xff]
      %v3539 = vld [vmem:[%s19 + $0x18] sm:$0xff]
      %v3540 = vld [vmem:[%s19 + $0x20] sm:$0xff]
      %v3541 = vld [vmem:[%s19 + $0x28] sm:$0xff]
      %v3542 = vld [vmem:[%s19 + $0x30] sm:$0xff]
      %v3543 = vld [vmem:[%s19 + $0x38] sm:$0xff]
      %v3544 = vld [vmem:[%s19 + $0x40] sm:$0xff]
      %v3545 = vld [vmem:[%s19 + $0x48] sm:$0xff]
      %v3546 = vld [vmem:[%s19 + $0x50] sm:$0xff]
      %v3547 = vld [vmem:[%s19 + $0x58] sm:$0xff]
      %v3548 = vld [vmem:[%s19 + $0x60] sm:$0xff]
      %v3549 = vld [vmem:[%s19 + $0x68] sm:$0xff]
      %v3550 = vld [vmem:[%s19 + $0x70] sm:$0xff]
      %v3551 = vld [vmem:[%s19 + $0x78] sm:$0xff]
      %v3552 = vld [vmem:[%s19 + $0x80] sm:$0xff]
      %v3553 = vld [vmem:[%s19 + $0x88] sm:$0xff]
      %v3554 = vld [vmem:[%s19 + $0x90] sm:$0xff]
      %v3555 = vld [vmem:[%s19 + $0x98] sm:$0xff]
      %v3556 = vld [vmem:[%s19 + $0xa0] sm:$0xff]
      %v3557 = vld [vmem:[%s19 + $0xa8] sm:$0xff]
      %v3558 = vld [vmem:[%s19 + $0xb0] sm:$0xff]
      %v3559 = vld [vmem:[%s19 + $0xb8] sm:$0xff]
      %v3560 = vld [vmem:[%s19 + $0xc0] sm:$0xff]
      %v3561 = vld [vmem:[%s19 + $0xc8] sm:$0xff]
      %v3562 = vld [vmem:[%s19 + $0xd0] sm:$0xff]
      %v3563 = vld [vmem:[%s19 + $0xd8] sm:$0xff]
      %v3564 = vld [vmem:[%s19 + $0xe0] sm:$0xff]
      %v3565 = vld [vmem:[%s19 + $0xe8] sm:$0xff]
      %v3566 = vld [vmem:[%s19 + $0xf0] sm:$0xff]
      %v3567 = vld [vmem:[%s19 + $0xf8] sm:$0xff]
      %v3568 = vld [vmem:[%s19 + $0x100] sm:$0xff]
      %v3569 = vld [vmem:[%s19 + $0x108] sm:$0xff]
      %v3570 = vld [vmem:[%s19 + $0x110] sm:$0xff]
      %v3571 = vld [vmem:[%s19 + $0x118] sm:$0xff]
      %v3572 = vld [vmem:[%s19 + $0x120] sm:$0xff]
      %v3573 = vld [vmem:[%s19 + $0x128] sm:$0xff]
      %v3574 = vld [vmem:[%s19 + $0x130] sm:$0xff]
      %v3575 = vld [vmem:[%s19 + $0x138] sm:$0xff]
      %v3576 = vld [vmem:[%s19 + $0x140] sm:$0xf]
      %v3578 = vsel %vm3084, %v3536, 0
      %v3581 = vsel %vm3084, %v3537, 0
      %v3584 = vsel %vm3084, %v3538, 0
      %v3587 = vsel %vm3084, %v3539, 0
      %v3590 = vsel %vm3084, %v3540, 0
      %v3593 = vsel %vm3084, %v3541, 0
      %v3596 = vsel %vm3084, %v3542, 0
      %v3599 = vsel %vm3084, %v3543, 0
      %v3602 = vsel %vm3084, %v3544, 0
      %v3605 = vsel %vm3084, %v3545, 0
      %v3608 = vsel %vm3084, %v3546, 0
      %v3611 = vsel %vm3084, %v3547, 0
      %v3614 = vsel %vm3084, %v3548, 0
      %v3617 = vsel %vm3084, %v3549, 0
      %v3620 = vsel %vm3084, %v3550, 0
      %v3623 = vsel %vm3084, %v3551, 0
      %v3626 = vsel %vm3084, %v3552, 0
      %v3629 = vsel %vm3084, %v3553, 0
      %v3632 = vsel %vm3084, %v3554, 0
      %v3635 = vsel %vm3084, %v3555, 0
      %v3638 = vsel %vm3084, %v3556, 0
      %v3641 = vsel %vm3084, %v3557, 0
      %v3644 = vsel %vm3084, %v3558, 0
      %v3647 = vsel %vm3084, %v3559, 0
      %v3650 = vsel %vm3084, %v3560, 0
      %v3653 = vsel %vm3084, %v3561, 0
      %v3656 = vsel %vm3084, %v3562, 0
      %v3659 = vsel %vm3084, %v3563, 0
      %v3662 = vsel %vm3084, %v3564, 0
      %v3665 = vsel %vm3084, %v3565, 0
      %v3668 = vsel %vm3084, %v3566, 0
      %v3671 = vsel %vm3084, %v3567, 0
      %v3674 = vsel %vm3084, %v3568, 0
      %v3677 = vsel %vm3084, %v3569, 0
      %v3680 = vsel %vm3084, %v3570, 0
      %v3683 = vsel %vm3084, %v3571, 0
      %v3686 = vsel %vm3084, %v3572, 0
      %v3689 = vsel %vm3084, %v3573, 0
      %v3692 = vsel %vm3084, %v3574, 0
      %v3695 = vsel %vm3084, %v3575, 0
      %v3698 = vsel %vm3084, %v3576, 0
      %3700 = vmatprep.subr.mxu0 0.0
      %3701 = vmatpush1.msra.mxu0 0.0
      %3702 = vmatprep.subr.mxu0 0.0
      %3703 = vmatpush1.msra.mxu0 0.0
      %3704 = vmatprep.subr.mxu0 0.0
      %3705 = vmatpush1.msra.mxu0 0.0
      %3706 = vmatprep.subr.mxu0 0.0
      %3707 = vmatpush1.msra.mxu0 0.0
      %3708 = vmatprep.subr.mxu0 0.0
      %3709 = vmatpush1.msra.mxu0 0.0
      %3710 = vmatprep.subr.mxu0 0.0
      %3711 = vmatpush1.msra.mxu0 0.0
      %3712 = vmatprep.subr.mxu0 0.0
      %3713 = vmatpush1.msra.mxu0 0.0
      %3714 = vmatprep.subr.mxu0 0.0
      %3715 = vmatpush1.msra.mxu0 0.0
      %3716 = vmatprep.subr.mxu0 0.0
      %3717 = vmatpush1.msra.mxu0 %v3535
      %3718 = vmatprep.subr.mxu0 0.0
      %3719 = vmatpush1.msra.mxu0 %v3534
      %3720 = vmatprep.subr.mxu0 0.0
      %3721 = vmatpush1.msra.mxu0 %v3533
      %3722 = vmatprep.subr.mxu0 0.0
      %3723 = vmatpush1.msra.mxu0 %v3532
      %3724 = vmatprep.subr.mxu0 0.0
      %3725 = vmatpush1.msra.mxu0 %v3531
      %3726 = vmatprep.subr.mxu0 0.0
      %3727 = vmatpush1.msra.mxu0 %v3530
      %3728 = vmatprep.subr.mxu0 0.0
      %3729 = vmatpush1.msra.mxu0 %v3529
      %3730 = vmatprep.subr.mxu0 0.0
      %3731 = vmatpush1.msra.mxu0 %v3528
      %3732 = vmatprep.subr.mxu0 0.0
      %3733 = vmatpush2.msra.mxu0 0.0
      %3734 = vmatprep.subr.mxu0 0.0
      %3735 = vmatpush2.msra.mxu0 0.0
      %3736 = vmatprep.subr.mxu0 0.0
      %3737 = vmatpush2.msra.mxu0 0.0
      %3738 = vmatprep.subr.mxu0 0.0
      %3739 = vmatpush2.msra.mxu0 0.0
      %3740 = vmatprep.subr.mxu0 0.0
      %3741 = vmatpush2.msra.mxu0 0.0
      %3742 = vmatprep.subr.mxu0 0.0
      %3743 = vmatpush2.msra.mxu0 0.0
      %3744 = vmatprep.subr.mxu0 0.0
      %3745 = vmatpush2.msra.mxu0 0.0
      %3746 = vmatprep.subr.mxu0 0.0
      %3747 = vmatpush2.msra.mxu0 0.0
      %3748 = vmatprep.subr.mxu0 0.0
      %3749 = vmatpush2.msra.mxu0 0.0
      %3750 = vmatprep.subr.mxu0 0.0
      %3751 = vmatpush2.msra.mxu0 0.0
      %3752 = vmatprep.subr.mxu0 0.0
      %3753 = vmatpush2.msra.mxu0 0.0
      %3754 = vmatprep.subr.mxu0 0.0
      %3755 = vmatpush2.msra.mxu0 0.0
      %3756 = vmatprep.subr.mxu0 0.0
      %3757 = vmatpush2.msra.mxu0 0.0
      %3758 = vmatprep.subr.mxu0 0.0
      %3759 = vmatpush2.msra.mxu0 0.0
      %3760 = vmatprep.subr.mxu0 0.0
      %3761 = vmatpush2.msra.mxu0 0.0
      %3762 = vmatprep.subr.mxu0 0.0
      %3763 = vmatpush2.msra.mxu0 0.0
      %3764 = vmatprep.mubr.f32.mxu0 0.0
      %3765 = vmatmul.mubr.f32.gmra.mxu0 %v3578
      %v3766 = vpop.f32.mrf.mxu0
      %v3767 = vadd.f32 0.0, %v3766
      %v3768 = vpop.f32.mrf.mxu0
      %3769 = vmatprep.mubr.f32.mxu0 0.0
      %3770 = vmatmul.mubr.f32.gmra.mxu0 %v3581
      %v3771 = vpop.f32.mrf.mxu0
      %v3772 = vadd.f32 0.0, %v3771
      %v3773 = vpop.f32.mrf.mxu0
      %3774 = vmatprep.mubr.f32.mxu0 0.0
      %3775 = vmatmul.mubr.f32.gmra.mxu0 %v3584
      %v3776 = vpop.f32.mrf.mxu0
      %v3777 = vadd.f32 0.0, %v3776
      %v3778 = vpop.f32.mrf.mxu0
      %3779 = vmatprep.mubr.f32.mxu0 0.0
      %3780 = vmatmul.mubr.f32.gmra.mxu0 %v3587
      %v3781 = vpop.f32.mrf.mxu0
      %v3782 = vadd.f32 0.0, %v3781
      %v3783 = vpop.f32.mrf.mxu0
      %3784 = vmatprep.mubr.f32.mxu0 0.0
      %3785 = vmatmul.mubr.f32.gmra.mxu0 %v3590
      %v3786 = vpop.f32.mrf.mxu0
      %v3787 = vadd.f32 0.0, %v3786
      %v3788 = vpop.f32.mrf.mxu0
      %3789 = vmatprep.mubr.f32.mxu0 0.0
      %3790 = vmatmul.mubr.f32.gmra.mxu0 %v3593
      %v3791 = vpop.f32.mrf.mxu0
      %v3792 = vadd.f32 0.0, %v3791
      %v3793 = vpop.f32.mrf.mxu0
      %3794 = vmatprep.mubr.f32.mxu0 0.0
      %3795 = vmatmul.mubr.f32.gmra.mxu0 %v3596
      %v3796 = vpop.f32.mrf.mxu0
      %v3797 = vadd.f32 0.0, %v3796
      %v3798 = vpop.f32.mrf.mxu0
      %3799 = vmatprep.mubr.f32.mxu0 0.0
      %3800 = vmatmul.mubr.f32.gmra.mxu0 %v3599
      %v3801 = vpop.f32.mrf.mxu0
      %v3802 = vadd.f32 0.0, %v3801
      %v3803 = vpop.f32.mrf.mxu0
      %3804 = vmatprep.mubr.f32.mxu0 0.0
      %3805 = vmatmul.mubr.f32.gmra.mxu0 %v3602
      %v3806 = vpop.f32.mrf.mxu0
      %v3807 = vadd.f32 0.0, %v3806
      %v3808 = vpop.f32.mrf.mxu0
      %3809 = vmatprep.mubr.f32.mxu0 0.0
      %3810 = vmatmul.mubr.f32.gmra.mxu0 %v3605
      %v3811 = vpop.f32.mrf.mxu0
      %v3812 = vadd.f32 0.0, %v3811
      %v3813 = vpop.f32.mrf.mxu0
      %3814 = vmatprep.mubr.f32.mxu0 0.0
      %3815 = vmatmul.mubr.f32.gmra.mxu0 %v3608
      %v3816 = vpop.f32.mrf.mxu0
      %v3817 = vadd.f32 0.0, %v3816
      %v3818 = vpop.f32.mrf.mxu0
      %3819 = vmatprep.mubr.f32.mxu0 0.0
      %3820 = vmatmul.mubr.f32.gmra.mxu0 %v3611
      %v3821 = vpop.f32.mrf.mxu0
      %v3822 = vadd.f32 0.0, %v3821
      %v3823 = vpop.f32.mrf.mxu0
      %3824 = vmatprep.mubr.f32.mxu0 0.0
      %3825 = vmatmul.mubr.f32.gmra.mxu0 %v3614
      %v3826 = vpop.f32.mrf.mxu0
      %v3827 = vadd.f32 0.0, %v3826
      %v3828 = vpop.f32.mrf.mxu0
      %3829 = vmatprep.mubr.f32.mxu0 0.0
      %3830 = vmatmul.mubr.f32.gmra.mxu0 %v3617
      %v3831 = vpop.f32.mrf.mxu0
      %v3832 = vadd.f32 0.0, %v3831
      %v3833 = vpop.f32.mrf.mxu0
      %3834 = vmatprep.mubr.f32.mxu0 0.0
      %3835 = vmatmul.mubr.f32.gmra.mxu0 %v3620
      %v3836 = vpop.f32.mrf.mxu0
      %v3837 = vadd.f32 0.0, %v3836
      %v3838 = vpop.f32.mrf.mxu0
      %3839 = vmatprep.mubr.f32.mxu0 0.0
      %3840 = vmatmul.mubr.f32.gmra.mxu0 %v3623
      %v3841 = vpop.f32.mrf.mxu0
      %v3842 = vadd.f32 0.0, %v3841
      %v3843 = vpop.f32.mrf.mxu0
      %3844 = vmatprep.mubr.f32.mxu0 0.0
      %3845 = vmatmul.mubr.f32.gmra.mxu0 %v3626
      %v3846 = vpop.f32.mrf.mxu0
      %v3847 = vadd.f32 0.0, %v3846
      %v3848 = vpop.f32.mrf.mxu0
      %3849 = vmatprep.mubr.f32.mxu0 0.0
      %3850 = vmatmul.mubr.f32.gmra.mxu0 %v3629
      %v3851 = vpop.f32.mrf.mxu0
      %v3852 = vadd.f32 0.0, %v3851
      %v3853 = vpop.f32.mrf.mxu0
      %3854 = vmatprep.mubr.f32.mxu0 0.0
      %3855 = vmatmul.mubr.f32.gmra.mxu0 %v3632
      %v3856 = vpop.f32.mrf.mxu0
      %v3857 = vadd.f32 0.0, %v3856
      %v3858 = vpop.f32.mrf.mxu0
      %3859 = vmatprep.mubr.f32.mxu0 0.0
      %3860 = vmatmul.mubr.f32.gmra.mxu0 %v3635
      %v3861 = vpop.f32.mrf.mxu0
      %v3862 = vadd.f32 0.0, %v3861
      %v3863 = vpop.f32.mrf.mxu0
      %3864 = vmatprep.mubr.f32.mxu0 0.0
      %3865 = vmatmul.mubr.f32.gmra.mxu0 %v3638
      %v3866 = vpop.f32.mrf.mxu0
      %v3867 = vadd.f32 0.0, %v3866
      %v3868 = vpop.f32.mrf.mxu0
      %3869 = vmatprep.mubr.f32.mxu0 0.0
      %3870 = vmatmul.mubr.f32.gmra.mxu0 %v3641
      %v3871 = vpop.f32.mrf.mxu0
      %v3872 = vadd.f32 0.0, %v3871
      %v3873 = vpop.f32.mrf.mxu0
      %3874 = vmatprep.mubr.f32.mxu0 0.0
      %3875 = vmatmul.mubr.f32.gmra.mxu0 %v3644
      %v3876 = vpop.f32.mrf.mxu0
      %v3877 = vadd.f32 0.0, %v3876
      %v3878 = vpop.f32.mrf.mxu0
      %3879 = vmatprep.mubr.f32.mxu0 0.0
      %3880 = vmatmul.mubr.f32.gmra.mxu0 %v3647
      %v3881 = vpop.f32.mrf.mxu0
      %v3882 = vadd.f32 0.0, %v3881
      %v3883 = vpop.f32.mrf.mxu0
      %3884 = vmatprep.mubr.f32.mxu0 0.0
      %3885 = vmatmul.mubr.f32.gmra.mxu0 %v3650
      %v3886 = vpop.f32.mrf.mxu0
      %v3887 = vadd.f32 0.0, %v3886
      %v3888 = vpop.f32.mrf.mxu0
      %3889 = vmatprep.mubr.f32.mxu0 0.0
      %3890 = vmatmul.mubr.f32.gmra.mxu0 %v3653
      %v3891 = vpop.f32.mrf.mxu0
      %v3892 = vadd.f32 0.0, %v3891
      %v3893 = vpop.f32.mrf.mxu0
      %3894 = vmatprep.mubr.f32.mxu0 0.0
      %3895 = vmatmul.mubr.f32.gmra.mxu0 %v3656
      %v3896 = vpop.f32.mrf.mxu0
      %v3897 = vadd.f32 0.0, %v3896
      %v3898 = vpop.f32.mrf.mxu0
      %3899 = vmatprep.mubr.f32.mxu0 0.0
      %3900 = vmatmul.mubr.f32.gmra.mxu0 %v3659
      %v3901 = vpop.f32.mrf.mxu0
      %v3902 = vadd.f32 0.0, %v3901
      %v3903 = vpop.f32.mrf.mxu0
      %3904 = vmatprep.mubr.f32.mxu0 0.0
      %3905 = vmatmul.mubr.f32.gmra.mxu0 %v3662
      %v3906 = vpop.f32.mrf.mxu0
      %v3907 = vadd.f32 0.0, %v3906
      %v3908 = vpop.f32.mrf.mxu0
      %3909 = vmatprep.mubr.f32.mxu0 0.0
      %3910 = vmatmul.mubr.f32.gmra.mxu0 %v3665
      %v3911 = vpop.f32.mrf.mxu0
      %v3912 = vadd.f32 0.0, %v3911
      %v3913 = vpop.f32.mrf.mxu0
      %3914 = vmatprep.mubr.f32.mxu0 0.0
      %3915 = vmatmul.mubr.f32.gmra.mxu0 %v3668
      %v3916 = vpop.f32.mrf.mxu0
      %v3917 = vadd.f32 0.0, %v3916
      %v3918 = vpop.f32.mrf.mxu0
      %3919 = vmatprep.mubr.f32.mxu0 0.0
      %3920 = vmatmul.mubr.f32.gmra.mxu0 %v3671
      %v3921 = vpop.f32.mrf.mxu0
      %v3922 = vadd.f32 0.0, %v3921
      %v3923 = vpop.f32.mrf.mxu0
      %3924 = vmatprep.mubr.f32.mxu0 0.0
      %3925 = vmatmul.mubr.f32.gmra.mxu0 %v3674
      %v3926 = vpop.f32.mrf.mxu0
      %v3927 = vadd.f32 0.0, %v3926
      %v3928 = vpop.f32.mrf.mxu0
      %3929 = vmatprep.mubr.f32.mxu0 0.0
      %3930 = vmatmul.mubr.f32.gmra.mxu0 %v3677
      %v3931 = vpop.f32.mrf.mxu0
      %v3932 = vadd.f32 0.0, %v3931
      %v3933 = vpop.f32.mrf.mxu0
      %3934 = vmatprep.mubr.f32.mxu0 0.0
      %3935 = vmatmul.mubr.f32.gmra.mxu0 %v3680
      %v3936 = vpop.f32.mrf.mxu0
      %v3937 = vadd.f32 0.0, %v3936
      %v3938 = vpop.f32.mrf.mxu0
      %3939 = vmatprep.mubr.f32.mxu0 0.0
      %3940 = vmatmul.mubr.f32.gmra.mxu0 %v3683
      %v3941 = vpop.f32.mrf.mxu0
      %v3942 = vadd.f32 0.0, %v3941
      %v3943 = vpop.f32.mrf.mxu0
      %3944 = vmatprep.mubr.f32.mxu0 0.0
      %3945 = vmatmul.mubr.f32.gmra.mxu0 %v3686
      %v3946 = vpop.f32.mrf.mxu0
      %v3947 = vadd.f32 0.0, %v3946
      %v3948 = vpop.f32.mrf.mxu0
      %3949 = vmatprep.mubr.f32.mxu0 0.0
      %3950 = vmatmul.mubr.f32.gmra.mxu0 %v3689
      %v3951 = vpop.f32.mrf.mxu0
      %v3952 = vadd.f32 0.0, %v3951
      %v3953 = vpop.f32.mrf.mxu0
      %3954 = vmatprep.mubr.f32.mxu0 0.0
      %3955 = vmatmul.mubr.f32.gmra.mxu0 %v3692
      %v3956 = vpop.f32.mrf.mxu0
      %v3957 = vadd.f32 0.0, %v3956
      %v3958 = vpop.f32.mrf.mxu0
      %3959 = vmatprep.mubr.f32.mxu0 0.0
      %3960 = vmatmul.mubr.f32.gmra.mxu0 %v3695
      %v3961 = vpop.f32.mrf.mxu0
      %v3962 = vadd.f32 0.0, %v3961
      %v3963 = vpop.f32.mrf.mxu0
      %3964 = vmatprep.mubr.f32.mxu0 0.0
      %3965 = vmatmul.mubr.f32.gmra.mxu0 %v3698
      %v3966 = vpop.f32.mrf.mxu0
      %v3967 = vadd.f32 0.0, %v3966
      %v3968 = vpop.f32.mrf.mxu0
      %3969 = vdwg.mxu0
      %v4011 = vcombine.high %v3767, %v3767
      %v4013 = vunpack.c.l.s4 1983009808
      %v4014 = vunpack.c.0.s8 %v4013
      %v4015 = vlaneseq
      %v4016 = vshrl.u32 %v4015, 7
      %v4017 = vsub.s32 %v4014, %v4016
      %v4018 = vrot.slane %v3767, %v4017
      %v4020 = vunpack.c.l.s4 1983009808
      %v4021 = vunpack.c.0.s8 %v4020
      %v4022 = vlaneseq
      %v4023 = vshrl.u32 %v4022, 7
      %v4024 = vsub.s32 %v4021, %v4023
      %v4025 = vrot.slane %v4011, %v4024
      %v4026 = vcombine.high %v4018, %v4018
      %v4027 = vcombine.high %v4025, %v4025
      %v4028 = vcombine.high %v3772, %v3772
      %v4030 = vunpack.c.l.s4 1983009808
      %v4031 = vunpack.c.0.s8 %v4030
      %v4032 = vlaneseq
      %v4033 = vshrl.u32 %v4032, 7
      %v4034 = vsub.s32 %v4031, %v4033
      %v4035 = vrot.slane %v3772, %v4034
      %v4037 = vunpack.c.l.s4 1983009808
      %v4038 = vunpack.c.0.s8 %v4037
      %v4039 = vlaneseq
      %v4040 = vshrl.u32 %v4039, 7
      %v4041 = vsub.s32 %v4038, %v4040
      %v4042 = vrot.slane %v4028, %v4041
      %v4043 = vcombine.high %v4035, %v4035
      %v4044 = vcombine.high %v4042, %v4042
      %v4045 = vcombine.high %v3777, %v3777
      %v4047 = vunpack.c.l.s4 1983009808
      %v4048 = vunpack.c.0.s8 %v4047
      %v4049 = vlaneseq
      %v4050 = vshrl.u32 %v4049, 7
      %v4051 = vsub.s32 %v4048, %v4050
      %v4052 = vrot.slane %v3777, %v4051
      %v4054 = vunpack.c.l.s4 1983009808
      %v4055 = vunpack.c.0.s8 %v4054
      %v4056 = vlaneseq
      %v4057 = vshrl.u32 %v4056, 7
      %v4058 = vsub.s32 %v4055, %v4057
      %v4059 = vrot.slane %v4045, %v4058
      %v4060 = vcombine.high %v4052, %v4052
      %v4061 = vcombine.high %v4059, %v4059
      %v4062 = vcombine.high %v3782, %v3782
      %v4064 = vunpack.c.l.s4 1983009808
      %v4065 = vunpack.c.0.s8 %v4064
      %v4066 = vlaneseq
      %v4067 = vshrl.u32 %v4066, 7
      %v4068 = vsub.s32 %v4065, %v4067
      %v4069 = vrot.slane %v3782, %v4068
      %v4071 = vunpack.c.l.s4 1983009808
      %v4072 = vunpack.c.0.s8 %v4071
      %v4073 = vlaneseq
      %v4074 = vshrl.u32 %v4073, 7
      %v4075 = vsub.s32 %v4072, %v4074
      %v4076 = vrot.slane %v4062, %v4075
      %v4077 = vcombine.high %v4069, %v4069
      %v4078 = vcombine.high %v4076, %v4076
      %v4079 = vcombine.high %v3787, %v3787
      %v4081 = vunpack.c.l.s4 1983009808
      %v4082 = vunpack.c.0.s8 %v4081
      %v4083 = vlaneseq
      %v4084 = vshrl.u32 %v4083, 7
      %v4085 = vsub.s32 %v4082, %v4084
      %v4086 = vrot.slane %v3787, %v4085
      %v4088 = vunpack.c.l.s4 1983009808
      %v4089 = vunpack.c.0.s8 %v4088
      %v4090 = vlaneseq
      %v4091 = vshrl.u32 %v4090, 7
      %v4092 = vsub.s32 %v4089, %v4091
      %v4093 = vrot.slane %v4079, %v4092
      %v4094 = vcombine.high %v4086, %v4086
      %v4095 = vcombine.high %v4093, %v4093
      %v4096 = vcombine.high %v3792, %v3792
      %v4098 = vunpack.c.l.s4 1983009808
      %v4099 = vunpack.c.0.s8 %v4098
      %v4100 = vlaneseq
      %v4101 = vshrl.u32 %v4100, 7
      %v4102 = vsub.s32 %v4099, %v4101
      %v4103 = vrot.slane %v3792, %v4102
      %v4105 = vunpack.c.l.s4 1983009808
      %v4106 = vunpack.c.0.s8 %v4105
      %v4107 = vlaneseq
      %v4108 = vshrl.u32 %v4107, 7
      %v4109 = vsub.s32 %v4106, %v4108
      %v4110 = vrot.slane %v4096, %v4109
      %v4111 = vcombine.high %v4103, %v4103
      %v4112 = vcombine.high %v4110, %v4110
      %v4113 = vcombine.high %v3797, %v3797
      %v4115 = vunpack.c.l.s4 1983009808
      %v4116 = vunpack.c.0.s8 %v4115
      %v4117 = vlaneseq
      %v4118 = vshrl.u32 %v4117, 7
      %v4119 = vsub.s32 %v4116, %v4118
      %v4120 = vrot.slane %v3797, %v4119
      %v4122 = vunpack.c.l.s4 1983009808
      %v4123 = vunpack.c.0.s8 %v4122
      %v4124 = vlaneseq
      %v4125 = vshrl.u32 %v4124, 7
      %v4126 = vsub.s32 %v4123, %v4125
      %v4127 = vrot.slane %v4113, %v4126
      %v4128 = vcombine.high %v4120, %v4120
      %v4129 = vcombine.high %v4127, %v4127
      %v4130 = vcombine.high %v3802, %v3802
      %v4132 = vunpack.c.l.s4 1983009808
      %v4133 = vunpack.c.0.s8 %v4132
      %v4134 = vlaneseq
      %v4135 = vshrl.u32 %v4134, 7
      %v4136 = vsub.s32 %v4133, %v4135
      %v4137 = vrot.slane %v3802, %v4136
      %v4139 = vunpack.c.l.s4 1983009808
      %v4140 = vunpack.c.0.s8 %v4139
      %v4141 = vlaneseq
      %v4142 = vshrl.u32 %v4141, 7
      %v4143 = vsub.s32 %v4140, %v4142
      %v4144 = vrot.slane %v4130, %v4143
      %v4145 = vcombine.high %v4137, %v4137
      %v4146 = vcombine.high %v4144, %v4144
      %v4147 = vcombine.high %v3807, %v3807
      %v4149 = vunpack.c.l.s4 1983009808
      %v4150 = vunpack.c.0.s8 %v4149
      %v4151 = vlaneseq
      %v4152 = vshrl.u32 %v4151, 7
      %v4153 = vsub.s32 %v4150, %v4152
      %v4154 = vrot.slane %v3807, %v4153
      %v4156 = vunpack.c.l.s4 1983009808
      %v4157 = vunpack.c.0.s8 %v4156
      %v4158 = vlaneseq
      %v4159 = vshrl.u32 %v4158, 7
      %v4160 = vsub.s32 %v4157, %v4159
      %v4161 = vrot.slane %v4147, %v4160
      %v4162 = vcombine.high %v4154, %v4154
      %v4163 = vcombine.high %v4161, %v4161
      %v4164 = vcombine.high %v3812, %v3812
      %v4166 = vunpack.c.l.s4 1983009808
      %v4167 = vunpack.c.0.s8 %v4166
      %v4168 = vlaneseq
      %v4169 = vshrl.u32 %v4168, 7
      %v4170 = vsub.s32 %v4167, %v4169
      %v4171 = vrot.slane %v3812, %v4170
      %v4173 = vunpack.c.l.s4 1983009808
      %v4174 = vunpack.c.0.s8 %v4173
      %v4175 = vlaneseq
      %v4176 = vshrl.u32 %v4175, 7
      %v4177 = vsub.s32 %v4174, %v4176
      %v4178 = vrot.slane %v4164, %v4177
      %v4179 = vcombine.high %v4171, %v4171
      %v4180 = vcombine.high %v4178, %v4178
      %v4181 = vcombine.high %v3817, %v3817
      %v4183 = vunpack.c.l.s4 1983009808
      %v4184 = vunpack.c.0.s8 %v4183
      %v4185 = vlaneseq
      %v4186 = vshrl.u32 %v4185, 7
      %v4187 = vsub.s32 %v4184, %v4186
      %v4188 = vrot.slane %v3817, %v4187
      %v4190 = vunpack.c.l.s4 1983009808
      %v4191 = vunpack.c.0.s8 %v4190
      %v4192 = vlaneseq
      %v4193 = vshrl.u32 %v4192, 7
      %v4194 = vsub.s32 %v4191, %v4193
      %v4195 = vrot.slane %v4181, %v4194
      %v4196 = vcombine.high %v4188, %v4188
      %v4197 = vcombine.high %v4195, %v4195
      %v4198 = vcombine.high %v3822, %v3822
      %v4200 = vunpack.c.l.s4 1983009808
      %v4201 = vunpack.c.0.s8 %v4200
      %v4202 = vlaneseq
      %v4203 = vshrl.u32 %v4202, 7
      %v4204 = vsub.s32 %v4201, %v4203
      %v4205 = vrot.slane %v3822, %v4204
      %v4207 = vunpack.c.l.s4 1983009808
      %v4208 = vunpack.c.0.s8 %v4207
      %v4209 = vlaneseq
      %v4210 = vshrl.u32 %v4209, 7
      %v4211 = vsub.s32 %v4208, %v4210
      %v4212 = vrot.slane %v4198, %v4211
      %v4213 = vcombine.high %v4205, %v4205
      %v4214 = vcombine.high %v4212, %v4212
      %v4215 = vcombine.high %v3827, %v3827
      %v4217 = vunpack.c.l.s4 1983009808
      %v4218 = vunpack.c.0.s8 %v4217
      %v4219 = vlaneseq
      %v4220 = vshrl.u32 %v4219, 7
      %v4221 = vsub.s32 %v4218, %v4220
      %v4222 = vrot.slane %v3827, %v4221
      %v4224 = vunpack.c.l.s4 1983009808
      %v4225 = vunpack.c.0.s8 %v4224
      %v4226 = vlaneseq
      %v4227 = vshrl.u32 %v4226, 7
      %v4228 = vsub.s32 %v4225, %v4227
      %v4229 = vrot.slane %v4215, %v4228
      %v4230 = vcombine.high %v4222, %v4222
      %v4231 = vcombine.high %v4229, %v4229
      %v4232 = vcombine.high %v3832, %v3832
      %v4234 = vunpack.c.l.s4 1983009808
      %v4235 = vunpack.c.0.s8 %v4234
      %v4236 = vlaneseq
      %v4237 = vshrl.u32 %v4236, 7
      %v4238 = vsub.s32 %v4235, %v4237
      %v4239 = vrot.slane %v3832, %v4238
      %v4241 = vunpack.c.l.s4 1983009808
      %v4242 = vunpack.c.0.s8 %v4241
      %v4243 = vlaneseq
      %v4244 = vshrl.u32 %v4243, 7
      %v4245 = vsub.s32 %v4242, %v4244
      %v4246 = vrot.slane %v4232, %v4245
      %v4247 = vcombine.high %v4239, %v4239
      %v4248 = vcombine.high %v4246, %v4246
      %v4249 = vcombine.high %v3837, %v3837
      %v4251 = vunpack.c.l.s4 1983009808
      %v4252 = vunpack.c.0.s8 %v4251
      %v4253 = vlaneseq
      %v4254 = vshrl.u32 %v4253, 7
      %v4255 = vsub.s32 %v4252, %v4254
      %v4256 = vrot.slane %v3837, %v4255
      %v4258 = vunpack.c.l.s4 1983009808
      %v4259 = vunpack.c.0.s8 %v4258
      %v4260 = vlaneseq
      %v4261 = vshrl.u32 %v4260, 7
      %v4262 = vsub.s32 %v4259, %v4261
      %v4263 = vrot.slane %v4249, %v4262
      %v4264 = vcombine.high %v4256, %v4256
      %v4265 = vcombine.high %v4263, %v4263
      %v4266 = vcombine.high %v3842, %v3842
      %v4268 = vunpack.c.l.s4 1983009808
      %v4269 = vunpack.c.0.s8 %v4268
      %v4270 = vlaneseq
      %v4271 = vshrl.u32 %v4270, 7
      %v4272 = vsub.s32 %v4269, %v4271
      %v4273 = vrot.slane %v3842, %v4272
      %v4275 = vunpack.c.l.s4 1983009808
      %v4276 = vunpack.c.0.s8 %v4275
      %v4277 = vlaneseq
      %v4278 = vshrl.u32 %v4277, 7
      %v4279 = vsub.s32 %v4276, %v4278
      %v4280 = vrot.slane %v4266, %v4279
      %v4281 = vcombine.high %v4273, %v4273
      %v4282 = vcombine.high %v4280, %v4280
      %v4283 = vcombine.high %v3847, %v3847
      %v4285 = vunpack.c.l.s4 1983009808
      %v4286 = vunpack.c.0.s8 %v4285
      %v4287 = vlaneseq
      %v4288 = vshrl.u32 %v4287, 7
      %v4289 = vsub.s32 %v4286, %v4288
      %v4290 = vrot.slane %v3847, %v4289
      %v4292 = vunpack.c.l.s4 1983009808
      %v4293 = vunpack.c.0.s8 %v4292
      %v4294 = vlaneseq
      %v4295 = vshrl.u32 %v4294, 7
      %v4296 = vsub.s32 %v4293, %v4295
      %v4297 = vrot.slane %v4283, %v4296
      %v4298 = vcombine.high %v4290, %v4290
      %v4299 = vcombine.high %v4297, %v4297
      %v4300 = vcombine.high %v3852, %v3852
      %v4302 = vunpack.c.l.s4 1983009808
      %v4303 = vunpack.c.0.s8 %v4302
      %v4304 = vlaneseq
      %v4305 = vshrl.u32 %v4304, 7
      %v4306 = vsub.s32 %v4303, %v4305
      %v4307 = vrot.slane %v3852, %v4306
      %v4309 = vunpack.c.l.s4 1983009808
      %v4310 = vunpack.c.0.s8 %v4309
      %v4311 = vlaneseq
      %v4312 = vshrl.u32 %v4311, 7
      %v4313 = vsub.s32 %v4310, %v4312
      %v4314 = vrot.slane %v4300, %v4313
      %v4315 = vcombine.high %v4307, %v4307
      %v4316 = vcombine.high %v4314, %v4314
      %v4317 = vcombine.high %v3857, %v3857
      %v4319 = vunpack.c.l.s4 1983009808
      %v4320 = vunpack.c.0.s8 %v4319
      %v4321 = vlaneseq
      %v4322 = vshrl.u32 %v4321, 7
      %v4323 = vsub.s32 %v4320, %v4322
      %v4324 = vrot.slane %v3857, %v4323
      %v4326 = vunpack.c.l.s4 1983009808
      %v4327 = vunpack.c.0.s8 %v4326
      %v4328 = vlaneseq
      %v4329 = vshrl.u32 %v4328, 7
      %v4330 = vsub.s32 %v4327, %v4329
      %v4331 = vrot.slane %v4317, %v4330
      %v4332 = vcombine.high %v4324, %v4324
      %v4333 = vcombine.high %v4331, %v4331
      %v4334 = vcombine.high %v3862, %v3862
      %v4336 = vunpack.c.l.s4 1983009808
      %v4337 = vunpack.c.0.s8 %v4336
      %v4338 = vlaneseq
      %v4339 = vshrl.u32 %v4338, 7
      %v4340 = vsub.s32 %v4337, %v4339
      %v4341 = vrot.slane %v3862, %v4340
      %v4343 = vunpack.c.l.s4 1983009808
      %v4344 = vunpack.c.0.s8 %v4343
      %v4345 = vlaneseq
      %v4346 = vshrl.u32 %v4345, 7
      %v4347 = vsub.s32 %v4344, %v4346
      %v4348 = vrot.slane %v4334, %v4347
      %v4349 = vcombine.high %v4341, %v4341
      %v4350 = vcombine.high %v4348, %v4348
      %v4351 = vcombine.high %v3867, %v3867
      %v4353 = vunpack.c.l.s4 1983009808
      %v4354 = vunpack.c.0.s8 %v4353
      %v4355 = vlaneseq
      %v4356 = vshrl.u32 %v4355, 7
      %v4357 = vsub.s32 %v4354, %v4356
      %v4358 = vrot.slane %v3867, %v4357
      %v4360 = vunpack.c.l.s4 1983009808
      %v4361 = vunpack.c.0.s8 %v4360
      %v4362 = vlaneseq
      %v4363 = vshrl.u32 %v4362, 7
      %v4364 = vsub.s32 %v4361, %v4363
      %v4365 = vrot.slane %v4351, %v4364
      %v4366 = vcombine.high %v4358, %v4358
      %v4367 = vcombine.high %v4365, %v4365
      %v4368 = vcombine.high %v3872, %v3872
      %v4370 = vunpack.c.l.s4 1983009808
      %v4371 = vunpack.c.0.s8 %v4370
      %v4372 = vlaneseq
      %v4373 = vshrl.u32 %v4372, 7
      %v4374 = vsub.s32 %v4371, %v4373
      %v4375 = vrot.slane %v3872, %v4374
      %v4377 = vunpack.c.l.s4 1983009808
      %v4378 = vunpack.c.0.s8 %v4377
      %v4379 = vlaneseq
      %v4380 = vshrl.u32 %v4379, 7
      %v4381 = vsub.s32 %v4378, %v4380
      %v4382 = vrot.slane %v4368, %v4381
      %v4383 = vcombine.high %v4375, %v4375
      %v4384 = vcombine.high %v4382, %v4382
      %v4385 = vcombine.high %v3877, %v3877
      %v4387 = vunpack.c.l.s4 1983009808
      %v4388 = vunpack.c.0.s8 %v4387
      %v4389 = vlaneseq
      %v4390 = vshrl.u32 %v4389, 7
      %v4391 = vsub.s32 %v4388, %v4390
      %v4392 = vrot.slane %v3877, %v4391
      %v4394 = vunpack.c.l.s4 1983009808
      %v4395 = vunpack.c.0.s8 %v4394
      %v4396 = vlaneseq
      %v4397 = vshrl.u32 %v4396, 7
      %v4398 = vsub.s32 %v4395, %v4397
      %v4399 = vrot.slane %v4385, %v4398
      %v4400 = vcombine.high %v4392, %v4392
      %v4401 = vcombine.high %v4399, %v4399
      %v4402 = vcombine.high %v3882, %v3882
      %v4404 = vunpack.c.l.s4 1983009808
      %v4405 = vunpack.c.0.s8 %v4404
      %v4406 = vlaneseq
      %v4407 = vshrl.u32 %v4406, 7
      %v4408 = vsub.s32 %v4405, %v4407
      %v4409 = vrot.slane %v3882, %v4408
      %v4411 = vunpack.c.l.s4 1983009808
      %v4412 = vunpack.c.0.s8 %v4411
      %v4413 = vlaneseq
      %v4414 = vshrl.u32 %v4413, 7
      %v4415 = vsub.s32 %v4412, %v4414
      %v4416 = vrot.slane %v4402, %v4415
      %v4417 = vcombine.high %v4409, %v4409
      %v4418 = vcombine.high %v4416, %v4416
      %v4419 = vcombine.high %v3887, %v3887
      %v4421 = vunpack.c.l.s4 1983009808
      %v4422 = vunpack.c.0.s8 %v4421
      %v4423 = vlaneseq
      %v4424 = vshrl.u32 %v4423, 7
      %v4425 = vsub.s32 %v4422, %v4424
      %v4426 = vrot.slane %v3887, %v4425
      %v4428 = vunpack.c.l.s4 1983009808
      %v4429 = vunpack.c.0.s8 %v4428
      %v4430 = vlaneseq
      %v4431 = vshrl.u32 %v4430, 7
      %v4432 = vsub.s32 %v4429, %v4431
      %v4433 = vrot.slane %v4419, %v4432
      %v4434 = vcombine.high %v4426, %v4426
      %v4435 = vcombine.high %v4433, %v4433
      %v4436 = vcombine.high %v3892, %v3892
      %v4438 = vunpack.c.l.s4 1983009808
      %v4439 = vunpack.c.0.s8 %v4438
      %v4440 = vlaneseq
      %v4441 = vshrl.u32 %v4440, 7
      %v4442 = vsub.s32 %v4439, %v4441
      %v4443 = vrot.slane %v3892, %v4442
      %v4445 = vunpack.c.l.s4 1983009808
      %v4446 = vunpack.c.0.s8 %v4445
      %v4447 = vlaneseq
      %v4448 = vshrl.u32 %v4447, 7
      %v4449 = vsub.s32 %v4446, %v4448
      %v4450 = vrot.slane %v4436, %v4449
      %v4451 = vcombine.high %v4443, %v4443
      %v4452 = vcombine.high %v4450, %v4450
      %v4453 = vcombine.high %v3897, %v3897
      %v4455 = vunpack.c.l.s4 1983009808
      %v4456 = vunpack.c.0.s8 %v4455
      %v4457 = vlaneseq
      %v4458 = vshrl.u32 %v4457, 7
      %v4459 = vsub.s32 %v4456, %v4458
      %v4460 = vrot.slane %v3897, %v4459
      %v4462 = vunpack.c.l.s4 1983009808
      %v4463 = vunpack.c.0.s8 %v4462
      %v4464 = vlaneseq
      %v4465 = vshrl.u32 %v4464, 7
      %v4466 = vsub.s32 %v4463, %v4465
      %v4467 = vrot.slane %v4453, %v4466
      %v4468 = vcombine.high %v4460, %v4460
      %v4469 = vcombine.high %v4467, %v4467
      %v4470 = vcombine.high %v3902, %v3902
      %v4472 = vunpack.c.l.s4 1983009808
      %v4473 = vunpack.c.0.s8 %v4472
      %v4474 = vlaneseq
      %v4475 = vshrl.u32 %v4474, 7
      %v4476 = vsub.s32 %v4473, %v4475
      %v4477 = vrot.slane %v3902, %v4476
      %v4479 = vunpack.c.l.s4 1983009808
      %v4480 = vunpack.c.0.s8 %v4479
      %v4481 = vlaneseq
      %v4482 = vshrl.u32 %v4481, 7
      %v4483 = vsub.s32 %v4480, %v4482
      %v4484 = vrot.slane %v4470, %v4483
      %v4485 = vcombine.high %v4477, %v4477
      %v4486 = vcombine.high %v4484, %v4484
      %v4487 = vcombine.high %v3907, %v3907
      %v4489 = vunpack.c.l.s4 1983009808
      %v4490 = vunpack.c.0.s8 %v4489
      %v4491 = vlaneseq
      %v4492 = vshrl.u32 %v4491, 7
      %v4493 = vsub.s32 %v4490, %v4492
      %v4494 = vrot.slane %v3907, %v4493
      %v4496 = vunpack.c.l.s4 1983009808
      %v4497 = vunpack.c.0.s8 %v4496
      %v4498 = vlaneseq
      %v4499 = vshrl.u32 %v4498, 7
      %v4500 = vsub.s32 %v4497, %v4499
      %v4501 = vrot.slane %v4487, %v4500
      %v4502 = vcombine.high %v4494, %v4494
      %v4503 = vcombine.high %v4501, %v4501
      %v4504 = vcombine.high %v3912, %v3912
      %v4506 = vunpack.c.l.s4 1983009808
      %v4507 = vunpack.c.0.s8 %v4506
      %v4508 = vlaneseq
      %v4509 = vshrl.u32 %v4508, 7
      %v4510 = vsub.s32 %v4507, %v4509
      %v4511 = vrot.slane %v3912, %v4510
      %v4513 = vunpack.c.l.s4 1983009808
      %v4514 = vunpack.c.0.s8 %v4513
      %v4515 = vlaneseq
      %v4516 = vshrl.u32 %v4515, 7
      %v4517 = vsub.s32 %v4514, %v4516
      %v4518 = vrot.slane %v4504, %v4517
      %v4519 = vcombine.high %v4511, %v4511
      %v4520 = vcombine.high %v4518, %v4518
      %v4521 = vcombine.high %v3917, %v3917
      %v4523 = vunpack.c.l.s4 1983009808
      %v4524 = vunpack.c.0.s8 %v4523
      %v4525 = vlaneseq
      %v4526 = vshrl.u32 %v4525, 7
      %v4527 = vsub.s32 %v4524, %v4526
      %v4528 = vrot.slane %v3917, %v4527
      %v4530 = vunpack.c.l.s4 1983009808
      %v4531 = vunpack.c.0.s8 %v4530
      %v4532 = vlaneseq
      %v4533 = vshrl.u32 %v4532, 7
      %v4534 = vsub.s32 %v4531, %v4533
      %v4535 = vrot.slane %v4521, %v4534
      %v4536 = vcombine.high %v4528, %v4528
      %v4537 = vcombine.high %v4535, %v4535
      %v4538 = vcombine.high %v3922, %v3922
      %v4540 = vunpack.c.l.s4 1983009808
      %v4541 = vunpack.c.0.s8 %v4540
      %v4542 = vlaneseq
      %v4543 = vshrl.u32 %v4542, 7
      %v4544 = vsub.s32 %v4541, %v4543
      %v4545 = vrot.slane %v3922, %v4544
      %v4547 = vunpack.c.l.s4 1983009808
      %v4548 = vunpack.c.0.s8 %v4547
      %v4549 = vlaneseq
      %v4550 = vshrl.u32 %v4549, 7
      %v4551 = vsub.s32 %v4548, %v4550
      %v4552 = vrot.slane %v4538, %v4551
      %v4553 = vcombine.high %v4545, %v4545
      %v4554 = vcombine.high %v4552, %v4552
      %v4555 = vcombine.high %v3927, %v3927
      %v4557 = vunpack.c.l.s4 1983009808
      %v4558 = vunpack.c.0.s8 %v4557
      %v4559 = vlaneseq
      %v4560 = vshrl.u32 %v4559, 7
      %v4561 = vsub.s32 %v4558, %v4560
      %v4562 = vrot.slane %v3927, %v4561
      %v4564 = vunpack.c.l.s4 1983009808
      %v4565 = vunpack.c.0.s8 %v4564
      %v4566 = vlaneseq
      %v4567 = vshrl.u32 %v4566, 7
      %v4568 = vsub.s32 %v4565, %v4567
      %v4569 = vrot.slane %v4555, %v4568
      %v4570 = vcombine.high %v4562, %v4562
      %v4571 = vcombine.high %v4569, %v4569
      %v4572 = vcombine.high %v3932, %v3932
      %v4574 = vunpack.c.l.s4 1983009808
      %v4575 = vunpack.c.0.s8 %v4574
      %v4576 = vlaneseq
      %v4577 = vshrl.u32 %v4576, 7
      %v4578 = vsub.s32 %v4575, %v4577
      %v4579 = vrot.slane %v3932, %v4578
      %v4581 = vunpack.c.l.s4 1983009808
      %v4582 = vunpack.c.0.s8 %v4581
      %v4583 = vlaneseq
      %v4584 = vshrl.u32 %v4583, 7
      %v4585 = vsub.s32 %v4582, %v4584
      %v4586 = vrot.slane %v4572, %v4585
      %v4587 = vcombine.high %v4579, %v4579
      %v4588 = vcombine.high %v4586, %v4586
      %v4589 = vcombine.high %v3937, %v3937
      %v4591 = vunpack.c.l.s4 1983009808
      %v4592 = vunpack.c.0.s8 %v4591
      %v4593 = vlaneseq
      %v4594 = vshrl.u32 %v4593, 7
      %v4595 = vsub.s32 %v4592, %v4594
      %v4596 = vrot.slane %v3937, %v4595
      %v4598 = vunpack.c.l.s4 1983009808
      %v4599 = vunpack.c.0.s8 %v4598
      %v4600 = vlaneseq
      %v4601 = vshrl.u32 %v4600, 7
      %v4602 = vsub.s32 %v4599, %v4601
      %v4603 = vrot.slane %v4589, %v4602
      %v4604 = vcombine.high %v4596, %v4596
      %v4605 = vcombine.high %v4603, %v4603
      %v4606 = vcombine.high %v3942, %v3942
      %v4608 = vunpack.c.l.s4 1983009808
      %v4609 = vunpack.c.0.s8 %v4608
      %v4610 = vlaneseq
      %v4611 = vshrl.u32 %v4610, 7
      %v4612 = vsub.s32 %v4609, %v4611
      %v4613 = vrot.slane %v3942, %v4612
      %v4615 = vunpack.c.l.s4 1983009808
      %v4616 = vunpack.c.0.s8 %v4615
      %v4617 = vlaneseq
      %v4618 = vshrl.u32 %v4617, 7
      %v4619 = vsub.s32 %v4616, %v4618
      %v4620 = vrot.slane %v4606, %v4619
      %v4621 = vcombine.high %v4613, %v4613
      %v4622 = vcombine.high %v4620, %v4620
      %v4623 = vcombine.high %v3947, %v3947
      %v4625 = vunpack.c.l.s4 1983009808
      %v4626 = vunpack.c.0.s8 %v4625
      %v4627 = vlaneseq
      %v4628 = vshrl.u32 %v4627, 7
      %v4629 = vsub.s32 %v4626, %v4628
      %v4630 = vrot.slane %v3947, %v4629
      %v4632 = vunpack.c.l.s4 1983009808
      %v4633 = vunpack.c.0.s8 %v4632
      %v4634 = vlaneseq
      %v4635 = vshrl.u32 %v4634, 7
      %v4636 = vsub.s32 %v4633, %v4635
      %v4637 = vrot.slane %v4623, %v4636
      %v4638 = vcombine.high %v4630, %v4630
      %v4639 = vcombine.high %v4637, %v4637
      %v4640 = vcombine.high %v3952, %v3952
      %v4642 = vunpack.c.l.s4 1983009808
      %v4643 = vunpack.c.0.s8 %v4642
      %v4644 = vlaneseq
      %v4645 = vshrl.u32 %v4644, 7
      %v4646 = vsub.s32 %v4643, %v4645
      %v4647 = vrot.slane %v3952, %v4646
      %v4649 = vunpack.c.l.s4 1983009808
      %v4650 = vunpack.c.0.s8 %v4649
      %v4651 = vlaneseq
      %v4652 = vshrl.u32 %v4651, 7
      %v4653 = vsub.s32 %v4650, %v4652
      %v4654 = vrot.slane %v4640, %v4653
      %v4655 = vcombine.high %v4647, %v4647
      %v4656 = vcombine.high %v4654, %v4654
      %v4657 = vcombine.high %v3957, %v3957
      %v4659 = vunpack.c.l.s4 1983009808
      %v4660 = vunpack.c.0.s8 %v4659
      %v4661 = vlaneseq
      %v4662 = vshrl.u32 %v4661, 7
      %v4663 = vsub.s32 %v4660, %v4662
      %v4664 = vrot.slane %v3957, %v4663
      %v4666 = vunpack.c.l.s4 1983009808
      %v4667 = vunpack.c.0.s8 %v4666
      %v4668 = vlaneseq
      %v4669 = vshrl.u32 %v4668, 7
      %v4670 = vsub.s32 %v4667, %v4669
      %v4671 = vrot.slane %v4657, %v4670
      %v4672 = vcombine.high %v4664, %v4664
      %v4673 = vcombine.high %v4671, %v4671
      %v4674 = vcombine.high %v3962, %v3962
      %v4676 = vunpack.c.l.s4 1983009808
      %v4677 = vunpack.c.0.s8 %v4676
      %v4678 = vlaneseq
      %v4679 = vshrl.u32 %v4678, 7
      %v4680 = vsub.s32 %v4677, %v4679
      %v4681 = vrot.slane %v3962, %v4680
      %v4683 = vunpack.c.l.s4 1983009808
      %v4684 = vunpack.c.0.s8 %v4683
      %v4685 = vlaneseq
      %v4686 = vshrl.u32 %v4685, 7
      %v4687 = vsub.s32 %v4684, %v4686
      %v4688 = vrot.slane %v4674, %v4687
      %v4689 = vcombine.high %v4681, %v4681
      %v4690 = vcombine.high %v4688, %v4688
      %v4692 = vunpack.c.l.s4 1983009808
      %v4693 = vunpack.c.0.s8 %v4692
      %v4694 = vlaneseq
      %v4695 = vshrl.u32 %v4694, 7
      %v4696 = vsub.s32 %v4693, %v4695
      %v4697 = vrot.slane %v3967, %v4696
      %v4698 = vcombine.high %v4697, %v4697
      %v4699 = vrot.slane %v4018, 7
      %v4700 = vrot.slane %v4699, 2
      %v4701 = vrot.slane %v4026, 7
      %v4702 = vsel %vm2242, %v4700, %v4701
      %v4703 = vrot.slane %v4701, 2
      %v4704 = vrot.slane %v4025, 7
      %v4705 = vsel %vm2242, %v4703, %v4704
      %v4706 = vrot.slane %v4704, 2
      %v4707 = vrot.slane %v4027, 7
      %v4708 = vsel %vm2242, %v4706, %v4707
      %v4709 = vrot.slane %v4707, 2
      %v4710 = vrot.slane %v4035, 7
      %v4711 = vsel %vm2242, %v4709, %v4710
      %v4712 = vrot.slane %v4710, 2
      %v4713 = vrot.slane %v4043, 7
      %v4714 = vsel %vm2242, %v4712, %v4713
      %v4715 = vrot.slane %v4713, 2
      %v4716 = vrot.slane %v4042, 7
      %v4717 = vsel %vm2242, %v4715, %v4716
      %v4718 = vrot.slane %v4716, 2
      %v4719 = vrot.slane %v4044, 7
      %v4720 = vsel %vm2242, %v4718, %v4719
      %v4721 = vrot.slane %v4719, 2
      %v4722 = vrot.slane %v4052, 7
      %v4723 = vsel %vm2242, %v4721, %v4722
      %v4724 = vrot.slane %v4060, 7
      %v4725 = vrot.slane %v4724, 2
      %v4726 = vrot.slane %v4059, 7
      %v4727 = vsel %vm2242, %v4725, %v4726
      %v4728 = vrot.slane %v4726, 2
      %v4729 = vrot.slane %v4061, 7
      %v4730 = vsel %vm2242, %v4728, %v4729
      %v4731 = vrot.slane %v4729, 2
      %v4732 = vrot.slane %v4069, 7
      %v4733 = vsel %vm2242, %v4731, %v4732
      %v4734 = vrot.slane %v4732, 2
      %v4735 = vrot.slane %v4077, 7
      %v4736 = vsel %vm2242, %v4734, %v4735
      %v4737 = vrot.slane %v4735, 2
      %v4738 = vrot.slane %v4076, 7
      %v4739 = vsel %vm2242, %v4737, %v4738
      %v4740 = vrot.slane %v4738, 2
      %v4741 = vrot.slane %v4078, 7
      %v4742 = vsel %vm2242, %v4740, %v4741
      %v4743 = vrot.slane %v4741, 2
      %v4744 = vrot.slane %v4086, 7
      %v4745 = vsel %vm2242, %v4743, %v4744
      %v4746 = vrot.slane %v4744, 2
      %v4747 = vrot.slane %v4094, 7
      %v4748 = vsel %vm2242, %v4746, %v4747
      %v4749 = vrot.slane %v4093, 7
      %v4750 = vrot.slane %v4749, 2
      %v4751 = vrot.slane %v4095, 7
      %v4752 = vsel %vm2242, %v4750, %v4751
      %v4753 = vrot.slane %v4751, 2
      %v4754 = vrot.slane %v4103, 7
      %v4755 = vsel %vm2242, %v4753, %v4754
      %v4756 = vrot.slane %v4754, 2
      %v4757 = vrot.slane %v4111, 7
      %v4758 = vsel %vm2242, %v4756, %v4757
      %v4759 = vrot.slane %v4757, 2
      %v4760 = vrot.slane %v4110, 7
      %v4761 = vsel %vm2242, %v4759, %v4760
      %v4762 = vrot.slane %v4760, 2
      %v4763 = vrot.slane %v4112, 7
      %v4764 = vsel %vm2242, %v4762, %v4763
      %v4765 = vrot.slane %v4763, 2
      %v4766 = vrot.slane %v4120, 7
      %v4767 = vsel %vm2242, %v4765, %v4766
      %v4768 = vrot.slane %v4766, 2
      %v4769 = vrot.slane %v4128, 7
      %v4770 = vsel %vm2242, %v4768, %v4769
      %v4771 = vrot.slane %v4769, 2
      %v4772 = vrot.slane %v4127, 7
      %v4773 = vsel %vm2242, %v4771, %v4772
      %v4774 = vrot.slane %v4129, 7
      %v4775 = vrot.slane %v4774, 2
      %v4776 = vrot.slane %v4137, 7
      %v4777 = vsel %vm2242, %v4775, %v4776
      %v4778 = vrot.slane %v4776, 2
      %v4779 = vrot.slane %v4145, 7
      %v4780 = vsel %vm2242, %v4778, %v4779
      %v4781 = vrot.slane %v4779, 2
      %v4782 = vrot.slane %v4144, 7
      %v4783 = vsel %vm2242, %v4781, %v4782
      %v4784 = vrot.slane %v4782, 2
      %v4785 = vrot.slane %v4146, 7
      %v4786 = vsel %vm2242, %v4784, %v4785
      %v4787 = vrot.slane %v4785, 2
      %v4788 = vrot.slane %v4154, 7
      %v4789 = vsel %vm2242, %v4787, %v4788
      %v4790 = vrot.slane %v4788, 2
      %v4791 = vrot.slane %v4162, 7
      %v4792 = vsel %vm2242, %v4790, %v4791
      %v4793 = vrot.slane %v4791, 2
      %v4794 = vrot.slane %v4161, 7
      %v4795 = vsel %vm2242, %v4793, %v4794
      %v4796 = vrot.slane %v4794, 2
      %v4797 = vrot.slane %v4163, 7
      %v4798 = vsel %vm2242, %v4796, %v4797
      %v4799 = vrot.slane %v4171, 7
      %v4800 = vrot.slane %v4799, 2
      %v4801 = vrot.slane %v4179, 7
      %v4802 = vsel %vm2242, %v4800, %v4801
      %v4803 = vrot.slane %v4801, 2
      %v4804 = vrot.slane %v4178, 7
      %v4805 = vsel %vm2242, %v4803, %v4804
      %v4806 = vrot.slane %v4804, 2
      %v4807 = vrot.slane %v4180, 7
      %v4808 = vsel %vm2242, %v4806, %v4807
      %v4809 = vrot.slane %v4807, 2
      %v4810 = vrot.slane %v4188, 7
      %v4811 = vsel %vm2242, %v4809, %v4810
      %v4812 = vrot.slane %v4810, 2
      %v4813 = vrot.slane %v4196, 7
      %v4814 = vsel %vm2242, %v4812, %v4813
      %v4815 = vrot.slane %v4813, 2
      %v4816 = vrot.slane %v4195, 7
      %v4817 = vsel %vm2242, %v4815, %v4816
      %v4818 = vrot.slane %v4816, 2
      %v4819 = vrot.slane %v4197, 7
      %v4820 = vsel %vm2242, %v4818, %v4819
      %v4821 = vrot.slane %v4819, 2
      %v4822 = vrot.slane %v4205, 7
      %v4823 = vsel %vm2242, %v4821, %v4822
      %v4824 = vrot.slane %v4213, 7
      %v4825 = vrot.slane %v4824, 2
      %v4826 = vrot.slane %v4212, 7
      %v4827 = vsel %vm2242, %v4825, %v4826
      %v4828 = vrot.slane %v4826, 2
      %v4829 = vrot.slane %v4214, 7
      %v4830 = vsel %vm2242, %v4828, %v4829
      %v4831 = vrot.slane %v4829, 2
      %v4832 = vrot.slane %v4222, 7
      %v4833 = vsel %vm2242, %v4831, %v4832
      %v4834 = vrot.slane %v4832, 2
      %v4835 = vrot.slane %v4230, 7
      %v4836 = vsel %vm2242, %v4834, %v4835
      %v4837 = vrot.slane %v4835, 2
      %v4838 = vrot.slane %v4229, 7
      %v4839 = vsel %vm2242, %v4837, %v4838
      %v4840 = vrot.slane %v4838, 2
      %v4841 = vrot.slane %v4231, 7
      %v4842 = vsel %vm2242, %v4840, %v4841
      %v4843 = vrot.slane %v4841, 2
      %v4844 = vrot.slane %v4239, 7
      %v4845 = vsel %vm2242, %v4843, %v4844
      %v4846 = vrot.slane %v4844, 2
      %v4847 = vrot.slane %v4247, 7
      %v4848 = vsel %vm2242, %v4846, %v4847
      %v4849 = vrot.slane %v4246, 7
      %v4850 = vrot.slane %v4849, 2
      %v4851 = vrot.slane %v4248, 7
      %v4852 = vsel %vm2242, %v4850, %v4851
      %v4853 = vrot.slane %v4851, 2
      %v4854 = vrot.slane %v4256, 7
      %v4855 = vsel %vm2242, %v4853, %v4854
      %v4856 = vrot.slane %v4854, 2
      %v4857 = vrot.slane %v4264, 7
      %v4858 = vsel %vm2242, %v4856, %v4857
      %v4859 = vrot.slane %v4857, 2
      %v4860 = vrot.slane %v4263, 7
      %v4861 = vsel %vm2242, %v4859, %v4860
      %v4862 = vrot.slane %v4860, 2
      %v4863 = vrot.slane %v4265, 7
      %v4864 = vsel %vm2242, %v4862, %v4863
      %v4865 = vrot.slane %v4863, 2
      %v4866 = vrot.slane %v4273, 7
      %v4867 = vsel %vm2242, %v4865, %v4866
      %v4868 = vrot.slane %v4866, 2
      %v4869 = vrot.slane %v4281, 7
      %v4870 = vsel %vm2242, %v4868, %v4869
      %v4871 = vrot.slane %v4869, 2
      %v4872 = vrot.slane %v4280, 7
      %v4873 = vsel %vm2242, %v4871, %v4872
      %v4874 = vrot.slane %v4282, 7
      %v4875 = vrot.slane %v4874, 2
      %v4876 = vrot.slane %v4290, 7
      %v4877 = vsel %vm2242, %v4875, %v4876
      %v4878 = vrot.slane %v4876, 2
      %v4879 = vrot.slane %v4298, 7
      %v4880 = vsel %vm2242, %v4878, %v4879
      %v4881 = vrot.slane %v4879, 2
      %v4882 = vrot.slane %v4297, 7
      %v4883 = vsel %vm2242, %v4881, %v4882
      %v4884 = vrot.slane %v4882, 2
      %v4885 = vrot.slane %v4299, 7
      %v4886 = vsel %vm2242, %v4884, %v4885
      %v4887 = vrot.slane %v4885, 2
      %v4888 = vrot.slane %v4307, 7
      %v4889 = vsel %vm2242, %v4887, %v4888
      %v4890 = vrot.slane %v4888, 2
      %v4891 = vrot.slane %v4315, 7
      %v4892 = vsel %vm2242, %v4890, %v4891
      %v4893 = vrot.slane %v4891, 2
      %v4894 = vrot.slane %v4314, 7
      %v4895 = vsel %vm2242, %v4893, %v4894
      %v4896 = vrot.slane %v4894, 2
      %v4897 = vrot.slane %v4316, 7
      %v4898 = vsel %vm2242, %v4896, %v4897
      %v4899 = vrot.slane %v4324, 7
      %v4900 = vrot.slane %v4899, 2
      %v4901 = vrot.slane %v4332, 7
      %v4902 = vsel %vm2242, %v4900, %v4901
      %v4903 = vrot.slane %v4901, 2
      %v4904 = vrot.slane %v4331, 7
      %v4905 = vsel %vm2242, %v4903, %v4904
      %v4906 = vrot.slane %v4904, 2
      %v4907 = vrot.slane %v4333, 7
      %v4908 = vsel %vm2242, %v4906, %v4907
      %v4909 = vrot.slane %v4907, 2
      %v4910 = vrot.slane %v4341, 7
      %v4911 = vsel %vm2242, %v4909, %v4910
      %v4912 = vrot.slane %v4910, 2
      %v4913 = vrot.slane %v4349, 7
      %v4914 = vsel %vm2242, %v4912, %v4913
      %v4915 = vrot.slane %v4913, 2
      %v4916 = vrot.slane %v4348, 7
      %v4917 = vsel %vm2242, %v4915, %v4916
      %v4918 = vrot.slane %v4916, 2
      %v4919 = vrot.slane %v4350, 7
      %v4920 = vsel %vm2242, %v4918, %v4919
      %v4921 = vrot.slane %v4919, 2
      %v4922 = vrot.slane %v4358, 7
      %v4923 = vsel %vm2242, %v4921, %v4922
      %v4924 = vrot.slane %v4366, 7
      %v4925 = vrot.slane %v4924, 2
      %v4926 = vrot.slane %v4365, 7
      %v4927 = vsel %vm2242, %v4925, %v4926
      %v4928 = vrot.slane %v4926, 2
      %v4929 = vrot.slane %v4367, 7
      %v4930 = vsel %vm2242, %v4928, %v4929
      %v4931 = vrot.slane %v4929, 2
      %v4932 = vrot.slane %v4375, 7
      %v4933 = vsel %vm2242, %v4931, %v4932
      %v4934 = vrot.slane %v4932, 2
      %v4935 = vrot.slane %v4383, 7
      %v4936 = vsel %vm2242, %v4934, %v4935
      %v4937 = vrot.slane %v4935, 2
      %v4938 = vrot.slane %v4382, 7
      %v4939 = vsel %vm2242, %v4937, %v4938
      %v4940 = vrot.slane %v4938, 2
      %v4941 = vrot.slane %v4384, 7
      %v4942 = vsel %vm2242, %v4940, %v4941
      %v4943 = vrot.slane %v4941, 2
      %v4944 = vrot.slane %v4392, 7
      %v4945 = vsel %vm2242, %v4943, %v4944
      %v4946 = vrot.slane %v4944, 2
      %v4947 = vrot.slane %v4400, 7
      %v4948 = vsel %vm2242, %v4946, %v4947
      %v4949 = vrot.slane %v4399, 7
      %v4950 = vrot.slane %v4949, 2
      %v4951 = vrot.slane %v4401, 7
      %v4952 = vsel %vm2242, %v4950, %v4951
      %v4953 = vrot.slane %v4951, 2
      %v4954 = vrot.slane %v4409, 7
      %v4955 = vsel %vm2242, %v4953, %v4954
      %v4956 = vrot.slane %v4954, 2
      %v4957 = vrot.slane %v4417, 7
      %v4958 = vsel %vm2242, %v4956, %v4957
      %v4959 = vrot.slane %v4957, 2
      %v4960 = vrot.slane %v4416, 7
      %v4961 = vsel %vm2242, %v4959, %v4960
      %v4962 = vrot.slane %v4960, 2
      %v4963 = vrot.slane %v4418, 7
      %v4964 = vsel %vm2242, %v4962, %v4963
      %v4965 = vrot.slane %v4963, 2
      %v4966 = vrot.slane %v4426, 7
      %v4967 = vsel %vm2242, %v4965, %v4966
      %v4968 = vrot.slane %v4966, 2
      %v4969 = vrot.slane %v4434, 7
      %v4970 = vsel %vm2242, %v4968, %v4969
      %v4971 = vrot.slane %v4969, 2
      %v4972 = vrot.slane %v4433, 7
      %v4973 = vsel %vm2242, %v4971, %v4972
      %v4974 = vrot.slane %v4435, 7
      %v4975 = vrot.slane %v4974, 2
      %v4976 = vrot.slane %v4443, 7
      %v4977 = vsel %vm2242, %v4975, %v4976
      %v4978 = vrot.slane %v4976, 2
      %v4979 = vrot.slane %v4451, 7
      %v4980 = vsel %vm2242, %v4978, %v4979
      %v4981 = vrot.slane %v4979, 2
      %v4982 = vrot.slane %v4450, 7
      %v4983 = vsel %vm2242, %v4981, %v4982
      %v4984 = vrot.slane %v4982, 2
      %v4985 = vrot.slane %v4452, 7
      %v4986 = vsel %vm2242, %v4984, %v4985
      %v4987 = vrot.slane %v4985, 2
      %v4988 = vrot.slane %v4460, 7
      %v4989 = vsel %vm2242, %v4987, %v4988
      %v4990 = vrot.slane %v4988, 2
      %v4991 = vrot.slane %v4468, 7
      %v4992 = vsel %vm2242, %v4990, %v4991
      %v4993 = vrot.slane %v4991, 2
      %v4994 = vrot.slane %v4467, 7
      %v4995 = vsel %vm2242, %v4993, %v4994
      %v4996 = vrot.slane %v4994, 2
      %v4997 = vrot.slane %v4469, 7
      %v4998 = vsel %vm2242, %v4996, %v4997
      %v4999 = vrot.slane %v4477, 7
      %v5000 = vrot.slane %v4999, 2
      %v5001 = vrot.slane %v4485, 7
      %v5002 = vsel %vm2242, %v5000, %v5001
      %v5003 = vrot.slane %v5001, 2
      %v5004 = vrot.slane %v4484, 7
      %v5005 = vsel %vm2242, %v5003, %v5004
      %v5006 = vrot.slane %v5004, 2
      %v5007 = vrot.slane %v4486, 7
      %v5008 = vsel %vm2242, %v5006, %v5007
      %v5009 = vrot.slane %v5007, 2
      %v5010 = vrot.slane %v4494, 7
      %v5011 = vsel %vm2242, %v5009, %v5010
      %v5012 = vrot.slane %v5010, 2
      %v5013 = vrot.slane %v4502, 7
      %v5014 = vsel %vm2242, %v5012, %v5013
      %v5015 = vrot.slane %v5013, 2
      %v5016 = vrot.slane %v4501, 7
      %v5017 = vsel %vm2242, %v5015, %v5016
      %v5018 = vrot.slane %v5016, 2
      %v5019 = vrot.slane %v4503, 7
      %v5020 = vsel %vm2242, %v5018, %v5019
      %v5021 = vrot.slane %v5019, 2
      %v5022 = vrot.slane %v4511, 7
      %v5023 = vsel %vm2242, %v5021, %v5022
      %v5024 = vrot.slane %v4519, 7
      %v5025 = vrot.slane %v5024, 2
      %v5026 = vrot.slane %v4518, 7
      %v5027 = vsel %vm2242, %v5025, %v5026
      %v5028 = vrot.slane %v5026, 2
      %v5029 = vrot.slane %v4520, 7
      %v5030 = vsel %vm2242, %v5028, %v5029
      %v5031 = vrot.slane %v5029, 2
      %v5032 = vrot.slane %v4528, 7
      %v5033 = vsel %vm2242, %v5031, %v5032
      %v5034 = vrot.slane %v5032, 2
      %v5035 = vrot.slane %v4536, 7
      %v5036 = vsel %vm2242, %v5034, %v5035
      %v5037 = vrot.slane %v5035, 2
      %v5038 = vrot.slane %v4535, 7
      %v5039 = vsel %vm2242, %v5037, %v5038
      %v5040 = vrot.slane %v5038, 2
      %v5041 = vrot.slane %v4537, 7
      %v5042 = vsel %vm2242, %v5040, %v5041
      %v5043 = vrot.slane %v5041, 2
      %v5044 = vrot.slane %v4545, 7
      %v5045 = vsel %vm2242, %v5043, %v5044
      %v5046 = vrot.slane %v5044, 2
      %v5047 = vrot.slane %v4553, 7
      %v5048 = vsel %vm2242, %v5046, %v5047
      %v5049 = vrot.slane %v4552, 7
      %v5050 = vrot.slane %v5049, 2
      %v5051 = vrot.slane %v4554, 7
      %v5052 = vsel %vm2242, %v5050, %v5051
      %v5053 = vrot.slane %v5051, 2
      %v5054 = vrot.slane %v4562, 7
      %v5055 = vsel %vm2242, %v5053, %v5054
      %v5056 = vrot.slane %v5054, 2
      %v5057 = vrot.slane %v4570, 7
      %v5058 = vsel %vm2242, %v5056, %v5057
      %v5059 = vrot.slane %v5057, 2
      %v5060 = vrot.slane %v4569, 7
      %v5061 = vsel %vm2242, %v5059, %v5060
      %v5062 = vrot.slane %v5060, 2
      %v5063 = vrot.slane %v4571, 7
      %v5064 = vsel %vm2242, %v5062, %v5063
      %v5065 = vrot.slane %v5063, 2
      %v5066 = vrot.slane %v4579, 7
      %v5067 = vsel %vm2242, %v5065, %v5066
      %v5068 = vrot.slane %v5066, 2
      %v5069 = vrot.slane %v4587, 7
      %v5070 = vsel %vm2242, %v5068, %v5069
      %v5071 = vrot.slane %v5069, 2
      %v5072 = vrot.slane %v4586, 7
      %v5073 = vsel %vm2242, %v5071, %v5072
      %v5074 = vrot.slane %v4588, 7
      %v5075 = vrot.slane %v5074, 2
      %v5076 = vrot.slane %v4596, 7
      %v5077 = vsel %vm2242, %v5075, %v5076
      %v5078 = vrot.slane %v5076, 2
      %v5079 = vrot.slane %v4604, 7
      %v5080 = vsel %vm2242, %v5078, %v5079
      %v5081 = vrot.slane %v5079, 2
      %v5082 = vrot.slane %v4603, 7
      %v5083 = vsel %vm2242, %v5081, %v5082
      %v5084 = vrot.slane %v5082, 2
      %v5085 = vrot.slane %v4605, 7
      %v5086 = vsel %vm2242, %v5084, %v5085
      %v5087 = vrot.slane %v5085, 2
      %v5088 = vrot.slane %v4613, 7
      %v5089 = vsel %vm2242, %v5087, %v5088
      %v5090 = vrot.slane %v5088, 2
      %v5091 = vrot.slane %v4621, 7
      %v5092 = vsel %vm2242, %v5090, %v5091
      %v5093 = vrot.slane %v5091, 2
      %v5094 = vrot.slane %v4620, 7
      %v5095 = vsel %vm2242, %v5093, %v5094
      %v5096 = vrot.slane %v5094, 2
      %v5097 = vrot.slane %v4622, 7
      %v5098 = vsel %vm2242, %v5096, %v5097
      %v5099 = vrot.slane %v4630, 7
      %v5100 = vrot.slane %v5099, 2
      %v5101 = vrot.slane %v4638, 7
      %v5102 = vsel %vm2242, %v5100, %v5101
      %v5103 = vrot.slane %v5101, 2
      %v5104 = vrot.slane %v4637, 7
      %v5105 = vsel %vm2242, %v5103, %v5104
      %v5106 = vrot.slane %v5104, 2
      %v5107 = vrot.slane %v4639, 7
      %v5108 = vsel %vm2242, %v5106, %v5107
      %v5109 = vrot.slane %v5107, 2
      %v5110 = vrot.slane %v4647, 7
      %v5111 = vsel %vm2242, %v5109, %v5110
      %v5112 = vrot.slane %v5110, 2
      %v5113 = vrot.slane %v4655, 7
      %v5114 = vsel %vm2242, %v5112, %v5113
      %v5115 = vrot.slane %v5113, 2
      %v5116 = vrot.slane %v4654, 7
      %v5117 = vsel %vm2242, %v5115, %v5116
      %v5118 = vrot.slane %v5116, 2
      %v5119 = vrot.slane %v4656, 7
      %v5120 = vsel %vm2242, %v5118, %v5119
      %v5121 = vrot.slane %v5119, 2
      %v5122 = vrot.slane %v4664, 7
      %v5123 = vsel %vm2242, %v5121, %v5122
      %v5124 = vrot.slane %v4672, 7
      %v5125 = vrot.slane %v5124, 2
      %v5126 = vrot.slane %v4671, 7
      %v5127 = vsel %vm2242, %v5125, %v5126
      %v5128 = vrot.slane %v5126, 2
      %v5129 = vrot.slane %v4673, 7
      %v5130 = vsel %vm2242, %v5128, %v5129
      %v5131 = vrot.slane %v5129, 2
      %v5132 = vrot.slane %v4681, 7
      %v5133 = vsel %vm2242, %v5131, %v5132
      %v5134 = vrot.slane %v5132, 2
      %v5135 = vrot.slane %v4689, 7
      %v5136 = vsel %vm2242, %v5134, %v5135
      %v5137 = vrot.slane %v5135, 2
      %v5138 = vrot.slane %v4688, 7
      %v5139 = vsel %vm2242, %v5137, %v5138
      %v5140 = vrot.slane %v5138, 2
      %v5141 = vrot.slane %v4690, 7
      %v5142 = vsel %vm2242, %v5140, %v5141
      %v5143 = vrot.slane %v5141, 2
      %v5144 = vrot.slane %v4697, 7
      %v5145 = vsel %vm2242, %v5143, %v5144
      %v5146 = vrot.slane %v5144, 2
      %v5147 = vrot.slane %v4698, 7
      %v5148 = vsel %vm2242, %v5146, %v5147
      %v5149 = vcombine.low %v4018, %v4026
      %v5150 = vcombine.low %v4025, %v4027
      %v5152 = vunpack.c.l.s4 1983009808
      %v5153 = vunpack.c.0.s8 %v5152
      %v5154 = vlaneseq
      %v5155 = vshrl.u32 %v5154, 7
      %v5156 = vsub.s32 %v5153, %v5155
      %v5157 = vrot.slane %v5149, %v5156
      %v5159 = vunpack.c.l.s4 1983009808
      %v5160 = vunpack.c.0.s8 %v5159
      %v5161 = vlaneseq
      %v5162 = vshrl.u32 %v5161, 7
      %v5163 = vsub.s32 %v5160, %v5162
      %v5164 = vrot.slane %v5150, %v5163
      %v5165 = vcombine.low %v5157, %v5164
      %v5166 = vcombine.low %v4035, %v4043
      %v5167 = vcombine.low %v4042, %v4044
      %v5169 = vunpack.c.l.s4 1983009808
      %v5170 = vunpack.c.0.s8 %v5169
      %v5171 = vlaneseq
      %v5172 = vshrl.u32 %v5171, 7
      %v5173 = vsub.s32 %v5170, %v5172
      %v5174 = vrot.slane %v5166, %v5173
      %v5176 = vunpack.c.l.s4 1983009808
      %v5177 = vunpack.c.0.s8 %v5176
      %v5178 = vlaneseq
      %v5179 = vshrl.u32 %v5178, 7
      %v5180 = vsub.s32 %v5177, %v5179
      %v5181 = vrot.slane %v5167, %v5180
      %v5182 = vcombine.low %v5174, %v5181
      %v5183 = vcombine.low %v4060, %v4059
      %v5184 = vcombine.low %v4061, %v4069
      %v5186 = vunpack.c.l.s4 1983009808
      %v5187 = vunpack.c.0.s8 %v5186
      %v5188 = vlaneseq
      %v5189 = vshrl.u32 %v5188, 7
      %v5190 = vsub.s32 %v5187, %v5189
      %v5191 = vrot.slane %v5183, %v5190
      %v5193 = vunpack.c.l.s4 1983009808
      %v5194 = vunpack.c.0.s8 %v5193
      %v5195 = vlaneseq
      %v5196 = vshrl.u32 %v5195, 7
      %v5197 = vsub.s32 %v5194, %v5196
      %v5198 = vrot.slane %v5184, %v5197
      %v5199 = vcombine.low %v5191, %v5198
      %v5200 = vcombine.low %v4077, %v4076
      %v5201 = vcombine.low %v4078, %v4086
      %v5203 = vunpack.c.l.s4 1983009808
      %v5204 = vunpack.c.0.s8 %v5203
      %v5205 = vlaneseq
      %v5206 = vshrl.u32 %v5205, 7
      %v5207 = vsub.s32 %v5204, %v5206
      %v5208 = vrot.slane %v5200, %v5207
      %v5210 = vunpack.c.l.s4 1983009808
      %v5211 = vunpack.c.0.s8 %v5210
      %v5212 = vlaneseq
      %v5213 = vshrl.u32 %v5212, 7
      %v5214 = vsub.s32 %v5211, %v5213
      %v5215 = vrot.slane %v5201, %v5214
      %v5216 = vcombine.low %v5208, %v5215
      %v5217 = vcombine.low %v4093, %v4095
      %v5218 = vcombine.low %v4103, %v4111
      %v5220 = vunpack.c.l.s4 1983009808
      %v5221 = vunpack.c.0.s8 %v5220
      %v5222 = vlaneseq
      %v5223 = vshrl.u32 %v5222, 7
      %v5224 = vsub.s32 %v5221, %v5223
      %v5225 = vrot.slane %v5217, %v5224
      %v5227 = vunpack.c.l.s4 1983009808
      %v5228 = vunpack.c.0.s8 %v5227
      %v5229 = vlaneseq
      %v5230 = vshrl.u32 %v5229, 7
      %v5231 = vsub.s32 %v5228, %v5230
      %v5232 = vrot.slane %v5218, %v5231
      %v5233 = vcombine.low %v5225, %v5232
      %v5234 = vcombine.low %v4110, %v4112
      %v5235 = vcombine.low %v4120, %v4128
      %v5237 = vunpack.c.l.s4 1983009808
      %v5238 = vunpack.c.0.s8 %v5237
      %v5239 = vlaneseq
      %v5240 = vshrl.u32 %v5239, 7
      %v5241 = vsub.s32 %v5238, %v5240
      %v5242 = vrot.slane %v5234, %v5241
      %v5244 = vunpack.c.l.s4 1983009808
      %v5245 = vunpack.c.0.s8 %v5244
      %v5246 = vlaneseq
      %v5247 = vshrl.u32 %v5246, 7
      %v5248 = vsub.s32 %v5245, %v5247
      %v5249 = vrot.slane %v5235, %v5248
      %v5250 = vcombine.low %v5242, %v5249
      %v5251 = vcombine.low %v4129, %v4137
      %v5252 = vcombine.low %v4145, %v4144
      %v5254 = vunpack.c.l.s4 1983009808
      %v5255 = vunpack.c.0.s8 %v5254
      %v5256 = vlaneseq
      %v5257 = vshrl.u32 %v5256, 7
      %v5258 = vsub.s32 %v5255, %v5257
      %v5259 = vrot.slane %v5251, %v5258
      %v5261 = vunpack.c.l.s4 1983009808
      %v5262 = vunpack.c.0.s8 %v5261
      %v5263 = vlaneseq
      %v5264 = vshrl.u32 %v5263, 7
      %v5265 = vsub.s32 %v5262, %v5264
      %v5266 = vrot.slane %v5252, %v5265
      %v5267 = vcombine.low %v5259, %v5266
      %v5268 = vcombine.low %v4146, %v4154
      %v5269 = vcombine.low %v4162, %v4161
      %v5271 = vunpack.c.l.s4 1983009808
      %v5272 = vunpack.c.0.s8 %v5271
      %v5273 = vlaneseq
      %v5274 = vshrl.u32 %v5273, 7
      %v5275 = vsub.s32 %v5272, %v5274
      %v5276 = vrot.slane %v5268, %v5275
      %v5278 = vunpack.c.l.s4 1983009808
      %v5279 = vunpack.c.0.s8 %v5278
      %v5280 = vlaneseq
      %v5281 = vshrl.u32 %v5280, 7
      %v5282 = vsub.s32 %v5279, %v5281
      %v5283 = vrot.slane %v5269, %v5282
      %v5284 = vcombine.low %v5276, %v5283
      %v5285 = vcombine.low %v4171, %v4179
      %v5286 = vcombine.low %v4178, %v4180
      %v5288 = vunpack.c.l.s4 1983009808
      %v5289 = vunpack.c.0.s8 %v5288
      %v5290 = vlaneseq
      %v5291 = vshrl.u32 %v5290, 7
      %v5292 = vsub.s32 %v5289, %v5291
      %v5293 = vrot.slane %v5285, %v5292
      %v5295 = vunpack.c.l.s4 1983009808
      %v5296 = vunpack.c.0.s8 %v5295
      %v5297 = vlaneseq
      %v5298 = vshrl.u32 %v5297, 7
      %v5299 = vsub.s32 %v5296, %v5298
      %v5300 = vrot.slane %v5286, %v5299
      %v5301 = vcombine.low %v5293, %v5300
      %v5302 = vcombine.low %v4188, %v4196
      %v5303 = vcombine.low %v4195, %v4197
      %v5305 = vunpack.c.l.s4 1983009808
      %v5306 = vunpack.c.0.s8 %v5305
      %v5307 = vlaneseq
      %v5308 = vshrl.u32 %v5307, 7
      %v5309 = vsub.s32 %v5306, %v5308
      %v5310 = vrot.slane %v5302, %v5309
      %v5312 = vunpack.c.l.s4 1983009808
      %v5313 = vunpack.c.0.s8 %v5312
      %v5314 = vlaneseq
      %v5315 = vshrl.u32 %v5314, 7
      %v5316 = vsub.s32 %v5313, %v5315
      %v5317 = vrot.slane %v5303, %v5316
      %v5318 = vcombine.low %v5310, %v5317
      %v5319 = vcombine.low %v4213, %v4212
      %v5320 = vcombine.low %v4214, %v4222
      %v5322 = vunpack.c.l.s4 1983009808
      %v5323 = vunpack.c.0.s8 %v5322
      %v5324 = vlaneseq
      %v5325 = vshrl.u32 %v5324, 7
      %v5326 = vsub.s32 %v5323, %v5325
      %v5327 = vrot.slane %v5319, %v5326
      %v5329 = vunpack.c.l.s4 1983009808
      %v5330 = vunpack.c.0.s8 %v5329
      %v5331 = vlaneseq
      %v5332 = vshrl.u32 %v5331, 7
      %v5333 = vsub.s32 %v5330, %v5332
      %v5334 = vrot.slane %v5320, %v5333
      %v5335 = vcombine.low %v5327, %v5334
      %v5336 = vcombine.low %v4230, %v4229
      %v5337 = vcombine.low %v4231, %v4239
      %v5339 = vunpack.c.l.s4 1983009808
      %v5340 = vunpack.c.0.s8 %v5339
      %v5341 = vlaneseq
      %v5342 = vshrl.u32 %v5341, 7
      %v5343 = vsub.s32 %v5340, %v5342
      %v5344 = vrot.slane %v5336, %v5343
      %v5346 = vunpack.c.l.s4 1983009808
      %v5347 = vunpack.c.0.s8 %v5346
      %v5348 = vlaneseq
      %v5349 = vshrl.u32 %v5348, 7
      %v5350 = vsub.s32 %v5347, %v5349
      %v5351 = vrot.slane %v5337, %v5350
      %v5352 = vcombine.low %v5344, %v5351
      %v5353 = vcombine.low %v4246, %v4248
      %v5354 = vcombine.low %v4256, %v4264
      %v5356 = vunpack.c.l.s4 1983009808
      %v5357 = vunpack.c.0.s8 %v5356
      %v5358 = vlaneseq
      %v5359 = vshrl.u32 %v5358, 7
      %v5360 = vsub.s32 %v5357, %v5359
      %v5361 = vrot.slane %v5353, %v5360
      %v5363 = vunpack.c.l.s4 1983009808
      %v5364 = vunpack.c.0.s8 %v5363
      %v5365 = vlaneseq
      %v5366 = vshrl.u32 %v5365, 7
      %v5367 = vsub.s32 %v5364, %v5366
      %v5368 = vrot.slane %v5354, %v5367
      %v5369 = vcombine.low %v5361, %v5368
      %v5370 = vcombine.low %v4263, %v4265
      %v5371 = vcombine.low %v4273, %v4281
      %v5373 = vunpack.c.l.s4 1983009808
      %v5374 = vunpack.c.0.s8 %v5373
      %v5375 = vlaneseq
      %v5376 = vshrl.u32 %v5375, 7
      %v5377 = vsub.s32 %v5374, %v5376
      %v5378 = vrot.slane %v5370, %v5377
      %v5380 = vunpack.c.l.s4 1983009808
      %v5381 = vunpack.c.0.s8 %v5380
      %v5382 = vlaneseq
      %v5383 = vshrl.u32 %v5382, 7
      %v5384 = vsub.s32 %v5381, %v5383
      %v5385 = vrot.slane %v5371, %v5384
      %v5386 = vcombine.low %v5378, %v5385
      %v5387 = vcombine.low %v4282, %v4290
      %v5388 = vcombine.low %v4298, %v4297
      %v5390 = vunpack.c.l.s4 1983009808
      %v5391 = vunpack.c.0.s8 %v5390
      %v5392 = vlaneseq
      %v5393 = vshrl.u32 %v5392, 7
      %v5394 = vsub.s32 %v5391, %v5393
      %v5395 = vrot.slane %v5387, %v5394
      %v5397 = vunpack.c.l.s4 1983009808
      %v5398 = vunpack.c.0.s8 %v5397
      %v5399 = vlaneseq
      %v5400 = vshrl.u32 %v5399, 7
      %v5401 = vsub.s32 %v5398, %v5400
      %v5402 = vrot.slane %v5388, %v5401
      %v5403 = vcombine.low %v5395, %v5402
      %v5404 = vcombine.low %v4299, %v4307
      %v5405 = vcombine.low %v4315, %v4314
      %v5407 = vunpack.c.l.s4 1983009808
      %v5408 = vunpack.c.0.s8 %v5407
      %v5409 = vlaneseq
      %v5410 = vshrl.u32 %v5409, 7
      %v5411 = vsub.s32 %v5408, %v5410
      %v5412 = vrot.slane %v5404, %v5411
      %v5414 = vunpack.c.l.s4 1983009808
      %v5415 = vunpack.c.0.s8 %v5414
      %v5416 = vlaneseq
      %v5417 = vshrl.u32 %v5416, 7
      %v5418 = vsub.s32 %v5415, %v5417
      %v5419 = vrot.slane %v5405, %v5418
      %v5420 = vcombine.low %v5412, %v5419
      %v5421 = vcombine.low %v4324, %v4332
      %v5422 = vcombine.low %v4331, %v4333
      %v5424 = vunpack.c.l.s4 1983009808
      %v5425 = vunpack.c.0.s8 %v5424
      %v5426 = vlaneseq
      %v5427 = vshrl.u32 %v5426, 7
      %v5428 = vsub.s32 %v5425, %v5427
      %v5429 = vrot.slane %v5421, %v5428
      %v5431 = vunpack.c.l.s4 1983009808
      %v5432 = vunpack.c.0.s8 %v5431
      %v5433 = vlaneseq
      %v5434 = vshrl.u32 %v5433, 7
      %v5435 = vsub.s32 %v5432, %v5434
      %v5436 = vrot.slane %v5422, %v5435
      %v5437 = vcombine.low %v5429, %v5436
      %v5438 = vcombine.low %v4341, %v4349
      %v5439 = vcombine.low %v4348, %v4350
      %v5441 = vunpack.c.l.s4 1983009808
      %v5442 = vunpack.c.0.s8 %v5441
      %v5443 = vlaneseq
      %v5444 = vshrl.u32 %v5443, 7
      %v5445 = vsub.s32 %v5442, %v5444
      %v5446 = vrot.slane %v5438, %v5445
      %v5448 = vunpack.c.l.s4 1983009808
      %v5449 = vunpack.c.0.s8 %v5448
      %v5450 = vlaneseq
      %v5451 = vshrl.u32 %v5450, 7
      %v5452 = vsub.s32 %v5449, %v5451
      %v5453 = vrot.slane %v5439, %v5452
      %v5454 = vcombine.low %v5446, %v5453
      %v5455 = vcombine.low %v4366, %v4365
      %v5456 = vcombine.low %v4367, %v4375
      %v5458 = vunpack.c.l.s4 1983009808
      %v5459 = vunpack.c.0.s8 %v5458
      %v5460 = vlaneseq
      %v5461 = vshrl.u32 %v5460, 7
      %v5462 = vsub.s32 %v5459, %v5461
      %v5463 = vrot.slane %v5455, %v5462
      %v5465 = vunpack.c.l.s4 1983009808
      %v5466 = vunpack.c.0.s8 %v5465
      %v5467 = vlaneseq
      %v5468 = vshrl.u32 %v5467, 7
      %v5469 = vsub.s32 %v5466, %v5468
      %v5470 = vrot.slane %v5456, %v5469
      %v5471 = vcombine.low %v5463, %v5470
      %v5472 = vcombine.low %v4383, %v4382
      %v5473 = vcombine.low %v4384, %v4392
      %v5475 = vunpack.c.l.s4 1983009808
      %v5476 = vunpack.c.0.s8 %v5475
      %v5477 = vlaneseq
      %v5478 = vshrl.u32 %v5477, 7
      %v5479 = vsub.s32 %v5476, %v5478
      %v5480 = vrot.slane %v5472, %v5479
      %v5482 = vunpack.c.l.s4 1983009808
      %v5483 = vunpack.c.0.s8 %v5482
      %v5484 = vlaneseq
      %v5485 = vshrl.u32 %v5484, 7
      %v5486 = vsub.s32 %v5483, %v5485
      %v5487 = vrot.slane %v5473, %v5486
      %v5488 = vcombine.low %v5480, %v5487
      %v5489 = vcombine.low %v4399, %v4401
      %v5490 = vcombine.low %v4409, %v4417
      %v5492 = vunpack.c.l.s4 1983009808
      %v5493 = vunpack.c.0.s8 %v5492
      %v5494 = vlaneseq
      %v5495 = vshrl.u32 %v5494, 7
      %v5496 = vsub.s32 %v5493, %v5495
      %v5497 = vrot.slane %v5489, %v5496
      %v5499 = vunpack.c.l.s4 1983009808
      %v5500 = vunpack.c.0.s8 %v5499
      %v5501 = vlaneseq
      %v5502 = vshrl.u32 %v5501, 7
      %v5503 = vsub.s32 %v5500, %v5502
      %v5504 = vrot.slane %v5490, %v5503
      %v5505 = vcombine.low %v5497, %v5504
      %v5506 = vcombine.low %v4416, %v4418
      %v5507 = vcombine.low %v4426, %v4434
      %v5509 = vunpack.c.l.s4 1983009808
      %v5510 = vunpack.c.0.s8 %v5509
      %v5511 = vlaneseq
      %v5512 = vshrl.u32 %v5511, 7
      %v5513 = vsub.s32 %v5510, %v5512
      %v5514 = vrot.slane %v5506, %v5513
      %v5516 = vunpack.c.l.s4 1983009808
      %v5517 = vunpack.c.0.s8 %v5516
      %v5518 = vlaneseq
      %v5519 = vshrl.u32 %v5518, 7
      %v5520 = vsub.s32 %v5517, %v5519
      %v5521 = vrot.slane %v5507, %v5520
      %v5522 = vcombine.low %v5514, %v5521
      %v5523 = vcombine.low %v4435, %v4443
      %v5524 = vcombine.low %v4451, %v4450
      %v5526 = vunpack.c.l.s4 1983009808
      %v5527 = vunpack.c.0.s8 %v5526
      %v5528 = vlaneseq
      %v5529 = vshrl.u32 %v5528, 7
      %v5530 = vsub.s32 %v5527, %v5529
      %v5531 = vrot.slane %v5523, %v5530
      %v5533 = vunpack.c.l.s4 1983009808
      %v5534 = vunpack.c.0.s8 %v5533
      %v5535 = vlaneseq
      %v5536 = vshrl.u32 %v5535, 7
      %v5537 = vsub.s32 %v5534, %v5536
      %v5538 = vrot.slane %v5524, %v5537
      %v5539 = vcombine.low %v5531, %v5538
      %v5540 = vcombine.low %v4452, %v4460
      %v5541 = vcombine.low %v4468, %v4467
      %v5543 = vunpack.c.l.s4 1983009808
      %v5544 = vunpack.c.0.s8 %v5543
      %v5545 = vlaneseq
      %v5546 = vshrl.u32 %v5545, 7
      %v5547 = vsub.s32 %v5544, %v5546
      %v5548 = vrot.slane %v5540, %v5547
      %v5550 = vunpack.c.l.s4 1983009808
      %v5551 = vunpack.c.0.s8 %v5550
      %v5552 = vlaneseq
      %v5553 = vshrl.u32 %v5552, 7
      %v5554 = vsub.s32 %v5551, %v5553
      %v5555 = vrot.slane %v5541, %v5554
      %v5556 = vcombine.low %v5548, %v5555
      %v5557 = vcombine.low %v4477, %v4485
      %v5558 = vcombine.low %v4484, %v4486
      %v5560 = vunpack.c.l.s4 1983009808
      %v5561 = vunpack.c.0.s8 %v5560
      %v5562 = vlaneseq
      %v5563 = vshrl.u32 %v5562, 7
      %v5564 = vsub.s32 %v5561, %v5563
      %v5565 = vrot.slane %v5557, %v5564
      %v5567 = vunpack.c.l.s4 1983009808
      %v5568 = vunpack.c.0.s8 %v5567
      %v5569 = vlaneseq
      %v5570 = vshrl.u32 %v5569, 7
      %v5571 = vsub.s32 %v5568, %v5570
      %v5572 = vrot.slane %v5558, %v5571
      %v5573 = vcombine.low %v5565, %v5572
      %v5574 = vcombine.low %v4494, %v4502
      %v5575 = vcombine.low %v4501, %v4503
      %v5577 = vunpack.c.l.s4 1983009808
      %v5578 = vunpack.c.0.s8 %v5577
      %v5579 = vlaneseq
      %v5580 = vshrl.u32 %v5579, 7
      %v5581 = vsub.s32 %v5578, %v5580
      %v5582 = vrot.slane %v5574, %v5581
      %v5584 = vunpack.c.l.s4 1983009808
      %v5585 = vunpack.c.0.s8 %v5584
      %v5586 = vlaneseq
      %v5587 = vshrl.u32 %v5586, 7
      %v5588 = vsub.s32 %v5585, %v5587
      %v5589 = vrot.slane %v5575, %v5588
      %v5590 = vcombine.low %v5582, %v5589
      %v5591 = vcombine.low %v4519, %v4518
      %v5592 = vcombine.low %v4520, %v4528
      %v5594 = vunpack.c.l.s4 1983009808
      %v5595 = vunpack.c.0.s8 %v5594
      %v5596 = vlaneseq
      %v5597 = vshrl.u32 %v5596, 7
      %v5598 = vsub.s32 %v5595, %v5597
      %v5599 = vrot.slane %v5591, %v5598
      %v5601 = vunpack.c.l.s4 1983009808
      %v5602 = vunpack.c.0.s8 %v5601
      %v5603 = vlaneseq
      %v5604 = vshrl.u32 %v5603, 7
      %v5605 = vsub.s32 %v5602, %v5604
      %v5606 = vrot.slane %v5592, %v5605
      %v5607 = vcombine.low %v5599, %v5606
      %v5608 = vcombine.low %v4536, %v4535
      %v5609 = vcombine.low %v4537, %v4545
      %v5611 = vunpack.c.l.s4 1983009808
      %v5612 = vunpack.c.0.s8 %v5611
      %v5613 = vlaneseq
      %v5614 = vshrl.u32 %v5613, 7
      %v5615 = vsub.s32 %v5612, %v5614
      %v5616 = vrot.slane %v5608, %v5615
      %v5618 = vunpack.c.l.s4 1983009808
      %v5619 = vunpack.c.0.s8 %v5618
      %v5620 = vlaneseq
      %v5621 = vshrl.u32 %v5620, 7
      %v5622 = vsub.s32 %v5619, %v5621
      %v5623 = vrot.slane %v5609, %v5622
      %v5624 = vcombine.low %v5616, %v5623
      %v5625 = vcombine.low %v4552, %v4554
      %v5626 = vcombine.low %v4562, %v4570
      %v5628 = vunpack.c.l.s4 1983009808
      %v5629 = vunpack.c.0.s8 %v5628
      %v5630 = vlaneseq
      %v5631 = vshrl.u32 %v5630, 7
      %v5632 = vsub.s32 %v5629, %v5631
      %v5633 = vrot.slane %v5625, %v5632
      %v5635 = vunpack.c.l.s4 1983009808
      %v5636 = vunpack.c.0.s8 %v5635
      %v5637 = vlaneseq
      %v5638 = vshrl.u32 %v5637, 7
      %v5639 = vsub.s32 %v5636, %v5638
      %v5640 = vrot.slane %v5626, %v5639
      %v5641 = vcombine.low %v5633, %v5640
      %v5642 = vcombine.low %v4569, %v4571
      %v5643 = vcombine.low %v4579, %v4587
      %v5645 = vunpack.c.l.s4 1983009808
      %v5646 = vunpack.c.0.s8 %v5645
      %v5647 = vlaneseq
      %v5648 = vshrl.u32 %v5647, 7
      %v5649 = vsub.s32 %v5646, %v5648
      %v5650 = vrot.slane %v5642, %v5649
      %v5652 = vunpack.c.l.s4 1983009808
      %v5653 = vunpack.c.0.s8 %v5652
      %v5654 = vlaneseq
      %v5655 = vshrl.u32 %v5654, 7
      %v5656 = vsub.s32 %v5653, %v5655
      %v5657 = vrot.slane %v5643, %v5656
      %v5658 = vcombine.low %v5650, %v5657
      %v5659 = vcombine.low %v4588, %v4596
      %v5660 = vcombine.low %v4604, %v4603
      %v5662 = vunpack.c.l.s4 1983009808
      %v5663 = vunpack.c.0.s8 %v5662
      %v5664 = vlaneseq
      %v5665 = vshrl.u32 %v5664, 7
      %v5666 = vsub.s32 %v5663, %v5665
      %v5667 = vrot.slane %v5659, %v5666
      %v5669 = vunpack.c.l.s4 1983009808
      %v5670 = vunpack.c.0.s8 %v5669
      %v5671 = vlaneseq
      %v5672 = vshrl.u32 %v5671, 7
      %v5673 = vsub.s32 %v5670, %v5672
      %v5674 = vrot.slane %v5660, %v5673
      %v5675 = vcombine.low %v5667, %v5674
      %v5676 = vcombine.low %v4605, %v4613
      %v5677 = vcombine.low %v4621, %v4620
      %v5679 = vunpack.c.l.s4 1983009808
      %v5680 = vunpack.c.0.s8 %v5679
      %v5681 = vlaneseq
      %v5682 = vshrl.u32 %v5681, 7
      %v5683 = vsub.s32 %v5680, %v5682
      %v5684 = vrot.slane %v5676, %v5683
      %v5686 = vunpack.c.l.s4 1983009808
      %v5687 = vunpack.c.0.s8 %v5686
      %v5688 = vlaneseq
      %v5689 = vshrl.u32 %v5688, 7
      %v5690 = vsub.s32 %v5687, %v5689
      %v5691 = vrot.slane %v5677, %v5690
      %v5692 = vcombine.low %v5684, %v5691
      %v5725 = vcombine.low %v4702, %v4705
      %v5726 = vcombine.low %v4708, %v4711
      %v5728 = vunpack.c.l.s4 1983009808
      %v5729 = vunpack.c.0.s8 %v5728
      %v5730 = vlaneseq
      %v5731 = vshrl.u32 %v5730, 7
      %v5732 = vsub.s32 %v5729, %v5731
      %v5733 = vrot.slane %v5725, %v5732
      %v5735 = vunpack.c.l.s4 1983009808
      %v5736 = vunpack.c.0.s8 %v5735
      %v5737 = vlaneseq
      %v5738 = vshrl.u32 %v5737, 7
      %v5739 = vsub.s32 %v5736, %v5738
      %v5740 = vrot.slane %v5726, %v5739
      %v5741 = vcombine.low %v5733, %v5740
      %v5742 = vcombine.low %v4714, %v4717
      %v5743 = vcombine.low %v4720, %v4723
      %v5745 = vunpack.c.l.s4 1983009808
      %v5746 = vunpack.c.0.s8 %v5745
      %v5747 = vlaneseq
      %v5748 = vshrl.u32 %v5747, 7
      %v5749 = vsub.s32 %v5746, %v5748
      %v5750 = vrot.slane %v5742, %v5749
      %v5752 = vunpack.c.l.s4 1983009808
      %v5753 = vunpack.c.0.s8 %v5752
      %v5754 = vlaneseq
      %v5755 = vshrl.u32 %v5754, 7
      %v5756 = vsub.s32 %v5753, %v5755
      %v5757 = vrot.slane %v5743, %v5756
      %v5758 = vcombine.low %v5750, %v5757
      %v5759 = vcombine.low %v4727, %v4730
      %v5760 = vcombine.low %v4733, %v4736
      %v5762 = vunpack.c.l.s4 1983009808
      %v5763 = vunpack.c.0.s8 %v5762
      %v5764 = vlaneseq
      %v5765 = vshrl.u32 %v5764, 7
      %v5766 = vsub.s32 %v5763, %v5765
      %v5767 = vrot.slane %v5759, %v5766
      %v5769 = vunpack.c.l.s4 1983009808
      %v5770 = vunpack.c.0.s8 %v5769
      %v5771 = vlaneseq
      %v5772 = vshrl.u32 %v5771, 7
      %v5773 = vsub.s32 %v5770, %v5772
      %v5774 = vrot.slane %v5760, %v5773
      %v5775 = vcombine.low %v5767, %v5774
      %v5776 = vcombine.low %v4739, %v4742
      %v5777 = vcombine.low %v4745, %v4748
      %v5779 = vunpack.c.l.s4 1983009808
      %v5780 = vunpack.c.0.s8 %v5779
      %v5781 = vlaneseq
      %v5782 = vshrl.u32 %v5781, 7
      %v5783 = vsub.s32 %v5780, %v5782
      %v5784 = vrot.slane %v5776, %v5783
      %v5786 = vunpack.c.l.s4 1983009808
      %v5787 = vunpack.c.0.s8 %v5786
      %v5788 = vlaneseq
      %v5789 = vshrl.u32 %v5788, 7
      %v5790 = vsub.s32 %v5787, %v5789
      %v5791 = vrot.slane %v5777, %v5790
      %v5792 = vcombine.low %v5784, %v5791
      %v5793 = vcombine.low %v4752, %v4755
      %v5794 = vcombine.low %v4758, %v4761
      %v5796 = vunpack.c.l.s4 1983009808
      %v5797 = vunpack.c.0.s8 %v5796
      %v5798 = vlaneseq
      %v5799 = vshrl.u32 %v5798, 7
      %v5800 = vsub.s32 %v5797, %v5799
      %v5801 = vrot.slane %v5793, %v5800
      %v5803 = vunpack.c.l.s4 1983009808
      %v5804 = vunpack.c.0.s8 %v5803
      %v5805 = vlaneseq
      %v5806 = vshrl.u32 %v5805, 7
      %v5807 = vsub.s32 %v5804, %v5806
      %v5808 = vrot.slane %v5794, %v5807
      %v5809 = vcombine.low %v5801, %v5808
      %v5810 = vcombine.low %v4764, %v4767
      %v5811 = vcombine.low %v4770, %v4773
      %v5813 = vunpack.c.l.s4 1983009808
      %v5814 = vunpack.c.0.s8 %v5813
      %v5815 = vlaneseq
      %v5816 = vshrl.u32 %v5815, 7
      %v5817 = vsub.s32 %v5814, %v5816
      %v5818 = vrot.slane %v5810, %v5817
      %v5820 = vunpack.c.l.s4 1983009808
      %v5821 = vunpack.c.0.s8 %v5820
      %v5822 = vlaneseq
      %v5823 = vshrl.u32 %v5822, 7
      %v5824 = vsub.s32 %v5821, %v5823
      %v5825 = vrot.slane %v5811, %v5824
      %v5826 = vcombine.low %v5818, %v5825
      %v5827 = vcombine.low %v4777, %v4780
      %v5828 = vcombine.low %v4783, %v4786
      %v5830 = vunpack.c.l.s4 1983009808
      %v5831 = vunpack.c.0.s8 %v5830
      %v5832 = vlaneseq
      %v5833 = vshrl.u32 %v5832, 7
      %v5834 = vsub.s32 %v5831, %v5833
      %v5835 = vrot.slane %v5827, %v5834
      %v5837 = vunpack.c.l.s4 1983009808
      %v5838 = vunpack.c.0.s8 %v5837
      %v5839 = vlaneseq
      %v5840 = vshrl.u32 %v5839, 7
      %v5841 = vsub.s32 %v5838, %v5840
      %v5842 = vrot.slane %v5828, %v5841
      %v5843 = vcombine.low %v5835, %v5842
      %v5844 = vcombine.low %v4789, %v4792
      %v5845 = vcombine.low %v4795, %v4798
      %v5847 = vunpack.c.l.s4 1983009808
      %v5848 = vunpack.c.0.s8 %v5847
      %v5849 = vlaneseq
      %v5850 = vshrl.u32 %v5849, 7
      %v5851 = vsub.s32 %v5848, %v5850
      %v5852 = vrot.slane %v5844, %v5851
      %v5854 = vunpack.c.l.s4 1983009808
      %v5855 = vunpack.c.0.s8 %v5854
      %v5856 = vlaneseq
      %v5857 = vshrl.u32 %v5856, 7
      %v5858 = vsub.s32 %v5855, %v5857
      %v5859 = vrot.slane %v5845, %v5858
      %v5860 = vcombine.low %v5852, %v5859
      %v5861 = vcombine.low %v4802, %v4805
      %v5862 = vcombine.low %v4808, %v4811
      %v5864 = vunpack.c.l.s4 1983009808
      %v5865 = vunpack.c.0.s8 %v5864
      %v5866 = vlaneseq
      %v5867 = vshrl.u32 %v5866, 7
      %v5868 = vsub.s32 %v5865, %v5867
      %v5869 = vrot.slane %v5861, %v5868
      %v5871 = vunpack.c.l.s4 1983009808
      %v5872 = vunpack.c.0.s8 %v5871
      %v5873 = vlaneseq
      %v5874 = vshrl.u32 %v5873, 7
      %v5875 = vsub.s32 %v5872, %v5874
      %v5876 = vrot.slane %v5862, %v5875
      %v5877 = vcombine.low %v5869, %v5876
      %v5878 = vcombine.low %v4814, %v4817
      %v5879 = vcombine.low %v4820, %v4823
      %v5881 = vunpack.c.l.s4 1983009808
      %v5882 = vunpack.c.0.s8 %v5881
      %v5883 = vlaneseq
      %v5884 = vshrl.u32 %v5883, 7
      %v5885 = vsub.s32 %v5882, %v5884
      %v5886 = vrot.slane %v5878, %v5885
      %v5888 = vunpack.c.l.s4 1983009808
      %v5889 = vunpack.c.0.s8 %v5888
      %v5890 = vlaneseq
      %v5891 = vshrl.u32 %v5890, 7
      %v5892 = vsub.s32 %v5889, %v5891
      %v5893 = vrot.slane %v5879, %v5892
      %v5894 = vcombine.low %v5886, %v5893
      %v5895 = vcombine.low %v4827, %v4830
      %v5896 = vcombine.low %v4833, %v4836
      %v5898 = vunpack.c.l.s4 1983009808
      %v5899 = vunpack.c.0.s8 %v5898
      %v5900 = vlaneseq
      %v5901 = vshrl.u32 %v5900, 7
      %v5902 = vsub.s32 %v5899, %v5901
      %v5903 = vrot.slane %v5895, %v5902
      %v5905 = vunpack.c.l.s4 1983009808
      %v5906 = vunpack.c.0.s8 %v5905
      %v5907 = vlaneseq
      %v5908 = vshrl.u32 %v5907, 7
      %v5909 = vsub.s32 %v5906, %v5908
      %v5910 = vrot.slane %v5896, %v5909
      %v5911 = vcombine.low %v5903, %v5910
      %v5912 = vcombine.low %v4839, %v4842
      %v5913 = vcombine.low %v4845, %v4848
      %v5915 = vunpack.c.l.s4 1983009808
      %v5916 = vunpack.c.0.s8 %v5915
      %v5917 = vlaneseq
      %v5918 = vshrl.u32 %v5917, 7
      %v5919 = vsub.s32 %v5916, %v5918
      %v5920 = vrot.slane %v5912, %v5919
      %v5922 = vunpack.c.l.s4 1983009808
      %v5923 = vunpack.c.0.s8 %v5922
      %v5924 = vlaneseq
      %v5925 = vshrl.u32 %v5924, 7
      %v5926 = vsub.s32 %v5923, %v5925
      %v5927 = vrot.slane %v5913, %v5926
      %v5928 = vcombine.low %v5920, %v5927
      %v5929 = vcombine.low %v4852, %v4855
      %v5930 = vcombine.low %v4858, %v4861
      %v5932 = vunpack.c.l.s4 1983009808
      %v5933 = vunpack.c.0.s8 %v5932
      %v5934 = vlaneseq
      %v5935 = vshrl.u32 %v5934, 7
      %v5936 = vsub.s32 %v5933, %v5935
      %v5937 = vrot.slane %v5929, %v5936
      %v5939 = vunpack.c.l.s4 1983009808
      %v5940 = vunpack.c.0.s8 %v5939
      %v5941 = vlaneseq
      %v5942 = vshrl.u32 %v5941, 7
      %v5943 = vsub.s32 %v5940, %v5942
      %v5944 = vrot.slane %v5930, %v5943
      %v5945 = vcombine.low %v5937, %v5944
      %v5946 = vcombine.low %v4864, %v4867
      %v5947 = vcombine.low %v4870, %v4873
      %v5949 = vunpack.c.l.s4 1983009808
      %v5950 = vunpack.c.0.s8 %v5949
      %v5951 = vlaneseq
      %v5952 = vshrl.u32 %v5951, 7
      %v5953 = vsub.s32 %v5950, %v5952
      %v5954 = vrot.slane %v5946, %v5953
      %v5956 = vunpack.c.l.s4 1983009808
      %v5957 = vunpack.c.0.s8 %v5956
      %v5958 = vlaneseq
      %v5959 = vshrl.u32 %v5958, 7
      %v5960 = vsub.s32 %v5957, %v5959
      %v5961 = vrot.slane %v5947, %v5960
      %v5962 = vcombine.low %v5954, %v5961
      %v5963 = vcombine.low %v4877, %v4880
      %v5964 = vcombine.low %v4883, %v4886
      %v5966 = vunpack.c.l.s4 1983009808
      %v5967 = vunpack.c.0.s8 %v5966
      %v5968 = vlaneseq
      %v5969 = vshrl.u32 %v5968, 7
      %v5970 = vsub.s32 %v5967, %v5969
      %v5971 = vrot.slane %v5963, %v5970
      %v5973 = vunpack.c.l.s4 1983009808
      %v5974 = vunpack.c.0.s8 %v5973
      %v5975 = vlaneseq
      %v5976 = vshrl.u32 %v5975, 7
      %v5977 = vsub.s32 %v5974, %v5976
      %v5978 = vrot.slane %v5964, %v5977
      %v5979 = vcombine.low %v5971, %v5978
      %v5980 = vcombine.low %v4889, %v4892
      %v5981 = vcombine.low %v4895, %v4898
      %v5983 = vunpack.c.l.s4 1983009808
      %v5984 = vunpack.c.0.s8 %v5983
      %v5985 = vlaneseq
      %v5986 = vshrl.u32 %v5985, 7
      %v5987 = vsub.s32 %v5984, %v5986
      %v5988 = vrot.slane %v5980, %v5987
      %v5990 = vunpack.c.l.s4 1983009808
      %v5991 = vunpack.c.0.s8 %v5990
      %v5992 = vlaneseq
      %v5993 = vshrl.u32 %v5992, 7
      %v5994 = vsub.s32 %v5991, %v5993
      %v5995 = vrot.slane %v5981, %v5994
      %v5996 = vcombine.low %v5988, %v5995
      %v5997 = vcombine.low %v4902, %v4905
      %v5998 = vcombine.low %v4908, %v4911
      %v6000 = vunpack.c.l.s4 1983009808
      %v6001 = vunpack.c.0.s8 %v6000
      %v6002 = vlaneseq
      %v6003 = vshrl.u32 %v6002, 7
      %v6004 = vsub.s32 %v6001, %v6003
      %v6005 = vrot.slane %v5997, %v6004
      %v6007 = vunpack.c.l.s4 1983009808
      %v6008 = vunpack.c.0.s8 %v6007
      %v6009 = vlaneseq
      %v6010 = vshrl.u32 %v6009, 7
      %v6011 = vsub.s32 %v6008, %v6010
      %v6012 = vrot.slane %v5998, %v6011
      %v6013 = vcombine.low %v6005, %v6012
      %v6014 = vcombine.low %v4914, %v4917
      %v6015 = vcombine.low %v4920, %v4923
      %v6017 = vunpack.c.l.s4 1983009808
      %v6018 = vunpack.c.0.s8 %v6017
      %v6019 = vlaneseq
      %v6020 = vshrl.u32 %v6019, 7
      %v6021 = vsub.s32 %v6018, %v6020
      %v6022 = vrot.slane %v6014, %v6021
      %v6024 = vunpack.c.l.s4 1983009808
      %v6025 = vunpack.c.0.s8 %v6024
      %v6026 = vlaneseq
      %v6027 = vshrl.u32 %v6026, 7
      %v6028 = vsub.s32 %v6025, %v6027
      %v6029 = vrot.slane %v6015, %v6028
      %v6030 = vcombine.low %v6022, %v6029
      %v6031 = vcombine.low %v4927, %v4930
      %v6032 = vcombine.low %v4933, %v4936
      %v6034 = vunpack.c.l.s4 1983009808
      %v6035 = vunpack.c.0.s8 %v6034
      %v6036 = vlaneseq
      %v6037 = vshrl.u32 %v6036, 7
      %v6038 = vsub.s32 %v6035, %v6037
      %v6039 = vrot.slane %v6031, %v6038
      %v6041 = vunpack.c.l.s4 1983009808
      %v6042 = vunpack.c.0.s8 %v6041
      %v6043 = vlaneseq
      %v6044 = vshrl.u32 %v6043, 7
      %v6045 = vsub.s32 %v6042, %v6044
      %v6046 = vrot.slane %v6032, %v6045
      %v6047 = vcombine.low %v6039, %v6046
      %v6048 = vcombine.low %v4939, %v4942
      %v6049 = vcombine.low %v4945, %v4948
      %v6051 = vunpack.c.l.s4 1983009808
      %v6052 = vunpack.c.0.s8 %v6051
      %v6053 = vlaneseq
      %v6054 = vshrl.u32 %v6053, 7
      %v6055 = vsub.s32 %v6052, %v6054
      %v6056 = vrot.slane %v6048, %v6055
      %v6058 = vunpack.c.l.s4 1983009808
      %v6059 = vunpack.c.0.s8 %v6058
      %v6060 = vlaneseq
      %v6061 = vshrl.u32 %v6060, 7
      %v6062 = vsub.s32 %v6059, %v6061
      %v6063 = vrot.slane %v6049, %v6062
      %v6064 = vcombine.low %v6056, %v6063
      %v6065 = vcombine.low %v4952, %v4955
      %v6066 = vcombine.low %v4958, %v4961
      %v6068 = vunpack.c.l.s4 1983009808
      %v6069 = vunpack.c.0.s8 %v6068
      %v6070 = vlaneseq
      %v6071 = vshrl.u32 %v6070, 7
      %v6072 = vsub.s32 %v6069, %v6071
      %v6073 = vrot.slane %v6065, %v6072
      %v6075 = vunpack.c.l.s4 1983009808
      %v6076 = vunpack.c.0.s8 %v6075
      %v6077 = vlaneseq
      %v6078 = vshrl.u32 %v6077, 7
      %v6079 = vsub.s32 %v6076, %v6078
      %v6080 = vrot.slane %v6066, %v6079
      %v6081 = vcombine.low %v6073, %v6080
      %v6082 = vcombine.low %v4964, %v4967
      %v6083 = vcombine.low %v4970, %v4973
      %v6085 = vunpack.c.l.s4 1983009808
      %v6086 = vunpack.c.0.s8 %v6085
      %v6087 = vlaneseq
      %v6088 = vshrl.u32 %v6087, 7
      %v6089 = vsub.s32 %v6086, %v6088
      %v6090 = vrot.slane %v6082, %v6089
      %v6092 = vunpack.c.l.s4 1983009808
      %v6093 = vunpack.c.0.s8 %v6092
      %v6094 = vlaneseq
      %v6095 = vshrl.u32 %v6094, 7
      %v6096 = vsub.s32 %v6093, %v6095
      %v6097 = vrot.slane %v6083, %v6096
      %v6098 = vcombine.low %v6090, %v6097
      %v6099 = vcombine.low %v4977, %v4980
      %v6100 = vcombine.low %v4983, %v4986
      %v6102 = vunpack.c.l.s4 1983009808
      %v6103 = vunpack.c.0.s8 %v6102
      %v6104 = vlaneseq
      %v6105 = vshrl.u32 %v6104, 7
      %v6106 = vsub.s32 %v6103, %v6105
      %v6107 = vrot.slane %v6099, %v6106
      %v6109 = vunpack.c.l.s4 1983009808
      %v6110 = vunpack.c.0.s8 %v6109
      %v6111 = vlaneseq
      %v6112 = vshrl.u32 %v6111, 7
      %v6113 = vsub.s32 %v6110, %v6112
      %v6114 = vrot.slane %v6100, %v6113
      %v6115 = vcombine.low %v6107, %v6114
      %v6116 = vcombine.low %v4989, %v4992
      %v6117 = vcombine.low %v4995, %v4998
      %v6119 = vunpack.c.l.s4 1983009808
      %v6120 = vunpack.c.0.s8 %v6119
      %v6121 = vlaneseq
      %v6122 = vshrl.u32 %v6121, 7
      %v6123 = vsub.s32 %v6120, %v6122
      %v6124 = vrot.slane %v6116, %v6123
      %v6126 = vunpack.c.l.s4 1983009808
      %v6127 = vunpack.c.0.s8 %v6126
      %v6128 = vlaneseq
      %v6129 = vshrl.u32 %v6128, 7
      %v6130 = vsub.s32 %v6127, %v6129
      %v6131 = vrot.slane %v6117, %v6130
      %v6132 = vcombine.low %v6124, %v6131
      %v6133 = vcombine.low %v5002, %v5005
      %v6134 = vcombine.low %v5008, %v5011
      %v6136 = vunpack.c.l.s4 1983009808
      %v6137 = vunpack.c.0.s8 %v6136
      %v6138 = vlaneseq
      %v6139 = vshrl.u32 %v6138, 7
      %v6140 = vsub.s32 %v6137, %v6139
      %v6141 = vrot.slane %v6133, %v6140
      %v6143 = vunpack.c.l.s4 1983009808
      %v6144 = vunpack.c.0.s8 %v6143
      %v6145 = vlaneseq
      %v6146 = vshrl.u32 %v6145, 7
      %v6147 = vsub.s32 %v6144, %v6146
      %v6148 = vrot.slane %v6134, %v6147
      %v6149 = vcombine.low %v6141, %v6148
      %v6150 = vcombine.low %v5014, %v5017
      %v6151 = vcombine.low %v5020, %v5023
      %v6153 = vunpack.c.l.s4 1983009808
      %v6154 = vunpack.c.0.s8 %v6153
      %v6155 = vlaneseq
      %v6156 = vshrl.u32 %v6155, 7
      %v6157 = vsub.s32 %v6154, %v6156
      %v6158 = vrot.slane %v6150, %v6157
      %v6160 = vunpack.c.l.s4 1983009808
      %v6161 = vunpack.c.0.s8 %v6160
      %v6162 = vlaneseq
      %v6163 = vshrl.u32 %v6162, 7
      %v6164 = vsub.s32 %v6161, %v6163
      %v6165 = vrot.slane %v6151, %v6164
      %v6166 = vcombine.low %v6158, %v6165
      %v6167 = vcombine.low %v5027, %v5030
      %v6168 = vcombine.low %v5033, %v5036
      %v6170 = vunpack.c.l.s4 1983009808
      %v6171 = vunpack.c.0.s8 %v6170
      %v6172 = vlaneseq
      %v6173 = vshrl.u32 %v6172, 7
      %v6174 = vsub.s32 %v6171, %v6173
      %v6175 = vrot.slane %v6167, %v6174
      %v6177 = vunpack.c.l.s4 1983009808
      %v6178 = vunpack.c.0.s8 %v6177
      %v6179 = vlaneseq
      %v6180 = vshrl.u32 %v6179, 7
      %v6181 = vsub.s32 %v6178, %v6180
      %v6182 = vrot.slane %v6168, %v6181
      %v6183 = vcombine.low %v6175, %v6182
      %v6184 = vcombine.low %v5039, %v5042
      %v6185 = vcombine.low %v5045, %v5048
      %v6187 = vunpack.c.l.s4 1983009808
      %v6188 = vunpack.c.0.s8 %v6187
      %v6189 = vlaneseq
      %v6190 = vshrl.u32 %v6189, 7
      %v6191 = vsub.s32 %v6188, %v6190
      %v6192 = vrot.slane %v6184, %v6191
      %v6194 = vunpack.c.l.s4 1983009808
      %v6195 = vunpack.c.0.s8 %v6194
      %v6196 = vlaneseq
      %v6197 = vshrl.u32 %v6196, 7
      %v6198 = vsub.s32 %v6195, %v6197
      %v6199 = vrot.slane %v6185, %v6198
      %v6200 = vcombine.low %v6192, %v6199
      %v6201 = vcombine.low %v5052, %v5055
      %v6202 = vcombine.low %v5058, %v5061
      %v6204 = vunpack.c.l.s4 1983009808
      %v6205 = vunpack.c.0.s8 %v6204
      %v6206 = vlaneseq
      %v6207 = vshrl.u32 %v6206, 7
      %v6208 = vsub.s32 %v6205, %v6207
      %v6209 = vrot.slane %v6201, %v6208
      %v6211 = vunpack.c.l.s4 1983009808
      %v6212 = vunpack.c.0.s8 %v6211
      %v6213 = vlaneseq
      %v6214 = vshrl.u32 %v6213, 7
      %v6215 = vsub.s32 %v6212, %v6214
      %v6216 = vrot.slane %v6202, %v6215
      %v6217 = vcombine.low %v6209, %v6216
      %v6218 = vcombine.low %v5064, %v5067
      %v6219 = vcombine.low %v5070, %v5073
      %v6221 = vunpack.c.l.s4 1983009808
      %v6222 = vunpack.c.0.s8 %v6221
      %v6223 = vlaneseq
      %v6224 = vshrl.u32 %v6223, 7
      %v6225 = vsub.s32 %v6222, %v6224
      %v6226 = vrot.slane %v6218, %v6225
      %v6228 = vunpack.c.l.s4 1983009808
      %v6229 = vunpack.c.0.s8 %v6228
      %v6230 = vlaneseq
      %v6231 = vshrl.u32 %v6230, 7
      %v6232 = vsub.s32 %v6229, %v6231
      %v6233 = vrot.slane %v6219, %v6232
      %v6234 = vcombine.low %v6226, %v6233
      %v6235 = vcombine.low %v5077, %v5080
      %v6236 = vcombine.low %v5083, %v5086
      %v6238 = vunpack.c.l.s4 1983009808
      %v6239 = vunpack.c.0.s8 %v6238
      %v6240 = vlaneseq
      %v6241 = vshrl.u32 %v6240, 7
      %v6242 = vsub.s32 %v6239, %v6241
      %v6243 = vrot.slane %v6235, %v6242
      %v6245 = vunpack.c.l.s4 1983009808
      %v6246 = vunpack.c.0.s8 %v6245
      %v6247 = vlaneseq
      %v6248 = vshrl.u32 %v6247, 7
      %v6249 = vsub.s32 %v6246, %v6248
      %v6250 = vrot.slane %v6236, %v6249
      %v6251 = vcombine.low %v6243, %v6250
      %v6252 = vcombine.low %v5089, %v5092
      %v6253 = vcombine.low %v5095, %v5098
      %v6255 = vunpack.c.l.s4 1983009808
      %v6256 = vunpack.c.0.s8 %v6255
      %v6257 = vlaneseq
      %v6258 = vshrl.u32 %v6257, 7
      %v6259 = vsub.s32 %v6256, %v6258
      %v6260 = vrot.slane %v6252, %v6259
      %v6262 = vunpack.c.l.s4 1983009808
      %v6263 = vunpack.c.0.s8 %v6262
      %v6264 = vlaneseq
      %v6265 = vshrl.u32 %v6264, 7
      %v6266 = vsub.s32 %v6263, %v6265
      %v6267 = vrot.slane %v6253, %v6266
      %v6268 = vcombine.low %v6260, %v6267
      %6269 = vrot.lane.b32.xlu0 %v5741, 8
      %v6270 = vpop.permute.xlu0 %6269
      %6271 = vrot.lane.b32.xlu0 %v5758, 8
      %v6272 = vpop.permute.xlu0 %6271
      %6273 = vrot.lane.b32.xlu0 %v5775, 8
      %v6274 = vpop.permute.xlu0 %6273
      %6275 = vrot.lane.b32.xlu0 %v5792, 8
      %v6276 = vpop.permute.xlu0 %6275
      %6277 = vrot.lane.b32.xlu0 %v5809, 8
      %v6278 = vpop.permute.xlu0 %6277
      %6279 = vrot.lane.b32.xlu0 %v5826, 8
      %v6280 = vpop.permute.xlu0 %6279
      %6281 = vrot.lane.b32.xlu0 %v5843, 8
      %v6282 = vpop.permute.xlu0 %6281
      %6283 = vrot.lane.b32.xlu0 %v5860, 8
      %v6284 = vpop.permute.xlu0 %6283
      %6285 = vrot.lane.b32.xlu0 %v5877, 8
      %v6286 = vpop.permute.xlu0 %6285
      %6287 = vrot.lane.b32.xlu0 %v5894, 8
      %v6288 = vpop.permute.xlu0 %6287
      %6289 = vrot.lane.b32.xlu0 %v5911, 8
      %v6290 = vpop.permute.xlu0 %6289
      %6291 = vrot.lane.b32.xlu0 %v5928, 8
      %v6292 = vpop.permute.xlu0 %6291
      %6293 = vrot.lane.b32.xlu0 %v5945, 8
      %v6294 = vpop.permute.xlu0 %6293
      %6295 = vrot.lane.b32.xlu0 %v5962, 8
      %v6296 = vpop.permute.xlu0 %6295
      %6297 = vrot.lane.b32.xlu0 %v5979, 8
      %v6298 = vpop.permute.xlu0 %6297
      %6299 = vrot.lane.b32.xlu0 %v5996, 8
      %v6300 = vpop.permute.xlu0 %6299
      %6301 = vrot.lane.b32.xlu0 %v6013, 8
      %v6302 = vpop.permute.xlu0 %6301
      %6303 = vrot.lane.b32.xlu0 %v6030, 8
      %v6304 = vpop.permute.xlu0 %6303
      %6305 = vrot.lane.b32.xlu0 %v6047, 8
      %v6306 = vpop.permute.xlu0 %6305
      %6307 = vrot.lane.b32.xlu0 %v6064, 8
      %v6308 = vpop.permute.xlu0 %6307
      %6309 = vrot.lane.b32.xlu0 %v6081, 8
      %v6310 = vpop.permute.xlu0 %6309
      %6311 = vrot.lane.b32.xlu0 %v6098, 8
      %v6312 = vpop.permute.xlu0 %6311
      %6313 = vrot.lane.b32.xlu0 %v6115, 8
      %v6314 = vpop.permute.xlu0 %6313
      %6315 = vrot.lane.b32.xlu0 %v6132, 8
      %v6316 = vpop.permute.xlu0 %6315
      %6317 = vrot.lane.b32.xlu0 %v6149, 8
      %v6318 = vpop.permute.xlu0 %6317
      %6319 = vrot.lane.b32.xlu0 %v6166, 8
      %v6320 = vpop.permute.xlu0 %6319
      %6321 = vrot.lane.b32.xlu0 %v6183, 8
      %v6322 = vpop.permute.xlu0 %6321
      %6323 = vrot.lane.b32.xlu0 %v6200, 8
      %v6324 = vpop.permute.xlu0 %6323
      %6325 = vrot.lane.b32.xlu0 %v6217, 8
      %v6326 = vpop.permute.xlu0 %6325
      %6327 = vrot.lane.b32.xlu0 %v6234, 8
      %v6328 = vpop.permute.xlu0 %6327
      %6329 = vrot.lane.b32.xlu0 %v6251, 8
      %v6330 = vpop.permute.xlu0 %6329
      %6331 = vrot.lane.b32.xlu0 %v6268, 8
      %v6332 = vpop.permute.xlu0 %6331
      %v6365 = vcombine.low %v4026, %v4025
      %v6366 = vcombine.low %v4027, %v4035
      %v6368 = vunpack.c.l.s4 1983009808
      %v6369 = vunpack.c.0.s8 %v6368
      %v6370 = vlaneseq
      %v6371 = vshrl.u32 %v6370, 7
      %v6372 = vsub.s32 %v6369, %v6371
      %v6373 = vrot.slane %v6365, %v6372
      %v6375 = vunpack.c.l.s4 1983009808
      %v6376 = vunpack.c.0.s8 %v6375
      %v6377 = vlaneseq
      %v6378 = vshrl.u32 %v6377, 7
      %v6379 = vsub.s32 %v6376, %v6378
      %v6380 = vrot.slane %v6366, %v6379
      %v6381 = vcombine.low %v6373, %v6380
      %v6382 = vcombine.low %v4043, %v4042
      %v6383 = vcombine.low %v4044, %v4052
      %v6385 = vunpack.c.l.s4 1983009808
      %v6386 = vunpack.c.0.s8 %v6385
      %v6387 = vlaneseq
      %v6388 = vshrl.u32 %v6387, 7
      %v6389 = vsub.s32 %v6386, %v6388
      %v6390 = vrot.slane %v6382, %v6389
      %v6392 = vunpack.c.l.s4 1983009808
      %v6393 = vunpack.c.0.s8 %v6392
      %v6394 = vlaneseq
      %v6395 = vshrl.u32 %v6394, 7
      %v6396 = vsub.s32 %v6393, %v6395
      %v6397 = vrot.slane %v6383, %v6396
      %v6398 = vcombine.low %v6390, %v6397
      %v6399 = vcombine.low %v4059, %v4061
      %v6400 = vcombine.low %v4069, %v4077
      %v6402 = vunpack.c.l.s4 1983009808
      %v6403 = vunpack.c.0.s8 %v6402
      %v6404 = vlaneseq
      %v6405 = vshrl.u32 %v6404, 7
      %v6406 = vsub.s32 %v6403, %v6405
      %v6407 = vrot.slane %v6399, %v6406
      %v6409 = vunpack.c.l.s4 1983009808
      %v6410 = vunpack.c.0.s8 %v6409
      %v6411 = vlaneseq
      %v6412 = vshrl.u32 %v6411, 7
      %v6413 = vsub.s32 %v6410, %v6412
      %v6414 = vrot.slane %v6400, %v6413
      %v6415 = vcombine.low %v6407, %v6414
      %v6416 = vcombine.low %v4076, %v4078
      %v6417 = vcombine.low %v4086, %v4094
      %v6419 = vunpack.c.l.s4 1983009808
      %v6420 = vunpack.c.0.s8 %v6419
      %v6421 = vlaneseq
      %v6422 = vshrl.u32 %v6421, 7
      %v6423 = vsub.s32 %v6420, %v6422
      %v6424 = vrot.slane %v6416, %v6423
      %v6426 = vunpack.c.l.s4 1983009808
      %v6427 = vunpack.c.0.s8 %v6426
      %v6428 = vlaneseq
      %v6429 = vshrl.u32 %v6428, 7
      %v6430 = vsub.s32 %v6427, %v6429
      %v6431 = vrot.slane %v6417, %v6430
      %v6432 = vcombine.low %v6424, %v6431
      %v6433 = vcombine.low %v4095, %v4103
      %v6434 = vcombine.low %v4111, %v4110
      %v6436 = vunpack.c.l.s4 1983009808
      %v6437 = vunpack.c.0.s8 %v6436
      %v6438 = vlaneseq
      %v6439 = vshrl.u32 %v6438, 7
      %v6440 = vsub.s32 %v6437, %v6439
      %v6441 = vrot.slane %v6433, %v6440
      %v6443 = vunpack.c.l.s4 1983009808
      %v6444 = vunpack.c.0.s8 %v6443
      %v6445 = vlaneseq
      %v6446 = vshrl.u32 %v6445, 7
      %v6447 = vsub.s32 %v6444, %v6446
      %v6448 = vrot.slane %v6434, %v6447
      %v6449 = vcombine.low %v6441, %v6448
      %v6450 = vcombine.low %v4112, %v4120
      %v6451 = vcombine.low %v4128, %v4127
      %v6453 = vunpack.c.l.s4 1983009808
      %v6454 = vunpack.c.0.s8 %v6453
      %v6455 = vlaneseq
      %v6456 = vshrl.u32 %v6455, 7
      %v6457 = vsub.s32 %v6454, %v6456
      %v6458 = vrot.slane %v6450, %v6457
      %v6460 = vunpack.c.l.s4 1983009808
      %v6461 = vunpack.c.0.s8 %v6460
      %v6462 = vlaneseq
      %v6463 = vshrl.u32 %v6462, 7
      %v6464 = vsub.s32 %v6461, %v6463
      %v6465 = vrot.slane %v6451, %v6464
      %v6466 = vcombine.low %v6458, %v6465
      %v6467 = vcombine.low %v4137, %v4145
      %v6468 = vcombine.low %v4144, %v4146
      %v6470 = vunpack.c.l.s4 1983009808
      %v6471 = vunpack.c.0.s8 %v6470
      %v6472 = vlaneseq
      %v6473 = vshrl.u32 %v6472, 7
      %v6474 = vsub.s32 %v6471, %v6473
      %v6475 = vrot.slane %v6467, %v6474
      %v6477 = vunpack.c.l.s4 1983009808
      %v6478 = vunpack.c.0.s8 %v6477
      %v6479 = vlaneseq
      %v6480 = vshrl.u32 %v6479, 7
      %v6481 = vsub.s32 %v6478, %v6480
      %v6482 = vrot.slane %v6468, %v6481
      %v6483 = vcombine.low %v6475, %v6482
      %v6484 = vcombine.low %v4154, %v4162
      %v6485 = vcombine.low %v4161, %v4163
      %v6487 = vunpack.c.l.s4 1983009808
      %v6488 = vunpack.c.0.s8 %v6487
      %v6489 = vlaneseq
      %v6490 = vshrl.u32 %v6489, 7
      %v6491 = vsub.s32 %v6488, %v6490
      %v6492 = vrot.slane %v6484, %v6491
      %v6494 = vunpack.c.l.s4 1983009808
      %v6495 = vunpack.c.0.s8 %v6494
      %v6496 = vlaneseq
      %v6497 = vshrl.u32 %v6496, 7
      %v6498 = vsub.s32 %v6495, %v6497
      %v6499 = vrot.slane %v6485, %v6498
      %v6500 = vcombine.low %v6492, %v6499
      %v6501 = vcombine.low %v4179, %v4178
      %v6502 = vcombine.low %v4180, %v4188
      %v6504 = vunpack.c.l.s4 1983009808
      %v6505 = vunpack.c.0.s8 %v6504
      %v6506 = vlaneseq
      %v6507 = vshrl.u32 %v6506, 7
      %v6508 = vsub.s32 %v6505, %v6507
      %v6509 = vrot.slane %v6501, %v6508
      %v6511 = vunpack.c.l.s4 1983009808
      %v6512 = vunpack.c.0.s8 %v6511
      %v6513 = vlaneseq
      %v6514 = vshrl.u32 %v6513, 7
      %v6515 = vsub.s32 %v6512, %v6514
      %v6516 = vrot.slane %v6502, %v6515
      %v6517 = vcombine.low %v6509, %v6516
      %v6518 = vcombine.low %v4196, %v4195
      %v6519 = vcombine.low %v4197, %v4205
      %v6521 = vunpack.c.l.s4 1983009808
      %v6522 = vunpack.c.0.s8 %v6521
      %v6523 = vlaneseq
      %v6524 = vshrl.u32 %v6523, 7
      %v6525 = vsub.s32 %v6522, %v6524
      %v6526 = vrot.slane %v6518, %v6525
      %v6528 = vunpack.c.l.s4 1983009808
      %v6529 = vunpack.c.0.s8 %v6528
      %v6530 = vlaneseq
      %v6531 = vshrl.u32 %v6530, 7
      %v6532 = vsub.s32 %v6529, %v6531
      %v6533 = vrot.slane %v6519, %v6532
      %v6534 = vcombine.low %v6526, %v6533
      %v6535 = vcombine.low %v4212, %v4214
      %v6536 = vcombine.low %v4222, %v4230
      %v6538 = vunpack.c.l.s4 1983009808
      %v6539 = vunpack.c.0.s8 %v6538
      %v6540 = vlaneseq
      %v6541 = vshrl.u32 %v6540, 7
      %v6542 = vsub.s32 %v6539, %v6541
      %v6543 = vrot.slane %v6535, %v6542
      %v6545 = vunpack.c.l.s4 1983009808
      %v6546 = vunpack.c.0.s8 %v6545
      %v6547 = vlaneseq
      %v6548 = vshrl.u32 %v6547, 7
      %v6549 = vsub.s32 %v6546, %v6548
      %v6550 = vrot.slane %v6536, %v6549
      %v6551 = vcombine.low %v6543, %v6550
      %v6552 = vcombine.low %v4229, %v4231
      %v6553 = vcombine.low %v4239, %v4247
      %v6555 = vunpack.c.l.s4 1983009808
      %v6556 = vunpack.c.0.s8 %v6555
      %v6557 = vlaneseq
      %v6558 = vshrl.u32 %v6557, 7
      %v6559 = vsub.s32 %v6556, %v6558
      %v6560 = vrot.slane %v6552, %v6559
      %v6562 = vunpack.c.l.s4 1983009808
      %v6563 = vunpack.c.0.s8 %v6562
      %v6564 = vlaneseq
      %v6565 = vshrl.u32 %v6564, 7
      %v6566 = vsub.s32 %v6563, %v6565
      %v6567 = vrot.slane %v6553, %v6566
      %v6568 = vcombine.low %v6560, %v6567
      %v6569 = vcombine.low %v4248, %v4256
      %v6570 = vcombine.low %v4264, %v4263
      %v6572 = vunpack.c.l.s4 1983009808
      %v6573 = vunpack.c.0.s8 %v6572
      %v6574 = vlaneseq
      %v6575 = vshrl.u32 %v6574, 7
      %v6576 = vsub.s32 %v6573, %v6575
      %v6577 = vrot.slane %v6569, %v6576
      %v6579 = vunpack.c.l.s4 1983009808
      %v6580 = vunpack.c.0.s8 %v6579
      %v6581 = vlaneseq
      %v6582 = vshrl.u32 %v6581, 7
      %v6583 = vsub.s32 %v6580, %v6582
      %v6584 = vrot.slane %v6570, %v6583
      %v6585 = vcombine.low %v6577, %v6584
      %v6586 = vcombine.low %v4265, %v4273
      %v6587 = vcombine.low %v4281, %v4280
      %v6589 = vunpack.c.l.s4 1983009808
      %v6590 = vunpack.c.0.s8 %v6589
      %v6591 = vlaneseq
      %v6592 = vshrl.u32 %v6591, 7
      %v6593 = vsub.s32 %v6590, %v6592
      %v6594 = vrot.slane %v6586, %v6593
      %v6596 = vunpack.c.l.s4 1983009808
      %v6597 = vunpack.c.0.s8 %v6596
      %v6598 = vlaneseq
      %v6599 = vshrl.u32 %v6598, 7
      %v6600 = vsub.s32 %v6597, %v6599
      %v6601 = vrot.slane %v6587, %v6600
      %v6602 = vcombine.low %v6594, %v6601
      %v6603 = vcombine.low %v4290, %v4298
      %v6604 = vcombine.low %v4297, %v4299
      %v6606 = vunpack.c.l.s4 1983009808
      %v6607 = vunpack.c.0.s8 %v6606
      %v6608 = vlaneseq
      %v6609 = vshrl.u32 %v6608, 7
      %v6610 = vsub.s32 %v6607, %v6609
      %v6611 = vrot.slane %v6603, %v6610
      %v6613 = vunpack.c.l.s4 1983009808
      %v6614 = vunpack.c.0.s8 %v6613
      %v6615 = vlaneseq
      %v6616 = vshrl.u32 %v6615, 7
      %v6617 = vsub.s32 %v6614, %v6616
      %v6618 = vrot.slane %v6604, %v6617
      %v6619 = vcombine.low %v6611, %v6618
      %v6620 = vcombine.low %v4307, %v4315
      %v6621 = vcombine.low %v4314, %v4316
      %v6623 = vunpack.c.l.s4 1983009808
      %v6624 = vunpack.c.0.s8 %v6623
      %v6625 = vlaneseq
      %v6626 = vshrl.u32 %v6625, 7
      %v6627 = vsub.s32 %v6624, %v6626
      %v6628 = vrot.slane %v6620, %v6627
      %v6630 = vunpack.c.l.s4 1983009808
      %v6631 = vunpack.c.0.s8 %v6630
      %v6632 = vlaneseq
      %v6633 = vshrl.u32 %v6632, 7
      %v6634 = vsub.s32 %v6631, %v6633
      %v6635 = vrot.slane %v6621, %v6634
      %v6636 = vcombine.low %v6628, %v6635
      %v6637 = vcombine.low %v4332, %v4331
      %v6638 = vcombine.low %v4333, %v4341
      %v6640 = vunpack.c.l.s4 1983009808
      %v6641 = vunpack.c.0.s8 %v6640
      %v6642 = vlaneseq
      %v6643 = vshrl.u32 %v6642, 7
      %v6644 = vsub.s32 %v6641, %v6643
      %v6645 = vrot.slane %v6637, %v6644
      %v6647 = vunpack.c.l.s4 1983009808
      %v6648 = vunpack.c.0.s8 %v6647
      %v6649 = vlaneseq
      %v6650 = vshrl.u32 %v6649, 7
      %v6651 = vsub.s32 %v6648, %v6650
      %v6652 = vrot.slane %v6638, %v6651
      %v6653 = vcombine.low %v6645, %v6652
      %v6654 = vcombine.low %v4349, %v4348
      %v6655 = vcombine.low %v4350, %v4358
      %v6657 = vunpack.c.l.s4 1983009808
      %v6658 = vunpack.c.0.s8 %v6657
      %v6659 = vlaneseq
      %v6660 = vshrl.u32 %v6659, 7
      %v6661 = vsub.s32 %v6658, %v6660
      %v6662 = vrot.slane %v6654, %v6661
      %v6664 = vunpack.c.l.s4 1983009808
      %v6665 = vunpack.c.0.s8 %v6664
      %v6666 = vlaneseq
      %v6667 = vshrl.u32 %v6666, 7
      %v6668 = vsub.s32 %v6665, %v6667
      %v6669 = vrot.slane %v6655, %v6668
      %v6670 = vcombine.low %v6662, %v6669
      %v6671 = vcombine.low %v4365, %v4367
      %v6672 = vcombine.low %v4375, %v4383
      %v6674 = vunpack.c.l.s4 1983009808
      %v6675 = vunpack.c.0.s8 %v6674
      %v6676 = vlaneseq
      %v6677 = vshrl.u32 %v6676, 7
      %v6678 = vsub.s32 %v6675, %v6677
      %v6679 = vrot.slane %v6671, %v6678
      %v6681 = vunpack.c.l.s4 1983009808
      %v6682 = vunpack.c.0.s8 %v6681
      %v6683 = vlaneseq
      %v6684 = vshrl.u32 %v6683, 7
      %v6685 = vsub.s32 %v6682, %v6684
      %v6686 = vrot.slane %v6672, %v6685
      %v6687 = vcombine.low %v6679, %v6686
      %v6688 = vcombine.low %v4382, %v4384
      %v6689 = vcombine.low %v4392, %v4400
      %v6691 = vunpack.c.l.s4 1983009808
      %v6692 = vunpack.c.0.s8 %v6691
      %v6693 = vlaneseq
      %v6694 = vshrl.u32 %v6693, 7
      %v6695 = vsub.s32 %v6692, %v6694
      %v6696 = vrot.slane %v6688, %v6695
      %v6698 = vunpack.c.l.s4 1983009808
      %v6699 = vunpack.c.0.s8 %v6698
      %v6700 = vlaneseq
      %v6701 = vshrl.u32 %v6700, 7
      %v6702 = vsub.s32 %v6699, %v6701
      %v6703 = vrot.slane %v6689, %v6702
      %v6704 = vcombine.low %v6696, %v6703
      %v6705 = vcombine.low %v4401, %v4409
      %v6706 = vcombine.low %v4417, %v4416
      %v6708 = vunpack.c.l.s4 1983009808
      %v6709 = vunpack.c.0.s8 %v6708
      %v6710 = vlaneseq
      %v6711 = vshrl.u32 %v6710, 7
      %v6712 = vsub.s32 %v6709, %v6711
      %v6713 = vrot.slane %v6705, %v6712
      %v6715 = vunpack.c.l.s4 1983009808
      %v6716 = vunpack.c.0.s8 %v6715
      %v6717 = vlaneseq
      %v6718 = vshrl.u32 %v6717, 7
      %v6719 = vsub.s32 %v6716, %v6718
      %v6720 = vrot.slane %v6706, %v6719
      %v6721 = vcombine.low %v6713, %v6720
      %v6722 = vcombine.low %v4418, %v4426
      %v6723 = vcombine.low %v4434, %v4433
      %v6725 = vunpack.c.l.s4 1983009808
      %v6726 = vunpack.c.0.s8 %v6725
      %v6727 = vlaneseq
      %v6728 = vshrl.u32 %v6727, 7
      %v6729 = vsub.s32 %v6726, %v6728
      %v6730 = vrot.slane %v6722, %v6729
      %v6732 = vunpack.c.l.s4 1983009808
      %v6733 = vunpack.c.0.s8 %v6732
      %v6734 = vlaneseq
      %v6735 = vshrl.u32 %v6734, 7
      %v6736 = vsub.s32 %v6733, %v6735
      %v6737 = vrot.slane %v6723, %v6736
      %v6738 = vcombine.low %v6730, %v6737
      %v6739 = vcombine.low %v4443, %v4451
      %v6740 = vcombine.low %v4450, %v4452
      %v6742 = vunpack.c.l.s4 1983009808
      %v6743 = vunpack.c.0.s8 %v6742
      %v6744 = vlaneseq
      %v6745 = vshrl.u32 %v6744, 7
      %v6746 = vsub.s32 %v6743, %v6745
      %v6747 = vrot.slane %v6739, %v6746
      %v6749 = vunpack.c.l.s4 1983009808
      %v6750 = vunpack.c.0.s8 %v6749
      %v6751 = vlaneseq
      %v6752 = vshrl.u32 %v6751, 7
      %v6753 = vsub.s32 %v6750, %v6752
      %v6754 = vrot.slane %v6740, %v6753
      %v6755 = vcombine.low %v6747, %v6754
      %v6756 = vcombine.low %v4460, %v4468
      %v6757 = vcombine.low %v4467, %v4469
      %v6759 = vunpack.c.l.s4 1983009808
      %v6760 = vunpack.c.0.s8 %v6759
      %v6761 = vlaneseq
      %v6762 = vshrl.u32 %v6761, 7
      %v6763 = vsub.s32 %v6760, %v6762
      %v6764 = vrot.slane %v6756, %v6763
      %v6766 = vunpack.c.l.s4 1983009808
      %v6767 = vunpack.c.0.s8 %v6766
      %v6768 = vlaneseq
      %v6769 = vshrl.u32 %v6768, 7
      %v6770 = vsub.s32 %v6767, %v6769
      %v6771 = vrot.slane %v6757, %v6770
      %v6772 = vcombine.low %v6764, %v6771
      %v6773 = vcombine.low %v4485, %v4484
      %v6774 = vcombine.low %v4486, %v4494
      %v6776 = vunpack.c.l.s4 1983009808
      %v6777 = vunpack.c.0.s8 %v6776
      %v6778 = vlaneseq
      %v6779 = vshrl.u32 %v6778, 7
      %v6780 = vsub.s32 %v6777, %v6779
      %v6781 = vrot.slane %v6773, %v6780
      %v6783 = vunpack.c.l.s4 1983009808
      %v6784 = vunpack.c.0.s8 %v6783
      %v6785 = vlaneseq
      %v6786 = vshrl.u32 %v6785, 7
      %v6787 = vsub.s32 %v6784, %v6786
      %v6788 = vrot.slane %v6774, %v6787
      %v6789 = vcombine.low %v6781, %v6788
      %v6790 = vcombine.low %v4502, %v4501
      %v6791 = vcombine.low %v4503, %v4511
      %v6793 = vunpack.c.l.s4 1983009808
      %v6794 = vunpack.c.0.s8 %v6793
      %v6795 = vlaneseq
      %v6796 = vshrl.u32 %v6795, 7
      %v6797 = vsub.s32 %v6794, %v6796
      %v6798 = vrot.slane %v6790, %v6797
      %v6800 = vunpack.c.l.s4 1983009808
      %v6801 = vunpack.c.0.s8 %v6800
      %v6802 = vlaneseq
      %v6803 = vshrl.u32 %v6802, 7
      %v6804 = vsub.s32 %v6801, %v6803
      %v6805 = vrot.slane %v6791, %v6804
      %v6806 = vcombine.low %v6798, %v6805
      %v6807 = vcombine.low %v4518, %v4520
      %v6808 = vcombine.low %v4528, %v4536
      %v6810 = vunpack.c.l.s4 1983009808
      %v6811 = vunpack.c.0.s8 %v6810
      %v6812 = vlaneseq
      %v6813 = vshrl.u32 %v6812, 7
      %v6814 = vsub.s32 %v6811, %v6813
      %v6815 = vrot.slane %v6807, %v6814
      %v6817 = vunpack.c.l.s4 1983009808
      %v6818 = vunpack.c.0.s8 %v6817
      %v6819 = vlaneseq
      %v6820 = vshrl.u32 %v6819, 7
      %v6821 = vsub.s32 %v6818, %v6820
      %v6822 = vrot.slane %v6808, %v6821
      %v6823 = vcombine.low %v6815, %v6822
      %v6824 = vcombine.low %v4535, %v4537
      %v6825 = vcombine.low %v4545, %v4553
      %v6827 = vunpack.c.l.s4 1983009808
      %v6828 = vunpack.c.0.s8 %v6827
      %v6829 = vlaneseq
      %v6830 = vshrl.u32 %v6829, 7
      %v6831 = vsub.s32 %v6828, %v6830
      %v6832 = vrot.slane %v6824, %v6831
      %v6834 = vunpack.c.l.s4 1983009808
      %v6835 = vunpack.c.0.s8 %v6834
      %v6836 = vlaneseq
      %v6837 = vshrl.u32 %v6836, 7
      %v6838 = vsub.s32 %v6835, %v6837
      %v6839 = vrot.slane %v6825, %v6838
      %v6840 = vcombine.low %v6832, %v6839
      %v6841 = vcombine.low %v4554, %v4562
      %v6842 = vcombine.low %v4570, %v4569
      %v6844 = vunpack.c.l.s4 1983009808
      %v6845 = vunpack.c.0.s8 %v6844
      %v6846 = vlaneseq
      %v6847 = vshrl.u32 %v6846, 7
      %v6848 = vsub.s32 %v6845, %v6847
      %v6849 = vrot.slane %v6841, %v6848
      %v6851 = vunpack.c.l.s4 1983009808
      %v6852 = vunpack.c.0.s8 %v6851
      %v6853 = vlaneseq
      %v6854 = vshrl.u32 %v6853, 7
      %v6855 = vsub.s32 %v6852, %v6854
      %v6856 = vrot.slane %v6842, %v6855
      %v6857 = vcombine.low %v6849, %v6856
      %v6858 = vcombine.low %v4571, %v4579
      %v6859 = vcombine.low %v4587, %v4586
      %v6861 = vunpack.c.l.s4 1983009808
      %v6862 = vunpack.c.0.s8 %v6861
      %v6863 = vlaneseq
      %v6864 = vshrl.u32 %v6863, 7
      %v6865 = vsub.s32 %v6862, %v6864
      %v6866 = vrot.slane %v6858, %v6865
      %v6868 = vunpack.c.l.s4 1983009808
      %v6869 = vunpack.c.0.s8 %v6868
      %v6870 = vlaneseq
      %v6871 = vshrl.u32 %v6870, 7
      %v6872 = vsub.s32 %v6869, %v6871
      %v6873 = vrot.slane %v6859, %v6872
      %v6874 = vcombine.low %v6866, %v6873
      %v6875 = vcombine.low %v4596, %v4604
      %v6876 = vcombine.low %v4603, %v4605
      %v6878 = vunpack.c.l.s4 1983009808
      %v6879 = vunpack.c.0.s8 %v6878
      %v6880 = vlaneseq
      %v6881 = vshrl.u32 %v6880, 7
      %v6882 = vsub.s32 %v6879, %v6881
      %v6883 = vrot.slane %v6875, %v6882
      %v6885 = vunpack.c.l.s4 1983009808
      %v6886 = vunpack.c.0.s8 %v6885
      %v6887 = vlaneseq
      %v6888 = vshrl.u32 %v6887, 7
      %v6889 = vsub.s32 %v6886, %v6888
      %v6890 = vrot.slane %v6876, %v6889
      %v6891 = vcombine.low %v6883, %v6890
      %v6892 = vcombine.low %v4613, %v4621
      %v6893 = vcombine.low %v4620, %v4622
      %v6895 = vunpack.c.l.s4 1983009808
      %v6896 = vunpack.c.0.s8 %v6895
      %v6897 = vlaneseq
      %v6898 = vshrl.u32 %v6897, 7
      %v6899 = vsub.s32 %v6896, %v6898
      %v6900 = vrot.slane %v6892, %v6899
      %v6902 = vunpack.c.l.s4 1983009808
      %v6903 = vunpack.c.0.s8 %v6902
      %v6904 = vlaneseq
      %v6905 = vshrl.u32 %v6904, 7
      %v6906 = vsub.s32 %v6903, %v6905
      %v6907 = vrot.slane %v6893, %v6906
      %v6908 = vcombine.low %v6900, %v6907
      %6909 = vrot.lane.b32.xlu0 %v6381, 16
      %v6910 = vpop.permute.xlu0 %6909
      %6911 = vrot.lane.b32.xlu0 %v6398, 16
      %v6912 = vpop.permute.xlu0 %6911
      %6913 = vrot.lane.b32.xlu0 %v6415, 16
      %v6914 = vpop.permute.xlu0 %6913
      %6915 = vrot.lane.b32.xlu0 %v6432, 16
      %v6916 = vpop.permute.xlu0 %6915
      %6917 = vrot.lane.b32.xlu0 %v6449, 16
      %v6918 = vpop.permute.xlu0 %6917
      %6919 = vrot.lane.b32.xlu0 %v6466, 16
      %v6920 = vpop.permute.xlu0 %6919
      %6921 = vrot.lane.b32.xlu0 %v6483, 16
      %v6922 = vpop.permute.xlu0 %6921
      %6923 = vrot.lane.b32.xlu0 %v6500, 16
      %v6924 = vpop.permute.xlu0 %6923
      %6925 = vrot.lane.b32.xlu0 %v6517, 16
      %v6926 = vpop.permute.xlu0 %6925
      %6927 = vrot.lane.b32.xlu0 %v6534, 16
      %v6928 = vpop.permute.xlu0 %6927
      %6929 = vrot.lane.b32.xlu0 %v6551, 16
      %v6930 = vpop.permute.xlu0 %6929
      %6931 = vrot.lane.b32.xlu0 %v6568, 16
      %v6932 = vpop.permute.xlu0 %6931
      %6933 = vrot.lane.b32.xlu0 %v6585, 16
      %v6934 = vpop.permute.xlu0 %6933
      %6935 = vrot.lane.b32.xlu0 %v6602, 16
      %v6936 = vpop.permute.xlu0 %6935
      %6937 = vrot.lane.b32.xlu0 %v6619, 16
      %v6938 = vpop.permute.xlu0 %6937
      %6939 = vrot.lane.b32.xlu0 %v6636, 16
      %v6940 = vpop.permute.xlu0 %6939
      %6941 = vrot.lane.b32.xlu0 %v6653, 16
      %v6942 = vpop.permute.xlu0 %6941
      %6943 = vrot.lane.b32.xlu0 %v6670, 16
      %v6944 = vpop.permute.xlu0 %6943
      %6945 = vrot.lane.b32.xlu0 %v6687, 16
      %v6946 = vpop.permute.xlu0 %6945
      %6947 = vrot.lane.b32.xlu0 %v6704, 16
      %v6948 = vpop.permute.xlu0 %6947
      %6949 = vrot.lane.b32.xlu0 %v6721, 16
      %v6950 = vpop.permute.xlu0 %6949
      %6951 = vrot.lane.b32.xlu0 %v6738, 16
      %v6952 = vpop.permute.xlu0 %6951
      %6953 = vrot.lane.b32.xlu0 %v6755, 16
      %v6954 = vpop.permute.xlu0 %6953
      %6955 = vrot.lane.b32.xlu0 %v6772, 16
      %v6956 = vpop.permute.xlu0 %6955
      %6957 = vrot.lane.b32.xlu0 %v6789, 16
      %v6958 = vpop.permute.xlu0 %6957
      %6959 = vrot.lane.b32.xlu0 %v6806, 16
      %v6960 = vpop.permute.xlu0 %6959
      %6961 = vrot.lane.b32.xlu0 %v6823, 16
      %v6962 = vpop.permute.xlu0 %6961
      %6963 = vrot.lane.b32.xlu0 %v6840, 16
      %v6964 = vpop.permute.xlu0 %6963
      %6965 = vrot.lane.b32.xlu0 %v6857, 16
      %v6966 = vpop.permute.xlu0 %6965
      %6967 = vrot.lane.b32.xlu0 %v6874, 16
      %v6968 = vpop.permute.xlu0 %6967
      %6969 = vrot.lane.b32.xlu0 %v6891, 16
      %v6970 = vpop.permute.xlu0 %6969
      %6971 = vrot.lane.b32.xlu0 %v6908, 16
      %v6972 = vpop.permute.xlu0 %6971
      %v7005 = vcombine.low %v4630, %v4638
      %v7006 = vcombine.low %v4637, %v4639
      %v7008 = vunpack.c.l.s4 1983009808
      %v7009 = vunpack.c.0.s8 %v7008
      %v7010 = vlaneseq
      %v7011 = vshrl.u32 %v7010, 7
      %v7012 = vsub.s32 %v7009, %v7011
      %v7013 = vrot.slane %v7005, %v7012
      %v7015 = vunpack.c.l.s4 1983009808
      %v7016 = vunpack.c.0.s8 %v7015
      %v7017 = vlaneseq
      %v7018 = vshrl.u32 %v7017, 7
      %v7019 = vsub.s32 %v7016, %v7018
      %v7020 = vrot.slane %v7006, %v7019
      %v7021 = vcombine.low %v7013, %v7020
      %v7022 = vcombine.low %v4647, %v4655
      %v7023 = vcombine.low %v4654, %v4656
      %v7025 = vunpack.c.l.s4 1983009808
      %v7026 = vunpack.c.0.s8 %v7025
      %v7027 = vlaneseq
      %v7028 = vshrl.u32 %v7027, 7
      %v7029 = vsub.s32 %v7026, %v7028
      %v7030 = vrot.slane %v7022, %v7029
      %v7032 = vunpack.c.l.s4 1983009808
      %v7033 = vunpack.c.0.s8 %v7032
      %v7034 = vlaneseq
      %v7035 = vshrl.u32 %v7034, 7
      %v7036 = vsub.s32 %v7033, %v7035
      %v7037 = vrot.slane %v7023, %v7036
      %v7038 = vcombine.low %v7030, %v7037
      %7039 = vrot.lane.b32.xlu0 %v5199, 24
      %v7040 = vpop.permute.xlu0 %7039
      %7041 = vrot.lane.b32.xlu0 %v5216, 24
      %v7042 = vpop.permute.xlu0 %7041
      %7043 = vrot.lane.b32.xlu0 %v5233, 24
      %v7044 = vpop.permute.xlu0 %7043
      %7045 = vrot.lane.b32.xlu0 %v5250, 24
      %v7046 = vpop.permute.xlu0 %7045
      %7047 = vrot.lane.b32.xlu0 %v5267, 24
      %v7048 = vpop.permute.xlu0 %7047
      %7049 = vrot.lane.b32.xlu0 %v5284, 24
      %v7050 = vpop.permute.xlu0 %7049
      %7051 = vrot.lane.b32.xlu0 %v5301, 24
      %v7052 = vpop.permute.xlu0 %7051
      %7053 = vrot.lane.b32.xlu0 %v5318, 24
      %v7054 = vpop.permute.xlu0 %7053
      %7055 = vrot.lane.b32.xlu0 %v5335, 24
      %v7056 = vpop.permute.xlu0 %7055
      %7057 = vrot.lane.b32.xlu0 %v5352, 24
      %v7058 = vpop.permute.xlu0 %7057
      %7059 = vrot.lane.b32.xlu0 %v5369, 24
      %v7060 = vpop.permute.xlu0 %7059
      %7061 = vrot.lane.b32.xlu0 %v5386, 24
      %v7062 = vpop.permute.xlu0 %7061
      %7063 = vrot.lane.b32.xlu0 %v5403, 24
      %v7064 = vpop.permute.xlu0 %7063
      %7065 = vrot.lane.b32.xlu0 %v5420, 24
      %v7066 = vpop.permute.xlu0 %7065
      %7067 = vrot.lane.b32.xlu0 %v5437, 24
      %v7068 = vpop.permute.xlu0 %7067
      %7069 = vrot.lane.b32.xlu0 %v5454, 24
      %v7070 = vpop.permute.xlu0 %7069
      %7071 = vrot.lane.b32.xlu0 %v5471, 24
      %v7072 = vpop.permute.xlu0 %7071
      %7073 = vrot.lane.b32.xlu0 %v5488, 24
      %v7074 = vpop.permute.xlu0 %7073
      %7075 = vrot.lane.b32.xlu0 %v5505, 24
      %v7076 = vpop.permute.xlu0 %7075
      %7077 = vrot.lane.b32.xlu0 %v5522, 24
      %v7078 = vpop.permute.xlu0 %7077
      %7079 = vrot.lane.b32.xlu0 %v5539, 24
      %v7080 = vpop.permute.xlu0 %7079
      %7081 = vrot.lane.b32.xlu0 %v5556, 24
      %v7082 = vpop.permute.xlu0 %7081
      %7083 = vrot.lane.b32.xlu0 %v5573, 24
      %v7084 = vpop.permute.xlu0 %7083
      %7085 = vrot.lane.b32.xlu0 %v5590, 24
      %v7086 = vpop.permute.xlu0 %7085
      %7087 = vrot.lane.b32.xlu0 %v5607, 24
      %v7088 = vpop.permute.xlu0 %7087
      %7089 = vrot.lane.b32.xlu0 %v5624, 24
      %v7090 = vpop.permute.xlu0 %7089
      %7091 = vrot.lane.b32.xlu0 %v5641, 24
      %v7092 = vpop.permute.xlu0 %7091
      %7093 = vrot.lane.b32.xlu0 %v5658, 24
      %v7094 = vpop.permute.xlu0 %7093
      %7095 = vrot.lane.b32.xlu0 %v5675, 24
      %v7096 = vpop.permute.xlu0 %7095
      %7097 = vrot.lane.b32.xlu0 %v5692, 24
      %v7098 = vpop.permute.xlu0 %7097
      %7099 = vrot.lane.b32.xlu0 %v7021, 24
      %v7100 = vpop.permute.xlu0 %7099
      %7101 = vrot.lane.b32.xlu0 %v7038, 24
      %v7102 = vpop.permute.xlu0 %7101
      %v7135 = vcombine.low %v5102, %v5105
      %v7136 = vcombine.low %v5108, %v5111
      %v7138 = vunpack.c.l.s4 1983009808
      %v7139 = vunpack.c.0.s8 %v7138
      %v7140 = vlaneseq
      %v7141 = vshrl.u32 %v7140, 7
      %v7142 = vsub.s32 %v7139, %v7141
      %v7143 = vrot.slane %v7135, %v7142
      %v7145 = vunpack.c.l.s4 1983009808
      %v7146 = vunpack.c.0.s8 %v7145
      %v7147 = vlaneseq
      %v7148 = vshrl.u32 %v7147, 7
      %v7149 = vsub.s32 %v7146, %v7148
      %v7150 = vrot.slane %v7136, %v7149
      %v7151 = vcombine.low %v7143, %v7150
      %v7152 = vcombine.low %v5114, %v5117
      %v7153 = vcombine.low %v5120, %v5123
      %v7155 = vunpack.c.l.s4 1983009808
      %v7156 = vunpack.c.0.s8 %v7155
      %v7157 = vlaneseq
      %v7158 = vshrl.u32 %v7157, 7
      %v7159 = vsub.s32 %v7156, %v7158
      %v7160 = vrot.slane %v7152, %v7159
      %v7162 = vunpack.c.l.s4 1983009808
      %v7163 = vunpack.c.0.s8 %v7162
      %v7164 = vlaneseq
      %v7165 = vshrl.u32 %v7164, 7
      %v7166 = vsub.s32 %v7163, %v7165
      %v7167 = vrot.slane %v7153, %v7166
      %v7168 = vcombine.low %v7160, %v7167
      %7169 = vrot.lane.b32.xlu0 %v5775, 32
      %v7170 = vpop.permute.xlu0 %7169
      %7171 = vrot.lane.b32.xlu0 %v5792, 32
      %v7172 = vpop.permute.xlu0 %7171
      %7173 = vrot.lane.b32.xlu0 %v5809, 32
      %v7174 = vpop.permute.xlu0 %7173
      %7175 = vrot.lane.b32.xlu0 %v5826, 32
      %v7176 = vpop.permute.xlu0 %7175
      %7177 = vrot.lane.b32.xlu0 %v5843, 32
      %v7178 = vpop.permute.xlu0 %7177
      %7179 = vrot.lane.b32.xlu0 %v5860, 32
      %v7180 = vpop.permute.xlu0 %7179
      %7181 = vrot.lane.b32.xlu0 %v5877, 32
      %v7182 = vpop.permute.xlu0 %7181
      %7183 = vrot.lane.b32.xlu0 %v5894, 32
      %v7184 = vpop.permute.xlu0 %7183
      %7185 = vrot.lane.b32.xlu0 %v5911, 32
      %v7186 = vpop.permute.xlu0 %7185
      %7187 = vrot.lane.b32.xlu0 %v5928, 32
      %v7188 = vpop.permute.xlu0 %7187
      %7189 = vrot.lane.b32.xlu0 %v5945, 32
      %v7190 = vpop.permute.xlu0 %7189
      %7191 = vrot.lane.b32.xlu0 %v5962, 32
      %v7192 = vpop.permute.xlu0 %7191
      %7193 = vrot.lane.b32.xlu0 %v5979, 32
      %v7194 = vpop.permute.xlu0 %7193
      %7195 = vrot.lane.b32.xlu0 %v5996, 32
      %v7196 = vpop.permute.xlu0 %7195
      %7197 = vrot.lane.b32.xlu0 %v6013, 32
      %v7198 = vpop.permute.xlu0 %7197
      %7199 = vrot.lane.b32.xlu0 %v6030, 32
      %v7200 = vpop.permute.xlu0 %7199
      %7201 = vrot.lane.b32.xlu0 %v6047, 32
      %v7202 = vpop.permute.xlu0 %7201
      %7203 = vrot.lane.b32.xlu0 %v6064, 32
      %v7204 = vpop.permute.xlu0 %7203
      %7205 = vrot.lane.b32.xlu0 %v6081, 32
      %v7206 = vpop.permute.xlu0 %7205
      %7207 = vrot.lane.b32.xlu0 %v6098, 32
      %v7208 = vpop.permute.xlu0 %7207
      %7209 = vrot.lane.b32.xlu0 %v6115, 32
      %v7210 = vpop.permute.xlu0 %7209
      %7211 = vrot.lane.b32.xlu0 %v6132, 32
      %v7212 = vpop.permute.xlu0 %7211
      %7213 = vrot.lane.b32.xlu0 %v6149, 32
      %v7214 = vpop.permute.xlu0 %7213
      %7215 = vrot.lane.b32.xlu0 %v6166, 32
      %v7216 = vpop.permute.xlu0 %7215
      %7217 = vrot.lane.b32.xlu0 %v6183, 32
      %v7218 = vpop.permute.xlu0 %7217
      %7219 = vrot.lane.b32.xlu0 %v6200, 32
      %v7220 = vpop.permute.xlu0 %7219
      %7221 = vrot.lane.b32.xlu0 %v6217, 32
      %v7222 = vpop.permute.xlu0 %7221
      %7223 = vrot.lane.b32.xlu0 %v6234, 32
      %v7224 = vpop.permute.xlu0 %7223
      %7225 = vrot.lane.b32.xlu0 %v6251, 32
      %v7226 = vpop.permute.xlu0 %7225
      %7227 = vrot.lane.b32.xlu0 %v6268, 32
      %v7228 = vpop.permute.xlu0 %7227
      %7229 = vrot.lane.b32.xlu0 %v7151, 32
      %v7230 = vpop.permute.xlu0 %7229
      %7231 = vrot.lane.b32.xlu0 %v7168, 32
      %v7232 = vpop.permute.xlu0 %7231
      %v7265 = vcombine.low %v4638, %v4637
      %v7266 = vcombine.low %v4639, %v4647
      %v7268 = vunpack.c.l.s4 1983009808
      %v7269 = vunpack.c.0.s8 %v7268
      %v7270 = vlaneseq
      %v7271 = vshrl.u32 %v7270, 7
      %v7272 = vsub.s32 %v7269, %v7271
      %v7273 = vrot.slane %v7265, %v7272
      %v7275 = vunpack.c.l.s4 1983009808
      %v7276 = vunpack.c.0.s8 %v7275
      %v7277 = vlaneseq
      %v7278 = vshrl.u32 %v7277, 7
      %v7279 = vsub.s32 %v7276, %v7278
      %v7280 = vrot.slane %v7266, %v7279
      %v7281 = vcombine.low %v7273, %v7280
      %v7282 = vcombine.low %v4655, %v4654
      %v7283 = vcombine.low %v4656, %v4664
      %v7285 = vunpack.c.l.s4 1983009808
      %v7286 = vunpack.c.0.s8 %v7285
      %v7287 = vlaneseq
      %v7288 = vshrl.u32 %v7287, 7
      %v7289 = vsub.s32 %v7286, %v7288
      %v7290 = vrot.slane %v7282, %v7289
      %v7292 = vunpack.c.l.s4 1983009808
      %v7293 = vunpack.c.0.s8 %v7292
      %v7294 = vlaneseq
      %v7295 = vshrl.u32 %v7294, 7
      %v7296 = vsub.s32 %v7293, %v7295
      %v7297 = vrot.slane %v7283, %v7296
      %v7298 = vcombine.low %v7290, %v7297
      %7299 = vrot.lane.b32.xlu0 %v6415, 40
      %v7300 = vpop.permute.xlu0 %7299
      %7301 = vrot.lane.b32.xlu0 %v6432, 40
      %v7302 = vpop.permute.xlu0 %7301
      %7303 = vrot.lane.b32.xlu0 %v6449, 40
      %v7304 = vpop.permute.xlu0 %7303
      %7305 = vrot.lane.b32.xlu0 %v6466, 40
      %v7306 = vpop.permute.xlu0 %7305
      %7307 = vrot.lane.b32.xlu0 %v6483, 40
      %v7308 = vpop.permute.xlu0 %7307
      %7309 = vrot.lane.b32.xlu0 %v6500, 40
      %v7310 = vpop.permute.xlu0 %7309
      %7311 = vrot.lane.b32.xlu0 %v6517, 40
      %v7312 = vpop.permute.xlu0 %7311
      %7313 = vrot.lane.b32.xlu0 %v6534, 40
      %v7314 = vpop.permute.xlu0 %7313
      %7315 = vrot.lane.b32.xlu0 %v6551, 40
      %v7316 = vpop.permute.xlu0 %7315
      %7317 = vrot.lane.b32.xlu0 %v6568, 40
      %v7318 = vpop.permute.xlu0 %7317
      %7319 = vrot.lane.b32.xlu0 %v6585, 40
      %v7320 = vpop.permute.xlu0 %7319
      %7321 = vrot.lane.b32.xlu0 %v6602, 40
      %v7322 = vpop.permute.xlu0 %7321
      %7323 = vrot.lane.b32.xlu0 %v6619, 40
      %v7324 = vpop.permute.xlu0 %7323
      %7325 = vrot.lane.b32.xlu0 %v6636, 40
      %v7326 = vpop.permute.xlu0 %7325
      %7327 = vrot.lane.b32.xlu0 %v6653, 40
      %v7328 = vpop.permute.xlu0 %7327
      %7329 = vrot.lane.b32.xlu0 %v6670, 40
      %v7330 = vpop.permute.xlu0 %7329
      %7331 = vrot.lane.b32.xlu0 %v6687, 40
      %v7332 = vpop.permute.xlu0 %7331
      %7333 = vrot.lane.b32.xlu0 %v6704, 40
      %v7334 = vpop.permute.xlu0 %7333
      %7335 = vrot.lane.b32.xlu0 %v6721, 40
      %v7336 = vpop.permute.xlu0 %7335
      %7337 = vrot.lane.b32.xlu0 %v6738, 40
      %v7338 = vpop.permute.xlu0 %7337
      %7339 = vrot.lane.b32.xlu0 %v6755, 40
      %v7340 = vpop.permute.xlu0 %7339
      %7341 = vrot.lane.b32.xlu0 %v6772, 40
      %v7342 = vpop.permute.xlu0 %7341
      %7343 = vrot.lane.b32.xlu0 %v6789, 40
      %v7344 = vpop.permute.xlu0 %7343
      %7345 = vrot.lane.b32.xlu0 %v6806, 40
      %v7346 = vpop.permute.xlu0 %7345
      %7347 = vrot.lane.b32.xlu0 %v6823, 40
      %v7348 = vpop.permute.xlu0 %7347
      %7349 = vrot.lane.b32.xlu0 %v6840, 40
      %v7350 = vpop.permute.xlu0 %7349
      %7351 = vrot.lane.b32.xlu0 %v6857, 40
      %v7352 = vpop.permute.xlu0 %7351
      %7353 = vrot.lane.b32.xlu0 %v6874, 40
      %v7354 = vpop.permute.xlu0 %7353
      %7355 = vrot.lane.b32.xlu0 %v6891, 40
      %v7356 = vpop.permute.xlu0 %7355
      %7357 = vrot.lane.b32.xlu0 %v6908, 40
      %v7358 = vpop.permute.xlu0 %7357
      %7359 = vrot.lane.b32.xlu0 %v7281, 40
      %v7360 = vpop.permute.xlu0 %7359
      %7361 = vrot.lane.b32.xlu0 %v7298, 40
      %v7362 = vpop.permute.xlu0 %7361
      %v7395 = vcombine.low %v4672, %v4671
      %v7396 = vcombine.low %v4673, %v4681
      %v7398 = vunpack.c.l.s4 1983009808
      %v7399 = vunpack.c.0.s8 %v7398
      %v7400 = vlaneseq
      %v7401 = vshrl.u32 %v7400, 7
      %v7402 = vsub.s32 %v7399, %v7401
      %v7403 = vrot.slane %v7395, %v7402
      %v7405 = vunpack.c.l.s4 1983009808
      %v7406 = vunpack.c.0.s8 %v7405
      %v7407 = vlaneseq
      %v7408 = vshrl.u32 %v7407, 7
      %v7409 = vsub.s32 %v7406, %v7408
      %v7410 = vrot.slane %v7396, %v7409
      %v7411 = vcombine.low %v7403, %v7410
      %v7412 = vcombine.low %v4689, %v4688
      %v7413 = vcombine.low %v4690, %v4697
      %v7415 = vunpack.c.l.s4 1983009808
      %v7416 = vunpack.c.0.s8 %v7415
      %v7417 = vlaneseq
      %v7418 = vshrl.u32 %v7417, 7
      %v7419 = vsub.s32 %v7416, %v7418
      %v7420 = vrot.slane %v7412, %v7419
      %v7422 = vunpack.c.l.s4 1983009808
      %v7423 = vunpack.c.0.s8 %v7422
      %v7424 = vlaneseq
      %v7425 = vshrl.u32 %v7424, 7
      %v7426 = vsub.s32 %v7423, %v7425
      %v7427 = vrot.slane %v7413, %v7426
      %v7428 = vcombine.low %v7420, %v7427
      %7429 = vrot.lane.b32.xlu0 %v5233, 48
      %v7430 = vpop.permute.xlu0 %7429
      %7431 = vrot.lane.b32.xlu0 %v5250, 48
      %v7432 = vpop.permute.xlu0 %7431
      %7433 = vrot.lane.b32.xlu0 %v5267, 48
      %v7434 = vpop.permute.xlu0 %7433
      %7435 = vrot.lane.b32.xlu0 %v5284, 48
      %v7436 = vpop.permute.xlu0 %7435
      %7437 = vrot.lane.b32.xlu0 %v5301, 48
      %v7438 = vpop.permute.xlu0 %7437
      %7439 = vrot.lane.b32.xlu0 %v5318, 48
      %v7440 = vpop.permute.xlu0 %7439
      %7441 = vrot.lane.b32.xlu0 %v5335, 48
      %v7442 = vpop.permute.xlu0 %7441
      %7443 = vrot.lane.b32.xlu0 %v5352, 48
      %v7444 = vpop.permute.xlu0 %7443
      %7445 = vrot.lane.b32.xlu0 %v5369, 48
      %v7446 = vpop.permute.xlu0 %7445
      %7447 = vrot.lane.b32.xlu0 %v5386, 48
      %v7448 = vpop.permute.xlu0 %7447
      %7449 = vrot.lane.b32.xlu0 %v5403, 48
      %v7450 = vpop.permute.xlu0 %7449
      %7451 = vrot.lane.b32.xlu0 %v5420, 48
      %v7452 = vpop.permute.xlu0 %7451
      %7453 = vrot.lane.b32.xlu0 %v5437, 48
      %v7454 = vpop.permute.xlu0 %7453
      %7455 = vrot.lane.b32.xlu0 %v5454, 48
      %v7456 = vpop.permute.xlu0 %7455
      %7457 = vrot.lane.b32.xlu0 %v5471, 48
      %v7458 = vpop.permute.xlu0 %7457
      %7459 = vrot.lane.b32.xlu0 %v5488, 48
      %v7460 = vpop.permute.xlu0 %7459
      %7461 = vrot.lane.b32.xlu0 %v5505, 48
      %v7462 = vpop.permute.xlu0 %7461
      %7463 = vrot.lane.b32.xlu0 %v5522, 48
      %v7464 = vpop.permute.xlu0 %7463
      %7465 = vrot.lane.b32.xlu0 %v5539, 48
      %v7466 = vpop.permute.xlu0 %7465
      %7467 = vrot.lane.b32.xlu0 %v5556, 48
      %v7468 = vpop.permute.xlu0 %7467
      %7469 = vrot.lane.b32.xlu0 %v5573, 48
      %v7470 = vpop.permute.xlu0 %7469
      %7471 = vrot.lane.b32.xlu0 %v5590, 48
      %v7472 = vpop.permute.xlu0 %7471
      %7473 = vrot.lane.b32.xlu0 %v5607, 48
      %v7474 = vpop.permute.xlu0 %7473
      %7475 = vrot.lane.b32.xlu0 %v5624, 48
      %v7476 = vpop.permute.xlu0 %7475
      %7477 = vrot.lane.b32.xlu0 %v5641, 48
      %v7478 = vpop.permute.xlu0 %7477
      %7479 = vrot.lane.b32.xlu0 %v5658, 48
      %v7480 = vpop.permute.xlu0 %7479
      %7481 = vrot.lane.b32.xlu0 %v5675, 48
      %v7482 = vpop.permute.xlu0 %7481
      %7483 = vrot.lane.b32.xlu0 %v5692, 48
      %v7484 = vpop.permute.xlu0 %7483
      %7485 = vrot.lane.b32.xlu0 %v7021, 48
      %v7486 = vpop.permute.xlu0 %7485
      %7487 = vrot.lane.b32.xlu0 %v7038, 48
      %v7488 = vpop.permute.xlu0 %7487
      %7489 = vrot.lane.b32.xlu0 %v7411, 48
      %v7490 = vpop.permute.xlu0 %7489
      %7491 = vrot.lane.b32.xlu0 %v7428, 48
      %v7492 = vpop.permute.xlu0 %7491
      %v7525 = vcombine.low %v5127, %v5130
      %v7526 = vcombine.low %v5133, %v5136
      %v7528 = vunpack.c.l.s4 1983009808
      %v7529 = vunpack.c.0.s8 %v7528
      %v7530 = vlaneseq
      %v7531 = vshrl.u32 %v7530, 7
      %v7532 = vsub.s32 %v7529, %v7531
      %v7533 = vrot.slane %v7525, %v7532
      %v7535 = vunpack.c.l.s4 1983009808
      %v7536 = vunpack.c.0.s8 %v7535
      %v7537 = vlaneseq
      %v7538 = vshrl.u32 %v7537, 7
      %v7539 = vsub.s32 %v7536, %v7538
      %v7540 = vrot.slane %v7526, %v7539
      %v7541 = vcombine.low %v7533, %v7540
      %v7542 = vcombine.low %v5139, %v5142
      %v7543 = vcombine.low %v5145, %v5148
      %v7545 = vunpack.c.l.s4 1983009808
      %v7546 = vunpack.c.0.s8 %v7545
      %v7547 = vlaneseq
      %v7548 = vshrl.u32 %v7547, 7
      %v7549 = vsub.s32 %v7546, %v7548
      %v7550 = vrot.slane %v7542, %v7549
      %v7552 = vunpack.c.l.s4 1983009808
      %v7553 = vunpack.c.0.s8 %v7552
      %v7554 = vlaneseq
      %v7555 = vshrl.u32 %v7554, 7
      %v7556 = vsub.s32 %v7553, %v7555
      %v7557 = vrot.slane %v7543, %v7556
      %v7558 = vcombine.low %v7550, %v7557
      %7559 = vrot.lane.b32.xlu0 %v5809, 56
      %v7560 = vpop.permute.xlu0 %7559
      %7561 = vrot.lane.b32.xlu0 %v5826, 56
      %v7562 = vpop.permute.xlu0 %7561
      %7563 = vrot.lane.b32.xlu0 %v5843, 56
      %v7564 = vpop.permute.xlu0 %7563
      %7565 = vrot.lane.b32.xlu0 %v5860, 56
      %v7566 = vpop.permute.xlu0 %7565
      %7567 = vrot.lane.b32.xlu0 %v5877, 56
      %v7568 = vpop.permute.xlu0 %7567
      %7569 = vrot.lane.b32.xlu0 %v5894, 56
      %v7570 = vpop.permute.xlu0 %7569
      %7571 = vrot.lane.b32.xlu0 %v5911, 56
      %v7572 = vpop.permute.xlu0 %7571
      %7573 = vrot.lane.b32.xlu0 %v5928, 56
      %v7574 = vpop.permute.xlu0 %7573
      %7575 = vrot.lane.b32.xlu0 %v5945, 56
      %v7576 = vpop.permute.xlu0 %7575
      %7577 = vrot.lane.b32.xlu0 %v5962, 56
      %v7578 = vpop.permute.xlu0 %7577
      %7579 = vrot.lane.b32.xlu0 %v5979, 56
      %v7580 = vpop.permute.xlu0 %7579
      %7581 = vrot.lane.b32.xlu0 %v5996, 56
      %v7582 = vpop.permute.xlu0 %7581
      %7583 = vrot.lane.b32.xlu0 %v6013, 56
      %v7584 = vpop.permute.xlu0 %7583
      %7585 = vrot.lane.b32.xlu0 %v6030, 56
      %v7586 = vpop.permute.xlu0 %7585
      %7587 = vrot.lane.b32.xlu0 %v6047, 56
      %v7588 = vpop.permute.xlu0 %7587
      %7589 = vrot.lane.b32.xlu0 %v6064, 56
      %v7590 = vpop.permute.xlu0 %7589
      %7591 = vrot.lane.b32.xlu0 %v6081, 56
      %v7592 = vpop.permute.xlu0 %7591
      %7593 = vrot.lane.b32.xlu0 %v6098, 56
      %v7594 = vpop.permute.xlu0 %7593
      %7595 = vrot.lane.b32.xlu0 %v6115, 56
      %v7596 = vpop.permute.xlu0 %7595
      %7597 = vrot.lane.b32.xlu0 %v6132, 56
      %v7598 = vpop.permute.xlu0 %7597
      %7599 = vrot.lane.b32.xlu0 %v6149, 56
      %v7600 = vpop.permute.xlu0 %7599
      %7601 = vrot.lane.b32.xlu0 %v6166, 56
      %v7602 = vpop.permute.xlu0 %7601
      %7603 = vrot.lane.b32.xlu0 %v6183, 56
      %v7604 = vpop.permute.xlu0 %7603
      %7605 = vrot.lane.b32.xlu0 %v6200, 56
      %v7606 = vpop.permute.xlu0 %7605
      %7607 = vrot.lane.b32.xlu0 %v6217, 56
      %v7608 = vpop.permute.xlu0 %7607
      %7609 = vrot.lane.b32.xlu0 %v6234, 56
      %v7610 = vpop.permute.xlu0 %7609
      %7611 = vrot.lane.b32.xlu0 %v6251, 56
      %v7612 = vpop.permute.xlu0 %7611
      %7613 = vrot.lane.b32.xlu0 %v6268, 56
      %v7614 = vpop.permute.xlu0 %7613
      %7615 = vrot.lane.b32.xlu0 %v7151, 56
      %v7616 = vpop.permute.xlu0 %7615
      %7617 = vrot.lane.b32.xlu0 %v7168, 56
      %v7618 = vpop.permute.xlu0 %7617
      %7619 = vrot.lane.b32.xlu0 %v7541, 56
      %v7620 = vpop.permute.xlu0 %7619
      %7621 = vrot.lane.b32.xlu0 %v7558, 56
      %v7622 = vpop.permute.xlu0 %7621
      %v7655 = vcombine.low %v4671, %v4673
      %v7656 = vcombine.low %v4681, %v4689
      %v7658 = vunpack.c.l.s4 1983009808
      %v7659 = vunpack.c.0.s8 %v7658
      %v7660 = vlaneseq
      %v7661 = vshrl.u32 %v7660, 7
      %v7662 = vsub.s32 %v7659, %v7661
      %v7663 = vrot.slane %v7655, %v7662
      %v7665 = vunpack.c.l.s4 1983009808
      %v7666 = vunpack.c.0.s8 %v7665
      %v7667 = vlaneseq
      %v7668 = vshrl.u32 %v7667, 7
      %v7669 = vsub.s32 %v7666, %v7668
      %v7670 = vrot.slane %v7656, %v7669
      %v7671 = vcombine.low %v7663, %v7670
      %v7672 = vcombine.low %v4688, %v4690
      %v7673 = vcombine.low %v4697, %v4698
      %v7675 = vunpack.c.l.s4 1983009808
      %v7676 = vunpack.c.0.s8 %v7675
      %v7677 = vlaneseq
      %v7678 = vshrl.u32 %v7677, 7
      %v7679 = vsub.s32 %v7676, %v7678
      %v7680 = vrot.slane %v7672, %v7679
      %v7682 = vunpack.c.l.s4 1983009808
      %v7683 = vunpack.c.0.s8 %v7682
      %v7684 = vlaneseq
      %v7685 = vshrl.u32 %v7684, 7
      %v7686 = vsub.s32 %v7683, %v7685
      %v7687 = vrot.slane %v7673, %v7686
      %v7688 = vcombine.low %v7680, %v7687
      %7689 = vrot.lane.b32.xlu0 %v6449, 64
      %v7690 = vpop.permute.xlu0 %7689
      %7691 = vrot.lane.b32.xlu0 %v6466, 64
      %v7692 = vpop.permute.xlu0 %7691
      %7693 = vrot.lane.b32.xlu0 %v6483, 64
      %v7694 = vpop.permute.xlu0 %7693
      %7695 = vrot.lane.b32.xlu0 %v6500, 64
      %v7696 = vpop.permute.xlu0 %7695
      %7697 = vrot.lane.b32.xlu0 %v6517, 64
      %v7698 = vpop.permute.xlu0 %7697
      %7699 = vrot.lane.b32.xlu0 %v6534, 64
      %v7700 = vpop.permute.xlu0 %7699
      %7701 = vrot.lane.b32.xlu0 %v6551, 64
      %v7702 = vpop.permute.xlu0 %7701
      %7703 = vrot.lane.b32.xlu0 %v6568, 64
      %v7704 = vpop.permute.xlu0 %7703
      %7705 = vrot.lane.b32.xlu0 %v6585, 64
      %v7706 = vpop.permute.xlu0 %7705
      %7707 = vrot.lane.b32.xlu0 %v6602, 64
      %v7708 = vpop.permute.xlu0 %7707
      %7709 = vrot.lane.b32.xlu0 %v6619, 64
      %v7710 = vpop.permute.xlu0 %7709
      %7711 = vrot.lane.b32.xlu0 %v6636, 64
      %v7712 = vpop.permute.xlu0 %7711
      %7713 = vrot.lane.b32.xlu0 %v6653, 64
      %v7714 = vpop.permute.xlu0 %7713
      %7715 = vrot.lane.b32.xlu0 %v6670, 64
      %v7716 = vpop.permute.xlu0 %7715
      %7717 = vrot.lane.b32.xlu0 %v6687, 64
      %v7718 = vpop.permute.xlu0 %7717
      %7719 = vrot.lane.b32.xlu0 %v6704, 64
      %v7720 = vpop.permute.xlu0 %7719
      %7721 = vrot.lane.b32.xlu0 %v6721, 64
      %v7722 = vpop.permute.xlu0 %7721
      %7723 = vrot.lane.b32.xlu0 %v6738, 64
      %v7724 = vpop.permute.xlu0 %7723
      %7725 = vrot.lane.b32.xlu0 %v6755, 64
      %v7726 = vpop.permute.xlu0 %7725
      %7727 = vrot.lane.b32.xlu0 %v6772, 64
      %v7728 = vpop.permute.xlu0 %7727
      %7729 = vrot.lane.b32.xlu0 %v6789, 64
      %v7730 = vpop.permute.xlu0 %7729
      %7731 = vrot.lane.b32.xlu0 %v6806, 64
      %v7732 = vpop.permute.xlu0 %7731
      %7733 = vrot.lane.b32.xlu0 %v6823, 64
      %v7734 = vpop.permute.xlu0 %7733
      %7735 = vrot.lane.b32.xlu0 %v6840, 64
      %v7736 = vpop.permute.xlu0 %7735
      %7737 = vrot.lane.b32.xlu0 %v6857, 64
      %v7738 = vpop.permute.xlu0 %7737
      %7739 = vrot.lane.b32.xlu0 %v6874, 64
      %v7740 = vpop.permute.xlu0 %7739
      %7741 = vrot.lane.b32.xlu0 %v6891, 64
      %v7742 = vpop.permute.xlu0 %7741
      %7743 = vrot.lane.b32.xlu0 %v6908, 64
      %v7744 = vpop.permute.xlu0 %7743
      %7745 = vrot.lane.b32.xlu0 %v7281, 64
      %v7746 = vpop.permute.xlu0 %7745
      %7747 = vrot.lane.b32.xlu0 %v7298, 64
      %v7748 = vpop.permute.xlu0 %7747
      %7749 = vrot.lane.b32.xlu0 %v7671, 64
      %v7750 = vpop.permute.xlu0 %7749
      %7751 = vrot.lane.b32.xlu0 %v7688, 64
      %v7752 = vpop.permute.xlu0 %7751
      %v7785 = vsel %vm935, %v5165, %v6270
      %v7786 = vsel %vm935, %v5182, %v6272
      %v7787 = vsel %vm935, %v5199, %v6274
      %v7788 = vsel %vm935, %v5216, %v6276
      %v7789 = vsel %vm935, %v5233, %v6278
      %v7790 = vsel %vm935, %v5250, %v6280
      %v7791 = vsel %vm935, %v5267, %v6282
      %v7792 = vsel %vm935, %v5284, %v6284
      %v7793 = vsel %vm935, %v5301, %v6286
      %v7794 = vsel %vm935, %v5318, %v6288
      %v7795 = vsel %vm935, %v5335, %v6290
      %v7796 = vsel %vm935, %v5352, %v6292
      %v7797 = vsel %vm935, %v5369, %v6294
      %v7798 = vsel %vm935, %v5386, %v6296
      %v7799 = vsel %vm935, %v5403, %v6298
      %v7800 = vsel %vm935, %v5420, %v6300
      %v7801 = vsel %vm935, %v5437, %v6302
      %v7802 = vsel %vm935, %v5454, %v6304
      %v7803 = vsel %vm935, %v5471, %v6306
      %v7804 = vsel %vm935, %v5488, %v6308
      %v7805 = vsel %vm935, %v5505, %v6310
      %v7806 = vsel %vm935, %v5522, %v6312
      %v7807 = vsel %vm935, %v5539, %v6314
      %v7808 = vsel %vm935, %v5556, %v6316
      %v7809 = vsel %vm935, %v5573, %v6318
      %v7810 = vsel %vm935, %v5590, %v6320
      %v7811 = vsel %vm935, %v5607, %v6322
      %v7812 = vsel %vm935, %v5624, %v6324
      %v7813 = vsel %vm935, %v5641, %v6326
      %v7814 = vsel %vm935, %v5658, %v6328
      %v7815 = vsel %vm935, %v5675, %v6330
      %v7816 = vsel %vm935, %v5692, %v6332
      %v7817 = vsel %vm800, %v7785, %v6910
      %v7818 = vsel %vm800, %v7786, %v6912
      %v7819 = vsel %vm800, %v7787, %v6914
      %v7820 = vsel %vm800, %v7788, %v6916
      %v7821 = vsel %vm800, %v7789, %v6918
      %v7822 = vsel %vm800, %v7790, %v6920
      %v7823 = vsel %vm800, %v7791, %v6922
      %v7824 = vsel %vm800, %v7792, %v6924
      %v7825 = vsel %vm800, %v7793, %v6926
      %v7826 = vsel %vm800, %v7794, %v6928
      %v7827 = vsel %vm800, %v7795, %v6930
      %v7828 = vsel %vm800, %v7796, %v6932
      %v7829 = vsel %vm800, %v7797, %v6934
      %v7830 = vsel %vm800, %v7798, %v6936
      %v7831 = vsel %vm800, %v7799, %v6938
      %v7832 = vsel %vm800, %v7800, %v6940
      %v7833 = vsel %vm800, %v7801, %v6942
      %v7834 = vsel %vm800, %v7802, %v6944
      %v7835 = vsel %vm800, %v7803, %v6946
      %v7836 = vsel %vm800, %v7804, %v6948
      %v7837 = vsel %vm800, %v7805, %v6950
      %v7838 = vsel %vm800, %v7806, %v6952
      %v7839 = vsel %vm800, %v7807, %v6954
      %v7840 = vsel %vm800, %v7808, %v6956
      %v7841 = vsel %vm800, %v7809, %v6958
      %v7842 = vsel %vm800, %v7810, %v6960
      %v7843 = vsel %vm800, %v7811, %v6962
      %v7844 = vsel %vm800, %v7812, %v6964
      %v7845 = vsel %vm800, %v7813, %v6966
      %v7846 = vsel %vm800, %v7814, %v6968
      %v7847 = vsel %vm800, %v7815, %v6970
      %v7848 = vsel %vm800, %v7816, %v6972
      %vm7849 = vcmask 195584
      %v7850 = vsel %vm7849, %v7817, %v7040
      %v7851 = vsel %vm7849, %v7818, %v7042
      %v7852 = vsel %vm7849, %v7819, %v7044
      %v7853 = vsel %vm7849, %v7820, %v7046
      %v7854 = vsel %vm7849, %v7821, %v7048
      %v7855 = vsel %vm7849, %v7822, %v7050
      %v7856 = vsel %vm7849, %v7823, %v7052
      %v7857 = vsel %vm7849, %v7824, %v7054
      %v7858 = vsel %vm7849, %v7825, %v7056
      %v7859 = vsel %vm7849, %v7826, %v7058
      %v7860 = vsel %vm7849, %v7827, %v7060
      %v7861 = vsel %vm7849, %v7828, %v7062
      %v7862 = vsel %vm7849, %v7829, %v7064
      %v7863 = vsel %vm7849, %v7830, %v7066
      %v7864 = vsel %vm7849, %v7831, %v7068
      %v7865 = vsel %vm7849, %v7832, %v7070
      %v7866 = vsel %vm7849, %v7833, %v7072
      %v7867 = vsel %vm7849, %v7834, %v7074
      %v7868 = vsel %vm7849, %v7835, %v7076
      %v7869 = vsel %vm7849, %v7836, %v7078
      %v7870 = vsel %vm7849, %v7837, %v7080
      %v7871 = vsel %vm7849, %v7838, %v7082
      %v7872 = vsel %vm7849, %v7839, %v7084
      %v7873 = vsel %vm7849, %v7840, %v7086
      %v7874 = vsel %vm7849, %v7841, %v7088
      %v7875 = vsel %vm7849, %v7842, %v7090
      %v7876 = vsel %vm7849, %v7843, %v7092
      %v7877 = vsel %vm7849, %v7844, %v7094
      %v7878 = vsel %vm7849, %v7845, %v7096
      %v7879 = vsel %vm7849, %v7846, %v7098
      %v7880 = vsel %vm7849, %v7847, %v7100
      %v7881 = vsel %vm7849, %v7848, %v7102
      %v7882 = vsel %vm1701, %v7850, %v7170
      %v7883 = vsel %vm1701, %v7851, %v7172
      %v7884 = vsel %vm1701, %v7852, %v7174
      %v7885 = vsel %vm1701, %v7853, %v7176
      %v7886 = vsel %vm1701, %v7854, %v7178
      %v7887 = vsel %vm1701, %v7855, %v7180
      %v7888 = vsel %vm1701, %v7856, %v7182
      %v7889 = vsel %vm1701, %v7857, %v7184
      %v7890 = vsel %vm1701, %v7858, %v7186
      %v7891 = vsel %vm1701, %v7859, %v7188
      %v7892 = vsel %vm1701, %v7860, %v7190
      %v7893 = vsel %vm1701, %v7861, %v7192
      %v7894 = vsel %vm1701, %v7862, %v7194
      %v7895 = vsel %vm1701, %v7863, %v7196
      %v7896 = vsel %vm1701, %v7864, %v7198
      %v7897 = vsel %vm1701, %v7865, %v7200
      %v7898 = vsel %vm1701, %v7866, %v7202
      %v7899 = vsel %vm1701, %v7867, %v7204
      %v7900 = vsel %vm1701, %v7868, %v7206
      %v7901 = vsel %vm1701, %v7869, %v7208
      %v7902 = vsel %vm1701, %v7870, %v7210
      %v7903 = vsel %vm1701, %v7871, %v7212
      %v7904 = vsel %vm1701, %v7872, %v7214
      %v7905 = vsel %vm1701, %v7873, %v7216
      %v7906 = vsel %vm1701, %v7874, %v7218
      %v7907 = vsel %vm1701, %v7875, %v7220
      %v7908 = vsel %vm1701, %v7876, %v7222
      %v7909 = vsel %vm1701, %v7877, %v7224
      %v7910 = vsel %vm1701, %v7878, %v7226
      %v7911 = vsel %vm1701, %v7879, %v7228
      %v7912 = vsel %vm1701, %v7880, %v7230
      %v7913 = vsel %vm1701, %v7881, %v7232
      %vm7914 = vcmask 326656
      %v7915 = vsel %vm7914, %v7882, %v7300
      %v7916 = vsel %vm7914, %v7883, %v7302
      %v7917 = vsel %vm7914, %v7884, %v7304
      %v7918 = vsel %vm7914, %v7885, %v7306
      %v7919 = vsel %vm7914, %v7886, %v7308
      %v7920 = vsel %vm7914, %v7887, %v7310
      %v7921 = vsel %vm7914, %v7888, %v7312
      %v7922 = vsel %vm7914, %v7889, %v7314
      %v7923 = vsel %vm7914, %v7890, %v7316
      %v7924 = vsel %vm7914, %v7891, %v7318
      %v7925 = vsel %vm7914, %v7892, %v7320
      %v7926 = vsel %vm7914, %v7893, %v7322
      %v7927 = vsel %vm7914, %v7894, %v7324
      %v7928 = vsel %vm7914, %v7895, %v7326
      %v7929 = vsel %vm7914, %v7896, %v7328
      %v7930 = vsel %vm7914, %v7897, %v7330
      %v7931 = vsel %vm7914, %v7898, %v7332
      %v7932 = vsel %vm7914, %v7899, %v7334
      %v7933 = vsel %vm7914, %v7900, %v7336
      %v7934 = vsel %vm7914, %v7901, %v7338
      %v7935 = vsel %vm7914, %v7902, %v7340
      %v7936 = vsel %vm7914, %v7903, %v7342
      %v7937 = vsel %vm7914, %v7904, %v7344
      %v7938 = vsel %vm7914, %v7905, %v7346
      %v7939 = vsel %vm7914, %v7906, %v7348
      %v7940 = vsel %vm7914, %v7907, %v7350
      %v7941 = vsel %vm7914, %v7908, %v7352
      %v7942 = vsel %vm7914, %v7909, %v7354
      %v7943 = vsel %vm7914, %v7910, %v7356
      %v7944 = vsel %vm7914, %v7911, %v7358
      %v7945 = vsel %vm7914, %v7912, %v7360
      %v7946 = vsel %vm7914, %v7913, %v7362
      %v7947 = vsel %vm3075, %v7915, %v7430
      %v7948 = vsel %vm3075, %v7916, %v7432
      %v7949 = vsel %vm3075, %v7917, %v7434
      %v7950 = vsel %vm3075, %v7918, %v7436
      %v7951 = vsel %vm3075, %v7919, %v7438
      %v7952 = vsel %vm3075, %v7920, %v7440
      %v7953 = vsel %vm3075, %v7921, %v7442
      %v7954 = vsel %vm3075, %v7922, %v7444
      %v7955 = vsel %vm3075, %v7923, %v7446
      %v7956 = vsel %vm3075, %v7924, %v7448
      %v7957 = vsel %vm3075, %v7925, %v7450
      %v7958 = vsel %vm3075, %v7926, %v7452
      %v7959 = vsel %vm3075, %v7927, %v7454
      %v7960 = vsel %vm3075, %v7928, %v7456
      %v7961 = vsel %vm3075, %v7929, %v7458
      %v7962 = vsel %vm3075, %v7930, %v7460
      %v7963 = vsel %vm3075, %v7931, %v7462
      %v7964 = vsel %vm3075, %v7932, %v7464
      %v7965 = vsel %vm3075, %v7933, %v7466
      %v7966 = vsel %vm3075, %v7934, %v7468
      %v7967 = vsel %vm3075, %v7935, %v7470
      %v7968 = vsel %vm3075, %v7936, %v7472
      %v7969 = vsel %vm3075, %v7937, %v7474
      %v7970 = vsel %vm3075, %v7938, %v7476
      %v7971 = vsel %vm3075, %v7939, %v7478
      %v7972 = vsel %vm3075, %v7940, %v7480
      %v7973 = vsel %vm3075, %v7941, %v7482
      %v7974 = vsel %vm3075, %v7942, %v7484
      %v7975 = vsel %vm3075, %v7943, %v7486
      %v7976 = vsel %vm3075, %v7944, %v7488
      %v7977 = vsel %vm3075, %v7945, %v7490
      %v7978 = vsel %vm3075, %v7946, %v7492
      %vm7979 = vcmask 457728
      %v7980 = vsel %vm7979, %v7947, %v7560
      %v7981 = vsel %vm7979, %v7948, %v7562
      %v7982 = vsel %vm7979, %v7949, %v7564
      %v7983 = vsel %vm7979, %v7950, %v7566
      %v7984 = vsel %vm7979, %v7951, %v7568
      %v7985 = vsel %vm7979, %v7952, %v7570
      %v7986 = vsel %vm7979, %v7953, %v7572
      %v7987 = vsel %vm7979, %v7954, %v7574
      %v7988 = vsel %vm7979, %v7955, %v7576
      %v7989 = vsel %vm7979, %v7956, %v7578
      %v7990 = vsel %vm7979, %v7957, %v7580
      %v7991 = vsel %vm7979, %v7958, %v7582
      %v7992 = vsel %vm7979, %v7959, %v7584
      %v7993 = vsel %vm7979, %v7960, %v7586
      %v7994 = vsel %vm7979, %v7961, %v7588
      %v7995 = vsel %vm7979, %v7962, %v7590
      %v7996 = vsel %vm7979, %v7963, %v7592
      %v7997 = vsel %vm7979, %v7964, %v7594
      %v7998 = vsel %vm7979, %v7965, %v7596
      %v7999 = vsel %vm7979, %v7966, %v7598
      %v8000 = vsel %vm7979, %v7967, %v7600
      %v8001 = vsel %vm7979, %v7968, %v7602
      %v8002 = vsel %vm7979, %v7969, %v7604
      %v8003 = vsel %vm7979, %v7970, %v7606
      %v8004 = vsel %vm7979, %v7971, %v7608
      %v8005 = vsel %vm7979, %v7972, %v7610
      %v8006 = vsel %vm7979, %v7973, %v7612
      %v8007 = vsel %vm7979, %v7974, %v7614
      %v8008 = vsel %vm7979, %v7975, %v7616
      %v8009 = vsel %vm7979, %v7976, %v7618
      %v8010 = vsel %vm7979, %v7977, %v7620
      %v8011 = vsel %vm7979, %v7978, %v7622
      %v8012 = vsel %vm3084, %v7980, %v7690
      %v8013 = vsel %vm3084, %v7981, %v7692
      %v8014 = vsel %vm3084, %v7982, %v7694
      %v8015 = vsel %vm3084, %v7983, %v7696
      %v8016 = vsel %vm3084, %v7984, %v7698
      %v8017 = vsel %vm3084, %v7985, %v7700
      %v8018 = vsel %vm3084, %v7986, %v7702
      %v8019 = vsel %vm3084, %v7987, %v7704
      %v8020 = vsel %vm3084, %v7988, %v7706
      %v8021 = vsel %vm3084, %v7989, %v7708
      %v8022 = vsel %vm3084, %v7990, %v7710
      %v8023 = vsel %vm3084, %v7991, %v7712
      %v8024 = vsel %vm3084, %v7992, %v7714
      %v8025 = vsel %vm3084, %v7993, %v7716
      %v8026 = vsel %vm3084, %v7994, %v7718
      %v8027 = vsel %vm3084, %v7995, %v7720
      %v8028 = vsel %vm3084, %v7996, %v7722
      %v8029 = vsel %vm3084, %v7997, %v7724
      %v8030 = vsel %vm3084, %v7998, %v7726
      %v8031 = vsel %vm3084, %v7999, %v7728
      %v8032 = vsel %vm3084, %v8000, %v7730
      %v8033 = vsel %vm3084, %v8001, %v7732
      %v8034 = vsel %vm3084, %v8002, %v7734
      %v8035 = vsel %vm3084, %v8003, %v7736
      %v8036 = vsel %vm3084, %v8004, %v7738
      %v8037 = vsel %vm3084, %v8005, %v7740
      %v8038 = vsel %vm3084, %v8006, %v7742
      %v8039 = vsel %vm3084, %v8007, %v7744
      %v8040 = vsel %vm3084, %v8008, %v7746
      %v8041 = vsel %vm3084, %v8009, %v7748
      %v8042 = vsel %vm3084, %v8010, %v7750
      %v8043 = vsel %vm3084, %v8011, %v7752
      %v8044 = vld [vmem:[%s20] sm:$0xff]
      %v8045 = vld [vmem:[%s20 + $0x8] sm:$0xff]
      %v8046 = vld [vmem:[%s20 + $0x10] sm:$0xff]
      %v8047 = vld [vmem:[%s20 + $0x18] sm:$0xff]
      %v8048 = vld [vmem:[%s20 + $0x20] sm:$0xff]
      %v8049 = vld [vmem:[%s20 + $0x28] sm:$0xff]
      %v8050 = vld [vmem:[%s20 + $0x30] sm:$0xff]
      %v8051 = vld [vmem:[%s20 + $0x38] sm:$0xff]
      %v8052 = vld [vmem:[%s20 + $0x40] sm:$0xff]
      %v8053 = vld [vmem:[%s21] sm:$0x1]
      %v8055 = vlaneseq
      %v8056 = vshrl.u32 %v8055, 7
      %v8057 = vsub.s32 0, %v8056
      %v8058 = vrot.slane %v8053, %v8057
      %vm8060 = vcmask 588800
      %v8062 = vsel %vm8060, %v8012, 0
      %v8065 = vsel %vm8060, %v8013, 0
      %v8068 = vsel %vm8060, %v8014, 0
      %v8071 = vsel %vm8060, %v8015, 0
      %v8074 = vsel %vm8060, %v8016, 0
      %v8077 = vsel %vm8060, %v8017, 0
      %v8080 = vsel %vm8060, %v8018, 0
      %v8083 = vsel %vm8060, %v8019, 0
      %v8086 = vsel %vm8060, %v8020, 0
      %v8089 = vsel %vm8060, %v8021, 0
      %v8092 = vsel %vm8060, %v8022, 0
      %v8095 = vsel %vm8060, %v8023, 0
      %v8098 = vsel %vm8060, %v8024, 0
      %v8101 = vsel %vm8060, %v8025, 0
      %v8104 = vsel %vm8060, %v8026, 0
      %v8107 = vsel %vm8060, %v8027, 0
      %v8110 = vsel %vm8060, %v8028, 0
      %v8113 = vsel %vm8060, %v8029, 0
      %v8116 = vsel %vm8060, %v8030, 0
      %v8119 = vsel %vm8060, %v8031, 0
      %v8122 = vsel %vm8060, %v8032, 0
      %v8125 = vsel %vm8060, %v8033, 0
      %v8128 = vsel %vm8060, %v8034, 0
      %v8131 = vsel %vm8060, %v8035, 0
      %v8134 = vsel %vm8060, %v8036, 0
      %v8137 = vsel %vm8060, %v8037, 0
      %v8140 = vsel %vm8060, %v8038, 0
      %v8143 = vsel %vm8060, %v8039, 0
      %v8146 = vsel %vm8060, %v8040, 0
      %v8149 = vsel %vm8060, %v8041, 0
      %v8152 = vsel %vm8060, %v8042, 0
      %v8155 = vsel %vm8060, %v8043, 0
      %8157 = vmatprep.subr.mxu0 0.0
      %8158 = vmatpush1.msra.mxu0 0.0
      %8159 = vmatprep.subr.mxu0 0.0
      %8160 = vmatpush1.msra.mxu0 0.0
      %8161 = vmatprep.subr.mxu0 0.0
      %8162 = vmatpush1.msra.mxu0 0.0
      %8163 = vmatprep.subr.mxu0 0.0
      %8164 = vmatpush1.msra.mxu0 0.0
      %8165 = vmatprep.subr.mxu0 0.0
      %8166 = vmatpush1.msra.mxu0 0.0
      %8167 = vmatprep.subr.mxu0 0.0
      %8168 = vmatpush1.msra.mxu0 0.0
      %8169 = vmatprep.subr.mxu0 0.0
      %8170 = vmatpush1.msra.mxu0 0.0
      %8171 = vmatprep.subr.mxu0 0.0
      %8172 = vmatpush1.msra.mxu0 %v8052
      %8173 = vmatprep.subr.mxu0 0.0
      %8174 = vmatpush1.msra.mxu0 %v8051
      %8175 = vmatprep.subr.mxu0 0.0
      %8176 = vmatpush1.msra.mxu0 %v8050
      %8177 = vmatprep.subr.mxu0 0.0
      %8178 = vmatpush1.msra.mxu0 %v8049
      %8179 = vmatprep.subr.mxu0 0.0
      %8180 = vmatpush1.msra.mxu0 %v8048
      %8181 = vmatprep.subr.mxu0 0.0
      %8182 = vmatpush1.msra.mxu0 %v8047
      %8183 = vmatprep.subr.mxu0 0.0
      %8184 = vmatpush1.msra.mxu0 %v8046
      %8185 = vmatprep.subr.mxu0 0.0
      %8186 = vmatpush1.msra.mxu0 %v8045
      %8187 = vmatprep.subr.mxu0 0.0
      %8188 = vmatpush1.msra.mxu0 %v8044
      %8189 = vmatprep.subr.mxu0 0.0
      %8190 = vmatpush2.msra.mxu0 0.0
      %8191 = vmatprep.subr.mxu0 0.0
      %8192 = vmatpush2.msra.mxu0 0.0
      %8193 = vmatprep.subr.mxu0 0.0
      %8194 = vmatpush2.msra.mxu0 0.0
      %8195 = vmatprep.subr.mxu0 0.0
      %8196 = vmatpush2.msra.mxu0 0.0
      %8197 = vmatprep.subr.mxu0 0.0
      %8198 = vmatpush2.msra.mxu0 0.0
      %8199 = vmatprep.subr.mxu0 0.0
      %8200 = vmatpush2.msra.mxu0 0.0
      %8201 = vmatprep.subr.mxu0 0.0
      %8202 = vmatpush2.msra.mxu0 0.0
      %8203 = vmatprep.subr.mxu0 0.0
      %8204 = vmatpush2.msra.mxu0 0.0
      %8205 = vmatprep.subr.mxu0 0.0
      %8206 = vmatpush2.msra.mxu0 0.0
      %8207 = vmatprep.subr.mxu0 0.0
      %8208 = vmatpush2.msra.mxu0 0.0
      %8209 = vmatprep.subr.mxu0 0.0
      %8210 = vmatpush2.msra.mxu0 0.0
      %8211 = vmatprep.subr.mxu0 0.0
      %8212 = vmatpush2.msra.mxu0 0.0
      %8213 = vmatprep.subr.mxu0 0.0
      %8214 = vmatpush2.msra.mxu0 0.0
      %8215 = vmatprep.subr.mxu0 0.0
      %8216 = vmatpush2.msra.mxu0 0.0
      %8217 = vmatprep.subr.mxu0 0.0
      %8218 = vmatpush2.msra.mxu0 0.0
      %8219 = vmatprep.subr.mxu0 0.0
      %8220 = vmatpush2.msra.mxu0 0.0
      %8221 = vmatprep.mubr.f32.mxu0 0.0
      %8222 = vmatmul.mubr.f32.gmra.mxu0 %v8062
      %v8223 = vpop.f32.mrf.mxu0
      %v8224 = vadd.f32 %v8058, %v8223
      %v8225 = vpop.f32.mrf.mxu0
      %8226 = vmatprep.mubr.f32.mxu0 0.0
      %8227 = vmatmul.mubr.f32.gmra.mxu0 %v8065
      %v8228 = vpop.f32.mrf.mxu0
      %v8229 = vadd.f32 %v8058, %v8228
      %v8230 = vpop.f32.mrf.mxu0
      %8231 = vmatprep.mubr.f32.mxu0 0.0
      %8232 = vmatmul.mubr.f32.gmra.mxu0 %v8068
      %v8233 = vpop.f32.mrf.mxu0
      %v8234 = vadd.f32 %v8058, %v8233
      %v8235 = vpop.f32.mrf.mxu0
      %8236 = vmatprep.mubr.f32.mxu0 0.0
      %8237 = vmatmul.mubr.f32.gmra.mxu0 %v8071
      %v8238 = vpop.f32.mrf.mxu0
      %v8239 = vadd.f32 %v8058, %v8238
      %v8240 = vpop.f32.mrf.mxu0
      %8241 = vmatprep.mubr.f32.mxu0 0.0
      %8242 = vmatmul.mubr.f32.gmra.mxu0 %v8074
      %v8243 = vpop.f32.mrf.mxu0
      %v8244 = vadd.f32 %v8058, %v8243
      %v8245 = vpop.f32.mrf.mxu0
      %8246 = vmatprep.mubr.f32.mxu0 0.0
      %8247 = vmatmul.mubr.f32.gmra.mxu0 %v8077
      %v8248 = vpop.f32.mrf.mxu0
      %v8249 = vadd.f32 %v8058, %v8248
      %v8250 = vpop.f32.mrf.mxu0
      %8251 = vmatprep.mubr.f32.mxu0 0.0
      %8252 = vmatmul.mubr.f32.gmra.mxu0 %v8080
      %v8253 = vpop.f32.mrf.mxu0
      %v8254 = vadd.f32 %v8058, %v8253
      %v8255 = vpop.f32.mrf.mxu0
      %8256 = vmatprep.mubr.f32.mxu0 0.0
      %8257 = vmatmul.mubr.f32.gmra.mxu0 %v8083
      %v8258 = vpop.f32.mrf.mxu0
      %v8259 = vadd.f32 %v8058, %v8258
      %v8260 = vpop.f32.mrf.mxu0
      %8261 = vmatprep.mubr.f32.mxu0 0.0
      %8262 = vmatmul.mubr.f32.gmra.mxu0 %v8086
      %v8263 = vpop.f32.mrf.mxu0
      %v8264 = vadd.f32 %v8058, %v8263
      %v8265 = vpop.f32.mrf.mxu0
      %8266 = vmatprep.mubr.f32.mxu0 0.0
      %8267 = vmatmul.mubr.f32.gmra.mxu0 %v8089
      %v8268 = vpop.f32.mrf.mxu0
      %v8269 = vadd.f32 %v8058, %v8268
      %v8270 = vpop.f32.mrf.mxu0
      %8271 = vmatprep.mubr.f32.mxu0 0.0
      %8272 = vmatmul.mubr.f32.gmra.mxu0 %v8092
      %v8273 = vpop.f32.mrf.mxu0
      %v8274 = vadd.f32 %v8058, %v8273
      %v8275 = vpop.f32.mrf.mxu0
      %8276 = vmatprep.mubr.f32.mxu0 0.0
      %8277 = vmatmul.mubr.f32.gmra.mxu0 %v8095
      %v8278 = vpop.f32.mrf.mxu0
      %v8279 = vadd.f32 %v8058, %v8278
      %v8280 = vpop.f32.mrf.mxu0
      %8281 = vmatprep.mubr.f32.mxu0 0.0
      %8282 = vmatmul.mubr.f32.gmra.mxu0 %v8098
      %v8283 = vpop.f32.mrf.mxu0
      %v8284 = vadd.f32 %v8058, %v8283
      %v8285 = vpop.f32.mrf.mxu0
      %8286 = vmatprep.mubr.f32.mxu0 0.0
      %8287 = vmatmul.mubr.f32.gmra.mxu0 %v8101
      %v8288 = vpop.f32.mrf.mxu0
      %v8289 = vadd.f32 %v8058, %v8288
      %v8290 = vpop.f32.mrf.mxu0
      %8291 = vmatprep.mubr.f32.mxu0 0.0
      %8292 = vmatmul.mubr.f32.gmra.mxu0 %v8104
      %v8293 = vpop.f32.mrf.mxu0
      %v8294 = vadd.f32 %v8058, %v8293
      %v8295 = vpop.f32.mrf.mxu0
      %8296 = vmatprep.mubr.f32.mxu0 0.0
      %8297 = vmatmul.mubr.f32.gmra.mxu0 %v8107
      %v8298 = vpop.f32.mrf.mxu0
      %v8299 = vadd.f32 %v8058, %v8298
      %v8300 = vpop.f32.mrf.mxu0
      %8301 = vmatprep.mubr.f32.mxu0 0.0
      %8302 = vmatmul.mubr.f32.gmra.mxu0 %v8110
      %v8303 = vpop.f32.mrf.mxu0
      %v8304 = vadd.f32 %v8058, %v8303
      %v8305 = vpop.f32.mrf.mxu0
      %8306 = vmatprep.mubr.f32.mxu0 0.0
      %8307 = vmatmul.mubr.f32.gmra.mxu0 %v8113
      %v8308 = vpop.f32.mrf.mxu0
      %v8309 = vadd.f32 %v8058, %v8308
      %v8310 = vpop.f32.mrf.mxu0
      %8311 = vmatprep.mubr.f32.mxu0 0.0
      %8312 = vmatmul.mubr.f32.gmra.mxu0 %v8116
      %v8313 = vpop.f32.mrf.mxu0
      %v8314 = vadd.f32 %v8058, %v8313
      %v8315 = vpop.f32.mrf.mxu0
      %8316 = vmatprep.mubr.f32.mxu0 0.0
      %8317 = vmatmul.mubr.f32.gmra.mxu0 %v8119
      %v8318 = vpop.f32.mrf.mxu0
      %v8319 = vadd.f32 %v8058, %v8318
      %v8320 = vpop.f32.mrf.mxu0
      %8321 = vmatprep.mubr.f32.mxu0 0.0
      %8322 = vmatmul.mubr.f32.gmra.mxu0 %v8122
      %v8323 = vpop.f32.mrf.mxu0
      %v8324 = vadd.f32 %v8058, %v8323
      %v8325 = vpop.f32.mrf.mxu0
      %8326 = vmatprep.mubr.f32.mxu0 0.0
      %8327 = vmatmul.mubr.f32.gmra.mxu0 %v8125
      %v8328 = vpop.f32.mrf.mxu0
      %v8329 = vadd.f32 %v8058, %v8328
      %v8330 = vpop.f32.mrf.mxu0
      %8331 = vmatprep.mubr.f32.mxu0 0.0
      %8332 = vmatmul.mubr.f32.gmra.mxu0 %v8128
      %v8333 = vpop.f32.mrf.mxu0
      %v8334 = vadd.f32 %v8058, %v8333
      %v8335 = vpop.f32.mrf.mxu0
      %8336 = vmatprep.mubr.f32.mxu0 0.0
      %8337 = vmatmul.mubr.f32.gmra.mxu0 %v8131
      %v8338 = vpop.f32.mrf.mxu0
      %v8339 = vadd.f32 %v8058, %v8338
      %v8340 = vpop.f32.mrf.mxu0
      %8341 = vmatprep.mubr.f32.mxu0 0.0
      %8342 = vmatmul.mubr.f32.gmra.mxu0 %v8134
      %v8343 = vpop.f32.mrf.mxu0
      %v8344 = vadd.f32 %v8058, %v8343
      %v8345 = vpop.f32.mrf.mxu0
      %8346 = vmatprep.mubr.f32.mxu0 0.0
      %8347 = vmatmul.mubr.f32.gmra.mxu0 %v8137
      %v8348 = vpop.f32.mrf.mxu0
      %v8349 = vadd.f32 %v8058, %v8348
      %v8350 = vpop.f32.mrf.mxu0
      %8351 = vmatprep.mubr.f32.mxu0 0.0
      %8352 = vmatmul.mubr.f32.gmra.mxu0 %v8140
      %v8353 = vpop.f32.mrf.mxu0
      %v8354 = vadd.f32 %v8058, %v8353
      %v8355 = vpop.f32.mrf.mxu0
      %8356 = vmatprep.mubr.f32.mxu0 0.0
      %8357 = vmatmul.mubr.f32.gmra.mxu0 %v8143
      %v8358 = vpop.f32.mrf.mxu0
      %v8359 = vadd.f32 %v8058, %v8358
      %v8360 = vpop.f32.mrf.mxu0
      %8361 = vmatprep.mubr.f32.mxu0 0.0
      %8362 = vmatmul.mubr.f32.gmra.mxu0 %v8146
      %v8363 = vpop.f32.mrf.mxu0
      %v8364 = vadd.f32 %v8058, %v8363
      %v8365 = vpop.f32.mrf.mxu0
      %8366 = vmatprep.mubr.f32.mxu0 0.0
      %8367 = vmatmul.mubr.f32.gmra.mxu0 %v8149
      %v8368 = vpop.f32.mrf.mxu0
      %v8369 = vadd.f32 %v8058, %v8368
      %v8370 = vpop.f32.mrf.mxu0
      %8371 = vmatprep.mubr.f32.mxu0 0.0
      %8372 = vmatmul.mubr.f32.gmra.mxu0 %v8152
      %v8373 = vpop.f32.mrf.mxu0
      %v8374 = vadd.f32 %v8058, %v8373
      %v8375 = vpop.f32.mrf.mxu0
      %8376 = vmatprep.mubr.f32.mxu0 0.0
      %8377 = vmatmul.mubr.f32.gmra.mxu0 %v8155
      %v8378 = vpop.f32.mrf.mxu0
      %v8379 = vadd.f32 %v8058, %v8378
      %v8380 = vpop.f32.mrf.mxu0
      %8381 = vdwg.mxu0
      %v8382 = vld [vmem:[%s22] sm:$0x1]
      %v8384 = vlaneseq
      %v8385 = vshrl.u32 %v8384, 7
      %v8386 = vsub.s32 0, %v8385
      %v8387 = vrot.slane %v8382, %v8386
      %v8389 = vmul.f32 %v8224, %v8387
      %v8390 = vmul.f32 %v8229, %v8387
      %v8391 = vmul.f32 %v8234, %v8387
      %v8392 = vmul.f32 %v8239, %v8387
      %v8393 = vmul.f32 %v8244, %v8387
      %v8394 = vmul.f32 %v8249, %v8387
      %v8395 = vmul.f32 %v8254, %v8387
      %v8396 = vmul.f32 %v8259, %v8387
      %v8397 = vmul.f32 %v8264, %v8387
      %v8398 = vmul.f32 %v8269, %v8387
      %v8399 = vmul.f32 %v8274, %v8387
      %v8400 = vmul.f32 %v8279, %v8387
      %v8401 = vmul.f32 %v8284, %v8387
      %v8402 = vmul.f32 %v8289, %v8387
      %v8403 = vmul.f32 %v8294, %v8387
      %v8404 = vmul.f32 %v8299, %v8387
      %v8405 = vmul.f32 %v8304, %v8387
      %v8406 = vmul.f32 %v8309, %v8387
      %v8407 = vmul.f32 %v8314, %v8387
      %v8408 = vmul.f32 %v8319, %v8387
      %v8409 = vmul.f32 %v8324, %v8387
      %v8410 = vmul.f32 %v8329, %v8387
      %v8411 = vmul.f32 %v8334, %v8387
      %v8412 = vmul.f32 %v8339, %v8387
      %v8413 = vmul.f32 %v8344, %v8387
      %v8414 = vmul.f32 %v8349, %v8387
      %v8415 = vmul.f32 %v8354, %v8387
      %v8416 = vmul.f32 %v8359, %v8387
      %v8417 = vmul.f32 %v8364, %v8387
      %v8418 = vmul.f32 %v8369, %v8387
      %v8419 = vmul.f32 %v8374, %v8387
      %v8420 = vmul.f32 %v8379, %v8387
      %v8421 = vld [vmem:[%s23] sm:$0x1]
      %v8423 = vlaneseq
      %v8424 = vshrl.u32 %v8423, 7
      %v8425 = vsub.s32 0, %v8424
      %v8426 = vrot.slane %v8421, %v8425
      %v8428 = vadd.f32 %v8389, %v8426
      %v8429 = vadd.f32 %v8390, %v8426
      %v8430 = vadd.f32 %v8391, %v8426
      %v8431 = vadd.f32 %v8392, %v8426
      %v8432 = vadd.f32 %v8393, %v8426
      %v8433 = vadd.f32 %v8394, %v8426
      %v8434 = vadd.f32 %v8395, %v8426
      %v8435 = vadd.f32 %v8396, %v8426
      %v8436 = vadd.f32 %v8397, %v8426
      %v8437 = vadd.f32 %v8398, %v8426
      %v8438 = vadd.f32 %v8399, %v8426
      %v8439 = vadd.f32 %v8400, %v8426
      %v8440 = vadd.f32 %v8401, %v8426
      %v8441 = vadd.f32 %v8402, %v8426
      %v8442 = vadd.f32 %v8403, %v8426
      %v8443 = vadd.f32 %v8404, %v8426
      %v8444 = vadd.f32 %v8405, %v8426
      %v8445 = vadd.f32 %v8406, %v8426
      %v8446 = vadd.f32 %v8407, %v8426
      %v8447 = vadd.f32 %v8408, %v8426
      %v8448 = vadd.f32 %v8409, %v8426
      %v8449 = vadd.f32 %v8410, %v8426
      %v8450 = vadd.f32 %v8411, %v8426
      %v8451 = vadd.f32 %v8412, %v8426
      %v8452 = vadd.f32 %v8413, %v8426
      %v8453 = vadd.f32 %v8414, %v8426
      %v8454 = vadd.f32 %v8415, %v8426
      %v8455 = vadd.f32 %v8416, %v8426
      %v8456 = vadd.f32 %v8417, %v8426
      %v8457 = vadd.f32 %v8418, %v8426
      %v8458 = vadd.f32 %v8419, %v8426
      %v8459 = vadd.f32 %v8420, %v8426
      %v8460 = vmul.f32 %v8428, 0.5
      %v8461 = vmul.f32 %v8429, 0.5
      %v8462 = vmul.f32 %v8430, 0.5
      %v8463 = vmul.f32 %v8431, 0.5
      %v8464 = vmul.f32 %v8432, 0.5
      %v8465 = vmul.f32 %v8433, 0.5
      %v8466 = vmul.f32 %v8434, 0.5
      %v8467 = vmul.f32 %v8435, 0.5
      %v8468 = vmul.f32 %v8436, 0.5
      %v8469 = vmul.f32 %v8437, 0.5
      %v8470 = vmul.f32 %v8438, 0.5
      %v8471 = vmul.f32 %v8439, 0.5
      %v8472 = vmul.f32 %v8440, 0.5
      %v8473 = vmul.f32 %v8441, 0.5
      %v8474 = vmul.f32 %v8442, 0.5
      %v8475 = vmul.f32 %v8443, 0.5
      %v8476 = vmul.f32 %v8444, 0.5
      %v8477 = vmul.f32 %v8445, 0.5
      %v8478 = vmul.f32 %v8446, 0.5
      %v8479 = vmul.f32 %v8447, 0.5
      %v8480 = vmul.f32 %v8448, 0.5
      %v8481 = vmul.f32 %v8449, 0.5
      %v8482 = vmul.f32 %v8450, 0.5
      %v8483 = vmul.f32 %v8451, 0.5
      %v8484 = vmul.f32 %v8452, 0.5
      %v8485 = vmul.f32 %v8453, 0.5
      %v8486 = vmul.f32 %v8454, 0.5
      %v8487 = vmul.f32 %v8455, 0.5
      %v8488 = vmul.f32 %v8456, 0.5
      %v8489 = vmul.f32 %v8457, 0.5
      %v8490 = vmul.f32 %v8458, 0.5
      %v8491 = vmul.f32 %v8459, 0.5
      %v8492 = vmul.f32 %v8428, 0.70710677
      %v8493 = vmul.f32 %v8429, 0.70710677
      %v8494 = vmul.f32 %v8430, 0.70710677
      %v8495 = vmul.f32 %v8431, 0.70710677
      %v8496 = vmul.f32 %v8432, 0.70710677
      %v8497 = vmul.f32 %v8433, 0.70710677
      %v8498 = vmul.f32 %v8434, 0.70710677
      %v8499 = vmul.f32 %v8435, 0.70710677
      %v8500 = vmul.f32 %v8436, 0.70710677
      %v8501 = vmul.f32 %v8437, 0.70710677
      %v8502 = vmul.f32 %v8438, 0.70710677
      %v8503 = vmul.f32 %v8439, 0.70710677
      %v8504 = vmul.f32 %v8440, 0.70710677
      %v8505 = vmul.f32 %v8441, 0.70710677
      %v8506 = vmul.f32 %v8442, 0.70710677
      %v8507 = vmul.f32 %v8443, 0.70710677
      %v8508 = vmul.f32 %v8444, 0.70710677
      %v8509 = vmul.f32 %v8445, 0.70710677
      %v8510 = vmul.f32 %v8446, 0.70710677
      %v8511 = vmul.f32 %v8447, 0.70710677
      %v8512 = vmul.f32 %v8448, 0.70710677
      %v8513 = vmul.f32 %v8449, 0.70710677
      %v8514 = vmul.f32 %v8450, 0.70710677
      %v8515 = vmul.f32 %v8451, 0.70710677
      %v8516 = vmul.f32 %v8452, 0.70710677
      %v8517 = vmul.f32 %v8453, 0.70710677
      %v8518 = vmul.f32 %v8454, 0.70710677
      %v8519 = vmul.f32 %v8455, 0.70710677
      %v8520 = vmul.f32 %v8456, 0.70710677
      %v8521 = vmul.f32 %v8457, 0.70710677
      %v8522 = vmul.f32 %v8458, 0.70710677
      %v8523 = vmul.f32 %v8459, 0.70710677
      %v8524 = vmax.f32 %v8492, -4.0
      %v8525 = vmax.f32 %v8493, -4.0
      %v8526 = vmax.f32 %v8494, -4.0
      %v8527 = vmax.f32 %v8495, -4.0
      %v8528 = vmax.f32 %v8496, -4.0
      %v8529 = vmax.f32 %v8497, -4.0
      %v8530 = vmax.f32 %v8498, -4.0
      %v8531 = vmax.f32 %v8499, -4.0
      %v8532 = vmax.f32 %v8500, -4.0
      %v8533 = vmax.f32 %v8501, -4.0
      %v8534 = vmax.f32 %v8502, -4.0
      %v8535 = vmax.f32 %v8503, -4.0
      %v8536 = vmax.f32 %v8504, -4.0
      %v8537 = vmax.f32 %v8505, -4.0
      %v8538 = vmax.f32 %v8506, -4.0
      %v8539 = vmax.f32 %v8507, -4.0
      %v8540 = vmax.f32 %v8508, -4.0
      %v8541 = vmax.f32 %v8509, -4.0
      %v8542 = vmax.f32 %v8510, -4.0
      %v8543 = vmax.f32 %v8511, -4.0
      %v8544 = vmax.f32 %v8512, -4.0
      %v8545 = vmax.f32 %v8513, -4.0
      %v8546 = vmax.f32 %v8514, -4.0
      %v8547 = vmax.f32 %v8515, -4.0
      %v8548 = vmax.f32 %v8516, -4.0
      %v8549 = vmax.f32 %v8517, -4.0
      %v8550 = vmax.f32 %v8518, -4.0
      %v8551 = vmax.f32 %v8519, -4.0
      %v8552 = vmax.f32 %v8520, -4.0
      %v8553 = vmax.f32 %v8521, -4.0
      %v8554 = vmax.f32 %v8522, -4.0
      %v8555 = vmax.f32 %v8523, -4.0
      %v8556 = vmin.f32 %v8524, 4.0
      %v8557 = vmin.f32 %v8525, 4.0
      %v8558 = vmin.f32 %v8526, 4.0
      %v8559 = vmin.f32 %v8527, 4.0
      %v8560 = vmin.f32 %v8528, 4.0
      %v8561 = vmin.f32 %v8529, 4.0
      %v8562 = vmin.f32 %v8530, 4.0
      %v8563 = vmin.f32 %v8531, 4.0
      %v8564 = vmin.f32 %v8532, 4.0
      %v8565 = vmin.f32 %v8533, 4.0
      %v8566 = vmin.f32 %v8534, 4.0
      %v8567 = vmin.f32 %v8535, 4.0
      %v8568 = vmin.f32 %v8536, 4.0
      %v8569 = vmin.f32 %v8537, 4.0
      %v8570 = vmin.f32 %v8538, 4.0
      %v8571 = vmin.f32 %v8539, 4.0
      %v8572 = vmin.f32 %v8540, 4.0
      %v8573 = vmin.f32 %v8541, 4.0
      %v8574 = vmin.f32 %v8542, 4.0
      %v8575 = vmin.f32 %v8543, 4.0
      %v8576 = vmin.f32 %v8544, 4.0
      %v8577 = vmin.f32 %v8545, 4.0
      %v8578 = vmin.f32 %v8546, 4.0
      %v8579 = vmin.f32 %v8547, 4.0
      %v8580 = vmin.f32 %v8548, 4.0
      %v8581 = vmin.f32 %v8549, 4.0
      %v8582 = vmin.f32 %v8550, 4.0
      %v8583 = vmin.f32 %v8551, 4.0
      %v8584 = vmin.f32 %v8552, 4.0
      %v8585 = vmin.f32 %v8553, 4.0
      %v8586 = vmin.f32 %v8554, 4.0
      %v8587 = vmin.f32 %v8555, 4.0
      %v8588 = vmul.f32 %v8556, %v8556
      %v8589 = vmul.f32 %v8557, %v8557
      %v8590 = vmul.f32 %v8558, %v8558
      %v8591 = vmul.f32 %v8559, %v8559
      %v8592 = vmul.f32 %v8560, %v8560
      %v8593 = vmul.f32 %v8561, %v8561
      %v8594 = vmul.f32 %v8562, %v8562
      %v8595 = vmul.f32 %v8563, %v8563
      %v8596 = vmul.f32 %v8564, %v8564
      %v8597 = vmul.f32 %v8565, %v8565
      %v8598 = vmul.f32 %v8566, %v8566
      %v8599 = vmul.f32 %v8567, %v8567
      %v8600 = vmul.f32 %v8568, %v8568
      %v8601 = vmul.f32 %v8569, %v8569
      %v8602 = vmul.f32 %v8570, %v8570
      %v8603 = vmul.f32 %v8571, %v8571
      %v8604 = vmul.f32 %v8572, %v8572
      %v8605 = vmul.f32 %v8573, %v8573
      %v8606 = vmul.f32 %v8574, %v8574
      %v8607 = vmul.f32 %v8575, %v8575
      %v8608 = vmul.f32 %v8576, %v8576
      %v8609 = vmul.f32 %v8577, %v8577
      %v8610 = vmul.f32 %v8578, %v8578
      %v8611 = vmul.f32 %v8579, %v8579
      %v8612 = vmul.f32 %v8580, %v8580
      %v8613 = vmul.f32 %v8581, %v8581
      %v8614 = vmul.f32 %v8582, %v8582
      %v8615 = vmul.f32 %v8583, %v8583
      %v8616 = vmul.f32 %v8584, %v8584
      %v8617 = vmul.f32 %v8585, %v8585
      %v8618 = vmul.f32 %v8586, %v8586
      %v8619 = vmul.f32 %v8587, %v8587
      %v8620 = vmul.f32 %v8588, -2.7261424e-10
      %v8621 = vmul.f32 %v8589, -2.7261424e-10
      %v8622 = vmul.f32 %v8590, -2.7261424e-10
      %v8623 = vmul.f32 %v8591, -2.7261424e-10
      %v8624 = vmul.f32 %v8592, -2.7261424e-10
      %v8625 = vmul.f32 %v8593, -2.7261424e-10
      %v8626 = vmul.f32 %v8594, -2.7261424e-10
      %v8627 = vmul.f32 %v8595, -2.7261424e-10
      %v8628 = vmul.f32 %v8596, -2.7261424e-10
      %v8629 = vmul.f32 %v8597, -2.7261424e-10
      %v8630 = vmul.f32 %v8598, -2.7261424e-10
      %v8631 = vmul.f32 %v8599, -2.7261424e-10
      %v8632 = vmul.f32 %v8600, -2.7261424e-10
      %v8633 = vmul.f32 %v8601, -2.7261424e-10
      %v8634 = vmul.f32 %v8602, -2.7261424e-10
      %v8635 = vmul.f32 %v8603, -2.7261424e-10
      %v8636 = vmul.f32 %v8604, -2.7261424e-10
      %v8637 = vmul.f32 %v8605, -2.7261424e-10
      %v8638 = vmul.f32 %v8606, -2.7261424e-10
      %v8639 = vmul.f32 %v8607, -2.7261424e-10
      %v8640 = vmul.f32 %v8608, -2.7261424e-10
      %v8641 = vmul.f32 %v8609, -2.7261424e-10
      %v8642 = vmul.f32 %v8610, -2.7261424e-10
      %v8643 = vmul.f32 %v8611, -2.7261424e-10
      %v8644 = vmul.f32 %v8612, -2.7261424e-10
      %v8645 = vmul.f32 %v8613, -2.7261424e-10
      %v8646 = vmul.f32 %v8614, -2.7261424e-10
      %v8647 = vmul.f32 %v8615, -2.7261424e-10
      %v8648 = vmul.f32 %v8616, -2.7261424e-10
      %v8649 = vmul.f32 %v8617, -2.7261424e-10
      %v8650 = vmul.f32 %v8618, -2.7261424e-10
      %v8651 = vmul.f32 %v8619, -2.7261424e-10
      %v8652 = vadd.f32 %v8620, 2.7706815e-08
      %v8653 = vadd.f32 %v8621, 2.7706815e-08
      %v8654 = vadd.f32 %v8622, 2.7706815e-08
      %v8655 = vadd.f32 %v8623, 2.7706815e-08
      %v8656 = vadd.f32 %v8624, 2.7706815e-08
      %v8657 = vadd.f32 %v8625, 2.7706815e-08
      %v8658 = vadd.f32 %v8626, 2.7706815e-08
      %v8659 = vadd.f32 %v8627, 2.7706815e-08
      %v8660 = vadd.f32 %v8628, 2.7706815e-08
      %v8661 = vadd.f32 %v8629, 2.7706815e-08
      %v8662 = vadd.f32 %v8630, 2.7706815e-08
      %v8663 = vadd.f32 %v8631, 2.7706815e-08
      %v8664 = vadd.f32 %v8632, 2.7706815e-08
      %v8665 = vadd.f32 %v8633, 2.7706815e-08
      %v8666 = vadd.f32 %v8634, 2.7706815e-08
      %v8667 = vadd.f32 %v8635, 2.7706815e-08
      %v8668 = vadd.f32 %v8636, 2.7706815e-08
      %v8669 = vadd.f32 %v8637, 2.7706815e-08
      %v8670 = vadd.f32 %v8638, 2.7706815e-08
      %v8671 = vadd.f32 %v8639, 2.7706815e-08
      %v8672 = vadd.f32 %v8640, 2.7706815e-08
      %v8673 = vadd.f32 %v8641, 2.7706815e-08
      %v8674 = vadd.f32 %v8642, 2.7706815e-08
      %v8675 = vadd.f32 %v8643, 2.7706815e-08
      %v8676 = vadd.f32 %v8644, 2.7706815e-08
      %v8677 = vadd.f32 %v8645, 2.7706815e-08
      %v8678 = vadd.f32 %v8646, 2.7706815e-08
      %v8679 = vadd.f32 %v8647, 2.7706815e-08
      %v8680 = vadd.f32 %v8648, 2.7706815e-08
      %v8681 = vadd.f32 %v8649, 2.7706815e-08
      %v8682 = vadd.f32 %v8650, 2.7706815e-08
      %v8683 = vadd.f32 %v8651, 2.7706815e-08
      %v8684 = vmul.f32 %v8652, %v8588
      %v8685 = vmul.f32 %v8653, %v8589
      %v8686 = vmul.f32 %v8654, %v8590
      %v8687 = vmul.f32 %v8655, %v8591
      %v8688 = vmul.f32 %v8656, %v8592
      %v8689 = vmul.f32 %v8657, %v8593
      %v8690 = vmul.f32 %v8658, %v8594
      %v8691 = vmul.f32 %v8659, %v8595
      %v8692 = vmul.f32 %v8660, %v8596
      %v8693 = vmul.f32 %v8661, %v8597
      %v8694 = vmul.f32 %v8662, %v8598
      %v8695 = vmul.f32 %v8663, %v8599
      %v8696 = vmul.f32 %v8664, %v8600
      %v8697 = vmul.f32 %v8665, %v8601
      %v8698 = vmul.f32 %v8666, %v8602
      %v8699 = vmul.f32 %v8667, %v8603
      %v8700 = vmul.f32 %v8668, %v8604
      %v8701 = vmul.f32 %v8669, %v8605
      %v8702 = vmul.f32 %v8670, %v8606
      %v8703 = vmul.f32 %v8671, %v8607
      %v8704 = vmul.f32 %v8672, %v8608
      %v8705 = vmul.f32 %v8673, %v8609
      %v8706 = vmul.f32 %v8674, %v8610
      %v8707 = vmul.f32 %v8675, %v8611
      %v8708 = vmul.f32 %v8676, %v8612
      %v8709 = vmul.f32 %v8677, %v8613
      %v8710 = vmul.f32 %v8678, %v8614
      %v8711 = vmul.f32 %v8679, %v8615
      %v8712 = vmul.f32 %v8680, %v8616
      %v8713 = vmul.f32 %v8681, %v8617
      %v8714 = vmul.f32 %v8682, %v8618
      %v8715 = vmul.f32 %v8683, %v8619
      %v8716 = vadd.f32 %v8684, -2.101024e-06
      %v8717 = vadd.f32 %v8685, -2.101024e-06
      %v8718 = vadd.f32 %v8686, -2.101024e-06
      %v8719 = vadd.f32 %v8687, -2.101024e-06
      %v8720 = vadd.f32 %v8688, -2.101024e-06
      %v8721 = vadd.f32 %v8689, -2.101024e-06
      %v8722 = vadd.f32 %v8690, -2.101024e-06
      %v8723 = vadd.f32 %v8691, -2.101024e-06
      %v8724 = vadd.f32 %v8692, -2.101024e-06
      %v8725 = vadd.f32 %v8693, -2.101024e-06
      %v8726 = vadd.f32 %v8694, -2.101024e-06
      %v8727 = vadd.f32 %v8695, -2.101024e-06
      %v8728 = vadd.f32 %v8696, -2.101024e-06
      %v8729 = vadd.f32 %v8697, -2.101024e-06
      %v8730 = vadd.f32 %v8698, -2.101024e-06
      %v8731 = vadd.f32 %v8699, -2.101024e-06
      %v8732 = vadd.f32 %v8700, -2.101024e-06
      %v8733 = vadd.f32 %v8701, -2.101024e-06
      %v8734 = vadd.f32 %v8702, -2.101024e-06
      %v8735 = vadd.f32 %v8703, -2.101024e-06
      %v8736 = vadd.f32 %v8704, -2.101024e-06
      %v8737 = vadd.f32 %v8705, -2.101024e-06
      %v8738 = vadd.f32 %v8706, -2.101024e-06
      %v8739 = vadd.f32 %v8707, -2.101024e-06
      %v8740 = vadd.f32 %v8708, -2.101024e-06
      %v8741 = vadd.f32 %v8709, -2.101024e-06
      %v8742 = vadd.f32 %v8710, -2.101024e-06
      %v8743 = vadd.f32 %v8711, -2.101024e-06
      %v8744 = vadd.f32 %v8712, -2.101024e-06
      %v8745 = vadd.f32 %v8713, -2.101024e-06
      %v8746 = vadd.f32 %v8714, -2.101024e-06
      %v8747 = vadd.f32 %v8715, -2.101024e-06
      %v8748 = vmul.f32 %v8716, %v8588
      %v8749 = vmul.f32 %v8717, %v8589
      %v8750 = vmul.f32 %v8718, %v8590
      %v8751 = vmul.f32 %v8719, %v8591
      %v8752 = vmul.f32 %v8720, %v8592
      %v8753 = vmul.f32 %v8721, %v8593
      %v8754 = vmul.f32 %v8722, %v8594
      %v8755 = vmul.f32 %v8723, %v8595
      %v8756 = vmul.f32 %v8724, %v8596
      %v8757 = vmul.f32 %v8725, %v8597
      %v8758 = vmul.f32 %v8726, %v8598
      %v8759 = vmul.f32 %v8727, %v8599
      %v8760 = vmul.f32 %v8728, %v8600
      %v8761 = vmul.f32 %v8729, %v8601
      %v8762 = vmul.f32 %v8730, %v8602
      %v8763 = vmul.f32 %v8731, %v8603
      %v8764 = vmul.f32 %v8732, %v8604
      %v8765 = vmul.f32 %v8733, %v8605
      %v8766 = vmul.f32 %v8734, %v8606
      %v8767 = vmul.f32 %v8735, %v8607
      %v8768 = vmul.f32 %v8736, %v8608
      %v8769 = vmul.f32 %v8737, %v8609
      %v8770 = vmul.f32 %v8738, %v8610
      %v8771 = vmul.f32 %v8739, %v8611
      %v8772 = vmul.f32 %v8740, %v8612
      %v8773 = vmul.f32 %v8741, %v8613
      %v8774 = vmul.f32 %v8742, %v8614
      %v8775 = vmul.f32 %v8743, %v8615
      %v8776 = vmul.f32 %v8744, %v8616
      %v8777 = vmul.f32 %v8745, %v8617
      %v8778 = vmul.f32 %v8746, %v8618
      %v8779 = vmul.f32 %v8747, %v8619
      %v8780 = vadd.f32 %v8748, -5.6925062e-05
      %v8781 = vadd.f32 %v8749, -5.6925062e-05
      %v8782 = vadd.f32 %v8750, -5.6925062e-05
      %v8783 = vadd.f32 %v8751, -5.6925062e-05
      %v8784 = vadd.f32 %v8752, -5.6925062e-05
      %v8785 = vadd.f32 %v8753, -5.6925062e-05
      %v8786 = vadd.f32 %v8754, -5.6925062e-05
      %v8787 = vadd.f32 %v8755, -5.6925062e-05
      %v8788 = vadd.f32 %v8756, -5.6925062e-05
      %v8789 = vadd.f32 %v8757, -5.6925062e-05
      %v8790 = vadd.f32 %v8758, -5.6925062e-05
      %v8791 = vadd.f32 %v8759, -5.6925062e-05
      %v8792 = vadd.f32 %v8760, -5.6925062e-05
      %v8793 = vadd.f32 %v8761, -5.6925062e-05
      %v8794 = vadd.f32 %v8762, -5.6925062e-05
      %v8795 = vadd.f32 %v8763, -5.6925062e-05
      %v8796 = vadd.f32 %v8764, -5.6925062e-05
      %v8797 = vadd.f32 %v8765, -5.6925062e-05
      %v8798 = vadd.f32 %v8766, -5.6925062e-05
      %v8799 = vadd.f32 %v8767, -5.6925062e-05
      %v8800 = vadd.f32 %v8768, -5.6925062e-05
      %v8801 = vadd.f32 %v8769, -5.6925062e-05
      %v8802 = vadd.f32 %v8770, -5.6925062e-05
      %v8803 = vadd.f32 %v8771, -5.6925062e-05
      %v8804 = vadd.f32 %v8772, -5.6925062e-05
      %v8805 = vadd.f32 %v8773, -5.6925062e-05
      %v8806 = vadd.f32 %v8774, -5.6925062e-05
      %v8807 = vadd.f32 %v8775, -5.6925062e-05
      %v8808 = vadd.f32 %v8776, -5.6925062e-05
      %v8809 = vadd.f32 %v8777, -5.6925062e-05
      %v8810 = vadd.f32 %v8778, -5.6925062e-05
      %v8811 = vadd.f32 %v8779, -5.6925062e-05
      %v8812 = vmul.f32 %v8780, %v8588
      %v8813 = vmul.f32 %v8781, %v8589
      %v8814 = vmul.f32 %v8782, %v8590
      %v8815 = vmul.f32 %v8783, %v8591
      %v8816 = vmul.f32 %v8784, %v8592
      %v8817 = vmul.f32 %v8785, %v8593
      %v8818 = vmul.f32 %v8786, %v8594
      %v8819 = vmul.f32 %v8787, %v8595
      %v8820 = vmul.f32 %v8788, %v8596
      %v8821 = vmul.f32 %v8789, %v8597
      %v8822 = vmul.f32 %v8790, %v8598
      %v8823 = vmul.f32 %v8791, %v8599
      %v8824 = vmul.f32 %v8792, %v8600
      %v8825 = vmul.f32 %v8793, %v8601
      %v8826 = vmul.f32 %v8794, %v8602
      %v8827 = vmul.f32 %v8795, %v8603
      %v8828 = vmul.f32 %v8796, %v8604
      %v8829 = vmul.f32 %v8797, %v8605
      %v8830 = vmul.f32 %v8798, %v8606
      %v8831 = vmul.f32 %v8799, %v8607
      %v8832 = vmul.f32 %v8800, %v8608
      %v8833 = vmul.f32 %v8801, %v8609
      %v8834 = vmul.f32 %v8802, %v8610
      %v8835 = vmul.f32 %v8803, %v8611
      %v8836 = vmul.f32 %v8804, %v8612
      %v8837 = vmul.f32 %v8805, %v8613
      %v8838 = vmul.f32 %v8806, %v8614
      %v8839 = vmul.f32 %v8807, %v8615
      %v8840 = vmul.f32 %v8808, %v8616
      %v8841 = vmul.f32 %v8809, %v8617
      %v8842 = vmul.f32 %v8810, %v8618
      %v8843 = vmul.f32 %v8811, %v8619
      %v8844 = vadd.f32 %v8812, -0.00073499064
      %v8845 = vadd.f32 %v8813, -0.00073499064
      %v8846 = vadd.f32 %v8814, -0.00073499064
      %v8847 = vadd.f32 %v8815, -0.00073499064
      %v8848 = vadd.f32 %v8816, -0.00073499064
      %v8849 = vadd.f32 %v8817, -0.00073499064
      %v8850 = vadd.f32 %v8818, -0.00073499064
      %v8851 = vadd.f32 %v8819, -0.00073499064
      %v8852 = vadd.f32 %v8820, -0.00073499064
      %v8853 = vadd.f32 %v8821, -0.00073499064
      %v8854 = vadd.f32 %v8822, -0.00073499064
      %v8855 = vadd.f32 %v8823, -0.00073499064
      %v8856 = vadd.f32 %v8824, -0.00073499064
      %v8857 = vadd.f32 %v8825, -0.00073499064
      %v8858 = vadd.f32 %v8826, -0.00073499064
      %v8859 = vadd.f32 %v8827, -0.00073499064
      %v8860 = vadd.f32 %v8828, -0.00073499064
      %v8861 = vadd.f32 %v8829, -0.00073499064
      %v8862 = vadd.f32 %v8830, -0.00073499064
      %v8863 = vadd.f32 %v8831, -0.00073499064
      %v8864 = vadd.f32 %v8832, -0.00073499064
      %v8865 = vadd.f32 %v8833, -0.00073499064
      %v8866 = vadd.f32 %v8834, -0.00073499064
      %v8867 = vadd.f32 %v8835, -0.00073499064
      %v8868 = vadd.f32 %v8836, -0.00073499064
      %v8869 = vadd.f32 %v8837, -0.00073499064
      %v8870 = vadd.f32 %v8838, -0.00073499064
      %v8871 = vadd.f32 %v8839, -0.00073499064
      %v8872 = vadd.f32 %v8840, -0.00073499064
      %v8873 = vadd.f32 %v8841, -0.00073499064
      %v8874 = vadd.f32 %v8842, -0.00073499064
      %v8875 = vadd.f32 %v8843, -0.00073499064
      %v8876 = vmul.f32 %v8844, %v8588
      %v8877 = vmul.f32 %v8845, %v8589
      %v8878 = vmul.f32 %v8846, %v8590
      %v8879 = vmul.f32 %v8847, %v8591
      %v8880 = vmul.f32 %v8848, %v8592
      %v8881 = vmul.f32 %v8849, %v8593
      %v8882 = vmul.f32 %v8850, %v8594
      %v8883 = vmul.f32 %v8851, %v8595
      %v8884 = vmul.f32 %v8852, %v8596
      %v8885 = vmul.f32 %v8853, %v8597
      %v8886 = vmul.f32 %v8854, %v8598
      %v8887 = vmul.f32 %v8855, %v8599
      %v8888 = vmul.f32 %v8856, %v8600
      %v8889 = vmul.f32 %v8857, %v8601
      %v8890 = vmul.f32 %v8858, %v8602
      %v8891 = vmul.f32 %v8859, %v8603
      %v8892 = vmul.f32 %v8860, %v8604
      %v8893 = vmul.f32 %v8861, %v8605
      %v8894 = vmul.f32 %v8862, %v8606
      %v8895 = vmul.f32 %v8863, %v8607
      %v8896 = vmul.f32 %v8864, %v8608
      %v8897 = vmul.f32 %v8865, %v8609
      %v8898 = vmul.f32 %v8866, %v8610
      %v8899 = vmul.f32 %v8867, %v8611
      %v8900 = vmul.f32 %v8868, %v8612
      %v8901 = vmul.f32 %v8869, %v8613
      %v8902 = vmul.f32 %v8870, %v8614
      %v8903 = vmul.f32 %v8871, %v8615
      %v8904 = vmul.f32 %v8872, %v8616
      %v8905 = vmul.f32 %v8873, %v8617
      %v8906 = vmul.f32 %v8874, %v8618
      %v8907 = vmul.f32 %v8875, %v8619
      %v8908 = vadd.f32 %v8876, -0.0029546
      %v8909 = vadd.f32 %v8877, -0.0029546
      %v8910 = vadd.f32 %v8878, -0.0029546
      %v8911 = vadd.f32 %v8879, -0.0029546
      %v8912 = vadd.f32 %v8880, -0.0029546
      %v8913 = vadd.f32 %v8881, -0.0029546
      %v8914 = vadd.f32 %v8882, -0.0029546
      %v8915 = vadd.f32 %v8883, -0.0029546
      %v8916 = vadd.f32 %v8884, -0.0029546
      %v8917 = vadd.f32 %v8885, -0.0029546
      %v8918 = vadd.f32 %v8886, -0.0029546
      %v8919 = vadd.f32 %v8887, -0.0029546
      %v8920 = vadd.f32 %v8888, -0.0029546
      %v8921 = vadd.f32 %v8889, -0.0029546
      %v8922 = vadd.f32 %v8890, -0.0029546
      %v8923 = vadd.f32 %v8891, -0.0029546
      %v8924 = vadd.f32 %v8892, -0.0029546
      %v8925 = vadd.f32 %v8893, -0.0029546
      %v8926 = vadd.f32 %v8894, -0.0029546
      %v8927 = vadd.f32 %v8895, -0.0029546
      %v8928 = vadd.f32 %v8896, -0.0029546
      %v8929 = vadd.f32 %v8897, -0.0029546
      %v8930 = vadd.f32 %v8898, -0.0029546
      %v8931 = vadd.f32 %v8899, -0.0029546
      %v8932 = vadd.f32 %v8900, -0.0029546
      %v8933 = vadd.f32 %v8901, -0.0029546
      %v8934 = vadd.f32 %v8902, -0.0029546
      %v8935 = vadd.f32 %v8903, -0.0029546
      %v8936 = vadd.f32 %v8904, -0.0029546
      %v8937 = vadd.f32 %v8905, -0.0029546
      %v8938 = vadd.f32 %v8906, -0.0029546
      %v8939 = vadd.f32 %v8907, -0.0029546
      %v8940 = vmul.f32 %v8908, %v8588
      %v8941 = vmul.f32 %v8909, %v8589
      %v8942 = vmul.f32 %v8910, %v8590
      %v8943 = vmul.f32 %v8911, %v8591
      %v8944 = vmul.f32 %v8912, %v8592
      %v8945 = vmul.f32 %v8913, %v8593
      %v8946 = vmul.f32 %v8914, %v8594
      %v8947 = vmul.f32 %v8915, %v8595
      %v8948 = vmul.f32 %v8916, %v8596
      %v8949 = vmul.f32 %v8917, %v8597
      %v8950 = vmul.f32 %v8918, %v8598
      %v8951 = vmul.f32 %v8919, %v8599
      %v8952 = vmul.f32 %v8920, %v8600
      %v8953 = vmul.f32 %v8921, %v8601
      %v8954 = vmul.f32 %v8922, %v8602
      %v8955 = vmul.f32 %v8923, %v8603
      %v8956 = vmul.f32 %v8924, %v8604
      %v8957 = vmul.f32 %v8925, %v8605
      %v8958 = vmul.f32 %v8926, %v8606
      %v8959 = vmul.f32 %v8927, %v8607
      %v8960 = vmul.f32 %v8928, %v8608
      %v8961 = vmul.f32 %v8929, %v8609
      %v8962 = vmul.f32 %v8930, %v8610
      %v8963 = vmul.f32 %v8931, %v8611
      %v8964 = vmul.f32 %v8932, %v8612
      %v8965 = vmul.f32 %v8933, %v8613
      %v8966 = vmul.f32 %v8934, %v8614
      %v8967 = vmul.f32 %v8935, %v8615
      %v8968 = vmul.f32 %v8936, %v8616
      %v8969 = vmul.f32 %v8937, %v8617
      %v8970 = vmul.f32 %v8938, %v8618
      %v8971 = vmul.f32 %v8939, %v8619
      %v8972 = vadd.f32 %v8940, -0.016096033
      %v8973 = vadd.f32 %v8941, -0.016096033
      %v8974 = vadd.f32 %v8942, -0.016096033
      %v8975 = vadd.f32 %v8943, -0.016096033
      %v8976 = vadd.f32 %v8944, -0.016096033
      %v8977 = vadd.f32 %v8945, -0.016096033
      %v8978 = vadd.f32 %v8946, -0.016096033
      %v8979 = vadd.f32 %v8947, -0.016096033
      %v8980 = vadd.f32 %v8948, -0.016096033
      %v8981 = vadd.f32 %v8949, -0.016096033
      %v8982 = vadd.f32 %v8950, -0.016096033
      %v8983 = vadd.f32 %v8951, -0.016096033
      %v8984 = vadd.f32 %v8952, -0.016096033
      %v8985 = vadd.f32 %v8953, -0.016096033
      %v8986 = vadd.f32 %v8954, -0.016096033
      %v8987 = vadd.f32 %v8955, -0.016096033
      %v8988 = vadd.f32 %v8956, -0.016096033
      %v8989 = vadd.f32 %v8957, -0.016096033
      %v8990 = vadd.f32 %v8958, -0.016096033
      %v8991 = vadd.f32 %v8959, -0.016096033
      %v8992 = vadd.f32 %v8960, -0.016096033
      %v8993 = vadd.f32 %v8961, -0.016096033
      %v8994 = vadd.f32 %v8962, -0.016096033
      %v8995 = vadd.f32 %v8963, -0.016096033
      %v8996 = vadd.f32 %v8964, -0.016096033
      %v8997 = vadd.f32 %v8965, -0.016096033
      %v8998 = vadd.f32 %v8966, -0.016096033
      %v8999 = vadd.f32 %v8967, -0.016096033
      %v9000 = vadd.f32 %v8968, -0.016096033
      %v9001 = vadd.f32 %v8969, -0.016096033
      %v9002 = vadd.f32 %v8970, -0.016096033
      %v9003 = vadd.f32 %v8971, -0.016096033
      %v9004 = vmul.f32 %v8972, %v8556
      %v9005 = vmul.f32 %v8973, %v8557
      %v9006 = vmul.f32 %v8974, %v8558
      %v9007 = vmul.f32 %v8975, %v8559
      %v9008 = vmul.f32 %v8976, %v8560
      %v9009 = vmul.f32 %v8977, %v8561
      %v9010 = vmul.f32 %v8978, %v8562
      %v9011 = vmul.f32 %v8979, %v8563
      %v9012 = vmul.f32 %v8980, %v8564
      %v9013 = vmul.f32 %v8981, %v8565
      %v9014 = vmul.f32 %v8982, %v8566
      %v9015 = vmul.f32 %v8983, %v8567
      %v9016 = vmul.f32 %v8984, %v8568
      %v9017 = vmul.f32 %v8985, %v8569
      %v9018 = vmul.f32 %v8986, %v8570
      %v9019 = vmul.f32 %v8987, %v8571
      %v9020 = vmul.f32 %v8988, %v8572
      %v9021 = vmul.f32 %v8989, %v8573
      %v9022 = vmul.f32 %v8990, %v8574
      %v9023 = vmul.f32 %v8991, %v8575
      %v9024 = vmul.f32 %v8992, %v8576
      %v9025 = vmul.f32 %v8993, %v8577
      %v9026 = vmul.f32 %v8994, %v8578
      %v9027 = vmul.f32 %v8995, %v8579
      %v9028 = vmul.f32 %v8996, %v8580
      %v9029 = vmul.f32 %v8997, %v8581
      %v9030 = vmul.f32 %v8998, %v8582
      %v9031 = vmul.f32 %v8999, %v8583
      %v9032 = vmul.f32 %v9000, %v8584
      %v9033 = vmul.f32 %v9001, %v8585
      %v9034 = vmul.f32 %v9002, %v8586
      %v9035 = vmul.f32 %v9003, %v8587
      %v9036 = vmul.f32 %v8588, -1.45660715e-05
      %v9037 = vmul.f32 %v8589, -1.45660715e-05
      %v9038 = vmul.f32 %v8590, -1.45660715e-05
      %v9039 = vmul.f32 %v8591, -1.45660715e-05
      %v9040 = vmul.f32 %v8592, -1.45660715e-05
      %v9041 = vmul.f32 %v8593, -1.45660715e-05
      %v9042 = vmul.f32 %v8594, -1.45660715e-05
      %v9043 = vmul.f32 %v8595, -1.45660715e-05
      %v9044 = vmul.f32 %v8596, -1.45660715e-05
      %v9045 = vmul.f32 %v8597, -1.45660715e-05
      %v9046 = vmul.f32 %v8598, -1.45660715e-05
      %v9047 = vmul.f32 %v8599, -1.45660715e-05
      %v9048 = vmul.f32 %v8600, -1.45660715e-05
      %v9049 = vmul.f32 %v8601, -1.45660715e-05
      %v9050 = vmul.f32 %v8602, -1.45660715e-05
      %v9051 = vmul.f32 %v8603, -1.45660715e-05
      %v9052 = vmul.f32 %v8604, -1.45660715e-05
      %v9053 = vmul.f32 %v8605, -1.45660715e-05
      %v9054 = vmul.f32 %v8606, -1.45660715e-05
      %v9055 = vmul.f32 %v8607, -1.45660715e-05
      %v9056 = vmul.f32 %v8608, -1.45660715e-05
      %v9057 = vmul.f32 %v8609, -1.45660715e-05
      %v9058 = vmul.f32 %v8610, -1.45660715e-05
      %v9059 = vmul.f32 %v8611, -1.45660715e-05
      %v9060 = vmul.f32 %v8612, -1.45660715e-05
      %v9061 = vmul.f32 %v8613, -1.45660715e-05
      %v9062 = vmul.f32 %v8614, -1.45660715e-05
      %v9063 = vmul.f32 %v8615, -1.45660715e-05
      %v9064 = vmul.f32 %v8616, -1.45660715e-05
      %v9065 = vmul.f32 %v8617, -1.45660715e-05
      %v9066 = vmul.f32 %v8618, -1.45660715e-05
      %v9067 = vmul.f32 %v8619, -1.45660715e-05
      %v9068 = vadd.f32 %v9036, -0.00021337405
      %v9069 = vadd.f32 %v9037, -0.00021337405
      %v9070 = vadd.f32 %v9038, -0.00021337405
      %v9071 = vadd.f32 %v9039, -0.00021337405
      %v9072 = vadd.f32 %v9040, -0.00021337405
      %v9073 = vadd.f32 %v9041, -0.00021337405
      %v9074 = vadd.f32 %v9042, -0.00021337405
      %v9075 = vadd.f32 %v9043, -0.00021337405
      %v9076 = vadd.f32 %v9044, -0.00021337405
      %v9077 = vadd.f32 %v9045, -0.00021337405
      %v9078 = vadd.f32 %v9046, -0.00021337405
      %v9079 = vadd.f32 %v9047, -0.00021337405
      %v9080 = vadd.f32 %v9048, -0.00021337405
      %v9081 = vadd.f32 %v9049, -0.00021337405
      %v9082 = vadd.f32 %v9050, -0.00021337405
      %v9083 = vadd.f32 %v9051, -0.00021337405
      %v9084 = vadd.f32 %v9052, -0.00021337405
      %v9085 = vadd.f32 %v9053, -0.00021337405
      %v9086 = vadd.f32 %v9054, -0.00021337405
      %v9087 = vadd.f32 %v9055, -0.00021337405
      %v9088 = vadd.f32 %v9056, -0.00021337405
      %v9089 = vadd.f32 %v9057, -0.00021337405
      %v9090 = vadd.f32 %v9058, -0.00021337405
      %v9091 = vadd.f32 %v9059, -0.00021337405
      %v9092 = vadd.f32 %v9060, -0.00021337405
      %v9093 = vadd.f32 %v9061, -0.00021337405
      %v9094 = vadd.f32 %v9062, -0.00021337405
      %v9095 = vadd.f32 %v9063, -0.00021337405
      %v9096 = vadd.f32 %v9064, -0.00021337405
      %v9097 = vadd.f32 %v9065, -0.00021337405
      %v9098 = vadd.f32 %v9066, -0.00021337405
      %v9099 = vadd.f32 %v9067, -0.00021337405
      %v9100 = vmul.f32 %v9068, %v8588
      %v9101 = vmul.f32 %v9069, %v8589
      %v9102 = vmul.f32 %v9070, %v8590
      %v9103 = vmul.f32 %v9071, %v8591
      %v9104 = vmul.f32 %v9072, %v8592
      %v9105 = vmul.f32 %v9073, %v8593
      %v9106 = vmul.f32 %v9074, %v8594
      %v9107 = vmul.f32 %v9075, %v8595
      %v9108 = vmul.f32 %v9076, %v8596
      %v9109 = vmul.f32 %v9077, %v8597
      %v9110 = vmul.f32 %v9078, %v8598
      %v9111 = vmul.f32 %v9079, %v8599
      %v9112 = vmul.f32 %v9080, %v8600
      %v9113 = vmul.f32 %v9081, %v8601
      %v9114 = vmul.f32 %v9082, %v8602
      %v9115 = vmul.f32 %v9083, %v8603
      %v9116 = vmul.f32 %v9084, %v8604
      %v9117 = vmul.f32 %v9085, %v8605
      %v9118 = vmul.f32 %v9086, %v8606
      %v9119 = vmul.f32 %v9087, %v8607
      %v9120 = vmul.f32 %v9088, %v8608
      %v9121 = vmul.f32 %v9089, %v8609
      %v9122 = vmul.f32 %v9090, %v8610
      %v9123 = vmul.f32 %v9091, %v8611
      %v9124 = vmul.f32 %v9092, %v8612
      %v9125 = vmul.f32 %v9093, %v8613
      %v9126 = vmul.f32 %v9094, %v8614
      %v9127 = vmul.f32 %v9095, %v8615
      %v9128 = vmul.f32 %v9096, %v8616
      %v9129 = vmul.f32 %v9097, %v8617
      %v9130 = vmul.f32 %v9098, %v8618
      %v9131 = vmul.f32 %v9099, %v8619
      %v9132 = vadd.f32 %v9100, -0.001682827
      %v9133 = vadd.f32 %v9101, -0.001682827
      %v9134 = vadd.f32 %v9102, -0.001682827
      %v9135 = vadd.f32 %v9103, -0.001682827
      %v9136 = vadd.f32 %v9104, -0.001682827
      %v9137 = vadd.f32 %v9105, -0.001682827
      %v9138 = vadd.f32 %v9106, -0.001682827
      %v9139 = vadd.f32 %v9107, -0.001682827
      %v9140 = vadd.f32 %v9108, -0.001682827
      %v9141 = vadd.f32 %v9109, -0.001682827
      %v9142 = vadd.f32 %v9110, -0.001682827
      %v9143 = vadd.f32 %v9111, -0.001682827
      %v9144 = vadd.f32 %v9112, -0.001682827
      %v9145 = vadd.f32 %v9113, -0.001682827
      %v9146 = vadd.f32 %v9114, -0.001682827
      %v9147 = vadd.f32 %v9115, -0.001682827
      %v9148 = vadd.f32 %v9116, -0.001682827
      %v9149 = vadd.f32 %v9117, -0.001682827
      %v9150 = vadd.f32 %v9118, -0.001682827
      %v9151 = vadd.f32 %v9119, -0.001682827
      %v9152 = vadd.f32 %v9120, -0.001682827
      %v9153 = vadd.f32 %v9121, -0.001682827
      %v9154 = vadd.f32 %v9122, -0.001682827
      %v9155 = vadd.f32 %v9123, -0.001682827
      %v9156 = vadd.f32 %v9124, -0.001682827
      %v9157 = vadd.f32 %v9125, -0.001682827
      %v9158 = vadd.f32 %v9126, -0.001682827
      %v9159 = vadd.f32 %v9127, -0.001682827
      %v9160 = vadd.f32 %v9128, -0.001682827
      %v9161 = vadd.f32 %v9129, -0.001682827
      %v9162 = vadd.f32 %v9130, -0.001682827
      %v9163 = vadd.f32 %v9131, -0.001682827
      %v9164 = vmul.f32 %v9132, %v8588
      %v9165 = vmul.f32 %v9133, %v8589
      %v9166 = vmul.f32 %v9134, %v8590
      %v9167 = vmul.f32 %v9135, %v8591
      %v9168 = vmul.f32 %v9136, %v8592
      %v9169 = vmul.f32 %v9137, %v8593
      %v9170 = vmul.f32 %v9138, %v8594
      %v9171 = vmul.f32 %v9139, %v8595
      %v9172 = vmul.f32 %v9140, %v8596
      %v9173 = vmul.f32 %v9141, %v8597
      %v9174 = vmul.f32 %v9142, %v8598
      %v9175 = vmul.f32 %v9143, %v8599
      %v9176 = vmul.f32 %v9144, %v8600
      %v9177 = vmul.f32 %v9145, %v8601
      %v9178 = vmul.f32 %v9146, %v8602
      %v9179 = vmul.f32 %v9147, %v8603
      %v9180 = vmul.f32 %v9148, %v8604
      %v9181 = vmul.f32 %v9149, %v8605
      %v9182 = vmul.f32 %v9150, %v8606
      %v9183 = vmul.f32 %v9151, %v8607
      %v9184 = vmul.f32 %v9152, %v8608
      %v9185 = vmul.f32 %v9153, %v8609
      %v9186 = vmul.f32 %v9154, %v8610
      %v9187 = vmul.f32 %v9155, %v8611
      %v9188 = vmul.f32 %v9156, %v8612
      %v9189 = vmul.f32 %v9157, %v8613
      %v9190 = vmul.f32 %v9158, %v8614
      %v9191 = vmul.f32 %v9159, %v8615
      %v9192 = vmul.f32 %v9160, %v8616
      %v9193 = vmul.f32 %v9161, %v8617
      %v9194 = vmul.f32 %v9162, %v8618
      %v9195 = vmul.f32 %v9163, %v8619
      %v9196 = vadd.f32 %v9164, -0.0073733293
      %v9197 = vadd.f32 %v9165, -0.0073733293
      %v9198 = vadd.f32 %v9166, -0.0073733293
      %v9199 = vadd.f32 %v9167, -0.0073733293
      %v9200 = vadd.f32 %v9168, -0.0073733293
      %v9201 = vadd.f32 %v9169, -0.0073733293
      %v9202 = vadd.f32 %v9170, -0.0073733293
      %v9203 = vadd.f32 %v9171, -0.0073733293
      %v9204 = vadd.f32 %v9172, -0.0073733293
      %v9205 = vadd.f32 %v9173, -0.0073733293
      %v9206 = vadd.f32 %v9174, -0.0073733293
      %v9207 = vadd.f32 %v9175, -0.0073733293
      %v9208 = vadd.f32 %v9176, -0.0073733293
      %v9209 = vadd.f32 %v9177, -0.0073733293
      %v9210 = vadd.f32 %v9178, -0.0073733293
      %v9211 = vadd.f32 %v9179, -0.0073733293
      %v9212 = vadd.f32 %v9180, -0.0073733293
      %v9213 = vadd.f32 %v9181, -0.0073733293
      %v9214 = vadd.f32 %v9182, -0.0073733293
      %v9215 = vadd.f32 %v9183, -0.0073733293
      %v9216 = vadd.f32 %v9184, -0.0073733293
      %v9217 = vadd.f32 %v9185, -0.0073733293
      %v9218 = vadd.f32 %v9186, -0.0073733293
      %v9219 = vadd.f32 %v9187, -0.0073733293
      %v9220 = vadd.f32 %v9188, -0.0073733293
      %v9221 = vadd.f32 %v9189, -0.0073733293
      %v9222 = vadd.f32 %v9190, -0.0073733293
      %v9223 = vadd.f32 %v9191, -0.0073733293
      %v9224 = vadd.f32 %v9192, -0.0073733293
      %v9225 = vadd.f32 %v9193, -0.0073733293
      %v9226 = vadd.f32 %v9194, -0.0073733293
      %v9227 = vadd.f32 %v9195, -0.0073733293
      %v9228 = vmul.f32 %v9196, %v8588
      %v9229 = vmul.f32 %v9197, %v8589
      %v9230 = vmul.f32 %v9198, %v8590
      %v9231 = vmul.f32 %v9199, %v8591
      %v9232 = vmul.f32 %v9200, %v8592
      %v9233 = vmul.f32 %v9201, %v8593
      %v9234 = vmul.f32 %v9202, %v8594
      %v9235 = vmul.f32 %v9203, %v8595
      %v9236 = vmul.f32 %v9204, %v8596
      %v9237 = vmul.f32 %v9205, %v8597
      %v9238 = vmul.f32 %v9206, %v8598
      %v9239 = vmul.f32 %v9207, %v8599
      %v9240 = vmul.f32 %v9208, %v8600
      %v9241 = vmul.f32 %v9209, %v8601
      %v9242 = vmul.f32 %v9210, %v8602
      %v9243 = vmul.f32 %v9211, %v8603
      %v9244 = vmul.f32 %v9212, %v8604
      %v9245 = vmul.f32 %v9213, %v8605
      %v9246 = vmul.f32 %v9214, %v8606
      %v9247 = vmul.f32 %v9215, %v8607
      %v9248 = vmul.f32 %v9216, %v8608
      %v9249 = vmul.f32 %v9217, %v8609
      %v9250 = vmul.f32 %v9218, %v8610
      %v9251 = vmul.f32 %v9219, %v8611
      %v9252 = vmul.f32 %v9220, %v8612
      %v9253 = vmul.f32 %v9221, %v8613
      %v9254 = vmul.f32 %v9222, %v8614
      %v9255 = vmul.f32 %v9223, %v8615
      %v9256 = vmul.f32 %v9224, %v8616
      %v9257 = vmul.f32 %v9225, %v8617
      %v9258 = vmul.f32 %v9226, %v8618
      %v9259 = vmul.f32 %v9227, %v8619
      %v9260 = vadd.f32 %v9228, -0.014264739
      %v9261 = vadd.f32 %v9229, -0.014264739
      %v9262 = vadd.f32 %v9230, -0.014264739
      %v9263 = vadd.f32 %v9231, -0.014264739
      %v9264 = vadd.f32 %v9232, -0.014264739
      %v9265 = vadd.f32 %v9233, -0.014264739
      %v9266 = vadd.f32 %v9234, -0.014264739
      %v9267 = vadd.f32 %v9235, -0.014264739
      %v9268 = vadd.f32 %v9236, -0.014264739
      %v9269 = vadd.f32 %v9237, -0.014264739
      %v9270 = vadd.f32 %v9238, -0.014264739
      %v9271 = vadd.f32 %v9239, -0.014264739
      %v9272 = vadd.f32 %v9240, -0.014264739
      %v9273 = vadd.f32 %v9241, -0.014264739
      %v9274 = vadd.f32 %v9242, -0.014264739
      %v9275 = vadd.f32 %v9243, -0.014264739
      %v9276 = vadd.f32 %v9244, -0.014264739
      %v9277 = vadd.f32 %v9245, -0.014264739
      %v9278 = vadd.f32 %v9246, -0.014264739
      %v9279 = vadd.f32 %v9247, -0.014264739
      %v9280 = vadd.f32 %v9248, -0.014264739
      %v9281 = vadd.f32 %v9249, -0.014264739
      %v9282 = vadd.f32 %v9250, -0.014264739
      %v9283 = vadd.f32 %v9251, -0.014264739
      %v9284 = vadd.f32 %v9252, -0.014264739
      %v9285 = vadd.f32 %v9253, -0.014264739
      %v9286 = vadd.f32 %v9254, -0.014264739
      %v9287 = vadd.f32 %v9255, -0.014264739
      %v9288 = vadd.f32 %v9256, -0.014264739
      %v9289 = vadd.f32 %v9257, -0.014264739
      %v9290 = vadd.f32 %v9258, -0.014264739
      %v9291 = vadd.f32 %v9259, -0.014264739
      %v9292 = vrcp.pop %v9260
      %v9293 = vrcp.pop %v9261
      %v9294 = vrcp.pop %v9262
      %v9295 = vrcp.pop %v9263
      %v9296 = vrcp.pop %v9264
      %v9297 = vrcp.pop %v9265
      %v9298 = vrcp.pop %v9266
      %v9299 = vrcp.pop %v9267
      %v9300 = vrcp.pop %v9268
      %v9301 = vrcp.pop %v9269
      %v9302 = vrcp.pop %v9270
      %v9303 = vrcp.pop %v9271
      %v9304 = vrcp.pop %v9272
      %v9305 = vrcp.pop %v9273
      %v9306 = vrcp.pop %v9274
      %v9307 = vrcp.pop %v9275
      %v9308 = vrcp.pop %v9276
      %v9309 = vrcp.pop %v9277
      %v9310 = vrcp.pop %v9278
      %v9311 = vrcp.pop %v9279
      %v9312 = vrcp.pop %v9280
      %v9313 = vrcp.pop %v9281
      %v9314 = vrcp.pop %v9282
      %v9315 = vrcp.pop %v9283
      %v9316 = vrcp.pop %v9284
      %v9317 = vrcp.pop %v9285
      %v9318 = vrcp.pop %v9286
      %v9319 = vrcp.pop %v9287
      %v9320 = vrcp.pop %v9288
      %v9321 = vrcp.pop %v9289
      %v9322 = vrcp.pop %v9290
      %v9323 = vrcp.pop %v9291
      %v9324 = vmul.f32 %v9004, %v9292
      %v9325 = vmul.f32 %v9005, %v9293
      %v9326 = vmul.f32 %v9006, %v9294
      %v9327 = vmul.f32 %v9007, %v9295
      %v9328 = vmul.f32 %v9008, %v9296
      %v9329 = vmul.f32 %v9009, %v9297
      %v9330 = vmul.f32 %v9010, %v9298
      %v9331 = vmul.f32 %v9011, %v9299
      %v9332 = vmul.f32 %v9012, %v9300
      %v9333 = vmul.f32 %v9013, %v9301
      %v9334 = vmul.f32 %v9014, %v9302
      %v9335 = vmul.f32 %v9015, %v9303
      %v9336 = vmul.f32 %v9016, %v9304
      %v9337 = vmul.f32 %v9017, %v9305
      %v9338 = vmul.f32 %v9018, %v9306
      %v9339 = vmul.f32 %v9019, %v9307
      %v9340 = vmul.f32 %v9020, %v9308
      %v9341 = vmul.f32 %v9021, %v9309
      %v9342 = vmul.f32 %v9022, %v9310
      %v9343 = vmul.f32 %v9023, %v9311
      %v9344 = vmul.f32 %v9024, %v9312
      %v9345 = vmul.f32 %v9025, %v9313
      %v9346 = vmul.f32 %v9026, %v9314
      %v9347 = vmul.f32 %v9027, %v9315
      %v9348 = vmul.f32 %v9028, %v9316
      %v9349 = vmul.f32 %v9029, %v9317
      %v9350 = vmul.f32 %v9030, %v9318
      %v9351 = vmul.f32 %v9031, %v9319
      %v9352 = vmul.f32 %v9032, %v9320
      %v9353 = vmul.f32 %v9033, %v9321
      %v9354 = vmul.f32 %v9034, %v9322
      %v9355 = vmul.f32 %v9035, %v9323
      %v9356 = vadd.f32 %v9324, 1.0
      %v9357 = vadd.f32 %v9325, 1.0
      %v9358 = vadd.f32 %v9326, 1.0
      %v9359 = vadd.f32 %v9327, 1.0
      %v9360 = vadd.f32 %v9328, 1.0
      %v9361 = vadd.f32 %v9329, 1.0
      %v9362 = vadd.f32 %v9330, 1.0
      %v9363 = vadd.f32 %v9331, 1.0
      %v9364 = vadd.f32 %v9332, 1.0
      %v9365 = vadd.f32 %v9333, 1.0
      %v9366 = vadd.f32 %v9334, 1.0
      %v9367 = vadd.f32 %v9335, 1.0
      %v9368 = vadd.f32 %v9336, 1.0
      %v9369 = vadd.f32 %v9337, 1.0
      %v9370 = vadd.f32 %v9338, 1.0
      %v9371 = vadd.f32 %v9339, 1.0
      %v9372 = vadd.f32 %v9340, 1.0
      %v9373 = vadd.f32 %v9341, 1.0
      %v9374 = vadd.f32 %v9342, 1.0
      %v9375 = vadd.f32 %v9343, 1.0
      %v9376 = vadd.f32 %v9344, 1.0
      %v9377 = vadd.f32 %v9345, 1.0
      %v9378 = vadd.f32 %v9346, 1.0
      %v9379 = vadd.f32 %v9347, 1.0
      %v9380 = vadd.f32 %v9348, 1.0
      %v9381 = vadd.f32 %v9349, 1.0
      %v9382 = vadd.f32 %v9350, 1.0
      %v9383 = vadd.f32 %v9351, 1.0
      %v9384 = vadd.f32 %v9352, 1.0
      %v9385 = vadd.f32 %v9353, 1.0
      %v9386 = vadd.f32 %v9354, 1.0
      %v9387 = vadd.f32 %v9355, 1.0
      %v9388 = vmul.f32 %v8460, %v9356
      %v9389 = vmul.f32 %v8461, %v9357
      %v9390 = vmul.f32 %v8462, %v9358
      %v9391 = vmul.f32 %v8463, %v9359
      %v9392 = vmul.f32 %v8464, %v9360
      %v9393 = vmul.f32 %v8465, %v9361
      %v9394 = vmul.f32 %v8466, %v9362
      %v9395 = vmul.f32 %v8467, %v9363
      %v9396 = vmul.f32 %v8468, %v9364
      %v9397 = vmul.f32 %v8469, %v9365
      %v9398 = vmul.f32 %v8470, %v9366
      %v9399 = vmul.f32 %v8471, %v9367
      %v9400 = vmul.f32 %v8472, %v9368
      %v9401 = vmul.f32 %v8473, %v9369
      %v9402 = vmul.f32 %v8474, %v9370
      %v9403 = vmul.f32 %v8475, %v9371
      %v9404 = vmul.f32 %v8476, %v9372
      %v9405 = vmul.f32 %v8477, %v9373
      %v9406 = vmul.f32 %v8478, %v9374
      %v9407 = vmul.f32 %v8479, %v9375
      %v9408 = vmul.f32 %v8480, %v9376
      %v9409 = vmul.f32 %v8481, %v9377
      %v9410 = vmul.f32 %v8482, %v9378
      %v9411 = vmul.f32 %v8483, %v9379
      %v9412 = vmul.f32 %v8484, %v9380
      %v9413 = vmul.f32 %v8485, %v9381
      %v9414 = vmul.f32 %v8486, %v9382
      %v9415 = vmul.f32 %v8487, %v9383
      %v9416 = vmul.f32 %v8488, %v9384
      %v9417 = vmul.f32 %v8489, %v9385
      %v9418 = vmul.f32 %v8490, %v9386
      %v9419 = vmul.f32 %v8491, %v9387
      %v9420 = vld [vmem:[%s24] sm:$0xff]
      %v9421 = vld [vmem:[%s25] sm:$0x1]
      %v9423 = vlaneseq
      %v9424 = vshrl.u32 %v9423, 7
      %v9425 = vsub.s32 0, %v9424
      %v9426 = vrot.slane %v9421, %v9425
      %v9429 = vsel %vm935, %v9388, 0
      %v9432 = vsel %vm935, %v9389, 0
      %v9435 = vsel %vm935, %v9390, 0
      %v9438 = vsel %vm935, %v9391, 0
      %v9441 = vsel %vm935, %v9392, 0
      %v9444 = vsel %vm935, %v9393, 0
      %v9447 = vsel %vm935, %v9394, 0
      %v9450 = vsel %vm935, %v9395, 0
      %v9453 = vsel %vm935, %v9396, 0
      %v9456 = vsel %vm935, %v9397, 0
      %v9459 = vsel %vm935, %v9398, 0
      %v9462 = vsel %vm935, %v9399, 0
      %v9465 = vsel %vm935, %v9400, 0
      %v9468 = vsel %vm935, %v9401, 0
      %v9471 = vsel %vm935, %v9402, 0
      %v9474 = vsel %vm935, %v9403, 0
      %v9477 = vsel %vm935, %v9404, 0
      %v9480 = vsel %vm935, %v9405, 0
      %v9483 = vsel %vm935, %v9406, 0
      %v9486 = vsel %vm935, %v9407, 0
      %v9489 = vsel %vm935, %v9408, 0
      %v9492 = vsel %vm935, %v9409, 0
      %v9495 = vsel %vm935, %v9410, 0
      %v9498 = vsel %vm935, %v9411, 0
      %v9501 = vsel %vm935, %v9412, 0
      %v9504 = vsel %vm935, %v9413, 0
      %v9507 = vsel %vm935, %v9414, 0
      %v9510 = vsel %vm935, %v9415, 0
      %v9513 = vsel %vm935, %v9416, 0
      %v9516 = vsel %vm935, %v9417, 0
      %v9519 = vsel %vm935, %v9418, 0
      %v9522 = vsel %vm935, %v9419, 0
      %9524 = vmatprep.subr.mxu0 0.0
      %9525 = vmatpush1.msra.mxu0 0.0
      %9526 = vmatprep.subr.mxu0 0.0
      %9527 = vmatpush1.msra.mxu0 0.0
      %9528 = vmatprep.subr.mxu0 0.0
      %9529 = vmatpush1.msra.mxu0 0.0
      %9530 = vmatprep.subr.mxu0 0.0
      %9531 = vmatpush1.msra.mxu0 0.0
      %9532 = vmatprep.subr.mxu0 0.0
      %9533 = vmatpush1.msra.mxu0 0.0
      %9534 = vmatprep.subr.mxu0 0.0
      %9535 = vmatpush1.msra.mxu0 0.0
      %9536 = vmatprep.subr.mxu0 0.0
      %9537 = vmatpush1.msra.mxu0 0.0
      %9538 = vmatprep.subr.mxu0 0.0
      %9539 = vmatpush1.msra.mxu0 0.0
      %9540 = vmatprep.subr.mxu0 0.0
      %9541 = vmatpush1.msra.mxu0 0.0
      %9542 = vmatprep.subr.mxu0 0.0
      %9543 = vmatpush1.msra.mxu0 0.0
      %9544 = vmatprep.subr.mxu0 0.0
      %9545 = vmatpush1.msra.mxu0 0.0
      %9546 = vmatprep.subr.mxu0 0.0
      %9547 = vmatpush1.msra.mxu0 0.0
      %9548 = vmatprep.subr.mxu0 0.0
      %9549 = vmatpush1.msra.mxu0 0.0
      %9550 = vmatprep.subr.mxu0 0.0
      %9551 = vmatpush1.msra.mxu0 0.0
      %9552 = vmatprep.subr.mxu0 0.0
      %9553 = vmatpush1.msra.mxu0 0.0
      %9554 = vmatprep.subr.mxu0 0.0
      %9555 = vmatpush1.msra.mxu0 %v9420
      %9556 = vmatprep.subr.mxu0 0.0
      %9557 = vmatpush2.msra.mxu0 0.0
      %9558 = vmatprep.subr.mxu0 0.0
      %9559 = vmatpush2.msra.mxu0 0.0
      %9560 = vmatprep.subr.mxu0 0.0
      %9561 = vmatpush2.msra.mxu0 0.0
      %9562 = vmatprep.subr.mxu0 0.0
      %9563 = vmatpush2.msra.mxu0 0.0
      %9564 = vmatprep.subr.mxu0 0.0
      %9565 = vmatpush2.msra.mxu0 0.0
      %9566 = vmatprep.subr.mxu0 0.0
      %9567 = vmatpush2.msra.mxu0 0.0
      %9568 = vmatprep.subr.mxu0 0.0
      %9569 = vmatpush2.msra.mxu0 0.0
      %9570 = vmatprep.subr.mxu0 0.0
      %9571 = vmatpush2.msra.mxu0 0.0
      %9572 = vmatprep.subr.mxu0 0.0
      %9573 = vmatpush2.msra.mxu0 0.0
      %9574 = vmatprep.subr.mxu0 0.0
      %9575 = vmatpush2.msra.mxu0 0.0
      %9576 = vmatprep.subr.mxu0 0.0
      %9577 = vmatpush2.msra.mxu0 0.0
      %9578 = vmatprep.subr.mxu0 0.0
      %9579 = vmatpush2.msra.mxu0 0.0
      %9580 = vmatprep.subr.mxu0 0.0
      %9581 = vmatpush2.msra.mxu0 0.0
      %9582 = vmatprep.subr.mxu0 0.0
      %9583 = vmatpush2.msra.mxu0 0.0
      %9584 = vmatprep.subr.mxu0 0.0
      %9585 = vmatpush2.msra.mxu0 0.0
      %9586 = vmatprep.subr.mxu0 0.0
      %9587 = vmatpush2.msra.mxu0 0.0
      %9588 = vmatprep.mubr.f32.mxu0 0.0
      %9589 = vmatmul.mubr.f32.gmra.mxu0 %v9429
      %v9590 = vpop.f32.mrf.mxu0
      %v9591 = vadd.f32 %v9426, %v9590
      %v9592 = vpop.f32.mrf.mxu0
      %9593 = vmatprep.mubr.f32.mxu0 0.0
      %9594 = vmatmul.mubr.f32.gmra.mxu0 %v9432
      %v9595 = vpop.f32.mrf.mxu0
      %v9596 = vadd.f32 %v9426, %v9595
      %v9597 = vpop.f32.mrf.mxu0
      %9598 = vmatprep.mubr.f32.mxu0 0.0
      %9599 = vmatmul.mubr.f32.gmra.mxu0 %v9435
      %v9600 = vpop.f32.mrf.mxu0
      %v9601 = vadd.f32 %v9426, %v9600
      %v9602 = vpop.f32.mrf.mxu0
      %9603 = vmatprep.mubr.f32.mxu0 0.0
      %9604 = vmatmul.mubr.f32.gmra.mxu0 %v9438
      %v9605 = vpop.f32.mrf.mxu0
      %v9606 = vadd.f32 %v9426, %v9605
      %v9607 = vpop.f32.mrf.mxu0
      %9608 = vmatprep.mubr.f32.mxu0 0.0
      %9609 = vmatmul.mubr.f32.gmra.mxu0 %v9441
      %v9610 = vpop.f32.mrf.mxu0
      %v9611 = vadd.f32 %v9426, %v9610
      %v9612 = vpop.f32.mrf.mxu0
      %9613 = vmatprep.mubr.f32.mxu0 0.0
      %9614 = vmatmul.mubr.f32.gmra.mxu0 %v9444
      %v9615 = vpop.f32.mrf.mxu0
      %v9616 = vadd.f32 %v9426, %v9615
      %v9617 = vpop.f32.mrf.mxu0
      %9618 = vmatprep.mubr.f32.mxu0 0.0
      %9619 = vmatmul.mubr.f32.gmra.mxu0 %v9447
      %v9620 = vpop.f32.mrf.mxu0
      %v9621 = vadd.f32 %v9426, %v9620
      %v9622 = vpop.f32.mrf.mxu0
      %9623 = vmatprep.mubr.f32.mxu0 0.0
      %9624 = vmatmul.mubr.f32.gmra.mxu0 %v9450
      %v9625 = vpop.f32.mrf.mxu0
      %v9626 = vadd.f32 %v9426, %v9625
      %v9627 = vpop.f32.mrf.mxu0
      %9628 = vmatprep.mubr.f32.mxu0 0.0
      %9629 = vmatmul.mubr.f32.gmra.mxu0 %v9453
      %v9630 = vpop.f32.mrf.mxu0
      %v9631 = vadd.f32 %v9426, %v9630
      %v9632 = vpop.f32.mrf.mxu0
      %9633 = vmatprep.mubr.f32.mxu0 0.0
      %9634 = vmatmul.mubr.f32.gmra.mxu0 %v9456
      %v9635 = vpop.f32.mrf.mxu0
      %v9636 = vadd.f32 %v9426, %v9635
      %v9637 = vpop.f32.mrf.mxu0
      %9638 = vmatprep.mubr.f32.mxu0 0.0
      %9639 = vmatmul.mubr.f32.gmra.mxu0 %v9459
      %v9640 = vpop.f32.mrf.mxu0
      %v9641 = vadd.f32 %v9426, %v9640
      %v9642 = vpop.f32.mrf.mxu0
      %9643 = vmatprep.mubr.f32.mxu0 0.0
      %9644 = vmatmul.mubr.f32.gmra.mxu0 %v9462
      %v9645 = vpop.f32.mrf.mxu0
      %v9646 = vadd.f32 %v9426, %v9645
      %v9647 = vpop.f32.mrf.mxu0
      %9648 = vmatprep.mubr.f32.mxu0 0.0
      %9649 = vmatmul.mubr.f32.gmra.mxu0 %v9465
      %v9650 = vpop.f32.mrf.mxu0
      %v9651 = vadd.f32 %v9426, %v9650
      %v9652 = vpop.f32.mrf.mxu0
      %9653 = vmatprep.mubr.f32.mxu0 0.0
      %9654 = vmatmul.mubr.f32.gmra.mxu0 %v9468
      %v9655 = vpop.f32.mrf.mxu0
      %v9656 = vadd.f32 %v9426, %v9655
      %v9657 = vpop.f32.mrf.mxu0
      %9658 = vmatprep.mubr.f32.mxu0 0.0
      %9659 = vmatmul.mubr.f32.gmra.mxu0 %v9471
      %v9660 = vpop.f32.mrf.mxu0
      %v9661 = vadd.f32 %v9426, %v9660
      %v9662 = vpop.f32.mrf.mxu0
      %9663 = vmatprep.mubr.f32.mxu0 0.0
      %9664 = vmatmul.mubr.f32.gmra.mxu0 %v9474
      %v9665 = vpop.f32.mrf.mxu0
      %v9666 = vadd.f32 %v9426, %v9665
      %v9667 = vpop.f32.mrf.mxu0
      %9668 = vmatprep.mubr.f32.mxu0 0.0
      %9669 = vmatmul.mubr.f32.gmra.mxu0 %v9477
      %v9670 = vpop.f32.mrf.mxu0
      %v9671 = vadd.f32 %v9426, %v9670
      %v9672 = vpop.f32.mrf.mxu0
      %9673 = vmatprep.mubr.f32.mxu0 0.0
      %9674 = vmatmul.mubr.f32.gmra.mxu0 %v9480
      %v9675 = vpop.f32.mrf.mxu0
      %v9676 = vadd.f32 %v9426, %v9675
      %v9677 = vpop.f32.mrf.mxu0
      %9678 = vmatprep.mubr.f32.mxu0 0.0
      %9679 = vmatmul.mubr.f32.gmra.mxu0 %v9483
      %v9680 = vpop.f32.mrf.mxu0
      %v9681 = vadd.f32 %v9426, %v9680
      %v9682 = vpop.f32.mrf.mxu0
      %9683 = vmatprep.mubr.f32.mxu0 0.0
      %9684 = vmatmul.mubr.f32.gmra.mxu0 %v9486
      %v9685 = vpop.f32.mrf.mxu0
      %v9686 = vadd.f32 %v9426, %v9685
      %v9687 = vpop.f32.mrf.mxu0
      %9688 = vmatprep.mubr.f32.mxu0 0.0
      %9689 = vmatmul.mubr.f32.gmra.mxu0 %v9489
      %v9690 = vpop.f32.mrf.mxu0
      %v9691 = vadd.f32 %v9426, %v9690
      %v9692 = vpop.f32.mrf.mxu0
      %9693 = vmatprep.mubr.f32.mxu0 0.0
      %9694 = vmatmul.mubr.f32.gmra.mxu0 %v9492
      %v9695 = vpop.f32.mrf.mxu0
      %v9696 = vadd.f32 %v9426, %v9695
      %v9697 = vpop.f32.mrf.mxu0
      %9698 = vmatprep.mubr.f32.mxu0 0.0
      %9699 = vmatmul.mubr.f32.gmra.mxu0 %v9495
      %v9700 = vpop.f32.mrf.mxu0
      %v9701 = vadd.f32 %v9426, %v9700
      %v9702 = vpop.f32.mrf.mxu0
      %9703 = vmatprep.mubr.f32.mxu0 0.0
      %9704 = vmatmul.mubr.f32.gmra.mxu0 %v9498
      %v9705 = vpop.f32.mrf.mxu0
      %v9706 = vadd.f32 %v9426, %v9705
      %v9707 = vpop.f32.mrf.mxu0
      %9708 = vmatprep.mubr.f32.mxu0 0.0
      %9709 = vmatmul.mubr.f32.gmra.mxu0 %v9501
      %v9710 = vpop.f32.mrf.mxu0
      %v9711 = vadd.f32 %v9426, %v9710
      %v9712 = vpop.f32.mrf.mxu0
      %9713 = vmatprep.mubr.f32.mxu0 0.0
      %9714 = vmatmul.mubr.f32.gmra.mxu0 %v9504
      %v9715 = vpop.f32.mrf.mxu0
      %v9716 = vadd.f32 %v9426, %v9715
      %v9717 = vpop.f32.mrf.mxu0
      %9718 = vmatprep.mubr.f32.mxu0 0.0
      %9719 = vmatmul.mubr.f32.gmra.mxu0 %v9507
      %v9720 = vpop.f32.mrf.mxu0
      %v9721 = vadd.f32 %v9426, %v9720
      %v9722 = vpop.f32.mrf.mxu0
      %9723 = vmatprep.mubr.f32.mxu0 0.0
      %9724 = vmatmul.mubr.f32.gmra.mxu0 %v9510
      %v9725 = vpop.f32.mrf.mxu0
      %v9726 = vadd.f32 %v9426, %v9725
      %v9727 = vpop.f32.mrf.mxu0
      %9728 = vmatprep.mubr.f32.mxu0 0.0
      %9729 = vmatmul.mubr.f32.gmra.mxu0 %v9513
      %v9730 = vpop.f32.mrf.mxu0
      %v9731 = vadd.f32 %v9426, %v9730
      %v9732 = vpop.f32.mrf.mxu0
      %9733 = vmatprep.mubr.f32.mxu0 0.0
      %9734 = vmatmul.mubr.f32.gmra.mxu0 %v9516
      %v9735 = vpop.f32.mrf.mxu0
      %v9736 = vadd.f32 %v9426, %v9735
      %v9737 = vpop.f32.mrf.mxu0
      %9738 = vmatprep.mubr.f32.mxu0 0.0
      %9739 = vmatmul.mubr.f32.gmra.mxu0 %v9519
      %v9740 = vpop.f32.mrf.mxu0
      %v9741 = vadd.f32 %v9426, %v9740
      %v9742 = vpop.f32.mrf.mxu0
      %9743 = vmatprep.mubr.f32.mxu0 0.0
      %9744 = vmatmul.mubr.f32.gmra.mxu0 %v9522
      %v9745 = vpop.f32.mrf.mxu0
      %v9746 = vadd.f32 %v9426, %v9745
      %v9747 = vpop.f32.mrf.mxu0
      %9748 = vdwg.mxu0
      %v9749 = vtanh.pop %v9591
      %v9750 = vtanh.pop %v9596
      %v9751 = vtanh.pop %v9601
      %v9752 = vtanh.pop %v9606
      %v9753 = vtanh.pop %v9611
      %v9754 = vtanh.pop %v9616
      %v9755 = vtanh.pop %v9621
      %v9756 = vtanh.pop %v9626
      %v9757 = vtanh.pop %v9631
      %v9758 = vtanh.pop %v9636
      %v9759 = vtanh.pop %v9641
      %v9760 = vtanh.pop %v9646
      %v9761 = vtanh.pop %v9651
      %v9762 = vtanh.pop %v9656
      %v9763 = vtanh.pop %v9661
      %v9764 = vtanh.pop %v9666
      %v9765 = vtanh.pop %v9671
      %v9766 = vtanh.pop %v9676
      %v9767 = vtanh.pop %v9681
      %v9768 = vtanh.pop %v9686
      %v9769 = vtanh.pop %v9691
      %v9770 = vtanh.pop %v9696
      %v9771 = vtanh.pop %v9701
      %v9772 = vtanh.pop %v9706
      %v9773 = vtanh.pop %v9711
      %v9774 = vtanh.pop %v9716
      %v9775 = vtanh.pop %v9721
      %v9776 = vtanh.pop %v9726
      %v9777 = vtanh.pop %v9731
      %v9778 = vtanh.pop %v9736
      %v9779 = vtanh.pop %v9741
      %v9780 = vtanh.pop %v9746
      %vm9781 = vcmask 23552
      %9782 = vst.msk [vmem:[%s791] sm:$0xff] %vm9781, %v9749
      %9783 = vst.msk [vmem:[%s791 + $0x8] sm:$0xff] %vm9781, %v9750
      %9784 = vst.msk [vmem:[%s791 + $0x10] sm:$0xff] %vm9781, %v9751
      %9785 = vst.msk [vmem:[%s791 + $0x18] sm:$0xff] %vm9781, %v9752
      %9786 = vst.msk [vmem:[%s791 + $0x20] sm:$0xff] %vm9781, %v9753
      %9787 = vst.msk [vmem:[%s791 + $0x28] sm:$0xff] %vm9781, %v9754
      %9788 = vst.msk [vmem:[%s791 + $0x30] sm:$0xff] %vm9781, %v9755
      %9789 = vst.msk [vmem:[%s791 + $0x38] sm:$0xff] %vm9781, %v9756
      %9790 = vst.msk [vmem:[%s791 + $0x40] sm:$0xff] %vm9781, %v9757
      %9791 = vst.msk [vmem:[%s791 + $0x48] sm:$0xff] %vm9781, %v9758
      %9792 = vst.msk [vmem:[%s791 + $0x50] sm:$0xff] %vm9781, %v9759
      %9793 = vst.msk [vmem:[%s791 + $0x58] sm:$0xff] %vm9781, %v9760
      %9794 = vst.msk [vmem:[%s791 + $0x60] sm:$0xff] %vm9781, %v9761
      %9795 = vst.msk [vmem:[%s791 + $0x68] sm:$0xff] %vm9781, %v9762
      %9796 = vst.msk [vmem:[%s791 + $0x70] sm:$0xff] %vm9781, %v9763
      %9797 = vst.msk [vmem:[%s791 + $0x78] sm:$0xff] %vm9781, %v9764
      %9798 = vst.msk [vmem:[%s791 + $0x80] sm:$0xff] %vm9781, %v9765
      %9799 = vst.msk [vmem:[%s791 + $0x88] sm:$0xff] %vm9781, %v9766
      %9800 = vst.msk [vmem:[%s791 + $0x90] sm:$0xff] %vm9781, %v9767
      %9801 = vst.msk [vmem:[%s791 + $0x98] sm:$0xff] %vm9781, %v9768
      %9802 = vst.msk [vmem:[%s791 + $0xa0] sm:$0xff] %vm9781, %v9769
      %9803 = vst.msk [vmem:[%s791 + $0xa8] sm:$0xff] %vm9781, %v9770
      %9804 = vst.msk [vmem:[%s791 + $0xb0] sm:$0xff] %vm9781, %v9771
      %9805 = vst.msk [vmem:[%s791 + $0xb8] sm:$0xff] %vm9781, %v9772
      %9806 = vst.msk [vmem:[%s791 + $0xc0] sm:$0xff] %vm9781, %v9773
      %9807 = vst.msk [vmem:[%s791 + $0xc8] sm:$0xff] %vm9781, %v9774
      %9808 = vst.msk [vmem:[%s791 + $0xd0] sm:$0xff] %vm9781, %v9775
      %9809 = vst.msk [vmem:[%s791 + $0xd8] sm:$0xff] %vm9781, %v9776
      %9810 = vst.msk [vmem:[%s791 + $0xe0] sm:$0xff] %vm9781, %v9777
      %9811 = vst.msk [vmem:[%s791 + $0xe8] sm:$0xff] %vm9781, %v9778
      %9812 = vst.msk [vmem:[%s791 + $0xf0] sm:$0xff] %vm9781, %v9779
      %9813 = vst.msk [vmem:[%s791 + $0xf8] sm:$0xff] %vm9781, %v9780
      %p9814 = scmp.lt.s32.totalorder %s37, 1
      %s9815 = scalar_select %p9814, %s37, 1
      %s9816 = smul.addr %s9815, 32
      %s9817 = smul.addr %s9816, 8
      %s9818 = scalar_lea.vmem %s26, %s9817
      // Predicated region
      $region125: #{tpu_custom_call.1} parent=123 // pred_check
        %p9819 = pneg %p606
      $region126: #{tpu_custom_call.1} parent=123 // pred_check_branch
        %9821 = sbr.rel (%p9819) target = $region128
      $region127: #{tpu_custom_call.1} parent=123 // pred_region
        _
      $region128: #{tpu_custom_call.1} parent=123 // pred_fallthru
        _
    $region124: #{tpu_custom_call.1} parent=5 // pred_fallthru
      _
    %p9822 = scmp.le.s32.totalorder 2, %s32
    // Predicated region
    $region129: #{tpu_custom_call.1} parent=5 // pred_check
      %p9823 = pneg %p9822
    $region130: #{tpu_custom_call.1} parent=5 // pred_check_branch
      %9825 = sbr.rel (%p9823) target = $region132
    $region131: #{tpu_custom_call.1} parent=5 // pred_region
      %s9826 = ssub.s32 %s32, 2
      // Predicated region
      $region133: #{tpu_custom_call.1} parent=131 // pred_check
        %p9827 = pneg %p612
      $region134: #{tpu_custom_call.1} parent=131 // pred_check_branch
        %9829 = sbr.rel (%p9827) target = $region136
      $region135: #{tpu_custom_call.1} parent=131 // pred_region
        %p9830 = scmp.lt.s32.totalorder %s38, 1
        %s9831 = scalar_select %p9830, %s38, 1
        %s9832 = smul.addr %s9831, 32
        %s9833 = smul.addr %s9832, 8
        %s9834 = scalar_lea.vmem %s26, %s9833
      $region136: #{tpu_custom_call.1} parent=131 // pred_fallthru
        _
    $region132: #{tpu_custom_call.1} parent=5 // pred_fallthru
      _
  $region6: #{tpu_custom_call.1} parent=0 // loop_footer
    %s36 = sadd.s32 1, %s32
  $region7: #{tpu_custom_call.1} parent=0 // loop_footer_branch
    %31 = sbr.rel target = $region3
  $region8: #{tpu_custom_call.1} parent=0 // loop_exit
    _

</llo_original>
